<compile_context>
chip_gen: v7x
topology: tpu7x:2x2x1
jax: 0.10.0
libtpu: 0.0.40
codegen_flags: <defaults>
</compile_context>

<pallas_src>
import functools

import jax
import jax.numpy as jnp
from jax import lax
from jax.experimental import pallas as pl
from jax.experimental.pallas import tpu as pltpu

EPS = 1e-5
_LANE = 128


def _round_up(x, m):
    return ((x + m - 1) // m) * m


def _vmem_limit_bytes():
    """Generation-aware scoped-VMEM limit (conservative 64 MiB fallback)."""
    cap = 64 * 1024 * 1024
    try:
        info = pltpu.get_tpu_info()
        cap = int(getattr(info, "vmem_capacity_bytes", cap))
    except Exception:
        pass
    return max(16 * 1024 * 1024, min((cap * 3) // 4, 112 * 1024 * 1024))


def _pick_tile_rows(h, w, cin_p, cout_p, budget_bytes):
    """Largest row-tile whose per-step working set fits the VMEM budget."""
    def step_bytes(th):
        m = th * w
        win = (th + 2) * (w + 2)
        b = 2 * 2 * (th + 2) * w * cin_p      # input tile + halos, dbl-buffered bf16
        b += 2 * 2 * m * cout_p               # output tile, dbl-buffered bf16
        b += 4 * m * cout_p                   # f32 accumulator
        b += 4 * win * cin_p                  # BN'd window (f32, fused path)
        b += 2 * win * cin_p                  # padded bf16 window
        b += 2 * 2 * m * 3 * cin_p            # kh-stacked operands (headroom)
        return b

    th = max(1, min(h, 256))
    while th > 1 and step_bytes(th) > budget_bytes:
        th = max(1, th // 2)
    return th


# ----------------------------------------------------------------------------
# Kernel A: (optional fused input BN+ReLU) -> 3x3 conv -> bf16 output
#           + per-tile per-channel (sum, sumsq) BatchNorm partials.
# ----------------------------------------------------------------------------
def _conv3x3_kernel(x_ref, top_ref, bot_ref, scale_ref, shift_ref, w_ref,
                    y_ref, stats_ref, *, fuse_input_bn, h_valid, mask_out_rows):
    th = x_ref.shape[1]          # tile rows
    w_cols = x_ref.shape[2]      # image width
    cin = x_ref.shape[3]         # padded input channels (lane-dense)
    cout = y_ref.shape[3]        # padded output channels
    i = pl.program_id(1)

    mid = x_ref[...].reshape(th, w_cols, cin)
    top = top_ref[...].reshape(1, w_cols, cin)
    bot = bot_ref[...].reshape(1, w_cols, cin)

    if fuse_input_bn:
        # BatchNorm(previous conv) + ReLU fused into the input read (f32 math).
        scale = scale_ref[...].reshape(1, 1, cin)
        shift = shift_ref[...].reshape(1, 1, cin)

        def bn(v):
            return jnp.maximum(v.astype(jnp.float32) * scale + shift, 0.0)

        mid, top, bot = bn(mid), bn(top), bn(bot)
        if mask_out_rows:
            # Stored H-pad rows are zero pre-BN; re-zero them post-BN.
            r = lax.broadcasted_iota(jnp.int32, (th, 1, 1), 0) + i * th
            mid = jnp.where(r < h_valid, mid, 0.0)
        # Bottom halo row acts as the image's bottom zero padding when needed.
        bot = jnp.where(i * th + th < h_valid, bot, jnp.zeros_like(bot))
    # Top halo row is the (nonexistent) row above the image for the first tile.
    top = jnp.where(i > 0, top, jnp.zeros_like(top))

    # Assemble the (th+2, W+2, Cin) window; zero W-border added post-BN.
    xt = jnp.concatenate([top, mid, bot], axis=0).astype(jnp.bfloat16)
    zc = jnp.zeros((th + 2, 1, cin), jnp.bfloat16)
    xp = jnp.concatenate([zc, xt, zc], axis=1)

    # 3 accumulating MXU matmuls, K = 3*Cin (kw taps stacked per kh).
    m = th * w_cols
    acc = jnp.zeros((m, cout), jnp.float32)
    for kh in range(3):
        op = jnp.concatenate(
            [xp[kh:kh + th, kw:kw + w_cols, :] for kw in range(3)], axis=-1
        ).reshape(m, 3 * cin)
        acc = acc + jnp.dot(op, w_ref[kh], preferred_element_type=jnp.float32)

    if mask_out_rows:
        # Zero outputs for padded rows (keeps y and the BN stats clean).
        r = lax.broadcasted_iota(jnp.int32, (th, 1, 1), 0) + i * th
        acc = jnp.where(r < h_valid, acc.reshape(th, w_cols, cout),
                        0.0).reshape(m, cout)

    y_ref[...] = acc.reshape(1, th, w_cols, cout).astype(y_ref.dtype)

    # BatchNorm partials via a ones-row MXU matmul (avoids XLU sublane reduce).
    # NOTE: two-phase E[x^2]-E[x]^2 in f32; fine for activation-scale data.
    ones = jnp.ones((1, m), jnp.float32)
    s = jnp.dot(ones, acc, preferred_element_type=jnp.float32)
    ss = jnp.dot(ones, acc * acc, preferred_element_type=jnp.float32)
    stats_ref[...] = jnp.concatenate([s, ss], axis=0).reshape(1, 1, 2, cout)


def _conv3x3_bn_stats(x, w_packed, in_scale, in_shift, *, th, h_t, h_valid,
                      fuse_input_bn, vmem_limit):
    n, rows_in, w, cin_p = x.shape
    _, _, cout_p = w_packed.shape
    ht = h_t // th
    mask_out_rows = (h_valid % th) != 0

    kernel = functools.partial(_conv3x3_kernel, fuse_input_bn=fuse_input_bn,
                               h_valid=h_valid, mask_out_rows=mask_out_rows)

    flops = 2 * n * h_t * w * (9 * cin_p) * cout_p + 4 * n * h_t * w * cout_p
    bytes_accessed = (x.size * x.dtype.itemsize + w_packed.size * 2
                      + n * h_t * w * cout_p * 2 + n * ht * 2 * cout_p * 4)

    grid_spec = pltpu.PrefetchScalarGridSpec(
        num_scalar_prefetch=0,
        grid=(n, ht),
        in_specs=[
            # main tile rows [i*th, (i+1)*th)
            pl.BlockSpec((1, th, w, cin_p), lambda b, i: (b, i, 0, 0)),
            # halo row above (clamped; zeroed in-kernel for the first tile)
            pl.BlockSpec((1, 1, w, cin_p),
                         lambda b, i: (b, jnp.maximum(i * th - 1, 0), 0, 0)),
            # halo row below (clamped; zeroed in-kernel when past the image)
            pl.BlockSpec((1, 1, w, cin_p),
                         lambda b, i: (b, jnp.minimum(i * th + th, rows_in - 1),
                                       0, 0)),
            pl.BlockSpec((1, cin_p), lambda b, i: (0, 0)),        # fused-BN scale
            pl.BlockSpec((1, cin_p), lambda b, i: (0, 0)),        # fused-BN shift
            pl.BlockSpec((3, 3 * cin_p, cout_p), lambda b, i: (0, 0, 0)),  # weights
        ],
        out_specs=(
            pl.BlockSpec((1, th, w, cout_p), lambda b, i: (b, i, 0, 0)),
            pl.BlockSpec((1, 1, 2, cout_p), lambda b, i: (b, i, 0, 0)),
        ),
    )

    y, stats = pl.pallas_call(
        kernel,
        out_shape=(jax.ShapeDtypeStruct((n, h_t, w, cout_p), jnp.bfloat16),
                   jax.ShapeDtypeStruct((n, ht, 2, cout_p), jnp.float32)),
        grid_spec=grid_spec,
        compiler_params=pltpu.CompilerParams(
            dimension_semantics=("parallel", "parallel"),
            vmem_limit_bytes=vmem_limit),
        cost_estimate=pl.CostEstimate(flops=flops, transcendentals=0,
                                      bytes_accessed=bytes_accessed),
    )(x, x, x, in_scale, in_shift, w_packed)
    return y, stats


# ----------------------------------------------------------------------------
# Kernel B: final BatchNorm apply + ReLU (elementwise, bf16 in, f32 out).
# ----------------------------------------------------------------------------
def _bn_relu_kernel(y_ref, scale_ref, shift_ref, o_ref):
    c = y_ref.shape[3]
    scale = scale_ref[...].reshape(1, 1, 1, c)
    shift = shift_ref[...].reshape(1, 1, 1, c)
    o_ref[...] = jnp.maximum(y_ref[...].astype(jnp.float32) * scale + shift, 0.0)


def _bn_relu_apply(y, scale, shift, *, vmem_limit):
    n, h_t, w, c = y.shape
    per_row = w * c * (2 * 2 + 4 * 2)            # bf16 in + f32 out, dbl-buffered
    th2 = max(1, min(h_t, (vmem_limit // 3) // max(per_row, 1)))
    while h_t % th2:
        th2 -= 1

    grid_spec = pltpu.PrefetchScalarGridSpec(
        num_scalar_prefetch=0,
        grid=(n, h_t // th2),
        in_specs=[
            pl.BlockSpec((1, th2, w, c), lambda b, i: (b, i, 0, 0)),
            pl.BlockSpec((1, c), lambda b, i: (0, 0)),
            pl.BlockSpec((1, c), lambda b, i: (0, 0)),
        ],
        out_specs=pl.BlockSpec((1, th2, w, c), lambda b, i: (b, i, 0, 0)),
    )
    return pl.pallas_call(
        _bn_relu_kernel,
        out_shape=jax.ShapeDtypeStruct((n, h_t, w, c), jnp.float32),
        grid_spec=grid_spec,
        compiler_params=pltpu.CompilerParams(
            dimension_semantics=("parallel", "parallel"),
            vmem_limit_bytes=vmem_limit),
        cost_estimate=pl.CostEstimate(flops=2 * n * h_t * w * c, transcendentals=0,
                                      bytes_accessed=n * h_t * w * c * 6),
    )(y, scale, shift)


# ----------------------------------------------------------------------------
# Glue: parameter packing, stats reduction, full DoubleConv forward.
# ----------------------------------------------------------------------------
def _pack_weight(w_33io, cin_p, cout_p):
    """(3,3,Cin,Cout) -> (3, 3*Cin_p, Cout_p) bf16, kw taps stacked along K."""
    _, _, cin, cout = w_33io.shape
    wp = jnp.zeros((3, 3, cin_p, cout_p), jnp.float32)
    wp = wp.at[:, :, :cin, :cout].set(w_33io)
    return wp.reshape(3, 3 * cin_p, cout_p).astype(jnp.bfloat16)


def _pad_vec(v, cp):
    return jnp.pad(v, (0, cp - v.shape[0]))


def _bn_fold(stats, gamma_p, beta_p, count):
    """Reduce per-tile (sum, sumsq) partials -> BN scale/shift (f32, tiny)."""
    tot = jnp.sum(stats, axis=(0, 1))                       # (2, Cp)
    mean = tot[0] / count
    var = jnp.maximum(tot[1] / count - mean * mean, 0.0)    # biased variance
    inv_std = lax.rsqrt(var + EPS)
    scale = gamma_p * inv_std
    shift = beta_p - mean * scale
    return scale.reshape(1, -1), shift.reshape(1, -1)


def double_conv(x_nchw, params):
    """DoubleConv forward.  Input/output NCHW to match the PyTorch module."""
    n, cin, h, w = x_nchw.shape
    cout = params["g1"].shape[0]
    cin_p = _round_up(cin, _LANE)
    cout_p = _round_up(cout, _LANE)

    vmem_limit = _vmem_limit_bytes()
    th = _pick_tile_rows(h, w, max(cin_p, cout_p), cout_p, vmem_limit // 2)
    h_t = _round_up(h, th)
    count = n * h * w

    # NHWC, lane-dense channels, bf16 MXU operands, H padded to h_t + 1
    # (the extra zero rows serve as bottom conv padding + tile alignment).
    x = jnp.transpose(x_nchw, (0, 2, 3, 1))
    x = jnp.pad(x, ((0, 0), (0, h_t + 1 - h), (0, 0), (0, cin_p - cin)))
    x = x.astype(jnp.bfloat16)

    w1 = _pack_weight(params["w1"], cin_p, cout_p)
    w2 = _pack_weight(params["w2"], cout_p, cout_p)
    g1 = _pad_vec(params["g1"], cout_p)
    bt1 = _pad_vec(params["bt1"], cout_p)
    g2 = _pad_vec(params["g2"], cout_p)
    bt2 = _pad_vec(params["bt2"], cout_p)
    # Conv biases (b1/b2) are intentionally NOT applied: a bias before a
    # batch-stats BatchNorm cancels exactly in the normalized output.
    dummy = jnp.zeros((1, cin_p), jnp.float32)

    # conv1: raw bf16 output + per-tile BN1 partials.
    y1, st1 = _conv3x3_bn_stats(x, w1, dummy, dummy, th=th, h_t=h_t, h_valid=h,
                                fuse_input_bn=False, vmem_limit=vmem_limit)
    s1, sh1 = _bn_fold(st1, g1, bt1, count)

    # conv2: BN1 + ReLU fused into the input read; bf16 output + BN2 partials.
    y2, st2 = _conv3x3_bn_stats(y1, w2, s1, sh1, th=th, h_t=h_t, h_valid=h,
                                fuse_input_bn=True, vmem_limit=vmem_limit)
    s2, sh2 = _bn_fold(st2, g2, bt2, count)

    out = _bn_relu_apply(y2, s2, sh2, vmem_limit=vmem_limit)  # (N,Ht,W,Cp) f32
    out = out[:, :h, :, :cout]
    return jnp.transpose(out, (0, 3, 1, 2))                   # NCHW


def init_params(key, in_channels, out_channels):
    k1, k2, k3, k4 = jax.random.split(key, 4)
    w1 = 0.1 * jax.random.normal(k1, (3, 3, in_channels, out_channels), jnp.float32)
    b1 = 0.1 * jax.random.normal(k2, (out_channels,), jnp.float32)
    w2 = 0.1 * jax.random.normal(k3, (3, 3, out_channels, out_channels), jnp.float32)
    b2 = 0.1 * jax.random.normal(k4, (out_channels,), jnp.float32)
    g1 = jnp.ones((out_channels,), jnp.float32)
    bt1 = jnp.zeros((out_channels,), jnp.float32)
    g2 = jnp.ones((out_channels,), jnp.float32)
    bt2 = jnp.zeros((out_channels,), jnp.float32)
    return dict(w1=w1, b1=b1, g1=g1, bt1=bt1, w2=w2, b2=b2, g2=g2, bt2=bt2)


def _reference(x_nchw, params):
    """Pure-JAX reference of the PyTorch training-mode forward.

    Conv operands are rounded to bf16 to mirror the kernel's bf16 MXU operands
    (accumulation and all BatchNorm math stay in f32).  Biases are kept here
    (PyTorch semantics); they cancel through BatchNorm exactly.
    """
    def r(t):
        return t.astype(jnp.bfloat16).astype(jnp.float32)

    def conv(x, w_33io, b):
        w_oihw = jnp.transpose(r(w_33io), (3, 2, 0, 1))
        y = lax.conv_general_dilated(
            r(x), w_oihw, window_strides=(1, 1), padding="SAME",
            dimension_numbers=("NCHW", "OIHW", "NCHW"),
            precision=lax.Precision.HIGHEST,
            preferred_element_type=jnp.float32)
        return y + b[None, :, None, None]

    def bn_relu(y, g, bt):
        mean = jnp.mean(y, axis=(0, 2, 3), keepdims=True)
        var = jnp.mean((y - mean) ** 2, axis=(0, 2, 3), keepdims=True)
        yh = (y - mean) * lax.rsqrt(var + EPS)
        yh = yh * g[None, :, None, None] + bt[None, :, None, None]
        return jnp.maximum(yh, 0.0)

    h = bn_relu(conv(x_nchw, params["w1"], params["b1"]), params["g1"], params["bt1"])
    h = bn_relu(conv(h, params["w2"], params["b2"]), params["g2"], params["bt2"])
    return h


if __name__ == "__main__":
    key = jax.random.PRNGKey(0)
    kx, kp = jax.random.split(key)

    N, Cin, Cout, H, W = 2, 4, 8, 16, 16
    x = jax.random.normal(kx, (N, Cin, H, W), jnp.float32)
    params = init_params(kp, Cin, Cout)

    out = jax.block_until_ready(jax.jit(double_conv)(x, params))
    ref = jax.block_until_ready(jax.jit(_reference)(x, params))

    assert out.shape == (N, Cout, H, W), out.shape
    # Tolerance accounts for bf16 MXU operands and bf16 intermediate storage
    # (all accumulation and BatchNorm math in f32).
    err = float(jnp.max(jnp.abs(out - ref)))
    assert jnp.allclose(out, ref, atol=3e-2, rtol=3e-2), err
    print("KERNEL_OK")
</pallas_src>

<mosaic_0001>
module attributes {stable_mosaic.version = 11 : i64} {
  func.func @_conv3x3_kernel(%arg0: i32, %arg1: i32, %arg2: memref<1x16x16x128xbf16, #tpu.memory_space<vmem>>, %arg3: memref<1x1x16x128xbf16, #tpu.memory_space<vmem>>, %arg4: memref<1x1x16x128xbf16, #tpu.memory_space<vmem>>, %arg5: memref<1x128xf32, #tpu.memory_space<vmem>>, %arg6: memref<1x128xf32, #tpu.memory_space<vmem>>, %arg7: memref<3x384x128xbf16, #tpu.memory_space<vmem>>, %arg8: memref<1x16x16x128xbf16, #tpu.memory_space<vmem>>, %arg9: memref<1x1x2x128xf32, #tpu.memory_space<vmem>>) attributes {dimension_semantics = [#tpu.dimension_semantics<parallel>, #tpu.dimension_semantics<parallel>], iteration_bounds = array<i64: 2, 1>, scalar_prefetch = 0 : i64, scratch_operands = 0 : i64, tpu.core_type = #tpu.core_type<tc>, window_params = [{transform_indices = @transform_0, window_bounds = array<i64: 1, 16, 16, 128>}, {transform_indices = @transform_1, window_bounds = array<i64: 1, 1, 16, 128>}, {transform_indices = @transform_2, window_bounds = array<i64: 1, 1, 16, 128>}, {pipeline_mode = #tpu.pipeline_mode<synchronous>, transform_indices = @transform_3, window_bounds = array<i64: 1, 128>}, {pipeline_mode = #tpu.pipeline_mode<synchronous>, transform_indices = @transform_4, window_bounds = array<i64: 1, 128>}, {pipeline_mode = #tpu.pipeline_mode<synchronous>, transform_indices = @transform_5, window_bounds = array<i64: 3, 384, 128>}, {transform_indices = @transform_6, window_bounds = array<i64: 1, 16, 16, 128>}, {transform_indices = @transform_7, window_bounds = array<i64: 1, 1, 2, 128>}]} {
    %c0 = arith.constant 0 : index
    %c0_0 = arith.constant 0 : index
    %c0_1 = arith.constant 0 : index
    %c0_2 = arith.constant 0 : index
    %0 = vector.load %arg2[%c0, %c0_0, %c0_1, %c0_2] : memref<1x16x16x128xbf16, #tpu.memory_space<vmem>>, vector<1x16x16x128xbf16>
    %1 = vector.shape_cast %0 : vector<1x16x16x128xbf16> to vector<16x16x128xbf16>
    %c0_3 = arith.constant 0 : index
    %c0_4 = arith.constant 0 : index
    %c0_5 = arith.constant 0 : index
    %c0_6 = arith.constant 0 : index
    %2 = vector.load %arg3[%c0_3, %c0_4, %c0_5, %c0_6] : memref<1x1x16x128xbf16, #tpu.memory_space<vmem>>, vector<1x1x16x128xbf16>
    %3 = vector.shape_cast %2 : vector<1x1x16x128xbf16> to vector<1x16x128xbf16>
    %c0_7 = arith.constant 0 : index
    %c0_8 = arith.constant 0 : index
    %c0_9 = arith.constant 0 : index
    %c0_10 = arith.constant 0 : index
    %4 = vector.load %arg4[%c0_7, %c0_8, %c0_9, %c0_10] : memref<1x1x16x128xbf16, #tpu.memory_space<vmem>>, vector<1x1x16x128xbf16>
    %5 = vector.shape_cast %4 : vector<1x1x16x128xbf16> to vector<1x16x128xbf16>
    %c0_i32 = arith.constant 0 : i32
    %6 = arith.cmpi sgt, %arg1, %c0_i32 : i32
    %cst = arith.constant 0.000000e+00 : bf16
    %7 = vector.broadcast %cst : bf16 to vector<1x16x128xbf16>
    %8 = arith.select %6, %3, %7 : vector<1x16x128xbf16>
    %9 = tpu.concatenate %8, %1, %5 in 0 : vector<1x16x128xbf16>, vector<16x16x128xbf16>, vector<1x16x128xbf16> -> vector<18x16x128xbf16>
    %cst_11 = arith.constant 0.000000e+00 : bf16
    %10 = vector.broadcast %cst_11 : bf16 to vector<18x1x128xbf16>
    %11 = tpu.concatenate %10, %9, %10 in 1 : vector<18x1x128xbf16>, vector<18x16x128xbf16>, vector<18x1x128xbf16> -> vector<18x18x128xbf16>
    %cst_12 = arith.constant 0.000000e+00 : f32
    %12 = vector.broadcast %cst_12 : f32 to vector<256x128xf32>
    %13 = vector.extract_strided_slice %11 {offsets = [0, 0, 0], sizes = [16, 16, 128], strides = [1, 1, 1]} : vector<18x18x128xbf16> to vector<16x16x128xbf16>
    %14 = vector.extract_strided_slice %11 {offsets = [0, 1, 0], sizes = [16, 16, 128], strides = [1, 1, 1]} : vector<18x18x128xbf16> to vector<16x16x128xbf16>
    %15 = vector.extract_strided_slice %11 {offsets = [0, 2, 0], sizes = [16, 16, 128], strides = [1, 1, 1]} : vector<18x18x128xbf16> to vector<16x16x128xbf16>
    %16 = tpu.concatenate %13, %14, %15 in 2 : vector<16x16x128xbf16>, vector<16x16x128xbf16>, vector<16x16x128xbf16> -> vector<16x16x384xbf16>
    %17 = vector.shape_cast %16 : vector<16x16x384xbf16> to vector<256x384xbf16>
    %c0_13 = arith.constant 0 : index
    %c0_14 = arith.constant 0 : index
    %c0_15 = arith.constant 0 : index
    %18 = vector.load %arg7[%c0_13, %c0_14, %c0_15] : memref<3x384x128xbf16, #tpu.memory_space<vmem>>, vector<1x384x128xbf16>
    %19 = vector.shape_cast %18 : vector<1x384x128xbf16> to vector<384x128xbf16>
    %cst_16 = arith.constant dense<0.000000e+00> : vector<256x128xf32>
    %20 = tpu.matmul %17, %19, %cst_16 {dimension_numbers = #tpu.dot_dimension_numbers<[1], [0], [0], [1], [0, 0, 1, 1], [], []>} : vector<256x384xbf16>, vector<384x128xbf16>, vector<256x128xf32> -> vector<256x128xf32>
    %21 = arith.addf %12, %20 : vector<256x128xf32>
    %22 = vector.extract_strided_slice %11 {offsets = [1, 0, 0], sizes = [16, 16, 128], strides = [1, 1, 1]} : vector<18x18x128xbf16> to vector<16x16x128xbf16>
    %23 = vector.extract_strided_slice %11 {offsets = [1, 1, 0], sizes = [16, 16, 128], strides = [1, 1, 1]} : vector<18x18x128xbf16> to vector<16x16x128xbf16>
    %24 = vector.extract_strided_slice %11 {offsets = [1, 2, 0], sizes = [16, 16, 128], strides = [1, 1, 1]} : vector<18x18x128xbf16> to vector<16x16x128xbf16>
    %25 = tpu.concatenate %22, %23, %24 in 2 : vector<16x16x128xbf16>, vector<16x16x128xbf16>, vector<16x16x128xbf16> -> vector<16x16x384xbf16>
    %26 = vector.shape_cast %25 : vector<16x16x384xbf16> to vector<256x384xbf16>
    %c1 = arith.constant 1 : index
    %c0_17 = arith.constant 0 : index
    %c0_18 = arith.constant 0 : index
    %27 = vector.load %arg7[%c1, %c0_17, %c0_18] : memref<3x384x128xbf16, #tpu.memory_space<vmem>>, vector<1x384x128xbf16>
    %28 = vector.shape_cast %27 : vector<1x384x128xbf16> to vector<384x128xbf16>
    %cst_19 = arith.constant dense<0.000000e+00> : vector<256x128xf32>
    %29 = tpu.matmul %26, %28, %cst_19 {dimension_numbers = #tpu.dot_dimension_numbers<[1], [0], [0], [1], [0, 0, 1, 1], [], []>} : vector<256x384xbf16>, vector<384x128xbf16>, vector<256x128xf32> -> vector<256x128xf32>
    %30 = arith.addf %21, %29 : vector<256x128xf32>
    %31 = vector.extract_strided_slice %11 {offsets = [2, 0, 0], sizes = [16, 16, 128], strides = [1, 1, 1]} : vector<18x18x128xbf16> to vector<16x16x128xbf16>
    %32 = vector.extract_strided_slice %11 {offsets = [2, 1, 0], sizes = [16, 16, 128], strides = [1, 1, 1]} : vector<18x18x128xbf16> to vector<16x16x128xbf16>
    %33 = vector.extract_strided_slice %11 {offsets = [2, 2, 0], sizes = [16, 16, 128], strides = [1, 1, 1]} : vector<18x18x128xbf16> to vector<16x16x128xbf16>
    %34 = tpu.concatenate %31, %32, %33 in 2 : vector<16x16x128xbf16>, vector<16x16x128xbf16>, vector<16x16x128xbf16> -> vector<16x16x384xbf16>
    %35 = vector.shape_cast %34 : vector<16x16x384xbf16> to vector<256x384xbf16>
    %c2 = arith.constant 2 : index
    %c0_20 = arith.constant 0 : index
    %c0_21 = arith.constant 0 : index
    %36 = vector.load %arg7[%c2, %c0_20, %c0_21] : memref<3x384x128xbf16, #tpu.memory_space<vmem>>, vector<1x384x128xbf16>
    %37 = vector.shape_cast %36 : vector<1x384x128xbf16> to vector<384x128xbf16>
    %cst_22 = arith.constant dense<0.000000e+00> : vector<256x128xf32>
    %38 = tpu.matmul %35, %37, %cst_22 {dimension_numbers = #tpu.dot_dimension_numbers<[1], [0], [0], [1], [0, 0, 1, 1], [], []>} : vector<256x384xbf16>, vector<384x128xbf16>, vector<256x128xf32> -> vector<256x128xf32>
    %39 = arith.addf %30, %38 : vector<256x128xf32>
    %40 = vector.shape_cast %39 : vector<256x128xf32> to vector<1x16x16x128xf32>
    %41 = arith.truncf %40 : vector<1x16x16x128xf32> to vector<1x16x16x128xbf16>
    %c0_23 = arith.constant 0 : index
    %c0_24 = arith.constant 0 : index
    %c0_25 = arith.constant 0 : index
    %c0_26 = arith.constant 0 : index
    %42 = vector.load %arg8[%c0_23, %c0_24, %c0_25, %c0_26] : memref<1x16x16x128xbf16, #tpu.memory_space<vmem>>, vector<1x16x16x128xbf16>
    tpu.vector_store %arg8[%c0_23, %c0_24, %c0_25, %c0_26], %41 {strides = array<i32>} : memref<1x16x16x128xbf16, #tpu.memory_space<vmem>>, vector<1x16x16x128xbf16>,
    %cst_27 = arith.constant 1.000000e+00 : f32
    %43 = vector.broadcast %cst_27 : f32 to vector<1x256xf32>
    %cst_28 = arith.constant dense<0.000000e+00> : vector<1x128xf32>
    %44 = tpu.matmul %43, %39, %cst_28 {dimension_numbers = #tpu.dot_dimension_numbers<[1], [0], [0], [1], [0, 0, 1, 1], [], []>} : vector<1x256xf32>, vector<256x128xf32>, vector<1x128xf32> -> vector<1x128xf32>
    %45 = arith.mulf %39, %39 : vector<256x128xf32>
    %cst_29 = arith.constant dense<0.000000e+00> : vector<1x128xf32>
    %46 = tpu.matmul %43, %45, %cst_29 {dimension_numbers = #tpu.dot_dimension_numbers<[1], [0], [0], [1], [0, 0, 1, 1], [], []>} : vector<1x256xf32>, vector<256x128xf32>, vector<1x128xf32> -> vector<1x128xf32>
    %47 = tpu.concatenate %44, %46 in 0 : vector<1x128xf32>, vector<1x128xf32> -> vector<2x128xf32>
    %48 = vector.shape_cast %47 : vector<2x128xf32> to vector<1x1x2x128xf32>
    %c0_30 = arith.constant 0 : index
    %c0_31 = arith.constant 0 : index
    %c0_32 = arith.constant 0 : index
    %c0_33 = arith.constant 0 : index
    %49 = vector.load %arg9[%c0_30, %c0_31, %c0_32, %c0_33] : memref<1x1x2x128xf32, #tpu.memory_space<vmem>>, vector<1x1x2x128xf32>
    tpu.vector_store %arg9[%c0_30, %c0_31, %c0_32, %c0_33], %48 {strides = array<i32>} : memref<1x1x2x128xf32, #tpu.memory_space<vmem>>, vector<1x1x2x128xf32>,
    return
  }
  func.func @transform_0(%arg0: i32, %arg1: i32) -> (i32, i32, i32, i32) {
    %c0_i32 = arith.constant 0 : i32
    %c0_i32_0 = arith.constant 0 : i32
    %c0_i32_1 = arith.constant 0 : i32
    return %arg0, %arg1, %c0_i32, %c0_i32_0 : i32, i32, i32, i32
  }
  func.func @transform_1(%arg0: i32, %arg1: i32) -> (i32, i32, i32, i32) {
    %c16_i32 = arith.constant 16 : i32
    %0 = arith.muli %arg1, %c16_i32 : i32
    %c1_i32 = arith.constant 1 : i32
    %1 = arith.subi %0, %c1_i32 : i32
    %c0_i32 = arith.constant 0 : i32
    %2 = arith.maxsi %1, %c0_i32 : i32
    %c0_i32_0 = arith.constant 0 : i32
    %c0_i32_1 = arith.constant 0 : i32
    %c0_i32_2 = arith.constant 0 : i32
    return %arg0, %2, %c0_i32_0, %c0_i32_1 : i32, i32, i32, i32
  }
  func.func @transform_2(%arg0: i32, %arg1: i32) -> (i32, i32, i32, i32) {
    %c16_i32 = arith.constant 16 : i32
    %0 = arith.muli %arg1, %c16_i32 : i32
    %c16_i32_0 = arith.constant 16 : i32
    %1 = arith.addi %0, %c16_i32_0 : i32
    %c16_i32_1 = arith.constant 16 : i32
    %2 = arith.minsi %1, %c16_i32_1 : i32
    %c0_i32 = arith.constant 0 : i32
    %c0_i32_2 = arith.constant 0 : i32
    %c0_i32_3 = arith.constant 0 : i32
    return %arg0, %2, %c0_i32, %c0_i32_2 : i32, i32, i32, i32
  }
  func.func @transform_3(%arg0: i32, %arg1: i32) -> (i32, i32) {
    %c0_i32 = arith.constant 0 : i32
    %c0_i32_0 = arith.constant 0 : i32
    %c0_i32_1 = arith.constant 0 : i32
    return %c0_i32, %c0_i32_0 : i32, i32
  }
  func.func @transform_4(%arg0: i32, %arg1: i32) -> (i32, i32) {
    %c0_i32 = arith.constant 0 : i32
    %c0_i32_0 = arith.constant 0 : i32
    %c0_i32_1 = arith.constant 0 : i32
    return %c0_i32, %c0_i32_0 : i32, i32
  }
  func.func @transform_5(%arg0: i32, %arg1: i32) -> (i32, i32, i32) {
    %c0_i32 = arith.constant 0 : i32
    %c0_i32_0 = arith.constant 0 : i32
    %c0_i32_1 = arith.constant 0 : i32
    %c0_i32_2 = arith.constant 0 : i32
    return %c0_i32, %c0_i32_0, %c0_i32_1 : i32, i32, i32
  }
  func.func @transform_6(%arg0: i32, %arg1: i32) -> (i32, i32, i32, i32) {
    %c0_i32 = arith.constant 0 : i32
    %c0_i32_0 = arith.constant 0 : i32
    %c0_i32_1 = arith.constant 0 : i32
    return %arg0, %arg1, %c0_i32, %c0_i32_0 : i32, i32, i32, i32
  }
  func.func @transform_7(%arg0: i32, %arg1: i32) -> (i32, i32, i32, i32) {
    %c0_i32 = arith.constant 0 : i32
    %c0_i32_0 = arith.constant 0 : i32
    %c0_i32_1 = arith.constant 0 : i32
    return %arg0, %arg1, %c0_i32, %c0_i32_0 : i32, i32, i32, i32
  }
}

module attributes {stable_mosaic.version = 11 : i64} {
  func.func @_conv3x3_kernel(%arg0: i32, %arg1: i32, %arg2: memref<1x16x16x128xbf16, #tpu.memory_space<vmem>>, %arg3: memref<1x1x16x128xbf16, #tpu.memory_space<vmem>>, %arg4: memref<1x1x16x128xbf16, #tpu.memory_space<vmem>>, %arg5: memref<1x128xf32, #tpu.memory_space<vmem>>, %arg6: memref<1x128xf32, #tpu.memory_space<vmem>>, %arg7: memref<3x384x128xbf16, #tpu.memory_space<vmem>>, %arg8: memref<1x16x16x128xbf16, #tpu.memory_space<vmem>>, %arg9: memref<1x1x2x128xf32, #tpu.memory_space<vmem>>) attributes {dimension_semantics = [#tpu.dimension_semantics<parallel>, #tpu.dimension_semantics<parallel>], iteration_bounds = array<i64: 2, 1>, scalar_prefetch = 0 : i64, scratch_operands = 0 : i64, tpu.core_type = #tpu.core_type<tc>, window_params = [{transform_indices = @transform_0, window_bounds = array<i64: 1, 16, 16, 128>}, {transform_indices = @transform_1, window_bounds = array<i64: 1, 1, 16, 128>}, {transform_indices = @transform_2, window_bounds = array<i64: 1, 1, 16, 128>}, {pipeline_mode = #tpu.pipeline_mode<synchronous>, transform_indices = @transform_3, window_bounds = array<i64: 1, 128>}, {pipeline_mode = #tpu.pipeline_mode<synchronous>, transform_indices = @transform_4, window_bounds = array<i64: 1, 128>}, {pipeline_mode = #tpu.pipeline_mode<synchronous>, transform_indices = @transform_5, window_bounds = array<i64: 3, 384, 128>}, {transform_indices = @transform_6, window_bounds = array<i64: 1, 16, 16, 128>}, {transform_indices = @transform_7, window_bounds = array<i64: 1, 1, 2, 128>}]} {
    %c0 = arith.constant 0 : index
    %c0_0 = arith.constant 0 : index
    %c0_1 = arith.constant 0 : index
    %c0_2 = arith.constant 0 : index
    %0 = vector.load %arg2[%c0, %c0_0, %c0_1, %c0_2] : memref<1x16x16x128xbf16, #tpu.memory_space<vmem>>, vector<1x16x16x128xbf16>
    %1 = vector.shape_cast %0 : vector<1x16x16x128xbf16> to vector<16x16x128xbf16>
    %c0_3 = arith.constant 0 : index
    %c0_4 = arith.constant 0 : index
    %c0_5 = arith.constant 0 : index
    %c0_6 = arith.constant 0 : index
    %2 = vector.load %arg3[%c0_3, %c0_4, %c0_5, %c0_6] : memref<1x1x16x128xbf16, #tpu.memory_space<vmem>>, vector<1x1x16x128xbf16>
    %3 = vector.shape_cast %2 : vector<1x1x16x128xbf16> to vector<1x16x128xbf16>
    %c0_7 = arith.constant 0 : index
    %c0_8 = arith.constant 0 : index
    %c0_9 = arith.constant 0 : index
    %c0_10 = arith.constant 0 : index
    %4 = vector.load %arg4[%c0_7, %c0_8, %c0_9, %c0_10] : memref<1x1x16x128xbf16, #tpu.memory_space<vmem>>, vector<1x1x16x128xbf16>
    %5 = vector.shape_cast %4 : vector<1x1x16x128xbf16> to vector<1x16x128xbf16>
    %c0_11 = arith.constant 0 : index
    %c0_12 = arith.constant 0 : index
    %6 = vector.load %arg5[%c0_11, %c0_12] : memref<1x128xf32, #tpu.memory_space<vmem>>, vector<1x128xf32>
    %7 = vector.shape_cast %6 : vector<1x128xf32> to vector<1x1x128xf32>
    %c0_13 = arith.constant 0 : index
    %c0_14 = arith.constant 0 : index
    %8 = vector.load %arg6[%c0_13, %c0_14] : memref<1x128xf32, #tpu.memory_space<vmem>>, vector<1x128xf32>
    %9 = vector.shape_cast %8 : vector<1x128xf32> to vector<1x1x128xf32>
    %10 = arith.extf %1 : vector<16x16x128xbf16> to vector<16x16x128xf32>
    %11 = vector.broadcast %7 : vector<1x1x128xf32> to vector<16x16x128xf32>
    %12 = arith.mulf %10, %11 : vector<16x16x128xf32>
    %13 = vector.broadcast %9 : vector<1x1x128xf32> to vector<16x16x128xf32>
    %14 = arith.addf %12, %13 : vector<16x16x128xf32>
    %cst = arith.constant 0.000000e+00 : f32
    %15 = vector.broadcast %cst : f32 to vector<16x16x128xf32>
    %16 = arith.maximumf %14, %15 : vector<16x16x128xf32>
    %17 = arith.extf %3 : vector<1x16x128xbf16> to vector<1x16x128xf32>
    %18 = vector.broadcast %7 : vector<1x1x128xf32> to vector<1x16x128xf32>
    %19 = arith.mulf %17, %18 : vector<1x16x128xf32>
    %20 = vector.broadcast %9 : vector<1x1x128xf32> to vector<1x16x128xf32>
    %21 = arith.addf %19, %20 : vector<1x16x128xf32>
    %cst_15 = arith.constant 0.000000e+00 : f32
    %22 = vector.broadcast %cst_15 : f32 to vector<1x16x128xf32>
    %23 = arith.maximumf %21, %22 : vector<1x16x128xf32>
    %24 = arith.extf %5 : vector<1x16x128xbf16> to vector<1x16x128xf32>
    %25 = vector.broadcast %7 : vector<1x1x128xf32> to vector<1x16x128xf32>
    %26 = arith.mulf %24, %25 : vector<1x16x128xf32>
    %27 = vector.broadcast %9 : vector<1x1x128xf32> to vector<1x16x128xf32>
    %28 = arith.addf %26, %27 : vector<1x16x128xf32>
    %cst_16 = arith.constant 0.000000e+00 : f32
    %29 = vector.broadcast %cst_16 : f32 to vector<1x16x128xf32>
    %30 = arith.maximumf %28, %29 : vector<1x16x128xf32>
    %c16_i32 = arith.constant 16 : i32
    %31 = arith.muli %arg1, %c16_i32 : i32
    %c16_i32_17 = arith.constant 16 : i32
    %32 = arith.addi %31, %c16_i32_17 : i32
    %c16_i32_18 = arith.constant 16 : i32
    %33 = arith.cmpi slt, %32, %c16_i32_18 : i32
    %cst_19 = arith.constant 0.000000e+00 : f32
    %34 = vector.broadcast %cst_19 : f32 to vector<1x16x128xf32>
    %35 = arith.select %33, %30, %34 : vector<1x16x128xf32>
    %c0_i32 = arith.constant 0 : i32
    %36 = arith.cmpi sgt, %arg1, %c0_i32 : i32
    %cst_20 = arith.constant 0.000000e+00 : f32
    %37 = vector.broadcast %cst_20 : f32 to vector<1x16x128xf32>
    %38 = arith.select %36, %23, %37 : vector<1x16x128xf32>
    %39 = tpu.concatenate %38, %16, %35 in 0 : vector<1x16x128xf32>, vector<16x16x128xf32>, vector<1x16x128xf32> -> vector<18x16x128xf32>
    %40 = arith.truncf %39 : vector<18x16x128xf32> to vector<18x16x128xbf16>
    %cst_21 = arith.constant 0.000000e+00 : bf16
    %41 = vector.broadcast %cst_21 : bf16 to vector<18x1x128xbf16>
    %42 = tpu.concatenate %41, %40, %41 in 1 : vector<18x1x128xbf16>, vector<18x16x128xbf16>, vector<18x1x128xbf16> -> vector<18x18x128xbf16>
    %cst_22 = arith.constant 0.000000e+00 : f32
    %43 = vector.broadcast %cst_22 : f32 to vector<256x128xf32>
    %44 = vector.extract_strided_slice %42 {offsets = [0, 0, 0], sizes = [16, 16, 128], strides = [1, 1, 1]} : vector<18x18x128xbf16> to vector<16x16x128xbf16>
    %45 = vector.extract_strided_slice %42 {offsets = [0, 1, 0], sizes = [16, 16, 128], strides = [1, 1, 1]} : vector<18x18x128xbf16> to vector<16x16x128xbf16>
    %46 = vector.extract_strided_slice %42 {offsets = [0, 2, 0], sizes = [16, 16, 128], strides = [1, 1, 1]} : vector<18x18x128xbf16> to vector<16x16x128xbf16>
    %47 = tpu.concatenate %44, %45, %46 in 2 : vector<16x16x128xbf16>, vector<16x16x128xbf16>, vector<16x16x128xbf16> -> vector<16x16x384xbf16>
    %48 = vector.shape_cast %47 : vector<16x16x384xbf16> to vector<256x384xbf16>
    %c0_23 = arith.constant 0 : index
    %c0_24 = arith.constant 0 : index
    %c0_25 = arith.constant 0 : index
    %49 = vector.load %arg7[%c0_23, %c0_24, %c0_25] : memref<3x384x128xbf16, #tpu.memory_space<vmem>>, vector<1x384x128xbf16>
    %50 = vector.shape_cast %49 : vector<1x384x128xbf16> to vector<384x128xbf16>
    %cst_26 = arith.constant dense<0.000000e+00> : vector<256x128xf32>
    %51 = tpu.matmul %48, %50, %cst_26 {dimension_numbers = #tpu.dot_dimension_numbers<[1], [0], [0], [1], [0, 0, 1, 1], [], []>} : vector<256x384xbf16>, vector<384x128xbf16>, vector<256x128xf32> -> vector<256x128xf32>
    %52 = arith.addf %43, %51 : vector<256x128xf32>
    %53 = vector.extract_strided_slice %42 {offsets = [1, 0, 0], sizes = [16, 16, 128], strides = [1, 1, 1]} : vector<18x18x128xbf16> to vector<16x16x128xbf16>
    %54 = vector.extract_strided_slice %42 {offsets = [1, 1, 0], sizes = [16, 16, 128], strides = [1, 1, 1]} : vector<18x18x128xbf16> to vector<16x16x128xbf16>
    %55 = vector.extract_strided_slice %42 {offsets = [1, 2, 0], sizes = [16, 16, 128], strides = [1, 1, 1]} : vector<18x18x128xbf16> to vector<16x16x128xbf16>
    %56 = tpu.concatenate %53, %54, %55 in 2 : vector<16x16x128xbf16>, vector<16x16x128xbf16>, vector<16x16x128xbf16> -> vector<16x16x384xbf16>
    %57 = vector.shape_cast %56 : vector<16x16x384xbf16> to vector<256x384xbf16>
    %c1 = arith.constant 1 : index
    %c0_27 = arith.constant 0 : index
    %c0_28 = arith.constant 0 : index
    %58 = vector.load %arg7[%c1, %c0_27, %c0_28] : memref<3x384x128xbf16, #tpu.memory_space<vmem>>, vector<1x384x128xbf16>
    %59 = vector.shape_cast %58 : vector<1x384x128xbf16> to vector<384x128xbf16>
    %cst_29 = arith.constant dense<0.000000e+00> : vector<256x128xf32>
    %60 = tpu.matmul %57, %59, %cst_29 {dimension_numbers = #tpu.dot_dimension_numbers<[1], [0], [0], [1], [0, 0, 1, 1], [], []>} : vector<256x384xbf16>, vector<384x128xbf16>, vector<256x128xf32> -> vector<256x128xf32>
    %61 = arith.addf %52, %60 : vector<256x128xf32>
    %62 = vector.extract_strided_slice %42 {offsets = [2, 0, 0], sizes = [16, 16, 128], strides = [1, 1, 1]} : vector<18x18x128xbf16> to vector<16x16x128xbf16>
    %63 = vector.extract_strided_slice %42 {offsets = [2, 1, 0], sizes = [16, 16, 128], strides = [1, 1, 1]} : vector<18x18x128xbf16> to vector<16x16x128xbf16>
    %64 = vector.extract_strided_slice %42 {offsets = [2, 2, 0], sizes = [16, 16, 128], strides = [1, 1, 1]} : vector<18x18x128xbf16> to vector<16x16x128xbf16>
    %65 = tpu.concatenate %62, %63, %64 in 2 : vector<16x16x128xbf16>, vector<16x16x128xbf16>, vector<16x16x128xbf16> -> vector<16x16x384xbf16>
    %66 = vector.shape_cast %65 : vector<16x16x384xbf16> to vector<256x384xbf16>
    %c2 = arith.constant 2 : index
    %c0_30 = arith.constant 0 : index
    %c0_31 = arith.constant 0 : index
    %67 = vector.load %arg7[%c2, %c0_30, %c0_31] : memref<3x384x128xbf16, #tpu.memory_space<vmem>>, vector<1x384x128xbf16>
    %68 = vector.shape_cast %67 : vector<1x384x128xbf16> to vector<384x128xbf16>
    %cst_32 = arith.constant dense<0.000000e+00> : vector<256x128xf32>
    %69 = tpu.matmul %66, %68, %cst_32 {dimension_numbers = #tpu.dot_dimension_numbers<[1], [0], [0], [1], [0, 0, 1, 1], [], []>} : vector<256x384xbf16>, vector<384x128xbf16>, vector<256x128xf32> -> vector<256x128xf32>
    %70 = arith.addf %61, %69 : vector<256x128xf32>
    %71 = vector.shape_cast %70 : vector<256x128xf32> to vector<1x16x16x128xf32>
    %72 = arith.truncf %71 : vector<1x16x16x128xf32> to vector<1x16x16x128xbf16>
    %c0_33 = arith.constant 0 : index
    %c0_34 = arith.constant 0 : index
    %c0_35 = arith.constant 0 : index
    %c0_36 = arith.constant 0 : index
    %73 = vector.load %arg8[%c0_33, %c0_34, %c0_35, %c0_36] : memref<1x16x16x128xbf16, #tpu.memory_space<vmem>>, vector<1x16x16x128xbf16>
    tpu.vector_store %arg8[%c0_33, %c0_34, %c0_35, %c0_36], %72 {strides = array<i32>} : memref<1x16x16x128xbf16, #tpu.memory_space<vmem>>, vector<1x16x16x128xbf16>,
    %cst_37 = arith.constant 1.000000e+00 : f32
    %74 = vector.broadcast %cst_37 : f32 to vector<1x256xf32>
    %cst_38 = arith.constant dense<0.000000e+00> : vector<1x128xf32>
    %75 = tpu.matmul %74, %70, %cst_38 {dimension_numbers = #tpu.dot_dimension_numbers<[1], [0], [0], [1], [0, 0, 1, 1], [], []>} : vector<1x256xf32>, vector<256x128xf32>, vector<1x128xf32> -> vector<1x128xf32>
    %76 = arith.mulf %70, %70 : vector<256x128xf32>
    %cst_39 = arith.constant dense<0.000000e+00> : vector<1x128xf32>
    %77 = tpu.matmul %74, %76, %cst_39 {dimension_numbers = #tpu.dot_dimension_numbers<[1], [0], [0], [1], [0, 0, 1, 1], [], []>} : vector<1x256xf32>, vector<256x128xf32>, vector<1x128xf32> -> vector<1x128xf32>
    %78 = tpu.concatenate %75, %77 in 0 : vector<1x128xf32>, vector<1x128xf32> -> vector<2x128xf32>
    %79 = vector.shape_cast %78 : vector<2x128xf32> to vector<1x1x2x128xf32>
    %c0_40 = arith.constant 0 : index
    %c0_41 = arith.constant 0 : index
    %c0_42 = arith.constant 0 : index
    %c0_43 = arith.constant 0 : index
    %80 = vector.load %arg9[%c0_40, %c0_41, %c0_42, %c0_43] : memref<1x1x2x128xf32, #tpu.memory_space<vmem>>, vector<1x1x2x128xf32>
    tpu.vector_store %arg9[%c0_40, %c0_41, %c0_42, %c0_43], %79 {strides = array<i32>} : memref<1x1x2x128xf32, #tpu.memory_space<vmem>>, vector<1x1x2x128xf32>,
    return
  }
  func.func @transform_0(%arg0: i32, %arg1: i32) -> (i32, i32, i32, i32) {
    %c0_i32 = arith.constant 0 : i32
    %c0_i32_0 = arith.constant 0 : i32
    %c0_i32_1 = arith.constant 0 : i32
    return %arg0, %arg1, %c0_i32, %c0_i32_0 : i32, i32, i32, i32
  }
  func.func @transform_1(%arg0: i32, %arg1: i32) -> (i32, i32, i32, i32) {
    %c16_i32 = arith.constant 16 : i32
    %0 = arith.muli %arg1, %c16_i32 : i32
    %c1_i32 = arith.constant 1 : i32
    %1 = arith.subi %0, %c1_i32 : i32
    %c0_i32 = arith.constant 0 : i32
    %2 = arith.maxsi %1, %c0_i32 : i32
    %c0_i32_0 = arith.constant 0 : i32
    %c0_i32_1 = arith.constant 0 : i32
    %c0_i32_2 = arith.constant 0 : i32
    return %arg0, %2, %c0_i32_0, %c0_i32_1 : i32, i32, i32, i32
  }
  func.func @transform_2(%arg0: i32, %arg1: i32) -> (i32, i32, i32, i32) {
    %c16_i32 = arith.constant 16 : i32
    %0 = arith.muli %arg1, %c16_i32 : i32
    %c16_i32_0 = arith.constant 16 : i32
    %1 = arith.addi %0, %c16_i32_0 : i32
    %c15_i32 = arith.constant 15 : i32
    %2 = arith.minsi %1, %c15_i32 : i32
    %c0_i32 = arith.constant 0 : i32
    %c0_i32_1 = arith.constant 0 : i32
    %c0_i32_2 = arith.constant 0 : i32
    return %arg0, %2, %c0_i32, %c0_i32_1 : i32, i32, i32, i32
  }
  func.func @transform_3(%arg0: i32, %arg1: i32) -> (i32, i32) {
    %c0_i32 = arith.constant 0 : i32
    %c0_i32_0 = arith.constant 0 : i32
    %c0_i32_1 = arith.constant 0 : i32
    return %c0_i32, %c0_i32_0 : i32, i32
  }
  func.func @transform_4(%arg0: i32, %arg1: i32) -> (i32, i32) {
    %c0_i32 = arith.constant 0 : i32
    %c0_i32_0 = arith.constant 0 : i32
    %c0_i32_1 = arith.constant 0 : i32
    return %c0_i32, %c0_i32_0 : i32, i32
  }
  func.func @transform_5(%arg0: i32, %arg1: i32) -> (i32, i32, i32) {
    %c0_i32 = arith.constant 0 : i32
    %c0_i32_0 = arith.constant 0 : i32
    %c0_i32_1 = arith.constant 0 : i32
    %c0_i32_2 = arith.constant 0 : i32
    return %c0_i32, %c0_i32_0, %c0_i32_1 : i32, i32, i32
  }
  func.func @transform_6(%arg0: i32, %arg1: i32) -> (i32, i32, i32, i32) {
    %c0_i32 = arith.constant 0 : i32
    %c0_i32_0 = arith.constant 0 : i32
    %c0_i32_1 = arith.constant 0 : i32
    return %arg0, %arg1, %c0_i32, %c0_i32_0 : i32, i32, i32, i32
  }
  func.func @transform_7(%arg0: i32, %arg1: i32) -> (i32, i32, i32, i32) {
    %c0_i32 = arith.constant 0 : i32
    %c0_i32_0 = arith.constant 0 : i32
    %c0_i32_1 = arith.constant 0 : i32
    return %arg0, %arg1, %c0_i32, %c0_i32_0 : i32, i32, i32, i32
  }
}

module attributes {stable_mosaic.version = 11 : i64} {
  func.func @_bn_relu_kernel(%arg0: i32, %arg1: i32, %arg2: memref<1x16x16x128xbf16, #tpu.memory_space<vmem>>, %arg3: memref<1x128xf32, #tpu.memory_space<vmem>>, %arg4: memref<1x128xf32, #tpu.memory_space<vmem>>, %arg5: memref<1x16x16x128xf32, #tpu.memory_space<vmem>>) attributes {dimension_semantics = [#tpu.dimension_semantics<parallel>, #tpu.dimension_semantics<parallel>], iteration_bounds = array<i64: 2, 1>, scalar_prefetch = 0 : i64, scratch_operands = 0 : i64, tpu.core_type = #tpu.core_type<tc>, window_params = [{transform_indices = @transform_0, window_bounds = array<i64: 1, 16, 16, 128>}, {pipeline_mode = #tpu.pipeline_mode<synchronous>, transform_indices = @transform_1, window_bounds = array<i64: 1, 128>}, {pipeline_mode = #tpu.pipeline_mode<synchronous>, transform_indices = @transform_2, window_bounds = array<i64: 1, 128>}, {transform_indices = @transform_3, window_bounds = array<i64: 1, 16, 16, 128>}]} {
    %c0 = arith.constant 0 : index
    %c0_0 = arith.constant 0 : index
    %0 = vector.load %arg3[%c0, %c0_0] : memref<1x128xf32, #tpu.memory_space<vmem>>, vector<1x128xf32>
    %1 = vector.shape_cast %0 : vector<1x128xf32> to vector<1x1x1x128xf32>
    %c0_1 = arith.constant 0 : index
    %c0_2 = arith.constant 0 : index
    %2 = vector.load %arg4[%c0_1, %c0_2] : memref<1x128xf32, #tpu.memory_space<vmem>>, vector<1x128xf32>
    %3 = vector.shape_cast %2 : vector<1x128xf32> to vector<1x1x1x128xf32>
    %c0_3 = arith.constant 0 : index
    %c0_4 = arith.constant 0 : index
    %c0_5 = arith.constant 0 : index
    %c0_6 = arith.constant 0 : index
    %4 = vector.load %arg2[%c0_3, %c0_4, %c0_5, %c0_6] : memref<1x16x16x128xbf16, #tpu.memory_space<vmem>>, vector<1x16x16x128xbf16>
    %5 = arith.extf %4 : vector<1x16x16x128xbf16> to vector<1x16x16x128xf32>
    %6 = vector.broadcast %1 : vector<1x1x1x128xf32> to vector<1x16x16x128xf32>
    %7 = arith.mulf %5, %6 : vector<1x16x16x128xf32>
    %8 = vector.broadcast %3 : vector<1x1x1x128xf32> to vector<1x16x16x128xf32>
    %9 = arith.addf %7, %8 : vector<1x16x16x128xf32>
    %cst = arith.constant 0.000000e+00 : f32
    %10 = vector.broadcast %cst : f32 to vector<1x16x16x128xf32>
    %11 = arith.maximumf %9, %10 : vector<1x16x16x128xf32>
    %c0_7 = arith.constant 0 : index
    %c0_8 = arith.constant 0 : index
    %c0_9 = arith.constant 0 : index
    %c0_10 = arith.constant 0 : index
    %12 = vector.load %arg5[%c0_7, %c0_8, %c0_9, %c0_10] : memref<1x16x16x128xf32, #tpu.memory_space<vmem>>, vector<1x16x16x128xf32>
    tpu.vector_store %arg5[%c0_7, %c0_8, %c0_9, %c0_10], %11 {strides = array<i32>} : memref<1x16x16x128xf32, #tpu.memory_space<vmem>>, vector<1x16x16x128xf32>,
    return
  }
  func.func @transform_0(%arg0: i32, %arg1: i32) -> (i32, i32, i32, i32) {
    %c0_i32 = arith.constant 0 : i32
    %c0_i32_0 = arith.constant 0 : i32
    %c0_i32_1 = arith.constant 0 : i32
    return %arg0, %arg1, %c0_i32, %c0_i32_0 : i32, i32, i32, i32
  }
  func.func @transform_1(%arg0: i32, %arg1: i32) -> (i32, i32) {
    %c0_i32 = arith.constant 0 : i32
    %c0_i32_0 = arith.constant 0 : i32
    %c0_i32_1 = arith.constant 0 : i32
    return %c0_i32, %c0_i32_0 : i32, i32
  }
  func.func @transform_2(%arg0: i32, %arg1: i32) -> (i32, i32) {
    %c0_i32 = arith.constant 0 : i32
    %c0_i32_0 = arith.constant 0 : i32
    %c0_i32_1 = arith.constant 0 : i32
    return %c0_i32, %c0_i32_0 : i32, i32
  }
  func.func @transform_3(%arg0: i32, %arg1: i32) -> (i32, i32, i32, i32) {
    %c0_i32 = arith.constant 0 : i32
    %c0_i32_0 = arith.constant 0 : i32
    %c0_i32_1 = arith.constant 0 : i32
    return %arg0, %arg1, %c0_i32, %c0_i32_0 : i32, i32, i32, i32
  }
}

</mosaic_0001>

<llo_original>
// kernel: double_conv.5
$region0: #{double_conv.5}
  #allocation0 [shape = 'u32[]', space=smem, size = 0x4, offset = 0x4, fixed_abs, tag = 'smem constant byte address 0x4 - core index']
  #allocation1 [shape = 'u32[144,128]{1,0:T(1,128)}', space=vmem, size = 0x12000, scoped, tag = 'internal scratch']
  %s0 = inlined_call_operand.vmem [shape: bf16[2,16,16,128], index: 0, kind: input, shape index: {}]
  %s1 = inlined_call_operand.vmem [shape: f32[1,128], index: 1, kind: input, shape index: {}]
  %s2 = inlined_call_operand.vmem [shape: f32[1,128], index: 2, kind: input, shape index: {}]
  %s3 = inlined_call_operand.vmem [shape: f32[2,16,16,128], index: 3, kind: output, shape index: {}]
  %s4 = sld [smem:[#allocation0]]
  $region45: #{double_conv.5} parent=0
    _
  %s6 = ssub.s32 1, %s4
  %s7 = scalar_select 0, %s6, %s4
  loop: start=0, step=1, limit=4
  $region2: #{double_conv.5} parent=0 // loop_pre_header
    _
  $region3: #{double_conv.5} parent=0 // loop_header
    %s9 = sphi 0, %s13
    %p10 = scmp.ge.s32.totalorder %s9, 4
    %s16 = sphi 0, %s28
    %s17 = sphi 0, %s24
    %s18 = sphi 0, %s16
    %s19 = sphi 0, %s17
    %s20 = sphi 0, %s18
    %s21 = sphi 0, %s19
    %s33 = sphi 0, %s35
    %s36 = sphi 0, %s33
    %s37 = sphi 0, %s36
    %s53 = sphi 0, %s37
    %s57 = sphi 0, %s57
    %s59 = sphi 0, %s57
    %s60 = sphi 0, %s59
    %s74 = sphi 0, %s60
    %s78 = sphi 0, %s78
    %s80 = sphi 0, %s78
    %s81 = sphi 0, %s80
    %s95 = sphi 0, %s81
    %s103 = sphi 0, %s105
    %s106 = sphi 0, %s103
    %s107 = sphi 0, %s106
    %s123 = sphi 0, %s107
  $region4: #{double_conv.5} parent=0 // loop_header_branch
    %12 = sbr.rel (%p10) target = $region8
  $region5: #{double_conv.5} parent=0 // loop_body
    %s14 = ssub.s32 %s9, 1
    %s15 = ssub.s32 %s9, 2
    %s22 = sadd.s32 1, %s17
    %p23 = scmp.ge.s32.totalorder %s22, 1
    %s24 = scalar_select %p23, 0, %s22
    %s25 = sadd.s32 1, %s16
    %s26 = scalar_select %p23, %s25, %s16
    %p27 = scmp.ge.s32.totalorder %s26, 2
    %s28 = scalar_select %p27, 0, %s26
    %s29 = ssub.s32 %s16, %s28
    %s30 = ssub.s32 %s17, %s24
    %s31 = sor.u32 %s29, %s30
    %p32 = scmp.eq.s32.totalorder %s31, 0
    %s34 = sadd.s32 %s33, 1
    %s35 = scalar_select %p32, %s33, %s34
    %p38 = pneg %p32
    %p39 = scmp.eq.s32.totalorder %s9, 1
    %p40 = por %p38, %p39
    %p41 = scmp.ne.s32.totalorder %s33, %s36
    %p42 = scmp.eq.s32.totalorder %s9, 0
    %p43 = por %p41, %p42
    %p44 = scmp.ne.s32.totalorder %s33, %s36
    %p45 = scmp.eq.s32.totalorder %s14, 1
    %p46 = por %p44, %p45
    %p47 = scmp.ne.s32.totalorder %s36, %s37
    %p48 = scmp.eq.s32.totalorder %s14, 0
    %p49 = por %p47, %p48
    %p50 = scmp.ne.s32.totalorder %s36, %s37
    %p51 = scmp.eq.s32.totalorder %s15, 1
    %p52 = por %p50, %p51
    %p54 = scmp.ne.s32.totalorder %s37, %s53
    %p55 = scmp.eq.s32.totalorder %s15, 0
    %p56 = por %p54, %p55
    %s58 = sadd.s32 %s57, 1
    %p61 = scmp.eq.s32.totalorder %s9, 1
    %p62 = scmp.ne.s32.totalorder %s57, %s59
    %p63 = scmp.eq.s32.totalorder %s9, 0
    %p64 = por %p62, %p63
    %p65 = scmp.ne.s32.totalorder %s57, %s59
    %p66 = scmp.eq.s32.totalorder %s14, 1
    %p67 = por %p65, %p66
    %p68 = scmp.ne.s32.totalorder %s59, %s60
    %p69 = scmp.eq.s32.totalorder %s14, 0
    %p70 = por %p68, %p69
    %p71 = scmp.ne.s32.totalorder %s59, %s60
    %p72 = scmp.eq.s32.totalorder %s15, 1
    %p73 = por %p71, %p72
    %p75 = scmp.ne.s32.totalorder %s60, %s74
    %p76 = scmp.eq.s32.totalorder %s15, 0
    %p77 = por %p75, %p76
    %s79 = sadd.s32 %s78, 1
    %p82 = scmp.eq.s32.totalorder %s9, 1
    %p83 = scmp.ne.s32.totalorder %s78, %s80
    %p84 = scmp.eq.s32.totalorder %s9, 0
    %p85 = por %p83, %p84
    %p86 = scmp.ne.s32.totalorder %s78, %s80
    %p87 = scmp.eq.s32.totalorder %s14, 1
    %p88 = por %p86, %p87
    %p89 = scmp.ne.s32.totalorder %s80, %s81
    %p90 = scmp.eq.s32.totalorder %s14, 0
    %p91 = por %p89, %p90
    %p92 = scmp.ne.s32.totalorder %s80, %s81
    %p93 = scmp.eq.s32.totalorder %s15, 1
    %p94 = por %p92, %p93
    %p96 = scmp.ne.s32.totalorder %s81, %s95
    %p97 = scmp.eq.s32.totalorder %s15, 0
    %p98 = por %p96, %p97
    %s99 = ssub.s32 %s16, %s28
    %s100 = ssub.s32 %s17, %s24
    %s101 = sor.u32 %s99, %s100
    %p102 = scmp.eq.s32.totalorder %s101, 0
    %s104 = sadd.s32 %s103, 1
    %s105 = scalar_select %p102, %s103, %s104
    %p108 = pneg %p102
    %p109 = scmp.eq.s32.totalorder %s9, 1
    %p110 = por %p108, %p109
    %p111 = scmp.ne.s32.totalorder %s103, %s106
    %p112 = scmp.eq.s32.totalorder %s9, 0
    %p113 = por %p111, %p112
    %p114 = scmp.ne.s32.totalorder %s103, %s106
    %p115 = scmp.eq.s32.totalorder %s14, 1
    %p116 = por %p114, %p115
    %p117 = scmp.ne.s32.totalorder %s106, %s107
    %p118 = scmp.eq.s32.totalorder %s14, 0
    %p119 = por %p117, %p118
    %p120 = scmp.ne.s32.totalorder %s106, %s107
    %p121 = scmp.eq.s32.totalorder %s15, 1
    %p122 = por %p120, %p121
    %p124 = scmp.ne.s32.totalorder %s107, %s123
    %p125 = scmp.eq.s32.totalorder %s15, 0
    %p126 = por %p124, %p125
    %p127 = scmp.le.s32.totalorder 1, %s9
    %p128 = scmp.lt.s32.totalorder %s9, 3
    %p129 = pnand %p127, %p128
    %p130 = pneg %p129
    // Predicated region
    $region9: #{double_conv.5} parent=5 // pred_check
      _
    $region10: #{double_conv.5} parent=5 // pred_check_branch
      %132 = sbr.rel (%p129) target = $region12
    $region11: #{double_conv.5} parent=5 // pred_region
      %s133 = ssub.s32 %s9, 1
      // Predicated region
      $region13: #{double_conv.5} parent=11 // pred_check
        %p134 = pneg %p70
      $region14: #{double_conv.5} parent=11 // pred_check_branch
        %136 = sbr.rel (%p134) target = $region16
      $region15: #{double_conv.5} parent=11 // pred_region
        _
      $region16: #{double_conv.5} parent=11 // pred_fallthru
        _
      // Predicated region
      $region17: #{double_conv.5} parent=11 // pred_check
        %p137 = pneg %p91
      $region18: #{double_conv.5} parent=11 // pred_check_branch
        %139 = sbr.rel (%p137) target = $region20
      $region19: #{double_conv.5} parent=11 // pred_region
        _
      $region20: #{double_conv.5} parent=11 // pred_fallthru
        _
    $region12: #{double_conv.5} parent=5 // pred_fallthru
      _
    %p140 = scmp.lt.s32.totalorder %s9, 2
    // Predicated region
    $region21: #{double_conv.5} parent=5 // pred_check
      %p141 = pneg %p140
    $region22: #{double_conv.5} parent=5 // pred_check_branch
      %143 = sbr.rel (%p141) target = $region24
    $region23: #{double_conv.5} parent=5 // pred_region
      // Predicated region
      $region25: #{double_conv.5} parent=23 // pred_check
        %p144 = pneg %p43
      $region26: #{double_conv.5} parent=23 // pred_check_branch
        %146 = sbr.rel (%p144) target = $region28
      $region27: #{double_conv.5} parent=23 // pred_region
        %s147 = smul.u32 16, %s17
        %p148 = scmp.lt.s32.totalorder %s16, 1
        %s149 = scalar_select %p148, %s16, 1
        %p150 = scmp.lt.s32.totalorder %s147, 15
        %s151 = scalar_select %p150, %s147, 15
        %s152 = smul.addr %s151, 2
        %s153 = smul.addr %s149, 32
        %s154 = sadd.s32 %s152, %s153
        %s155 = smul.addr %s154, 4
        %s156 = scalar_lea.vmem %s0, %s155
        %s157 = smul.u32 16, %s17
      $region28: #{double_conv.5} parent=23 // pred_fallthru
        _
    $region24: #{double_conv.5} parent=5 // pred_fallthru
      _
    %p158 = scmp.le.s32.totalorder 1, %s9
    %p159 = scmp.lt.s32.totalorder %s9, 3
    %p160 = pnand %p158, %p159
    %p161 = pneg %p160
    // Predicated region
    $region29: #{double_conv.5} parent=5 // pred_check
      _
    $region30: #{double_conv.5} parent=5 // pred_check_branch
      %163 = sbr.rel (%p160) target = $region32
    $region31: #{double_conv.5} parent=5 // pred_region
      %s164 = ssub.s32 %s9, 1
      %s165 = smul.u32 16, %s19
      %p166 = scmp.lt.s32.totalorder %s18, 1
      %s167 = scalar_select %p166, %s18, 1
      %p168 = scmp.lt.s32.totalorder %s165, 15
      %s169 = scalar_select %p168, %s165, 15
      %s170 = smul.addr %s169, 2
      %s171 = smul.addr %s167, 32
      %s172 = sadd.s32 %s170, %s171
      %s173 = smul.addr %s172, 4
      %s174 = scalar_lea.vmem %s0, %s173
      %p175 = pneg %p49
      %p176 = pneg %p46
      %p177 = pneg %p70
      %p178 = pneg %p67
      %p179 = pneg %p91
      %p180 = pneg %p88
      %p181 = pneg %p119
      %p182 = pneg %p116
      %s183 = smul.u32 16, %s19
      %p184 = scmp.lt.s32.totalorder %s18, 1
      %s185 = scalar_select %p184, %s18, 1
      %p186 = scmp.lt.s32.totalorder %s183, 15
      %s187 = scalar_select %p186, %s183, 15
      %s188 = smul.addr %s187, 2
      %s189 = smul.addr %s185, 32
      %s190 = sadd.s32 %s188, %s189
      %s191 = smul.addr %s190, 8
      %s192 = scalar_lea.vmem %s3, %s191
      %s193 = smul.u32 16, %s19
      %p194 = scmp.lt.s32.totalorder %s18, 1
      %s195 = scalar_select %p194, %s18, 1
      %p196 = scmp.lt.s32.totalorder %s193, 15
      %s197 = scalar_select %p196, %s193, 15
      %s198 = smul.addr %s197, 2
      %s199 = smul.addr %s195, 32
      %s200 = sadd.s32 %s198, %s199
      %s201 = smul.addr %s200, 4
      %s202 = scalar_lea.vmem %s0, %s201
      %s203 = smul.u32 16, %s19
      %s204 = smul.u32 16, %s19
      %p205 = scmp.lt.s32.totalorder %s18, 1
      %s206 = scalar_select %p205, %s18, 1
      %p207 = scmp.lt.s32.totalorder %s204, 15
      %s208 = scalar_select %p207, %s204, 15
      %s209 = smul.addr %s208, 2
      %s210 = smul.addr %s206, 32
      %s211 = sadd.s32 %s209, %s210
      %s212 = smul.addr %s211, 8
      %s213 = scalar_lea.vmem %s3, %s212
      %s214 = smul.u32 16, %s19
      %v215 = vld [vmem:[%s1] sm:$0x1]
      %v216 = vld [vmem:[%s2] sm:$0x1]
      %v217 = vld [vmem:[%s202] sm:$0xf]
      %v218 = vld [vmem:[%s202 + $0x4] sm:$0xf]
      %v219 = vld [vmem:[%s202 + $0x8] sm:$0xf]
      %v220 = vld [vmem:[%s202 + $0xc] sm:$0xf]
      %v221 = vld [vmem:[%s202 + $0x10] sm:$0xf]
      %v222 = vld [vmem:[%s202 + $0x14] sm:$0xf]
      %v223 = vld [vmem:[%s202 + $0x18] sm:$0xf]
      %v224 = vld [vmem:[%s202 + $0x1c] sm:$0xf]
      %v225 = vld [vmem:[%s202 + $0x20] sm:$0xf]
      %v226 = vld [vmem:[%s202 + $0x24] sm:$0xf]
      %v227 = vld [vmem:[%s202 + $0x28] sm:$0xf]
      %v228 = vld [vmem:[%s202 + $0x2c] sm:$0xf]
      %v229 = vld [vmem:[%s202 + $0x30] sm:$0xf]
      %v230 = vld [vmem:[%s202 + $0x34] sm:$0xf]
      %v231 = vld [vmem:[%s202 + $0x38] sm:$0xf]
      %v232 = vld [vmem:[%s202 + $0x3c] sm:$0xf]
      %v233 = vld [vmem:[%s202 + $0x40] sm:$0xf]
      %v234 = vld [vmem:[%s202 + $0x44] sm:$0xf]
      %v235 = vld [vmem:[%s202 + $0x48] sm:$0xf]
      %v236 = vld [vmem:[%s202 + $0x4c] sm:$0xf]
      %v237 = vld [vmem:[%s202 + $0x50] sm:$0xf]
      %v238 = vld [vmem:[%s202 + $0x54] sm:$0xf]
      %v239 = vld [vmem:[%s202 + $0x58] sm:$0xf]
      %v240 = vld [vmem:[%s202 + $0x5c] sm:$0xf]
      %v241 = vld [vmem:[%s202 + $0x60] sm:$0xf]
      %v242 = vld [vmem:[%s202 + $0x64] sm:$0xf]
      %v243 = vld [vmem:[%s202 + $0x68] sm:$0xf]
      %v244 = vld [vmem:[%s202 + $0x6c] sm:$0xf]
      %v245 = vld [vmem:[%s202 + $0x70] sm:$0xf]
      %v246 = vld [vmem:[%s202 + $0x74] sm:$0xf]
      %v247 = vld [vmem:[%s202 + $0x78] sm:$0xf]
      %v248 = vld [vmem:[%s202 + $0x7c] sm:$0xf]
      %v249 = vunpack.c.l.bf16 %v217
      %v250 = vunpack.c.l.bf16 %v218
      %v251 = vunpack.c.l.bf16 %v219
      %v252 = vunpack.c.l.bf16 %v220
      %v253 = vunpack.c.l.bf16 %v221
      %v254 = vunpack.c.l.bf16 %v222
      %v255 = vunpack.c.l.bf16 %v223
      %v256 = vunpack.c.l.bf16 %v224
      %v257 = vunpack.c.l.bf16 %v225
      %v258 = vunpack.c.l.bf16 %v226
      %v259 = vunpack.c.l.bf16 %v227
      %v260 = vunpack.c.l.bf16 %v228
      %v261 = vunpack.c.l.bf16 %v229
      %v262 = vunpack.c.l.bf16 %v230
      %v263 = vunpack.c.l.bf16 %v231
      %v264 = vunpack.c.l.bf16 %v232
      %v265 = vunpack.c.l.bf16 %v233
      %v266 = vunpack.c.l.bf16 %v234
      %v267 = vunpack.c.l.bf16 %v235
      %v268 = vunpack.c.l.bf16 %v236
      %v269 = vunpack.c.l.bf16 %v237
      %v270 = vunpack.c.l.bf16 %v238
      %v271 = vunpack.c.l.bf16 %v239
      %v272 = vunpack.c.l.bf16 %v240
      %v273 = vunpack.c.l.bf16 %v241
      %v274 = vunpack.c.l.bf16 %v242
      %v275 = vunpack.c.l.bf16 %v243
      %v276 = vunpack.c.l.bf16 %v244
      %v277 = vunpack.c.l.bf16 %v245
      %v278 = vunpack.c.l.bf16 %v246
      %v279 = vunpack.c.l.bf16 %v247
      %v280 = vunpack.c.l.bf16 %v248
      %v282 = vlaneseq
      %v283 = vshrl.u32 %v282, 7
      %v284 = vsub.s32 0, %v283
      %v285 = vrot.slane %v215, %v284
      %v287 = vmul.f32 %v249, %v285
      %v288 = vmul.f32 %v250, %v285
      %v289 = vmul.f32 %v251, %v285
      %v290 = vmul.f32 %v252, %v285
      %v291 = vmul.f32 %v253, %v285
      %v292 = vmul.f32 %v254, %v285
      %v293 = vmul.f32 %v255, %v285
      %v294 = vmul.f32 %v256, %v285
      %v295 = vmul.f32 %v257, %v285
      %v296 = vmul.f32 %v258, %v285
      %v297 = vmul.f32 %v259, %v285
      %v298 = vmul.f32 %v260, %v285
      %v299 = vmul.f32 %v261, %v285
      %v300 = vmul.f32 %v262, %v285
      %v301 = vmul.f32 %v263, %v285
      %v302 = vmul.f32 %v264, %v285
      %v303 = vmul.f32 %v265, %v285
      %v304 = vmul.f32 %v266, %v285
      %v305 = vmul.f32 %v267, %v285
      %v306 = vmul.f32 %v268, %v285
      %v307 = vmul.f32 %v269, %v285
      %v308 = vmul.f32 %v270, %v285
      %v309 = vmul.f32 %v271, %v285
      %v310 = vmul.f32 %v272, %v285
      %v311 = vmul.f32 %v273, %v285
      %v312 = vmul.f32 %v274, %v285
      %v313 = vmul.f32 %v275, %v285
      %v314 = vmul.f32 %v276, %v285
      %v315 = vmul.f32 %v277, %v285
      %v316 = vmul.f32 %v278, %v285
      %v317 = vmul.f32 %v279, %v285
      %v318 = vmul.f32 %v280, %v285
      %v320 = vlaneseq
      %v321 = vshrl.u32 %v320, 7
      %v322 = vsub.s32 0, %v321
      %v323 = vrot.slane %v216, %v322
      %v325 = vadd.f32 %v287, %v323
      %v326 = vadd.f32 %v288, %v323
      %v327 = vadd.f32 %v289, %v323
      %v328 = vadd.f32 %v290, %v323
      %v329 = vadd.f32 %v291, %v323
      %v330 = vadd.f32 %v292, %v323
      %v331 = vadd.f32 %v293, %v323
      %v332 = vadd.f32 %v294, %v323
      %v333 = vadd.f32 %v295, %v323
      %v334 = vadd.f32 %v296, %v323
      %v335 = vadd.f32 %v297, %v323
      %v336 = vadd.f32 %v298, %v323
      %v337 = vadd.f32 %v299, %v323
      %v338 = vadd.f32 %v300, %v323
      %v339 = vadd.f32 %v301, %v323
      %v340 = vadd.f32 %v302, %v323
      %v341 = vadd.f32 %v303, %v323
      %v342 = vadd.f32 %v304, %v323
      %v343 = vadd.f32 %v305, %v323
      %v344 = vadd.f32 %v306, %v323
      %v345 = vadd.f32 %v307, %v323
      %v346 = vadd.f32 %v308, %v323
      %v347 = vadd.f32 %v309, %v323
      %v348 = vadd.f32 %v310, %v323
      %v349 = vadd.f32 %v311, %v323
      %v350 = vadd.f32 %v312, %v323
      %v351 = vadd.f32 %v313, %v323
      %v352 = vadd.f32 %v314, %v323
      %v353 = vadd.f32 %v315, %v323
      %v354 = vadd.f32 %v316, %v323
      %v355 = vadd.f32 %v317, %v323
      %v356 = vadd.f32 %v318, %v323
      %v357 = vmax.f32 %v325, 0.0
      %v358 = vmax.f32 %v326, 0.0
      %v359 = vmax.f32 %v327, 0.0
      %v360 = vmax.f32 %v328, 0.0
      %v361 = vmax.f32 %v329, 0.0
      %v362 = vmax.f32 %v330, 0.0
      %v363 = vmax.f32 %v331, 0.0
      %v364 = vmax.f32 %v332, 0.0
      %v365 = vmax.f32 %v333, 0.0
      %v366 = vmax.f32 %v334, 0.0
      %v367 = vmax.f32 %v335, 0.0
      %v368 = vmax.f32 %v336, 0.0
      %v369 = vmax.f32 %v337, 0.0
      %v370 = vmax.f32 %v338, 0.0
      %v371 = vmax.f32 %v339, 0.0
      %v372 = vmax.f32 %v340, 0.0
      %v373 = vmax.f32 %v341, 0.0
      %v374 = vmax.f32 %v342, 0.0
      %v375 = vmax.f32 %v343, 0.0
      %v376 = vmax.f32 %v344, 0.0
      %v377 = vmax.f32 %v345, 0.0
      %v378 = vmax.f32 %v346, 0.0
      %v379 = vmax.f32 %v347, 0.0
      %v380 = vmax.f32 %v348, 0.0
      %v381 = vmax.f32 %v349, 0.0
      %v382 = vmax.f32 %v350, 0.0
      %v383 = vmax.f32 %v351, 0.0
      %v384 = vmax.f32 %v352, 0.0
      %v385 = vmax.f32 %v353, 0.0
      %v386 = vmax.f32 %v354, 0.0
      %v387 = vmax.f32 %v355, 0.0
      %v388 = vmax.f32 %v356, 0.0
      %389 = vst [vmem:[%s213] sm:$0xff] %v357
      %390 = vst [vmem:[%s213 + $0x8] sm:$0xff] %v358
      %391 = vst [vmem:[%s213 + $0x10] sm:$0xff] %v359
      %392 = vst [vmem:[%s213 + $0x18] sm:$0xff] %v360
      %393 = vst [vmem:[%s213 + $0x20] sm:$0xff] %v361
      %394 = vst [vmem:[%s213 + $0x28] sm:$0xff] %v362
      %395 = vst [vmem:[%s213 + $0x30] sm:$0xff] %v363
      %396 = vst [vmem:[%s213 + $0x38] sm:$0xff] %v364
      %397 = vst [vmem:[%s213 + $0x40] sm:$0xff] %v365
      %398 = vst [vmem:[%s213 + $0x48] sm:$0xff] %v366
      %399 = vst [vmem:[%s213 + $0x50] sm:$0xff] %v367
      %400 = vst [vmem:[%s213 + $0x58] sm:$0xff] %v368
      %401 = vst [vmem:[%s213 + $0x60] sm:$0xff] %v369
      %402 = vst [vmem:[%s213 + $0x68] sm:$0xff] %v370
      %403 = vst [vmem:[%s213 + $0x70] sm:$0xff] %v371
      %404 = vst [vmem:[%s213 + $0x78] sm:$0xff] %v372
      %405 = vst [vmem:[%s213 + $0x80] sm:$0xff] %v373
      %406 = vst [vmem:[%s213 + $0x88] sm:$0xff] %v374
      %407 = vst [vmem:[%s213 + $0x90] sm:$0xff] %v375
      %408 = vst [vmem:[%s213 + $0x98] sm:$0xff] %v376
      %409 = vst [vmem:[%s213 + $0xa0] sm:$0xff] %v377
      %410 = vst [vmem:[%s213 + $0xa8] sm:$0xff] %v378
      %411 = vst [vmem:[%s213 + $0xb0] sm:$0xff] %v379
      %412 = vst [vmem:[%s213 + $0xb8] sm:$0xff] %v380
      %413 = vst [vmem:[%s213 + $0xc0] sm:$0xff] %v381
      %414 = vst [vmem:[%s213 + $0xc8] sm:$0xff] %v382
      %415 = vst [vmem:[%s213 + $0xd0] sm:$0xff] %v383
      %416 = vst [vmem:[%s213 + $0xd8] sm:$0xff] %v384
      %417 = vst [vmem:[%s213 + $0xe0] sm:$0xff] %v385
      %418 = vst [vmem:[%s213 + $0xe8] sm:$0xff] %v386
      %419 = vst [vmem:[%s213 + $0xf0] sm:$0xff] %v387
      %420 = vst [vmem:[%s213 + $0xf8] sm:$0xff] %v388
      %s421 = smul.u32 16, %s19
      %p422 = scmp.lt.s32.totalorder %s18, 1
      %s423 = scalar_select %p422, %s18, 1
      %p424 = scmp.lt.s32.totalorder %s421, 15
      %s425 = scalar_select %p424, %s421, 15
      %s426 = smul.addr %s425, 2
      %s427 = smul.addr %s423, 32
      %s428 = sadd.s32 %s426, %s427
      %s429 = smul.addr %s428, 8
      %s430 = scalar_lea.vmem %s3, %s429
      // Predicated region
      $region33: #{double_conv.5} parent=31 // pred_check
        %p431 = pneg %p116
      $region34: #{double_conv.5} parent=31 // pred_check_branch
        %433 = sbr.rel (%p431) target = $region36
      $region35: #{double_conv.5} parent=31 // pred_region
        %s434 = smul.u32 16, %s19
      $region36: #{double_conv.5} parent=31 // pred_fallthru
        _
    $region32: #{double_conv.5} parent=5 // pred_fallthru
      _
    %p435 = scmp.le.s32.totalorder 2, %s9
    // Predicated region
    $region37: #{double_conv.5} parent=5 // pred_check
      %p436 = pneg %p435
    $region38: #{double_conv.5} parent=5 // pred_check_branch
      %438 = sbr.rel (%p436) target = $region40
    $region39: #{double_conv.5} parent=5 // pred_region
      %s439 = ssub.s32 %s9, 2
      // Predicated region
      $region41: #{double_conv.5} parent=39 // pred_check
        %p440 = pneg %p122
      $region42: #{double_conv.5} parent=39 // pred_check_branch
        %442 = sbr.rel (%p440) target = $region44
      $region43: #{double_conv.5} parent=39 // pred_region
        %s443 = smul.u32 16, %s21
        %p444 = scmp.lt.s32.totalorder %s20, 1
        %s445 = scalar_select %p444, %s20, 1
        %p446 = scmp.lt.s32.totalorder %s443, 15
        %s447 = scalar_select %p446, %s443, 15
        %s448 = smul.addr %s447, 2
        %s449 = smul.addr %s445, 32
        %s450 = sadd.s32 %s448, %s449
        %s451 = smul.addr %s450, 8
        %s452 = scalar_lea.vmem %s3, %s451
      $region44: #{double_conv.5} parent=39 // pred_fallthru
        _
    $region40: #{double_conv.5} parent=5 // pred_fallthru
      _
  $region6: #{double_conv.5} parent=0 // loop_footer
    %s13 = sadd.s32 1, %s9
  $region7: #{double_conv.5} parent=0 // loop_footer_branch
    %8 = sbr.rel target = $region3
  $region8: #{double_conv.5} parent=0 // loop_exit
    _

// kernel: double_conv.3
$region0: #{double_conv.3}
  #allocation0 [shape = 'u32[]', space=smem, size = 0x4, offset = 0x4, fixed_abs, tag = 'smem constant byte address 0x4 - core index']
  #allocation1 [shape = 'u32[144,128]{1,0:T(1,128)}', space=vmem, size = 0x12000, scoped, tag = 'internal scratch']
  %s0 = inlined_call_operand.vmem [shape: bf16[2,17,16,128], index: 0, kind: input, shape index: {}, may-alias: {0,1,2}]
  %s1 = inlined_call_operand.vmem [shape: bf16[2,17,16,128], index: 1, kind: input, shape index: {}, may-alias: {0,1,2}]
  %s2 = inlined_call_operand.vmem [shape: bf16[2,17,16,128], index: 2, kind: input, shape index: {}, may-alias: {0,1,2}]
  %s3 = inlined_call_operand.vmem [shape: f32[1,128], index: 3, kind: input, shape index: {}, may-alias: {3,4}]
  %s4 = inlined_call_operand.vmem [shape: f32[1,128], index: 4, kind: input, shape index: {}, may-alias: {3,4}]
  %s5 = inlined_call_operand.vmem [shape: bf16[3,384,128], index: 5, kind: input, shape index: {}]
  %s6 = inlined_call_operand.vmem [shape: bf16[2,16,16,128], index: 6, kind: output, shape index: {0}]
  %s7 = inlined_call_operand.vmem [shape: f32[2,1,2,128], index: 7, kind: output, shape index: {1}]
  %8 = xla_tuple %s6, %s7
  %s9 = sld [smem:[#allocation0]]
  $region65: #{double_conv.3} parent=0
    _
  %s11 = ssub.s32 1, %s9
  %s12 = scalar_select 0, %s11, %s9
  loop: start=0, step=1, limit=4
  $region2: #{double_conv.3} parent=0 // loop_pre_header
    _
  $region3: #{double_conv.3} parent=0 // loop_header
    %s14 = sphi 0, %s18
    %p15 = scmp.ge.s32.totalorder %s14, 4
    %s21 = sphi 0, %s33
    %s22 = sphi 0, %s29
    %s23 = sphi 0, %s21
    %s24 = sphi 0, %s22
    %s25 = sphi 0, %s23
    %s26 = sphi 0, %s24
    %s38 = sphi 0, %s40
    %s41 = sphi 0, %s38
    %s42 = sphi 0, %s41
    %s58 = sphi 0, %s42
    %s74 = sphi 0, %s76
    %s77 = sphi 0, %s74
    %s78 = sphi 0, %s77
    %s94 = sphi 0, %s78
    %s110 = sphi 0, %s112
    %s113 = sphi 0, %s110
    %s114 = sphi 0, %s113
    %s130 = sphi 0, %s114
    %s134 = sphi 0, %s134
    %s136 = sphi 0, %s134
    %s137 = sphi 0, %s136
    %s151 = sphi 0, %s137
    %s155 = sphi 0, %s155
    %s157 = sphi 0, %s155
    %s158 = sphi 0, %s157
    %s172 = sphi 0, %s158
    %s176 = sphi 0, %s176
    %s178 = sphi 0, %s176
    %s179 = sphi 0, %s178
    %s193 = sphi 0, %s179
    %s201 = sphi 0, %s203
    %s204 = sphi 0, %s201
    %s205 = sphi 0, %s204
    %s221 = sphi 0, %s205
    %s229 = sphi 0, %s231
    %s232 = sphi 0, %s229
    %s233 = sphi 0, %s232
    %s249 = sphi 0, %s233
  $region4: #{double_conv.3} parent=0 // loop_header_branch
    %17 = sbr.rel (%p15) target = $region8
  $region5: #{double_conv.3} parent=0 // loop_body
    %s19 = ssub.s32 %s14, 1
    %s20 = ssub.s32 %s14, 2
    %s27 = sadd.s32 1, %s22
    %p28 = scmp.ge.s32.totalorder %s27, 1
    %s29 = scalar_select %p28, 0, %s27
    %s30 = sadd.s32 1, %s21
    %s31 = scalar_select %p28, %s30, %s21
    %p32 = scmp.ge.s32.totalorder %s31, 2
    %s33 = scalar_select %p32, 0, %s31
    %s34 = ssub.s32 %s21, %s33
    %s35 = ssub.s32 %s22, %s29
    %s36 = sor.u32 %s34, %s35
    %p37 = scmp.eq.s32.totalorder %s36, 0
    %s39 = sadd.s32 %s38, 1
    %s40 = scalar_select %p37, %s38, %s39
    %p43 = pneg %p37
    %p44 = scmp.eq.s32.totalorder %s14, 1
    %p45 = por %p43, %p44
    %p46 = scmp.ne.s32.totalorder %s38, %s41
    %p47 = scmp.eq.s32.totalorder %s14, 0
    %p48 = por %p46, %p47
    %p49 = scmp.ne.s32.totalorder %s38, %s41
    %p50 = scmp.eq.s32.totalorder %s19, 1
    %p51 = por %p49, %p50
    %p52 = scmp.ne.s32.totalorder %s41, %s42
    %p53 = scmp.eq.s32.totalorder %s19, 0
    %p54 = por %p52, %p53
    %p55 = scmp.ne.s32.totalorder %s41, %s42
    %p56 = scmp.eq.s32.totalorder %s20, 1
    %p57 = por %p55, %p56
    %p59 = scmp.ne.s32.totalorder %s42, %s58
    %p60 = scmp.eq.s32.totalorder %s20, 0
    %p61 = por %p59, %p60
    %s62 = smul.u32 %s22, 16
    %s63 = ssub.s32 %s62, 1
    %p64 = scmp.gt.s32.totalorder %s63, 0
    %s65 = scalar_select %p64, %s63, 0
    %s66 = smul.u32 %s29, 16
    %s67 = ssub.s32 %s66, 1
    %p68 = scmp.gt.s32.totalorder %s67, 0
    %s69 = scalar_select %p68, %s67, 0
    %s70 = ssub.s32 %s21, %s33
    %s71 = ssub.s32 %s65, %s69
    %s72 = sor.u32 %s70, %s71
    %p73 = scmp.eq.s32.totalorder %s72, 0
    %s75 = sadd.s32 %s74, 1
    %s76 = scalar_select %p73, %s74, %s75
    %p79 = pneg %p73
    %p80 = scmp.eq.s32.totalorder %s14, 1
    %p81 = por %p79, %p80
    %p82 = scmp.ne.s32.totalorder %s74, %s77
    %p83 = scmp.eq.s32.totalorder %s14, 0
    %p84 = por %p82, %p83
    %p85 = scmp.ne.s32.totalorder %s74, %s77
    %p86 = scmp.eq.s32.totalorder %s19, 1
    %p87 = por %p85, %p86
    %p88 = scmp.ne.s32.totalorder %s77, %s78
    %p89 = scmp.eq.s32.totalorder %s19, 0
    %p90 = por %p88, %p89
    %p91 = scmp.ne.s32.totalorder %s77, %s78
    %p92 = scmp.eq.s32.totalorder %s20, 1
    %p93 = por %p91, %p92
    %p95 = scmp.ne.s32.totalorder %s78, %s94
    %p96 = scmp.eq.s32.totalorder %s20, 0
    %p97 = por %p95, %p96
    %s98 = smul.u32 %s22, 16
    %s99 = sadd.s32 %s98, 16
    %p100 = scmp.lt.s32.totalorder %s99, 16
    %s101 = scalar_select %p100, %s99, 16
    %s102 = smul.u32 %s29, 16
    %s103 = sadd.s32 %s102, 16
    %p104 = scmp.lt.s32.totalorder %s103, 16
    %s105 = scalar_select %p104, %s103, 16
    %s106 = ssub.s32 %s21, %s33
    %s107 = ssub.s32 %s101, %s105
    %s108 = sor.u32 %s106, %s107
    %p109 = scmp.eq.s32.totalorder %s108, 0
    %s111 = sadd.s32 %s110, 1
    %s112 = scalar_select %p109, %s110, %s111
    %p115 = pneg %p109
    %p116 = scmp.eq.s32.totalorder %s14, 1
    %p117 = por %p115, %p116
    %p118 = scmp.ne.s32.totalorder %s110, %s113
    %p119 = scmp.eq.s32.totalorder %s14, 0
    %p120 = por %p118, %p119
    %p121 = scmp.ne.s32.totalorder %s110, %s113
    %p122 = scmp.eq.s32.totalorder %s19, 1
    %p123 = por %p121, %p122
    %p124 = scmp.ne.s32.totalorder %s113, %s114
    %p125 = scmp.eq.s32.totalorder %s19, 0
    %p126 = por %p124, %p125
    %p127 = scmp.ne.s32.totalorder %s113, %s114
    %p128 = scmp.eq.s32.totalorder %s20, 1
    %p129 = por %p127, %p128
    %p131 = scmp.ne.s32.totalorder %s114, %s130
    %p132 = scmp.eq.s32.totalorder %s20, 0
    %p133 = por %p131, %p132
    %s135 = sadd.s32 %s134, 1
    %p138 = scmp.eq.s32.totalorder %s14, 1
    %p139 = scmp.ne.s32.totalorder %s134, %s136
    %p140 = scmp.eq.s32.totalorder %s14, 0
    %p141 = por %p139, %p140
    %p142 = scmp.ne.s32.totalorder %s134, %s136
    %p143 = scmp.eq.s32.totalorder %s19, 1
    %p144 = por %p142, %p143
    %p145 = scmp.ne.s32.totalorder %s136, %s137
    %p146 = scmp.eq.s32.totalorder %s19, 0
    %p147 = por %p145, %p146
    %p148 = scmp.ne.s32.totalorder %s136, %s137
    %p149 = scmp.eq.s32.totalorder %s20, 1
    %p150 = por %p148, %p149
    %p152 = scmp.ne.s32.totalorder %s137, %s151
    %p153 = scmp.eq.s32.totalorder %s20, 0
    %p154 = por %p152, %p153
    %s156 = sadd.s32 %s155, 1
    %p159 = scmp.eq.s32.totalorder %s14, 1
    %p160 = scmp.ne.s32.totalorder %s155, %s157
    %p161 = scmp.eq.s32.totalorder %s14, 0
    %p162 = por %p160, %p161
    %p163 = scmp.ne.s32.totalorder %s155, %s157
    %p164 = scmp.eq.s32.totalorder %s19, 1
    %p165 = por %p163, %p164
    %p166 = scmp.ne.s32.totalorder %s157, %s158
    %p167 = scmp.eq.s32.totalorder %s19, 0
    %p168 = por %p166, %p167
    %p169 = scmp.ne.s32.totalorder %s157, %s158
    %p170 = scmp.eq.s32.totalorder %s20, 1
    %p171 = por %p169, %p170
    %p173 = scmp.ne.s32.totalorder %s158, %s172
    %p174 = scmp.eq.s32.totalorder %s20, 0
    %p175 = por %p173, %p174
    %s177 = sadd.s32 %s176, 1
    %p180 = scmp.eq.s32.totalorder %s14, 1
    %p181 = scmp.ne.s32.totalorder %s176, %s178
    %p182 = scmp.eq.s32.totalorder %s14, 0
    %p183 = por %p181, %p182
    %p184 = scmp.ne.s32.totalorder %s176, %s178
    %p185 = scmp.eq.s32.totalorder %s19, 1
    %p186 = por %p184, %p185
    %p187 = scmp.ne.s32.totalorder %s178, %s179
    %p188 = scmp.eq.s32.totalorder %s19, 0
    %p189 = por %p187, %p188
    %p190 = scmp.ne.s32.totalorder %s178, %s179
    %p191 = scmp.eq.s32.totalorder %s20, 1
    %p192 = por %p190, %p191
    %p194 = scmp.ne.s32.totalorder %s179, %s193
    %p195 = scmp.eq.s32.totalorder %s20, 0
    %p196 = por %p194, %p195
    %s197 = ssub.s32 %s21, %s33
    %s198 = ssub.s32 %s22, %s29
    %s199 = sor.u32 %s197, %s198
    %p200 = scmp.eq.s32.totalorder %s199, 0
    %s202 = sadd.s32 %s201, 1
    %s203 = scalar_select %p200, %s201, %s202
    %p206 = pneg %p200
    %p207 = scmp.eq.s32.totalorder %s14, 1
    %p208 = por %p206, %p207
    %p209 = scmp.ne.s32.totalorder %s201, %s204
    %p210 = scmp.eq.s32.totalorder %s14, 0
    %p211 = por %p209, %p210
    %p212 = scmp.ne.s32.totalorder %s201, %s204
    %p213 = scmp.eq.s32.totalorder %s19, 1
    %p214 = por %p212, %p213
    %p215 = scmp.ne.s32.totalorder %s204, %s205
    %p216 = scmp.eq.s32.totalorder %s19, 0
    %p217 = por %p215, %p216
    %p218 = scmp.ne.s32.totalorder %s204, %s205
    %p219 = scmp.eq.s32.totalorder %s20, 1
    %p220 = por %p218, %p219
    %p222 = scmp.ne.s32.totalorder %s205, %s221
    %p223 = scmp.eq.s32.totalorder %s20, 0
    %p224 = por %p222, %p223
    %s225 = ssub.s32 %s21, %s33
    %s226 = ssub.s32 %s22, %s29
    %s227 = sor.u32 %s225, %s226
    %p228 = scmp.eq.s32.totalorder %s227, 0
    %s230 = sadd.s32 %s229, 1
    %s231 = scalar_select %p228, %s229, %s230
    %p234 = pneg %p228
    %p235 = scmp.eq.s32.totalorder %s14, 1
    %p236 = por %p234, %p235
    %p237 = scmp.ne.s32.totalorder %s229, %s232
    %p238 = scmp.eq.s32.totalorder %s14, 0
    %p239 = por %p237, %p238
    %p240 = scmp.ne.s32.totalorder %s229, %s232
    %p241 = scmp.eq.s32.totalorder %s19, 1
    %p242 = por %p240, %p241
    %p243 = scmp.ne.s32.totalorder %s232, %s233
    %p244 = scmp.eq.s32.totalorder %s19, 0
    %p245 = por %p243, %p244
    %p246 = scmp.ne.s32.totalorder %s232, %s233
    %p247 = scmp.eq.s32.totalorder %s20, 1
    %p248 = por %p246, %p247
    %p250 = scmp.ne.s32.totalorder %s233, %s249
    %p251 = scmp.eq.s32.totalorder %s20, 0
    %p252 = por %p250, %p251
    %p253 = scmp.le.s32.totalorder 1, %s14
    %p254 = scmp.lt.s32.totalorder %s14, 3
    %p255 = pnand %p253, %p254
    %p256 = pneg %p255
    // Predicated region
    $region9: #{double_conv.3} parent=5 // pred_check
      _
    $region10: #{double_conv.3} parent=5 // pred_check_branch
      %258 = sbr.rel (%p255) target = $region12
    $region11: #{double_conv.3} parent=5 // pred_region
      %s259 = ssub.s32 %s14, 1
      // Predicated region
      $region13: #{double_conv.3} parent=11 // pred_check
        %p260 = pneg %p147
      $region14: #{double_conv.3} parent=11 // pred_check_branch
        %262 = sbr.rel (%p260) target = $region16
      $region15: #{double_conv.3} parent=11 // pred_region
        _
      $region16: #{double_conv.3} parent=11 // pred_fallthru
        _
      // Predicated region
      $region17: #{double_conv.3} parent=11 // pred_check
        %p263 = pneg %p168
      $region18: #{double_conv.3} parent=11 // pred_check_branch
        %265 = sbr.rel (%p263) target = $region20
      $region19: #{double_conv.3} parent=11 // pred_region
        _
      $region20: #{double_conv.3} parent=11 // pred_fallthru
        _
      // Predicated region
      $region21: #{double_conv.3} parent=11 // pred_check
        %p266 = pneg %p189
      $region22: #{double_conv.3} parent=11 // pred_check_branch
        %268 = sbr.rel (%p266) target = $region24
      $region23: #{double_conv.3} parent=11 // pred_region
        _
      $region24: #{double_conv.3} parent=11 // pred_fallthru
        _
    $region12: #{double_conv.3} parent=5 // pred_fallthru
      _
    %p269 = scmp.lt.s32.totalorder %s14, 2
    // Predicated region
    $region25: #{double_conv.3} parent=5 // pred_check
      %p270 = pneg %p269
    $region26: #{double_conv.3} parent=5 // pred_check_branch
      %272 = sbr.rel (%p270) target = $region28
    $region27: #{double_conv.3} parent=5 // pred_region
      // Predicated region
      $region29: #{double_conv.3} parent=27 // pred_check
        %p273 = pneg %p48
      $region30: #{double_conv.3} parent=27 // pred_check_branch
        %275 = sbr.rel (%p273) target = $region32
      $region31: #{double_conv.3} parent=27 // pred_region
        %s276 = smul.u32 16, %s22
        %s277 = ssub.s32 17, %s276
        %p278 = scmp.lt.s32.totalorder %s277, 16
        %s279 = scalar_select %p278, %s277, 16
        %s280 = smul.u32 64, %s279
        %s281 = smul.u32 %s280, 2
        %p282 = scmp.lt.s32.totalorder %s21, 1
        %s283 = scalar_select %p282, %s21, 1
        %p284 = scmp.lt.s32.totalorder %s276, 16
        %s285 = scalar_select %p284, %s276, 16
        %s286 = smul.addr %s285, 2
        %s287 = smul.addr %s283, 34
        %s288 = sadd.s32 %s286, %s287
        %s289 = smul.addr %s288, 4
        %s290 = scalar_lea.vmem %s0, %s289
        %s291 = smul.u32 16, %s22
        %s292 = ssub.s32 17, %s291
        %p293 = scmp.lt.s32.totalorder %s292, 16
        %s294 = scalar_select %p293, %s292, 16
        %s295 = smul.u32 64, %s294
        %s296 = smul.u32 %s295, 2
      $region32: #{double_conv.3} parent=27 // pred_fallthru
        _
      // Predicated region
      $region33: #{double_conv.3} parent=27 // pred_check
        %p297 = pneg %p84
      $region34: #{double_conv.3} parent=27 // pred_check_branch
        %299 = sbr.rel (%p297) target = $region36
      $region35: #{double_conv.3} parent=27 // pred_region
        %s300 = smul.u32 %s22, 16
        %s301 = ssub.s32 %s300, 1
        %p302 = scmp.gt.s32.totalorder %s301, 0
        %s303 = scalar_select %p302, %s301, 0
        %p304 = scmp.lt.s32.totalorder %s21, 1
        %s305 = scalar_select %p304, %s21, 1
        %p306 = scmp.lt.s32.totalorder %s303, 16
        %s307 = scalar_select %p306, %s303, 16
        %s308 = smul.addr %s307, 2
        %s309 = smul.addr %s305, 34
        %s310 = sadd.s32 %s308, %s309
        %s311 = smul.addr %s310, 4
        %s312 = scalar_lea.vmem %s1, %s311
        %s313 = smul.u32 %s22, 16
        %s314 = ssub.s32 %s313, 1
        %p315 = scmp.gt.s32.totalorder %s314, 0
        %s316 = scalar_select %p315, %s314, 0
      $region36: #{double_conv.3} parent=27 // pred_fallthru
        _
      // Predicated region
      $region37: #{double_conv.3} parent=27 // pred_check
        %p317 = pneg %p120
      $region38: #{double_conv.3} parent=27 // pred_check_branch
        %319 = sbr.rel (%p317) target = $region40
      $region39: #{double_conv.3} parent=27 // pred_region
        %s320 = smul.u32 %s22, 16
        %s321 = sadd.s32 %s320, 16
        %p322 = scmp.lt.s32.totalorder %s321, 16
        %s323 = scalar_select %p322, %s321, 16
        %p324 = scmp.lt.s32.totalorder %s21, 1
        %s325 = scalar_select %p324, %s21, 1
        %p326 = scmp.lt.s32.totalorder %s323, 16
        %s327 = scalar_select %p326, %s323, 16
        %s328 = smul.addr %s327, 2
        %s329 = smul.addr %s325, 34
        %s330 = sadd.s32 %s328, %s329
        %s331 = smul.addr %s330, 4
        %s332 = scalar_lea.vmem %s2, %s331
        %s333 = smul.u32 %s22, 16
        %s334 = sadd.s32 %s333, 16
        %p335 = scmp.lt.s32.totalorder %s334, 16
        %s336 = scalar_select %p335, %s334, 16
      $region40: #{double_conv.3} parent=27 // pred_fallthru
        _
    $region28: #{double_conv.3} parent=5 // pred_fallthru
      _
    %p337 = scmp.le.s32.totalorder 1, %s14
    %p338 = scmp.lt.s32.totalorder %s14, 3
    %p339 = pnand %p337, %p338
    %p340 = pneg %p339
    // Predicated region
    $region41: #{double_conv.3} parent=5 // pred_check
      _
    $region42: #{double_conv.3} parent=5 // pred_check_branch
      %342 = sbr.rel (%p339) target = $region44
    $region43: #{double_conv.3} parent=5 // pred_region
      %s343 = ssub.s32 %s14, 1
      %s344 = smul.u32 16, %s24
      %s345 = ssub.s32 17, %s344
      %p346 = scmp.lt.s32.totalorder %s345, 16
      %s347 = scalar_select %p346, %s345, 16
      %s348 = smul.u32 64, %s347
      %s349 = smul.u32 %s348, 2
      %p350 = scmp.lt.s32.totalorder %s23, 1
      %s351 = scalar_select %p350, %s23, 1
      %p352 = scmp.lt.s32.totalorder %s344, 16
      %s353 = scalar_select %p352, %s344, 16
      %s354 = smul.addr %s353, 2
      %s355 = smul.addr %s351, 34
      %s356 = sadd.s32 %s354, %s355
      %s357 = smul.addr %s356, 4
      %s358 = scalar_lea.vmem %s0, %s357
      %p359 = pneg %p54
      %p360 = pneg %p51
      %s361 = smul.u32 %s24, 16
      %s362 = ssub.s32 %s361, 1
      %p363 = scmp.gt.s32.totalorder %s362, 0
      %s364 = scalar_select %p363, %s362, 0
      %p365 = scmp.lt.s32.totalorder %s23, 1
      %s366 = scalar_select %p365, %s23, 1
      %p367 = scmp.lt.s32.totalorder %s364, 16
      %s368 = scalar_select %p367, %s364, 16
      %s369 = smul.addr %s368, 2
      %s370 = smul.addr %s366, 34
      %s371 = sadd.s32 %s369, %s370
      %s372 = smul.addr %s371, 4
      %s373 = scalar_lea.vmem %s1, %s372
      %p374 = pneg %p90
      %p375 = pneg %p87
      %s376 = smul.u32 %s24, 16
      %s377 = sadd.s32 %s376, 16
      %p378 = scmp.lt.s32.totalorder %s377, 16
      %s379 = scalar_select %p378, %s377, 16
      %p380 = scmp.lt.s32.totalorder %s23, 1
      %s381 = scalar_select %p380, %s23, 1
      %p382 = scmp.lt.s32.totalorder %s379, 16
      %s383 = scalar_select %p382, %s379, 16
      %s384 = smul.addr %s383, 2
      %s385 = smul.addr %s381, 34
      %s386 = sadd.s32 %s384, %s385
      %s387 = smul.addr %s386, 4
      %s388 = scalar_lea.vmem %s2, %s387
      %p389 = pneg %p126
      %p390 = pneg %p123
      %p391 = pneg %p147
      %p392 = pneg %p144
      %p393 = pneg %p168
      %p394 = pneg %p165
      %p395 = pneg %p189
      %p396 = pneg %p186
      %p397 = pneg %p217
      %p398 = pneg %p214
      %s399 = smul.u32 16, %s24
      %p400 = scmp.lt.s32.totalorder %s23, 1
      %s401 = scalar_select %p400, %s23, 1
      %p402 = scmp.lt.s32.totalorder %s399, 15
      %s403 = scalar_select %p402, %s399, 15
      %s404 = smul.addr %s403, 2
      %s405 = smul.addr %s401, 32
      %s406 = sadd.s32 %s404, %s405
      %s407 = smul.addr %s406, 4
      %s408 = scalar_lea.vmem %s6, %s407
      %p409 = pneg %p245
      %p410 = pneg %p242
      %p411 = scmp.lt.s32.totalorder %s23, 1
      %s412 = scalar_select %p411, %s23, 1
      %p413 = scmp.lt.s32.totalorder %s24, 0
      %s414 = scalar_select %p413, %s24, 0
      %s415 = sadd.s32 %s414, %s412
      %s416 = smul.addr %s415, 2
      %s417 = scalar_lea.vmem %s7, %s416
      %s418 = smul.u32 16, %s24
      %s419 = ssub.s32 17, %s418
      %p420 = scmp.lt.s32.totalorder %s419, 16
      %s421 = scalar_select %p420, %s419, 16
      %s422 = smul.u32 64, %s421
      %s423 = smul.u32 %s422, 2
      %p424 = scmp.lt.s32.totalorder %s23, 1
      %s425 = scalar_select %p424, %s23, 1
      %p426 = scmp.lt.s32.totalorder %s418, 16
      %s427 = scalar_select %p426, %s418, 16
      %s428 = smul.addr %s427, 2
      %s429 = smul.addr %s425, 34
      %s430 = sadd.s32 %s428, %s429
      %s431 = smul.addr %s430, 4
      %s432 = scalar_lea.vmem %s0, %s431
      %s433 = smul.u32 16, %s24
      %s434 = ssub.s32 17, %s433
      %p435 = scmp.lt.s32.totalorder %s434, 16
      %s436 = scalar_select %p435, %s434, 16
      %s437 = smul.u32 64, %s436
      %s438 = smul.u32 %s437, 2
      %s439 = smul.u32 %s24, 16
      %s440 = ssub.s32 %s439, 1
      %p441 = scmp.gt.s32.totalorder %s440, 0
      %s442 = scalar_select %p441, %s440, 0
      %p443 = scmp.lt.s32.totalorder %s23, 1
      %s444 = scalar_select %p443, %s23, 1
      %p445 = scmp.lt.s32.totalorder %s442, 16
      %s446 = scalar_select %p445, %s442, 16
      %s447 = smul.addr %s446, 2
      %s448 = smul.addr %s444, 34
      %s449 = sadd.s32 %s447, %s448
      %s450 = smul.addr %s449, 4
      %s451 = scalar_lea.vmem %s1, %s450
      %s452 = smul.u32 %s24, 16
      %s453 = ssub.s32 %s452, 1
      %p454 = scmp.gt.s32.totalorder %s453, 0
      %s455 = scalar_select %p454, %s453, 0
      %s456 = smul.u32 %s24, 16
      %s457 = sadd.s32 %s456, 16
      %p458 = scmp.lt.s32.totalorder %s457, 16
      %s459 = scalar_select %p458, %s457, 16
      %p460 = scmp.lt.s32.totalorder %s23, 1
      %s461 = scalar_select %p460, %s23, 1
      %p462 = scmp.lt.s32.totalorder %s459, 16
      %s463 = scalar_select %p462, %s459, 16
      %s464 = smul.addr %s463, 2
      %s465 = smul.addr %s461, 34
      %s466 = sadd.s32 %s464, %s465
      %s467 = smul.addr %s466, 4
      %s468 = scalar_lea.vmem %s2, %s467
      %s469 = smul.u32 %s24, 16
      %s470 = sadd.s32 %s469, 16
      %p471 = scmp.lt.s32.totalorder %s470, 16
      %s472 = scalar_select %p471, %s470, 16
      %s473 = smul.u32 16, %s24
      %p474 = scmp.lt.s32.totalorder %s23, 1
      %s475 = scalar_select %p474, %s23, 1
      %p476 = scmp.lt.s32.totalorder %s473, 15
      %s477 = scalar_select %p476, %s473, 15
      %s478 = smul.addr %s477, 2
      %s479 = smul.addr %s475, 32
      %s480 = sadd.s32 %s478, %s479
      %s481 = smul.addr %s480, 4
      %s482 = scalar_lea.vmem %s6, %s481
      %s483 = smul.u32 16, %s24
      %p484 = scmp.lt.s32.totalorder %s23, 1
      %s485 = scalar_select %p484, %s23, 1
      %p486 = scmp.lt.s32.totalorder %s24, 0
      %s487 = scalar_select %p486, %s24, 0
      %s488 = sadd.s32 %s487, %s485
      %s489 = smul.addr %s488, 2
      %s490 = scalar_lea.vmem %s7, %s489
      %v492 = vld [vmem:[%s432] sm:$0xf]
      %v493 = vld [vmem:[%s432 + $0x4] sm:$0xf]
      %v494 = vld [vmem:[%s432 + $0x8] sm:$0xf]
      %v495 = vld [vmem:[%s432 + $0xc] sm:$0xf]
      %v496 = vld [vmem:[%s432 + $0x10] sm:$0xf]
      %v497 = vld [vmem:[%s432 + $0x14] sm:$0xf]
      %v498 = vld [vmem:[%s432 + $0x18] sm:$0xf]
      %v499 = vld [vmem:[%s432 + $0x1c] sm:$0xf]
      %v500 = vld [vmem:[%s432 + $0x20] sm:$0xf]
      %v501 = vld [vmem:[%s432 + $0x24] sm:$0xf]
      %v502 = vld [vmem:[%s432 + $0x28] sm:$0xf]
      %v503 = vld [vmem:[%s432 + $0x2c] sm:$0xf]
      %v504 = vld [vmem:[%s432 + $0x30] sm:$0xf]
      %v505 = vld [vmem:[%s432 + $0x34] sm:$0xf]
      %v506 = vld [vmem:[%s432 + $0x38] sm:$0xf]
      %v507 = vld [vmem:[%s432 + $0x3c] sm:$0xf]
      %v508 = vld [vmem:[%s432 + $0x40] sm:$0xf]
      %v509 = vld [vmem:[%s432 + $0x44] sm:$0xf]
      %v510 = vld [vmem:[%s432 + $0x48] sm:$0xf]
      %v511 = vld [vmem:[%s432 + $0x4c] sm:$0xf]
      %v512 = vld [vmem:[%s432 + $0x50] sm:$0xf]
      %v513 = vld [vmem:[%s432 + $0x54] sm:$0xf]
      %v514 = vld [vmem:[%s432 + $0x58] sm:$0xf]
      %v515 = vld [vmem:[%s432 + $0x5c] sm:$0xf]
      %v516 = vld [vmem:[%s432 + $0x60] sm:$0xf]
      %v517 = vld [vmem:[%s432 + $0x64] sm:$0xf]
      %v518 = vld [vmem:[%s432 + $0x68] sm:$0xf]
      %v519 = vld [vmem:[%s432 + $0x6c] sm:$0xf]
      %v520 = vld [vmem:[%s432 + $0x70] sm:$0xf]
      %v521 = vld [vmem:[%s432 + $0x74] sm:$0xf]
      %v522 = vld [vmem:[%s432 + $0x78] sm:$0xf]
      %v523 = vld [vmem:[%s432 + $0x7c] sm:$0xf]
      %v524 = vld [vmem:[%s451] sm:$0xf]
      %v525 = vld [vmem:[%s451 + $0x4] sm:$0xf]
      %v526 = vld [vmem:[%s468] sm:$0xf]
      %v527 = vld [vmem:[%s468 + $0x4] sm:$0xf]
      %p528 = scmp.gt.s32.totalorder %s24, 0
      %s529 = scalar_select %p528, 1, 0
      %v530 = vstv %s529
      %vm531 = vcmp.eq.s32.totalorder %v530, 1
      %v532 = vsel %vm531, %v524, 0
      %v533 = vsel %vm531, %v525, 0
      %v570 = vunpack.c.l.b16 %v532
      %v571 = vunpack.c.l.b16 %v533
      %v572 = vunpack.c.l.b16 %v492
      %v573 = vunpack.c.l.b16 %v493
      %v574 = vunpack.c.l.b16 %v494
      %v575 = vunpack.c.l.b16 %v495
      %v576 = vunpack.c.l.b16 %v496
      %v577 = vunpack.c.l.b16 %v497
      %v578 = vunpack.c.l.b16 %v498
      %v579 = vunpack.c.l.b16 %v499
      %v580 = vunpack.c.l.b16 %v500
      %v581 = vunpack.c.l.b16 %v501
      %v582 = vunpack.c.l.b16 %v502
      %v583 = vunpack.c.l.b16 %v503
      %v584 = vunpack.c.l.b16 %v504
      %v585 = vunpack.c.l.b16 %v505
      %v586 = vunpack.c.l.b16 %v506
      %v587 = vunpack.c.l.b16 %v507
      %v588 = vunpack.c.l.b16 %v508
      %v589 = vunpack.c.l.b16 %v509
      %v590 = vunpack.c.l.b16 %v510
      %v591 = vunpack.c.l.b16 %v511
      %v592 = vunpack.c.l.b16 %v512
      %v593 = vunpack.c.l.b16 %v513
      %v594 = vunpack.c.l.b16 %v514
      %v595 = vunpack.c.l.b16 %v515
      %v596 = vunpack.c.l.b16 %v516
      %v597 = vunpack.c.l.b16 %v517
      %v598 = vunpack.c.l.b16 %v518
      %v599 = vunpack.c.l.b16 %v519
      %v600 = vunpack.c.l.b16 %v520
      %v601 = vunpack.c.l.b16 %v521
      %v602 = vunpack.c.l.b16 %v522
      %v603 = vunpack.c.l.b16 %v523
      %v604 = vunpack.c.l.b16 %v526
      %v605 = vunpack.c.l.b16 %v527
      %v606 = vpack.c.b16 %v571, %v570
      %v607 = vpack.c.b16 %v573, %v572
      %v608 = vpack.c.b16 %v575, %v574
      %v609 = vpack.c.b16 %v577, %v576
      %v610 = vpack.c.b16 %v579, %v578
      %v611 = vpack.c.b16 %v581, %v580
      %v612 = vpack.c.b16 %v583, %v582
      %v613 = vpack.c.b16 %v585, %v584
      %v614 = vpack.c.b16 %v587, %v586
      %v615 = vpack.c.b16 %v589, %v588
      %v616 = vpack.c.b16 %v591, %v590
      %v617 = vpack.c.b16 %v593, %v592
      %v618 = vpack.c.b16 %v595, %v594
      %v619 = vpack.c.b16 %v597, %v596
      %v620 = vpack.c.b16 %v599, %v598
      %v621 = vpack.c.b16 %v601, %v600
      %v622 = vpack.c.b16 %v603, %v602
      %v623 = vpack.c.b16 %v605, %v604
      %v625 = vshrl.u32 %v606, 16
      %v627 = vrot.slane %v625, 7
      %v628 = vshll.u32 %v606, 16
      %v630 = vor.u32 %v627, %v628
      %v632 = vshrl.u32 %v607, 16
      %v634 = vrot.slane %v632, 7
      %v635 = vshll.u32 %v607, 16
      %v637 = vor.u32 %v634, %v635
      %v639 = vshrl.u32 %v608, 16
      %v641 = vrot.slane %v639, 7
      %v642 = vshll.u32 %v608, 16
      %v644 = vor.u32 %v641, %v642
      %v646 = vshrl.u32 %v609, 16
      %v648 = vrot.slane %v646, 7
      %v649 = vshll.u32 %v609, 16
      %v651 = vor.u32 %v648, %v649
      %v653 = vshrl.u32 %v610, 16
      %v655 = vrot.slane %v653, 7
      %v656 = vshll.u32 %v610, 16
      %v658 = vor.u32 %v655, %v656
      %v660 = vshrl.u32 %v611, 16
      %v662 = vrot.slane %v660, 7
      %v663 = vshll.u32 %v611, 16
      %v665 = vor.u32 %v662, %v663
      %v667 = vshrl.u32 %v612, 16
      %v669 = vrot.slane %v667, 7
      %v670 = vshll.u32 %v612, 16
      %v672 = vor.u32 %v669, %v670
      %v674 = vshrl.u32 %v613, 16
      %v676 = vrot.slane %v674, 7
      %v677 = vshll.u32 %v613, 16
      %v679 = vor.u32 %v676, %v677
      %v681 = vshrl.u32 %v614, 16
      %v683 = vrot.slane %v681, 7
      %v684 = vshll.u32 %v614, 16
      %v686 = vor.u32 %v683, %v684
      %v688 = vshrl.u32 %v615, 16
      %v690 = vrot.slane %v688, 7
      %v691 = vshll.u32 %v615, 16
      %v693 = vor.u32 %v690, %v691
      %v695 = vshrl.u32 %v616, 16
      %v697 = vrot.slane %v695, 7
      %v698 = vshll.u32 %v616, 16
      %v700 = vor.u32 %v697, %v698
      %v702 = vshrl.u32 %v617, 16
      %v704 = vrot.slane %v702, 7
      %v705 = vshll.u32 %v617, 16
      %v707 = vor.u32 %v704, %v705
      %v709 = vshrl.u32 %v618, 16
      %v711 = vrot.slane %v709, 7
      %v712 = vshll.u32 %v618, 16
      %v714 = vor.u32 %v711, %v712
      %v716 = vshrl.u32 %v619, 16
      %v718 = vrot.slane %v716, 7
      %v719 = vshll.u32 %v619, 16
      %v721 = vor.u32 %v718, %v719
      %v723 = vshrl.u32 %v620, 16
      %v725 = vrot.slane %v723, 7
      %v726 = vshll.u32 %v620, 16
      %v728 = vor.u32 %v725, %v726
      %v730 = vshrl.u32 %v621, 16
      %v732 = vrot.slane %v730, 7
      %v733 = vshll.u32 %v621, 16
      %v735 = vor.u32 %v732, %v733
      %v737 = vshrl.u32 %v622, 16
      %v739 = vrot.slane %v737, 7
      %v740 = vshll.u32 %v622, 16
      %v742 = vor.u32 %v739, %v740
      %v744 = vshrl.u32 %v623, 16
      %v746 = vrot.slane %v744, 7
      %v747 = vshll.u32 %v623, 16
      %v749 = vor.u32 %v746, %v747
      %vm786 = vcmask 1040384
      %vm787 = vsmask.f32 256
      %vm788 = vmand %vm786, %vm787
      %v789 = vsel %vm788, 0, %v630
      %v790 = vsel %vm788, 0, %v637
      %v791 = vsel %vm788, 0, %v644
      %v792 = vsel %vm788, 0, %v651
      %v793 = vsel %vm788, 0, %v658
      %v794 = vsel %vm788, 0, %v665
      %v795 = vsel %vm788, 0, %v672
      %v796 = vsel %vm788, 0, %v679
      %v797 = vsel %vm788, 0, %v686
      %v798 = vsel %vm788, 0, %v693
      %v799 = vsel %vm788, 0, %v700
      %v800 = vsel %vm788, 0, %v707
      %v801 = vsel %vm788, 0, %v714
      %v802 = vsel %vm788, 0, %v721
      %v803 = vsel %vm788, 0, %v728
      %v804 = vsel %vm788, 0, %v735
      %v805 = vsel %vm788, 0, %v742
      %v806 = vsel %vm788, 0, %v749
      %v807 = vsel %vm788, %v627, 0
      %v808 = vsel %vm788, %v634, 0
      %v809 = vsel %vm788, %v641, 0
      %v810 = vsel %vm788, %v648, 0
      %v811 = vsel %vm788, %v655, 0
      %v812 = vsel %vm788, %v662, 0
      %v813 = vsel %vm788, %v669, 0
      %v814 = vsel %vm788, %v676, 0
      %v815 = vsel %vm788, %v683, 0
      %v816 = vsel %vm788, %v690, 0
      %v817 = vsel %vm788, %v697, 0
      %v818 = vsel %vm788, %v704, 0
      %v819 = vsel %vm788, %v711, 0
      %v820 = vsel %vm788, %v718, 0
      %v821 = vsel %vm788, %v725, 0
      %v822 = vsel %vm788, %v732, 0
      %v823 = vsel %vm788, %v739, 0
      %v824 = vsel %vm788, %v746, 0
      %vm825 = vsmask.f32 7424
      %v827 = vshrl.u32 %v789, 16
      %v829 = vshll.u32 %v789, 16
      %v831 = vrot.slane %v829, 1
      %v832 = vor.u32 %v827, %v831
      %v834 = vshll.u32 %v807, 16
      %v836 = vrot.slane %v834, 1
      %v837 = vsel %vm825, %v832, %v836
      %v839 = vshrl.u32 %v790, 16
      %v841 = vshll.u32 %v790, 16
      %v843 = vrot.slane %v841, 1
      %v844 = vor.u32 %v839, %v843
      %v846 = vshll.u32 %v808, 16
      %v848 = vrot.slane %v846, 1
      %v849 = vsel %vm825, %v844, %v848
      %v851 = vshrl.u32 %v791, 16
      %v853 = vshll.u32 %v791, 16
      %v855 = vrot.slane %v853, 1
      %v856 = vor.u32 %v851, %v855
      %v858 = vshll.u32 %v809, 16
      %v860 = vrot.slane %v858, 1
      %v861 = vsel %vm825, %v856, %v860
      %v863 = vshrl.u32 %v792, 16
      %v865 = vshll.u32 %v792, 16
      %v867 = vrot.slane %v865, 1
      %v868 = vor.u32 %v863, %v867
      %v870 = vshll.u32 %v810, 16
      %v872 = vrot.slane %v870, 1
      %v873 = vsel %vm825, %v868, %v872
      %v875 = vshrl.u32 %v793, 16
      %v877 = vshll.u32 %v793, 16
      %v879 = vrot.slane %v877, 1
      %v880 = vor.u32 %v875, %v879
      %v882 = vshll.u32 %v811, 16
      %v884 = vrot.slane %v882, 1
      %v885 = vsel %vm825, %v880, %v884
      %v887 = vshrl.u32 %v794, 16
      %v889 = vshll.u32 %v794, 16
      %v891 = vrot.slane %v889, 1
      %v892 = vor.u32 %v887, %v891
      %v894 = vshll.u32 %v812, 16
      %v896 = vrot.slane %v894, 1
      %v897 = vsel %vm825, %v892, %v896
      %v899 = vshrl.u32 %v795, 16
      %v901 = vshll.u32 %v795, 16
      %v903 = vrot.slane %v901, 1
      %v904 = vor.u32 %v899, %v903
      %v906 = vshll.u32 %v813, 16
      %v908 = vrot.slane %v906, 1
      %v909 = vsel %vm825, %v904, %v908
      %v911 = vshrl.u32 %v796, 16
      %v913 = vshll.u32 %v796, 16
      %v915 = vrot.slane %v913, 1
      %v916 = vor.u32 %v911, %v915
      %v918 = vshll.u32 %v814, 16
      %v920 = vrot.slane %v918, 1
      %v921 = vsel %vm825, %v916, %v920
      %v923 = vshrl.u32 %v797, 16
      %v925 = vshll.u32 %v797, 16
      %v927 = vrot.slane %v925, 1
      %v928 = vor.u32 %v923, %v927
      %v930 = vshll.u32 %v815, 16
      %v932 = vrot.slane %v930, 1
      %v933 = vsel %vm825, %v928, %v932
      %v935 = vshrl.u32 %v798, 16
      %v937 = vshll.u32 %v798, 16
      %v939 = vrot.slane %v937, 1
      %v940 = vor.u32 %v935, %v939
      %v942 = vshll.u32 %v816, 16
      %v944 = vrot.slane %v942, 1
      %v945 = vsel %vm825, %v940, %v944
      %v947 = vshrl.u32 %v799, 16
      %v949 = vshll.u32 %v799, 16
      %v951 = vrot.slane %v949, 1
      %v952 = vor.u32 %v947, %v951
      %v954 = vshll.u32 %v817, 16
      %v956 = vrot.slane %v954, 1
      %v957 = vsel %vm825, %v952, %v956
      %v959 = vshrl.u32 %v800, 16
      %v961 = vshll.u32 %v800, 16
      %v963 = vrot.slane %v961, 1
      %v964 = vor.u32 %v959, %v963
      %v966 = vshll.u32 %v818, 16
      %v968 = vrot.slane %v966, 1
      %v969 = vsel %vm825, %v964, %v968
      %v971 = vshrl.u32 %v801, 16
      %v973 = vshll.u32 %v801, 16
      %v975 = vrot.slane %v973, 1
      %v976 = vor.u32 %v971, %v975
      %v978 = vshll.u32 %v819, 16
      %v980 = vrot.slane %v978, 1
      %v981 = vsel %vm825, %v976, %v980
      %v983 = vshrl.u32 %v802, 16
      %v985 = vshll.u32 %v802, 16
      %v987 = vrot.slane %v985, 1
      %v988 = vor.u32 %v983, %v987
      %v990 = vshll.u32 %v820, 16
      %v992 = vrot.slane %v990, 1
      %v993 = vsel %vm825, %v988, %v992
      %v995 = vshrl.u32 %v803, 16
      %v997 = vshll.u32 %v803, 16
      %v999 = vrot.slane %v997, 1
      %v1000 = vor.u32 %v995, %v999
      %v1002 = vshll.u32 %v821, 16
      %v1004 = vrot.slane %v1002, 1
      %v1005 = vsel %vm825, %v1000, %v1004
      %v1007 = vshrl.u32 %v804, 16
      %v1009 = vshll.u32 %v804, 16
      %v1011 = vrot.slane %v1009, 1
      %v1012 = vor.u32 %v1007, %v1011
      %v1014 = vshll.u32 %v822, 16
      %v1016 = vrot.slane %v1014, 1
      %v1017 = vsel %vm825, %v1012, %v1016
      %vm1066 = vcmask 1046528
      %v1067 = vrot.slane %v789, 1
      %v1068 = vrot.slane %v807, 1
      %v1069 = vsel %vm1066, %v1067, %v1068
      %v1070 = vrot.slane %v790, 1
      %v1071 = vrot.slane %v808, 1
      %v1072 = vsel %vm1066, %v1070, %v1071
      %v1073 = vrot.slane %v791, 1
      %v1074 = vrot.slane %v809, 1
      %v1075 = vsel %vm1066, %v1073, %v1074
      %v1076 = vrot.slane %v792, 1
      %v1077 = vrot.slane %v810, 1
      %v1078 = vsel %vm1066, %v1076, %v1077
      %v1079 = vrot.slane %v793, 1
      %v1080 = vrot.slane %v811, 1
      %v1081 = vsel %vm1066, %v1079, %v1080
      %v1082 = vrot.slane %v794, 1
      %v1083 = vrot.slane %v812, 1
      %v1084 = vsel %vm1066, %v1082, %v1083
      %v1085 = vrot.slane %v795, 1
      %v1086 = vrot.slane %v813, 1
      %v1087 = vsel %vm1066, %v1085, %v1086
      %v1088 = vrot.slane %v796, 1
      %v1089 = vrot.slane %v814, 1
      %v1090 = vsel %vm1066, %v1088, %v1089
      %v1091 = vrot.slane %v797, 1
      %v1092 = vrot.slane %v815, 1
      %v1093 = vsel %vm1066, %v1091, %v1092
      %v1094 = vrot.slane %v798, 1
      %v1095 = vrot.slane %v816, 1
      %v1096 = vsel %vm1066, %v1094, %v1095
      %v1097 = vrot.slane %v799, 1
      %v1098 = vrot.slane %v817, 1
      %v1099 = vsel %vm1066, %v1097, %v1098
      %v1100 = vrot.slane %v800, 1
      %v1101 = vrot.slane %v818, 1
      %v1102 = vsel %vm1066, %v1100, %v1101
      %v1103 = vrot.slane %v801, 1
      %v1104 = vrot.slane %v819, 1
      %v1105 = vsel %vm1066, %v1103, %v1104
      %v1106 = vrot.slane %v802, 1
      %v1107 = vrot.slane %v820, 1
      %v1108 = vsel %vm1066, %v1106, %v1107
      %v1109 = vrot.slane %v803, 1
      %v1110 = vrot.slane %v821, 1
      %v1111 = vsel %vm1066, %v1109, %v1110
      %v1112 = vrot.slane %v804, 1
      %v1113 = vrot.slane %v822, 1
      %v1114 = vsel %vm1066, %v1112, %v1113
      %v1131 = vld [vmem:[%s5] sm:$0xf]
      %v1132 = vld [vmem:[%s5 + $0x4] sm:$0xf]
      %v1133 = vld [vmem:[%s5 + $0x8] sm:$0xf]
      %v1134 = vld [vmem:[%s5 + $0xc] sm:$0xf]
      %v1135 = vld [vmem:[%s5 + $0x10] sm:$0xf]
      %v1136 = vld [vmem:[%s5 + $0x14] sm:$0xf]
      %v1137 = vld [vmem:[%s5 + $0x18] sm:$0xf]
      %v1138 = vld [vmem:[%s5 + $0x1c] sm:$0xf]
      %v1139 = vld [vmem:[%s5 + $0x20] sm:$0xf]
      %v1140 = vld [vmem:[%s5 + $0x24] sm:$0xf]
      %v1141 = vld [vmem:[%s5 + $0x28] sm:$0xf]
      %v1142 = vld [vmem:[%s5 + $0x2c] sm:$0xf]
      %v1143 = vld [vmem:[%s5 + $0x30] sm:$0xf]
      %v1144 = vld [vmem:[%s5 + $0x34] sm:$0xf]
      %v1145 = vld [vmem:[%s5 + $0x38] sm:$0xf]
      %v1146 = vld [vmem:[%s5 + $0x3c] sm:$0xf]
      %v1147 = vld [vmem:[%s5 + $0x40] sm:$0xf]
      %v1148 = vld [vmem:[%s5 + $0x44] sm:$0xf]
      %v1149 = vld [vmem:[%s5 + $0x48] sm:$0xf]
      %v1150 = vld [vmem:[%s5 + $0x4c] sm:$0xf]
      %v1151 = vld [vmem:[%s5 + $0x50] sm:$0xf]
      %v1152 = vld [vmem:[%s5 + $0x54] sm:$0xf]
      %v1153 = vld [vmem:[%s5 + $0x58] sm:$0xf]
      %v1154 = vld [vmem:[%s5 + $0x5c] sm:$0xf]
      %v1155 = vld [vmem:[%s5 + $0x60] sm:$0xf]
      %v1156 = vld [vmem:[%s5 + $0x64] sm:$0xf]
      %v1157 = vld [vmem:[%s5 + $0x68] sm:$0xf]
      %v1158 = vld [vmem:[%s5 + $0x6c] sm:$0xf]
      %v1159 = vld [vmem:[%s5 + $0x70] sm:$0xf]
      %v1160 = vld [vmem:[%s5 + $0x74] sm:$0xf]
      %v1161 = vld [vmem:[%s5 + $0x78] sm:$0xf]
      %v1162 = vld [vmem:[%s5 + $0x7c] sm:$0xf]
      %v1163 = vld [vmem:[%s5 + $0x80] sm:$0xf]
      %v1164 = vld [vmem:[%s5 + $0x84] sm:$0xf]
      %v1165 = vld [vmem:[%s5 + $0x88] sm:$0xf]
      %v1166 = vld [vmem:[%s5 + $0x8c] sm:$0xf]
      %v1167 = vld [vmem:[%s5 + $0x90] sm:$0xf]
      %v1168 = vld [vmem:[%s5 + $0x94] sm:$0xf]
      %v1169 = vld [vmem:[%s5 + $0x98] sm:$0xf]
      %v1170 = vld [vmem:[%s5 + $0x9c] sm:$0xf]
      %v1171 = vld [vmem:[%s5 + $0xa0] sm:$0xf]
      %v1172 = vld [vmem:[%s5 + $0xa4] sm:$0xf]
      %v1173 = vld [vmem:[%s5 + $0xa8] sm:$0xf]
      %v1174 = vld [vmem:[%s5 + $0xac] sm:$0xf]
      %v1175 = vld [vmem:[%s5 + $0xb0] sm:$0xf]
      %v1176 = vld [vmem:[%s5 + $0xb4] sm:$0xf]
      %v1177 = vld [vmem:[%s5 + $0xb8] sm:$0xf]
      %v1178 = vld [vmem:[%s5 + $0xbc] sm:$0xf]
      %v1180 = vshrl.u32 %v805, 16
      %v1182 = vshll.u32 %v805, 16
      %v1184 = vrot.slane %v1182, 1
      %v1185 = vor.u32 %v1180, %v1184
      %v1187 = vshll.u32 %v823, 16
      %v1189 = vrot.slane %v1187, 1
      %v1190 = vsel %vm825, %v1185, %v1189
      %v1194 = vrot.slane %v805, 1
      %v1195 = vrot.slane %v823, 1
      %v1196 = vsel %vm1066, %v1194, %v1195
      %s1198 = scalar_lea.vmem %s5, 192
      %v1199 = vld [vmem:[%s1198] sm:$0xf]
      %v1200 = vld [vmem:[%s1198 + $0x4] sm:$0xf]
      %v1201 = vld [vmem:[%s1198 + $0x8] sm:$0xf]
      %v1202 = vld [vmem:[%s1198 + $0xc] sm:$0xf]
      %v1203 = vld [vmem:[%s1198 + $0x10] sm:$0xf]
      %v1204 = vld [vmem:[%s1198 + $0x14] sm:$0xf]
      %v1205 = vld [vmem:[%s1198 + $0x18] sm:$0xf]
      %v1206 = vld [vmem:[%s1198 + $0x1c] sm:$0xf]
      %v1207 = vld [vmem:[%s1198 + $0x20] sm:$0xf]
      %v1208 = vld [vmem:[%s1198 + $0x24] sm:$0xf]
      %v1209 = vld [vmem:[%s1198 + $0x28] sm:$0xf]
      %v1210 = vld [vmem:[%s1198 + $0x2c] sm:$0xf]
      %v1211 = vld [vmem:[%s1198 + $0x30] sm:$0xf]
      %v1212 = vld [vmem:[%s1198 + $0x34] sm:$0xf]
      %v1213 = vld [vmem:[%s1198 + $0x38] sm:$0xf]
      %v1214 = vld [vmem:[%s1198 + $0x3c] sm:$0xf]
      %v1215 = vld [vmem:[%s1198 + $0x40] sm:$0xf]
      %v1216 = vld [vmem:[%s1198 + $0x44] sm:$0xf]
      %v1217 = vld [vmem:[%s1198 + $0x48] sm:$0xf]
      %v1218 = vld [vmem:[%s1198 + $0x4c] sm:$0xf]
      %v1219 = vld [vmem:[%s1198 + $0x50] sm:$0xf]
      %v1220 = vld [vmem:[%s1198 + $0x54] sm:$0xf]
      %v1221 = vld [vmem:[%s1198 + $0x58] sm:$0xf]
      %v1222 = vld [vmem:[%s1198 + $0x5c] sm:$0xf]
      %v1223 = vld [vmem:[%s1198 + $0x60] sm:$0xf]
      %v1224 = vld [vmem:[%s1198 + $0x64] sm:$0xf]
      %v1225 = vld [vmem:[%s1198 + $0x68] sm:$0xf]
      %v1226 = vld [vmem:[%s1198 + $0x6c] sm:$0xf]
      %v1227 = vld [vmem:[%s1198 + $0x70] sm:$0xf]
      %v1228 = vld [vmem:[%s1198 + $0x74] sm:$0xf]
      %v1229 = vld [vmem:[%s1198 + $0x78] sm:$0xf]
      %v1230 = vld [vmem:[%s1198 + $0x7c] sm:$0xf]
      %v1231 = vld [vmem:[%s1198 + $0x80] sm:$0xf]
      %v1232 = vld [vmem:[%s1198 + $0x84] sm:$0xf]
      %v1233 = vld [vmem:[%s1198 + $0x88] sm:$0xf]
      %v1234 = vld [vmem:[%s1198 + $0x8c] sm:$0xf]
      %v1235 = vld [vmem:[%s1198 + $0x90] sm:$0xf]
      %v1236 = vld [vmem:[%s1198 + $0x94] sm:$0xf]
      %v1237 = vld [vmem:[%s1198 + $0x98] sm:$0xf]
      %v1238 = vld [vmem:[%s1198 + $0x9c] sm:$0xf]
      %v1239 = vld [vmem:[%s1198 + $0xa0] sm:$0xf]
      %v1240 = vld [vmem:[%s1198 + $0xa4] sm:$0xf]
      %v1241 = vld [vmem:[%s1198 + $0xa8] sm:$0xf]
      %v1242 = vld [vmem:[%s1198 + $0xac] sm:$0xf]
      %v1243 = vld [vmem:[%s1198 + $0xb0] sm:$0xf]
      %v1244 = vld [vmem:[%s1198 + $0xb4] sm:$0xf]
      %v1245 = vld [vmem:[%s1198 + $0xb8] sm:$0xf]
      %v1246 = vld [vmem:[%s1198 + $0xbc] sm:$0xf]
      %v1295 = vunpack.c.l.b16 %v1199
      %v1296 = vunpack.c.l.b16 %v1200
      %v1297 = vunpack.c.l.b16 %v1201
      %v1298 = vunpack.c.l.b16 %v1202
      %v1299 = vunpack.c.l.b16 %v1203
      %v1300 = vunpack.c.l.b16 %v1204
      %v1301 = vunpack.c.l.b16 %v1205
      %v1302 = vunpack.c.l.b16 %v1206
      %v1303 = vunpack.c.l.b16 %v1207
      %v1304 = vunpack.c.l.b16 %v1208
      %v1305 = vunpack.c.l.b16 %v1209
      %v1306 = vunpack.c.l.b16 %v1210
      %v1307 = vunpack.c.l.b16 %v1211
      %v1308 = vunpack.c.l.b16 %v1212
      %v1309 = vunpack.c.l.b16 %v1213
      %v1310 = vunpack.c.l.b16 %v1214
      %v1311 = vunpack.c.l.b16 %v1215
      %v1312 = vunpack.c.l.b16 %v1216
      %v1313 = vunpack.c.l.b16 %v1217
      %v1314 = vunpack.c.l.b16 %v1218
      %v1315 = vunpack.c.l.b16 %v1219
      %v1316 = vunpack.c.l.b16 %v1220
      %v1317 = vunpack.c.l.b16 %v1221
      %v1318 = vunpack.c.l.b16 %v1222
      %v1319 = vunpack.c.l.b16 %v1223
      %v1320 = vunpack.c.l.b16 %v1224
      %v1321 = vunpack.c.l.b16 %v1225
      %v1322 = vunpack.c.l.b16 %v1226
      %v1323 = vunpack.c.l.b16 %v1227
      %v1324 = vunpack.c.l.b16 %v1228
      %v1325 = vunpack.c.l.b16 %v1229
      %v1326 = vunpack.c.l.b16 %v1230
      %v1327 = vunpack.c.l.b16 %v1231
      %v1328 = vunpack.c.l.b16 %v1232
      %v1329 = vunpack.c.l.b16 %v1233
      %v1330 = vunpack.c.l.b16 %v1234
      %v1331 = vunpack.c.l.b16 %v1235
      %v1332 = vunpack.c.l.b16 %v1236
      %v1333 = vunpack.c.l.b16 %v1237
      %v1334 = vunpack.c.l.b16 %v1238
      %v1335 = vunpack.c.l.b16 %v1239
      %v1336 = vunpack.c.l.b16 %v1240
      %v1337 = vunpack.c.l.b16 %v1241
      %v1338 = vunpack.c.l.b16 %v1242
      %v1339 = vunpack.c.l.b16 %v1243
      %v1340 = vunpack.c.l.b16 %v1244
      %v1341 = vunpack.c.l.b16 %v1245
      %v1342 = vunpack.c.l.b16 %v1246
      %v1343 = vpack.c.b16 %v1296, %v1295
      %v1344 = vpack.c.b16 %v1298, %v1297
      %v1345 = vpack.c.b16 %v1300, %v1299
      %v1346 = vpack.c.b16 %v1302, %v1301
      %v1347 = vpack.c.b16 %v1304, %v1303
      %v1348 = vpack.c.b16 %v1306, %v1305
      %v1349 = vpack.c.b16 %v1308, %v1307
      %v1350 = vpack.c.b16 %v1310, %v1309
      %v1351 = vpack.c.b16 %v1312, %v1311
      %v1352 = vpack.c.b16 %v1314, %v1313
      %v1353 = vpack.c.b16 %v1316, %v1315
      %v1354 = vpack.c.b16 %v1318, %v1317
      %v1355 = vpack.c.b16 %v1320, %v1319
      %v1356 = vpack.c.b16 %v1322, %v1321
      %v1357 = vpack.c.b16 %v1324, %v1323
      %v1358 = vpack.c.b16 %v1326, %v1325
      %v1359 = vpack.c.b16 %v1328, %v1327
      %v1360 = vpack.c.b16 %v1330, %v1329
      %v1361 = vpack.c.b16 %v1332, %v1331
      %v1362 = vpack.c.b16 %v1334, %v1333
      %v1363 = vpack.c.b16 %v1336, %v1335
      %v1364 = vpack.c.b16 %v1338, %v1337
      %v1365 = vpack.c.b16 %v1340, %v1339
      %v1366 = vpack.c.b16 %v1342, %v1341
      %1391 = vmatprep.subr.bf16.mxu0 0
      %1392 = vmatpush1.bf16.msra.mxu0 %v1343
      %1393 = vmatprep.subr.bf16.mxu0 0
      %1394 = vmatpush1.bf16.msra.mxu0 %v1344
      %1395 = vmatprep.subr.bf16.mxu0 0
      %1396 = vmatpush1.bf16.msra.mxu0 %v1345
      %1397 = vmatprep.subr.bf16.mxu0 0
      %1398 = vmatpush1.bf16.msra.mxu0 %v1346
      %1399 = vmatprep.subr.bf16.mxu0 0
      %1400 = vmatpush1.bf16.msra.mxu0 %v1347
      %1401 = vmatprep.subr.bf16.mxu0 0
      %1402 = vmatpush1.bf16.msra.mxu0 %v1348
      %1403 = vmatprep.subr.bf16.mxu0 0
      %1404 = vmatpush1.bf16.msra.mxu0 %v1349
      %1405 = vmatprep.subr.bf16.mxu0 0
      %1406 = vmatpush1.bf16.msra.mxu0 %v1350
      %1407 = vmatprep.subr.bf16.mxu0 0
      %1408 = vmatpush1.bf16.msra.mxu0 %v1351
      %1409 = vmatprep.subr.bf16.mxu0 0
      %1410 = vmatpush1.bf16.msra.mxu0 %v1352
      %1411 = vmatprep.subr.bf16.mxu0 0
      %1412 = vmatpush1.bf16.msra.mxu0 %v1353
      %1413 = vmatprep.subr.bf16.mxu0 0
      %1414 = vmatpush1.bf16.msra.mxu0 %v1354
      %1415 = vmatprep.subr.bf16.mxu0 0
      %1416 = vmatpush1.bf16.msra.mxu0 %v1355
      %1417 = vmatprep.subr.bf16.mxu0 0
      %1418 = vmatpush1.bf16.msra.mxu0 %v1356
      %1419 = vmatprep.subr.bf16.mxu0 0
      %1420 = vmatpush1.bf16.msra.mxu0 %v1357
      %1421 = vmatprep.subr.bf16.mxu0 0
      %1422 = vmatpush1.bf16.msra.mxu0 %v1358
      %1423 = vmatprep.mubr.bf16.mxu0 %v849
      %1424 = vmatmul.mubr.bf16.gmra.mrb[0].mxu0 %v790
      %v1425 = vpop.f32.mrb[0].mxu0
      %v1426 = vadd.f32 0.0, %v1425
      %v1427 = vpop.f32.mrb[0].mxu0
      %v1428 = vpop.f32.mrb[0].mxu0
      %v1429 = vadd.f32 0.0, %v1428
      %v1430 = vpop.f32.mrb[0].mxu0
      %1431 = vmatprep.mubr.bf16.mxu0 %v861
      %1432 = vmatmul.mubr.bf16.gmra.mrb[0].mxu0 %v791
      %v1433 = vpop.f32.mrb[0].mxu0
      %v1434 = vadd.f32 0.0, %v1433
      %v1435 = vpop.f32.mrb[0].mxu0
      %v1436 = vpop.f32.mrb[0].mxu0
      %v1437 = vadd.f32 0.0, %v1436
      %v1438 = vpop.f32.mrb[0].mxu0
      %1439 = vmatprep.mubr.bf16.mxu0 %v873
      %1440 = vmatmul.mubr.bf16.gmra.mrb[0].mxu0 %v792
      %v1441 = vpop.f32.mrb[0].mxu0
      %v1442 = vadd.f32 0.0, %v1441
      %v1443 = vpop.f32.mrb[0].mxu0
      %v1444 = vpop.f32.mrb[0].mxu0
      %v1445 = vadd.f32 0.0, %v1444
      %v1446 = vpop.f32.mrb[0].mxu0
      %1447 = vmatprep.mubr.bf16.mxu0 %v885
      %1448 = vmatmul.mubr.bf16.gmra.mrb[0].mxu0 %v793
      %v1449 = vpop.f32.mrb[0].mxu0
      %v1450 = vadd.f32 0.0, %v1449
      %v1451 = vpop.f32.mrb[0].mxu0
      %v1452 = vpop.f32.mrb[0].mxu0
      %v1453 = vadd.f32 0.0, %v1452
      %v1454 = vpop.f32.mrb[0].mxu0
      %1455 = vmatprep.mubr.bf16.mxu0 %v897
      %1456 = vmatmul.mubr.bf16.gmra.mrb[0].mxu0 %v794
      %v1457 = vpop.f32.mrb[0].mxu0
      %v1458 = vadd.f32 0.0, %v1457
      %v1459 = vpop.f32.mrb[0].mxu0
      %v1460 = vpop.f32.mrb[0].mxu0
      %v1461 = vadd.f32 0.0, %v1460
      %v1462 = vpop.f32.mrb[0].mxu0
      %1463 = vmatprep.mubr.bf16.mxu0 %v909
      %1464 = vmatmul.mubr.bf16.gmra.mrb[0].mxu0 %v795
      %v1465 = vpop.f32.mrb[0].mxu0
      %v1466 = vadd.f32 0.0, %v1465
      %v1467 = vpop.f32.mrb[0].mxu0
      %v1468 = vpop.f32.mrb[0].mxu0
      %v1469 = vadd.f32 0.0, %v1468
      %v1470 = vpop.f32.mrb[0].mxu0
      %1471 = vmatprep.mubr.bf16.mxu0 %v921
      %1472 = vmatmul.mubr.bf16.gmra.mrb[0].mxu0 %v796
      %v1473 = vpop.f32.mrb[0].mxu0
      %v1474 = vadd.f32 0.0, %v1473
      %v1475 = vpop.f32.mrb[0].mxu0
      %v1476 = vpop.f32.mrb[0].mxu0
      %v1477 = vadd.f32 0.0, %v1476
      %v1478 = vpop.f32.mrb[0].mxu0
      %1479 = vmatprep.mubr.bf16.mxu0 %v933
      %1480 = vmatmul.mubr.bf16.gmra.mrb[0].mxu0 %v797
      %v1481 = vpop.f32.mrb[0].mxu0
      %v1482 = vadd.f32 0.0, %v1481
      %v1483 = vpop.f32.mrb[0].mxu0
      %v1484 = vpop.f32.mrb[0].mxu0
      %v1485 = vadd.f32 0.0, %v1484
      %v1486 = vpop.f32.mrb[0].mxu0
      %1487 = vmatprep.mubr.bf16.mxu0 %v945
      %1488 = vmatmul.mubr.bf16.gmra.mrb[0].mxu0 %v798
      %v1489 = vpop.f32.mrb[0].mxu0
      %v1490 = vadd.f32 0.0, %v1489
      %v1491 = vpop.f32.mrb[0].mxu0
      %v1492 = vpop.f32.mrb[0].mxu0
      %v1493 = vadd.f32 0.0, %v1492
      %v1494 = vpop.f32.mrb[0].mxu0
      %1495 = vmatprep.mubr.bf16.mxu0 %v957
      %1496 = vmatmul.mubr.bf16.gmra.mrb[0].mxu0 %v799
      %v1497 = vpop.f32.mrb[0].mxu0
      %v1498 = vadd.f32 0.0, %v1497
      %v1499 = vpop.f32.mrb[0].mxu0
      %v1500 = vpop.f32.mrb[0].mxu0
      %v1501 = vadd.f32 0.0, %v1500
      %v1502 = vpop.f32.mrb[0].mxu0
      %1503 = vmatprep.mubr.bf16.mxu0 %v969
      %1504 = vmatmul.mubr.bf16.gmra.mrb[0].mxu0 %v800
      %v1505 = vpop.f32.mrb[0].mxu0
      %v1506 = vadd.f32 0.0, %v1505
      %v1507 = vpop.f32.mrb[0].mxu0
      %v1508 = vpop.f32.mrb[0].mxu0
      %v1509 = vadd.f32 0.0, %v1508
      %v1510 = vpop.f32.mrb[0].mxu0
      %1511 = vmatprep.mubr.bf16.mxu0 %v981
      %1512 = vmatmul.mubr.bf16.gmra.mrb[0].mxu0 %v801
      %v1513 = vpop.f32.mrb[0].mxu0
      %v1514 = vadd.f32 0.0, %v1513
      %v1515 = vpop.f32.mrb[0].mxu0
      %v1516 = vpop.f32.mrb[0].mxu0
      %v1517 = vadd.f32 0.0, %v1516
      %v1518 = vpop.f32.mrb[0].mxu0
      %1519 = vmatprep.mubr.bf16.mxu0 %v993
      %1520 = vmatmul.mubr.bf16.gmra.mrb[0].mxu0 %v802
      %v1521 = vpop.f32.mrb[0].mxu0
      %v1522 = vadd.f32 0.0, %v1521
      %v1523 = vpop.f32.mrb[0].mxu0
      %v1524 = vpop.f32.mrb[0].mxu0
      %v1525 = vadd.f32 0.0, %v1524
      %v1526 = vpop.f32.mrb[0].mxu0
      %1527 = vmatprep.mubr.bf16.mxu0 %v1005
      %1528 = vmatmul.mubr.bf16.gmra.mrb[0].mxu0 %v803
      %v1529 = vpop.f32.mrb[0].mxu0
      %v1530 = vadd.f32 0.0, %v1529
      %v1531 = vpop.f32.mrb[0].mxu0
      %v1532 = vpop.f32.mrb[0].mxu0
      %v1533 = vadd.f32 0.0, %v1532
      %v1534 = vpop.f32.mrb[0].mxu0
      %1535 = vmatprep.mubr.bf16.mxu0 %v1017
      %1536 = vmatmul.mubr.bf16.gmra.mrb[0].mxu0 %v804
      %v1537 = vpop.f32.mrb[0].mxu0
      %v1538 = vadd.f32 0.0, %v1537
      %v1539 = vpop.f32.mrb[0].mxu0
      %v1540 = vpop.f32.mrb[0].mxu0
      %v1541 = vadd.f32 0.0, %v1540
      %v1542 = vpop.f32.mrb[0].mxu0
      %1543 = vmatprep.mubr.bf16.mxu0 %v1190
      %1544 = vmatmul.mubr.bf16.gmra.mrb[0].mxu0 %v805
      %v1545 = vpop.f32.mrb[0].mxu0
      %v1546 = vadd.f32 0.0, %v1545
      %v1547 = vpop.f32.mrb[0].mxu0
      %v1548 = vpop.f32.mrb[0].mxu0
      %v1549 = vadd.f32 0.0, %v1548
      %v1550 = vpop.f32.mrb[0].mxu0
      %1551 = vdwg.mxu0
      %1552 = vmatprep.subr.bf16.mxu0 0
      %1553 = vmatpush1.bf16.msra.mxu0 %v1359
      %1554 = vmatprep.subr.bf16.mxu0 0
      %1555 = vmatpush1.bf16.msra.mxu0 %v1360
      %1556 = vmatprep.subr.bf16.mxu0 0
      %1557 = vmatpush1.bf16.msra.mxu0 %v1361
      %1558 = vmatprep.subr.bf16.mxu0 0
      %1559 = vmatpush1.bf16.msra.mxu0 %v1362
      %1560 = vmatprep.subr.bf16.mxu0 0
      %1561 = vmatpush1.bf16.msra.mxu0 %v1363
      %1562 = vmatprep.subr.bf16.mxu0 0
      %1563 = vmatpush1.bf16.msra.mxu0 %v1364
      %1564 = vmatprep.subr.bf16.mxu0 0
      %1565 = vmatpush1.bf16.msra.mxu0 %v1365
      %1566 = vmatprep.subr.bf16.mxu0 0
      %1567 = vmatpush1.bf16.msra.mxu0 %v1366
      %1568 = vmatprep.subr.bf16.mxu0 0
      %1569 = vmatpush1.bf16.msra.mxu0 0
      %1570 = vmatprep.subr.bf16.mxu0 0
      %1571 = vmatpush1.bf16.msra.mxu0 0
      %1572 = vmatprep.subr.bf16.mxu0 0
      %1573 = vmatpush1.bf16.msra.mxu0 0
      %1574 = vmatprep.subr.bf16.mxu0 0
      %1575 = vmatpush1.bf16.msra.mxu0 0
      %1576 = vmatprep.subr.bf16.mxu0 0
      %1577 = vmatpush1.bf16.msra.mxu0 0
      %1578 = vmatprep.subr.bf16.mxu0 0
      %1579 = vmatpush1.bf16.msra.mxu0 0
      %1580 = vmatprep.subr.bf16.mxu0 0
      %1581 = vmatpush1.bf16.msra.mxu0 0
      %1582 = vmatprep.subr.bf16.mxu0 0
      %1583 = vmatpush1.bf16.msra.mxu0 0
      %1584 = vmatprep.mubr.bf16.mxu0 0
      %1585 = vmatmul.mubr.bf16.gmra.mrb[0].mxu0 %v1072
      %v1586 = vpop.f32.mrb[0].mxu0
      %v1587 = vadd.f32 %v1426, %v1586
      %v1588 = vpop.f32.mrb[0].mxu0
      %v1589 = vpop.f32.mrb[0].mxu0
      %v1590 = vadd.f32 %v1429, %v1589
      %v1591 = vpop.f32.mrb[0].mxu0
      %1592 = vmatprep.mubr.bf16.mxu0 0
      %1593 = vmatmul.mubr.bf16.gmra.mrb[0].mxu0 %v1075
      %v1594 = vpop.f32.mrb[0].mxu0
      %v1595 = vadd.f32 %v1434, %v1594
      %v1596 = vpop.f32.mrb[0].mxu0
      %v1597 = vpop.f32.mrb[0].mxu0
      %v1598 = vadd.f32 %v1437, %v1597
      %v1599 = vpop.f32.mrb[0].mxu0
      %1600 = vmatprep.mubr.bf16.mxu0 0
      %1601 = vmatmul.mubr.bf16.gmra.mrb[0].mxu0 %v1078
      %v1602 = vpop.f32.mrb[0].mxu0
      %v1603 = vadd.f32 %v1442, %v1602
      %v1604 = vpop.f32.mrb[0].mxu0
      %v1605 = vpop.f32.mrb[0].mxu0
      %v1606 = vadd.f32 %v1445, %v1605
      %v1607 = vpop.f32.mrb[0].mxu0
      %1608 = vmatprep.mubr.bf16.mxu0 0
      %1609 = vmatmul.mubr.bf16.gmra.mrb[0].mxu0 %v1081
      %v1610 = vpop.f32.mrb[0].mxu0
      %v1611 = vadd.f32 %v1450, %v1610
      %v1612 = vpop.f32.mrb[0].mxu0
      %v1613 = vpop.f32.mrb[0].mxu0
      %v1614 = vadd.f32 %v1453, %v1613
      %v1615 = vpop.f32.mrb[0].mxu0
      %1616 = vmatprep.mubr.bf16.mxu0 0
      %1617 = vmatmul.mubr.bf16.gmra.mrb[0].mxu0 %v1084
      %v1618 = vpop.f32.mrb[0].mxu0
      %v1619 = vadd.f32 %v1458, %v1618
      %v1620 = vpop.f32.mrb[0].mxu0
      %v1621 = vpop.f32.mrb[0].mxu0
      %v1622 = vadd.f32 %v1461, %v1621
      %v1623 = vpop.f32.mrb[0].mxu0
      %1624 = vmatprep.mubr.bf16.mxu0 0
      %1625 = vmatmul.mubr.bf16.gmra.mrb[0].mxu0 %v1087
      %v1626 = vpop.f32.mrb[0].mxu0
      %v1627 = vadd.f32 %v1466, %v1626
      %v1628 = vpop.f32.mrb[0].mxu0
      %v1629 = vpop.f32.mrb[0].mxu0
      %v1630 = vadd.f32 %v1469, %v1629
      %v1631 = vpop.f32.mrb[0].mxu0
      %1632 = vmatprep.mubr.bf16.mxu0 0
      %1633 = vmatmul.mubr.bf16.gmra.mrb[0].mxu0 %v1090
      %v1634 = vpop.f32.mrb[0].mxu0
      %v1635 = vadd.f32 %v1474, %v1634
      %v1636 = vpop.f32.mrb[0].mxu0
      %v1637 = vpop.f32.mrb[0].mxu0
      %v1638 = vadd.f32 %v1477, %v1637
      %v1639 = vpop.f32.mrb[0].mxu0
      %1640 = vmatprep.mubr.bf16.mxu0 0
      %1641 = vmatmul.mubr.bf16.gmra.mrb[0].mxu0 %v1093
      %v1642 = vpop.f32.mrb[0].mxu0
      %v1643 = vadd.f32 %v1482, %v1642
      %v1644 = vpop.f32.mrb[0].mxu0
      %v1645 = vpop.f32.mrb[0].mxu0
      %v1646 = vadd.f32 %v1485, %v1645
      %v1647 = vpop.f32.mrb[0].mxu0
      %1648 = vmatprep.mubr.bf16.mxu0 0
      %1649 = vmatmul.mubr.bf16.gmra.mrb[0].mxu0 %v1096
      %v1650 = vpop.f32.mrb[0].mxu0
      %v1651 = vadd.f32 %v1490, %v1650
      %v1652 = vpop.f32.mrb[0].mxu0
      %v1653 = vpop.f32.mrb[0].mxu0
      %v1654 = vadd.f32 %v1493, %v1653
      %v1655 = vpop.f32.mrb[0].mxu0
      %1656 = vmatprep.mubr.bf16.mxu0 0
      %1657 = vmatmul.mubr.bf16.gmra.mrb[0].mxu0 %v1099
      %v1658 = vpop.f32.mrb[0].mxu0
      %v1659 = vadd.f32 %v1498, %v1658
      %v1660 = vpop.f32.mrb[0].mxu0
      %v1661 = vpop.f32.mrb[0].mxu0
      %v1662 = vadd.f32 %v1501, %v1661
      %v1663 = vpop.f32.mrb[0].mxu0
      %1664 = vmatprep.mubr.bf16.mxu0 0
      %1665 = vmatmul.mubr.bf16.gmra.mrb[0].mxu0 %v1102
      %v1666 = vpop.f32.mrb[0].mxu0
      %v1667 = vadd.f32 %v1506, %v1666
      %v1668 = vpop.f32.mrb[0].mxu0
      %v1669 = vpop.f32.mrb[0].mxu0
      %v1670 = vadd.f32 %v1509, %v1669
      %v1671 = vpop.f32.mrb[0].mxu0
      %1672 = vmatprep.mubr.bf16.mxu0 0
      %1673 = vmatmul.mubr.bf16.gmra.mrb[0].mxu0 %v1105
      %v1674 = vpop.f32.mrb[0].mxu0
      %v1675 = vadd.f32 %v1514, %v1674
      %v1676 = vpop.f32.mrb[0].mxu0
      %v1677 = vpop.f32.mrb[0].mxu0
      %v1678 = vadd.f32 %v1517, %v1677
      %v1679 = vpop.f32.mrb[0].mxu0
      %1680 = vmatprep.mubr.bf16.mxu0 0
      %1681 = vmatmul.mubr.bf16.gmra.mrb[0].mxu0 %v1108
      %v1682 = vpop.f32.mrb[0].mxu0
      %v1683 = vadd.f32 %v1522, %v1682
      %v1684 = vpop.f32.mrb[0].mxu0
      %v1685 = vpop.f32.mrb[0].mxu0
      %v1686 = vadd.f32 %v1525, %v1685
      %v1687 = vpop.f32.mrb[0].mxu0
      %1688 = vmatprep.mubr.bf16.mxu0 0
      %1689 = vmatmul.mubr.bf16.gmra.mrb[0].mxu0 %v1111
      %v1690 = vpop.f32.mrb[0].mxu0
      %v1691 = vadd.f32 %v1530, %v1690
      %v1692 = vpop.f32.mrb[0].mxu0
      %v1693 = vpop.f32.mrb[0].mxu0
      %v1694 = vadd.f32 %v1533, %v1693
      %v1695 = vpop.f32.mrb[0].mxu0
      %1696 = vmatprep.mubr.bf16.mxu0 0
      %1697 = vmatmul.mubr.bf16.gmra.mrb[0].mxu0 %v1114
      %v1698 = vpop.f32.mrb[0].mxu0
      %v1699 = vadd.f32 %v1538, %v1698
      %v1700 = vpop.f32.mrb[0].mxu0
      %v1701 = vpop.f32.mrb[0].mxu0
      %v1702 = vadd.f32 %v1541, %v1701
      %v1703 = vpop.f32.mrb[0].mxu0
      %1704 = vmatprep.mubr.bf16.mxu0 0
      %1705 = vmatmul.mubr.bf16.gmra.mrb[0].mxu0 %v1196
      %v1706 = vpop.f32.mrb[0].mxu0
      %v1707 = vadd.f32 %v1546, %v1706
      %v1708 = vpop.f32.mrb[0].mxu0
      %v1709 = vpop.f32.mrb[0].mxu0
      %v1710 = vadd.f32 %v1549, %v1709
      %v1711 = vpop.f32.mrb[0].mxu0
      %1712 = vdwg.mxu0
      %v1761 = vunpack.c.l.b16 %v1131
      %v1762 = vunpack.c.l.b16 %v1132
      %v1763 = vunpack.c.l.b16 %v1133
      %v1764 = vunpack.c.l.b16 %v1134
      %v1765 = vunpack.c.l.b16 %v1135
      %v1766 = vunpack.c.l.b16 %v1136
      %v1767 = vunpack.c.l.b16 %v1137
      %v1768 = vunpack.c.l.b16 %v1138
      %v1769 = vunpack.c.l.b16 %v1139
      %v1770 = vunpack.c.l.b16 %v1140
      %v1771 = vunpack.c.l.b16 %v1141
      %v1772 = vunpack.c.l.b16 %v1142
      %v1773 = vunpack.c.l.b16 %v1143
      %v1774 = vunpack.c.l.b16 %v1144
      %v1775 = vunpack.c.l.b16 %v1145
      %v1776 = vunpack.c.l.b16 %v1146
      %v1777 = vunpack.c.l.b16 %v1147
      %v1778 = vunpack.c.l.b16 %v1148
      %v1779 = vunpack.c.l.b16 %v1149
      %v1780 = vunpack.c.l.b16 %v1150
      %v1781 = vunpack.c.l.b16 %v1151
      %v1782 = vunpack.c.l.b16 %v1152
      %v1783 = vunpack.c.l.b16 %v1153
      %v1784 = vunpack.c.l.b16 %v1154
      %v1785 = vunpack.c.l.b16 %v1155
      %v1786 = vunpack.c.l.b16 %v1156
      %v1787 = vunpack.c.l.b16 %v1157
      %v1788 = vunpack.c.l.b16 %v1158
      %v1789 = vunpack.c.l.b16 %v1159
      %v1790 = vunpack.c.l.b16 %v1160
      %v1791 = vunpack.c.l.b16 %v1161
      %v1792 = vunpack.c.l.b16 %v1162
      %v1793 = vunpack.c.l.b16 %v1163
      %v1794 = vunpack.c.l.b16 %v1164
      %v1795 = vunpack.c.l.b16 %v1165
      %v1796 = vunpack.c.l.b16 %v1166
      %v1797 = vunpack.c.l.b16 %v1167
      %v1798 = vunpack.c.l.b16 %v1168
      %v1799 = vunpack.c.l.b16 %v1169
      %v1800 = vunpack.c.l.b16 %v1170
      %v1801 = vunpack.c.l.b16 %v1171
      %v1802 = vunpack.c.l.b16 %v1172
      %v1803 = vunpack.c.l.b16 %v1173
      %v1804 = vunpack.c.l.b16 %v1174
      %v1805 = vunpack.c.l.b16 %v1175
      %v1806 = vunpack.c.l.b16 %v1176
      %v1807 = vunpack.c.l.b16 %v1177
      %v1808 = vunpack.c.l.b16 %v1178
      %v1809 = vpack.c.b16 %v1762, %v1761
      %v1810 = vpack.c.b16 %v1764, %v1763
      %v1811 = vpack.c.b16 %v1766, %v1765
      %v1812 = vpack.c.b16 %v1768, %v1767
      %v1813 = vpack.c.b16 %v1770, %v1769
      %v1814 = vpack.c.b16 %v1772, %v1771
      %v1815 = vpack.c.b16 %v1774, %v1773
      %v1816 = vpack.c.b16 %v1776, %v1775
      %v1817 = vpack.c.b16 %v1778, %v1777
      %v1818 = vpack.c.b16 %v1780, %v1779
      %v1819 = vpack.c.b16 %v1782, %v1781
      %v1820 = vpack.c.b16 %v1784, %v1783
      %v1821 = vpack.c.b16 %v1786, %v1785
      %v1822 = vpack.c.b16 %v1788, %v1787
      %v1823 = vpack.c.b16 %v1790, %v1789
      %v1824 = vpack.c.b16 %v1792, %v1791
      %v1825 = vpack.c.b16 %v1794, %v1793
      %v1826 = vpack.c.b16 %v1796, %v1795
      %v1827 = vpack.c.b16 %v1798, %v1797
      %v1828 = vpack.c.b16 %v1800, %v1799
      %v1829 = vpack.c.b16 %v1802, %v1801
      %v1830 = vpack.c.b16 %v1804, %v1803
      %v1831 = vpack.c.b16 %v1806, %v1805
      %v1832 = vpack.c.b16 %v1808, %v1807
      %1857 = vmatprep.subr.bf16.mxu0 0
      %1858 = vmatpush1.bf16.msra.mxu0 %v1809
      %1859 = vmatprep.subr.bf16.mxu0 0
      %1860 = vmatpush1.bf16.msra.mxu0 %v1810
      %1861 = vmatprep.subr.bf16.mxu0 0
      %1862 = vmatpush1.bf16.msra.mxu0 %v1811
      %1863 = vmatprep.subr.bf16.mxu0 0
      %1864 = vmatpush1.bf16.msra.mxu0 %v1812
      %1865 = vmatprep.subr.bf16.mxu0 0
      %1866 = vmatpush1.bf16.msra.mxu0 %v1813
      %1867 = vmatprep.subr.bf16.mxu0 0
      %1868 = vmatpush1.bf16.msra.mxu0 %v1814
      %1869 = vmatprep.subr.bf16.mxu0 0
      %1870 = vmatpush1.bf16.msra.mxu0 %v1815
      %1871 = vmatprep.subr.bf16.mxu0 0
      %1872 = vmatpush1.bf16.msra.mxu0 %v1816
      %1873 = vmatprep.subr.bf16.mxu0 0
      %1874 = vmatpush1.bf16.msra.mxu0 %v1817
      %1875 = vmatprep.subr.bf16.mxu0 0
      %1876 = vmatpush1.bf16.msra.mxu0 %v1818
      %1877 = vmatprep.subr.bf16.mxu0 0
      %1878 = vmatpush1.bf16.msra.mxu0 %v1819
      %1879 = vmatprep.subr.bf16.mxu0 0
      %1880 = vmatpush1.bf16.msra.mxu0 %v1820
      %1881 = vmatprep.subr.bf16.mxu0 0
      %1882 = vmatpush1.bf16.msra.mxu0 %v1821
      %1883 = vmatprep.subr.bf16.mxu0 0
      %1884 = vmatpush1.bf16.msra.mxu0 %v1822
      %1885 = vmatprep.subr.bf16.mxu0 0
      %1886 = vmatpush1.bf16.msra.mxu0 %v1823
      %1887 = vmatprep.subr.bf16.mxu0 0
      %1888 = vmatpush1.bf16.msra.mxu0 %v1824
      %1889 = vmatprep.mubr.bf16.mxu0 %v837
      %1890 = vmatmul.mubr.bf16.gmra.mrb[0].mxu0 %v789
      %v1891 = vpop.f32.mrb[0].mxu0
      %v1892 = vadd.f32 %v1587, %v1891
      %v1893 = vpop.f32.mrb[0].mxu0
      %v1894 = vpop.f32.mrb[0].mxu0
      %v1895 = vadd.f32 %v1590, %v1894
      %v1896 = vpop.f32.mrb[0].mxu0
      %1897 = vmatprep.mubr.bf16.mxu0 %v849
      %1898 = vmatmul.mubr.bf16.gmra.mrb[0].mxu0 %v790
      %v1899 = vpop.f32.mrb[0].mxu0
      %v1900 = vadd.f32 %v1595, %v1899
      %v1901 = vpop.f32.mrb[0].mxu0
      %v1902 = vpop.f32.mrb[0].mxu0
      %v1903 = vadd.f32 %v1598, %v1902
      %v1904 = vpop.f32.mrb[0].mxu0
      %1905 = vmatprep.mubr.bf16.mxu0 %v861
      %1906 = vmatmul.mubr.bf16.gmra.mrb[0].mxu0 %v791
      %v1907 = vpop.f32.mrb[0].mxu0
      %v1908 = vadd.f32 %v1603, %v1907
      %v1909 = vpop.f32.mrb[0].mxu0
      %v1910 = vpop.f32.mrb[0].mxu0
      %v1911 = vadd.f32 %v1606, %v1910
      %v1912 = vpop.f32.mrb[0].mxu0
      %1913 = vmatprep.mubr.bf16.mxu0 %v873
      %1914 = vmatmul.mubr.bf16.gmra.mrb[0].mxu0 %v792
      %v1915 = vpop.f32.mrb[0].mxu0
      %v1916 = vadd.f32 %v1611, %v1915
      %v1917 = vpop.f32.mrb[0].mxu0
      %v1918 = vpop.f32.mrb[0].mxu0
      %v1919 = vadd.f32 %v1614, %v1918
      %v1920 = vpop.f32.mrb[0].mxu0
      %1921 = vmatprep.mubr.bf16.mxu0 %v885
      %1922 = vmatmul.mubr.bf16.gmra.mrb[0].mxu0 %v793
      %v1923 = vpop.f32.mrb[0].mxu0
      %v1924 = vadd.f32 %v1619, %v1923
      %v1925 = vpop.f32.mrb[0].mxu0
      %v1926 = vpop.f32.mrb[0].mxu0
      %v1927 = vadd.f32 %v1622, %v1926
      %v1928 = vpop.f32.mrb[0].mxu0
      %1929 = vmatprep.mubr.bf16.mxu0 %v897
      %1930 = vmatmul.mubr.bf16.gmra.mrb[0].mxu0 %v794
      %v1931 = vpop.f32.mrb[0].mxu0
      %v1932 = vadd.f32 %v1627, %v1931
      %v1933 = vpop.f32.mrb[0].mxu0
      %v1934 = vpop.f32.mrb[0].mxu0
      %v1935 = vadd.f32 %v1630, %v1934
      %v1936 = vpop.f32.mrb[0].mxu0
      %1937 = vmatprep.mubr.bf16.mxu0 %v909
      %1938 = vmatmul.mubr.bf16.gmra.mrb[0].mxu0 %v795
      %v1939 = vpop.f32.mrb[0].mxu0
      %v1940 = vadd.f32 %v1635, %v1939
      %v1941 = vpop.f32.mrb[0].mxu0
      %v1942 = vpop.f32.mrb[0].mxu0
      %v1943 = vadd.f32 %v1638, %v1942
      %v1944 = vpop.f32.mrb[0].mxu0
      %1945 = vmatprep.mubr.bf16.mxu0 %v921
      %1946 = vmatmul.mubr.bf16.gmra.mrb[0].mxu0 %v796
      %v1947 = vpop.f32.mrb[0].mxu0
      %v1948 = vadd.f32 %v1643, %v1947
      %v1949 = vpop.f32.mrb[0].mxu0
      %v1950 = vpop.f32.mrb[0].mxu0
      %v1951 = vadd.f32 %v1646, %v1950
      %v1952 = vpop.f32.mrb[0].mxu0
      %1953 = vmatprep.mubr.bf16.mxu0 %v933
      %1954 = vmatmul.mubr.bf16.gmra.mrb[0].mxu0 %v797
      %v1955 = vpop.f32.mrb[0].mxu0
      %v1956 = vadd.f32 %v1651, %v1955
      %v1957 = vpop.f32.mrb[0].mxu0
      %v1958 = vpop.f32.mrb[0].mxu0
      %v1959 = vadd.f32 %v1654, %v1958
      %v1960 = vpop.f32.mrb[0].mxu0
      %1961 = vmatprep.mubr.bf16.mxu0 %v945
      %1962 = vmatmul.mubr.bf16.gmra.mrb[0].mxu0 %v798
      %v1963 = vpop.f32.mrb[0].mxu0
      %v1964 = vadd.f32 %v1659, %v1963
      %v1965 = vpop.f32.mrb[0].mxu0
      %v1966 = vpop.f32.mrb[0].mxu0
      %v1967 = vadd.f32 %v1662, %v1966
      %v1968 = vpop.f32.mrb[0].mxu0
      %1969 = vmatprep.mubr.bf16.mxu0 %v957
      %1970 = vmatmul.mubr.bf16.gmra.mrb[0].mxu0 %v799
      %v1971 = vpop.f32.mrb[0].mxu0
      %v1972 = vadd.f32 %v1667, %v1971
      %v1973 = vpop.f32.mrb[0].mxu0
      %v1974 = vpop.f32.mrb[0].mxu0
      %v1975 = vadd.f32 %v1670, %v1974
      %v1976 = vpop.f32.mrb[0].mxu0
      %1977 = vmatprep.mubr.bf16.mxu0 %v969
      %1978 = vmatmul.mubr.bf16.gmra.mrb[0].mxu0 %v800
      %v1979 = vpop.f32.mrb[0].mxu0
      %v1980 = vadd.f32 %v1675, %v1979
      %v1981 = vpop.f32.mrb[0].mxu0
      %v1982 = vpop.f32.mrb[0].mxu0
      %v1983 = vadd.f32 %v1678, %v1982
      %v1984 = vpop.f32.mrb[0].mxu0
      %1985 = vmatprep.mubr.bf16.mxu0 %v981
      %1986 = vmatmul.mubr.bf16.gmra.mrb[0].mxu0 %v801
      %v1987 = vpop.f32.mrb[0].mxu0
      %v1988 = vadd.f32 %v1683, %v1987
      %v1989 = vpop.f32.mrb[0].mxu0
      %v1990 = vpop.f32.mrb[0].mxu0
      %v1991 = vadd.f32 %v1686, %v1990
      %v1992 = vpop.f32.mrb[0].mxu0
      %1993 = vmatprep.mubr.bf16.mxu0 %v993
      %1994 = vmatmul.mubr.bf16.gmra.mrb[0].mxu0 %v802
      %v1995 = vpop.f32.mrb[0].mxu0
      %v1996 = vadd.f32 %v1691, %v1995
      %v1997 = vpop.f32.mrb[0].mxu0
      %v1998 = vpop.f32.mrb[0].mxu0
      %v1999 = vadd.f32 %v1694, %v1998
      %v2000 = vpop.f32.mrb[0].mxu0
      %2001 = vmatprep.mubr.bf16.mxu0 %v1005
      %2002 = vmatmul.mubr.bf16.gmra.mrb[0].mxu0 %v803
      %v2003 = vpop.f32.mrb[0].mxu0
      %v2004 = vadd.f32 %v1699, %v2003
      %v2005 = vpop.f32.mrb[0].mxu0
      %v2006 = vpop.f32.mrb[0].mxu0
      %v2007 = vadd.f32 %v1702, %v2006
      %v2008 = vpop.f32.mrb[0].mxu0
      %2009 = vmatprep.mubr.bf16.mxu0 %v1017
      %2010 = vmatmul.mubr.bf16.gmra.mrb[0].mxu0 %v804
      %v2011 = vpop.f32.mrb[0].mxu0
      %v2012 = vadd.f32 %v1707, %v2011
      %v2013 = vpop.f32.mrb[0].mxu0
      %v2014 = vpop.f32.mrb[0].mxu0
      %v2015 = vadd.f32 %v1710, %v2014
      %v2016 = vpop.f32.mrb[0].mxu0
      %2017 = vdwg.mxu0
      %2018 = vmatprep.subr.bf16.mxu0 0
      %2019 = vmatpush1.bf16.msra.mxu0 %v1825
      %2020 = vmatprep.subr.bf16.mxu0 0
      %2021 = vmatpush1.bf16.msra.mxu0 %v1826
      %2022 = vmatprep.subr.bf16.mxu0 0
      %2023 = vmatpush1.bf16.msra.mxu0 %v1827
      %2024 = vmatprep.subr.bf16.mxu0 0
      %2025 = vmatpush1.bf16.msra.mxu0 %v1828
      %2026 = vmatprep.subr.bf16.mxu0 0
      %2027 = vmatpush1.bf16.msra.mxu0 %v1829
      %2028 = vmatprep.subr.bf16.mxu0 0
      %2029 = vmatpush1.bf16.msra.mxu0 %v1830
      %2030 = vmatprep.subr.bf16.mxu0 0
      %2031 = vmatpush1.bf16.msra.mxu0 %v1831
      %2032 = vmatprep.subr.bf16.mxu0 0
      %2033 = vmatpush1.bf16.msra.mxu0 %v1832
      %2034 = vmatprep.subr.bf16.mxu0 0
      %2035 = vmatpush1.bf16.msra.mxu0 0
      %2036 = vmatprep.subr.bf16.mxu0 0
      %2037 = vmatpush1.bf16.msra.mxu0 0
      %2038 = vmatprep.subr.bf16.mxu0 0
      %2039 = vmatpush1.bf16.msra.mxu0 0
      %2040 = vmatprep.subr.bf16.mxu0 0
      %2041 = vmatpush1.bf16.msra.mxu0 0
      %2042 = vmatprep.subr.bf16.mxu0 0
      %2043 = vmatpush1.bf16.msra.mxu0 0
      %2044 = vmatprep.subr.bf16.mxu0 0
      %2045 = vmatpush1.bf16.msra.mxu0 0
      %2046 = vmatprep.subr.bf16.mxu0 0
      %2047 = vmatpush1.bf16.msra.mxu0 0
      %2048 = vmatprep.subr.bf16.mxu0 0
      %2049 = vmatpush1.bf16.msra.mxu0 0
      %2050 = vmatprep.mubr.bf16.mxu0 0
      %2051 = vmatmul.mubr.bf16.gmra.mrb[0].mxu0 %v1069
      %v2052 = vpop.f32.mrb[0].mxu0
      %v2053 = vadd.f32 %v1892, %v2052
      %v2054 = vpop.f32.mrb[0].mxu0
      %v2055 = vpop.f32.mrb[0].mxu0
      %v2056 = vadd.f32 %v1895, %v2055
      %v2057 = vpop.f32.mrb[0].mxu0
      %2058 = vmatprep.mubr.bf16.mxu0 0
      %2059 = vmatmul.mubr.bf16.gmra.mrb[0].mxu0 %v1072
      %v2060 = vpop.f32.mrb[0].mxu0
      %v2061 = vadd.f32 %v1900, %v2060
      %v2062 = vpop.f32.mrb[0].mxu0
      %v2063 = vpop.f32.mrb[0].mxu0
      %v2064 = vadd.f32 %v1903, %v2063
      %v2065 = vpop.f32.mrb[0].mxu0
      %2066 = vmatprep.mubr.bf16.mxu0 0
      %2067 = vmatmul.mubr.bf16.gmra.mrb[0].mxu0 %v1075
      %v2068 = vpop.f32.mrb[0].mxu0
      %v2069 = vadd.f32 %v1908, %v2068
      %v2070 = vpop.f32.mrb[0].mxu0
      %v2071 = vpop.f32.mrb[0].mxu0
      %v2072 = vadd.f32 %v1911, %v2071
      %v2073 = vpop.f32.mrb[0].mxu0
      %2074 = vmatprep.mubr.bf16.mxu0 0
      %2075 = vmatmul.mubr.bf16.gmra.mrb[0].mxu0 %v1078
      %v2076 = vpop.f32.mrb[0].mxu0
      %v2077 = vadd.f32 %v1916, %v2076
      %v2078 = vpop.f32.mrb[0].mxu0
      %v2079 = vpop.f32.mrb[0].mxu0
      %v2080 = vadd.f32 %v1919, %v2079
      %v2081 = vpop.f32.mrb[0].mxu0
      %2082 = vmatprep.mubr.bf16.mxu0 0
      %2083 = vmatmul.mubr.bf16.gmra.mrb[0].mxu0 %v1081
      %v2084 = vpop.f32.mrb[0].mxu0
      %v2085 = vadd.f32 %v1924, %v2084
      %v2086 = vpop.f32.mrb[0].mxu0
      %v2087 = vpop.f32.mrb[0].mxu0
      %v2088 = vadd.f32 %v1927, %v2087
      %v2089 = vpop.f32.mrb[0].mxu0
      %2090 = vmatprep.mubr.bf16.mxu0 0
      %2091 = vmatmul.mubr.bf16.gmra.mrb[0].mxu0 %v1084
      %v2092 = vpop.f32.mrb[0].mxu0
      %v2093 = vadd.f32 %v1932, %v2092
      %v2094 = vpop.f32.mrb[0].mxu0
      %v2095 = vpop.f32.mrb[0].mxu0
      %v2096 = vadd.f32 %v1935, %v2095
      %v2097 = vpop.f32.mrb[0].mxu0
      %2098 = vmatprep.mubr.bf16.mxu0 0
      %2099 = vmatmul.mubr.bf16.gmra.mrb[0].mxu0 %v1087
      %v2100 = vpop.f32.mrb[0].mxu0
      %v2101 = vadd.f32 %v1940, %v2100
      %v2102 = vpop.f32.mrb[0].mxu0
      %v2103 = vpop.f32.mrb[0].mxu0
      %v2104 = vadd.f32 %v1943, %v2103
      %v2105 = vpop.f32.mrb[0].mxu0
      %2106 = vmatprep.mubr.bf16.mxu0 0
      %2107 = vmatmul.mubr.bf16.gmra.mrb[0].mxu0 %v1090
      %v2108 = vpop.f32.mrb[0].mxu0
      %v2109 = vadd.f32 %v1948, %v2108
      %v2110 = vpop.f32.mrb[0].mxu0
      %v2111 = vpop.f32.mrb[0].mxu0
      %v2112 = vadd.f32 %v1951, %v2111
      %v2113 = vpop.f32.mrb[0].mxu0
      %2114 = vmatprep.mubr.bf16.mxu0 0
      %2115 = vmatmul.mubr.bf16.gmra.mrb[0].mxu0 %v1093
      %v2116 = vpop.f32.mrb[0].mxu0
      %v2117 = vadd.f32 %v1956, %v2116
      %v2118 = vpop.f32.mrb[0].mxu0
      %v2119 = vpop.f32.mrb[0].mxu0
      %v2120 = vadd.f32 %v1959, %v2119
      %v2121 = vpop.f32.mrb[0].mxu0
      %2122 = vmatprep.mubr.bf16.mxu0 0
      %2123 = vmatmul.mubr.bf16.gmra.mrb[0].mxu0 %v1096
      %v2124 = vpop.f32.mrb[0].mxu0
      %v2125 = vadd.f32 %v1964, %v2124
      %v2126 = vpop.f32.mrb[0].mxu0
      %v2127 = vpop.f32.mrb[0].mxu0
      %v2128 = vadd.f32 %v1967, %v2127
      %v2129 = vpop.f32.mrb[0].mxu0
      %2130 = vmatprep.mubr.bf16.mxu0 0
      %2131 = vmatmul.mubr.bf16.gmra.mrb[0].mxu0 %v1099
      %v2132 = vpop.f32.mrb[0].mxu0
      %v2133 = vadd.f32 %v1972, %v2132
      %v2134 = vpop.f32.mrb[0].mxu0
      %v2135 = vpop.f32.mrb[0].mxu0
      %v2136 = vadd.f32 %v1975, %v2135
      %v2137 = vpop.f32.mrb[0].mxu0
      %2138 = vmatprep.mubr.bf16.mxu0 0
      %2139 = vmatmul.mubr.bf16.gmra.mrb[0].mxu0 %v1102
      %v2140 = vpop.f32.mrb[0].mxu0
      %v2141 = vadd.f32 %v1980, %v2140
      %v2142 = vpop.f32.mrb[0].mxu0
      %v2143 = vpop.f32.mrb[0].mxu0
      %v2144 = vadd.f32 %v1983, %v2143
      %v2145 = vpop.f32.mrb[0].mxu0
      %2146 = vmatprep.mubr.bf16.mxu0 0
      %2147 = vmatmul.mubr.bf16.gmra.mrb[0].mxu0 %v1105
      %v2148 = vpop.f32.mrb[0].mxu0
      %v2149 = vadd.f32 %v1988, %v2148
      %v2150 = vpop.f32.mrb[0].mxu0
      %v2151 = vpop.f32.mrb[0].mxu0
      %v2152 = vadd.f32 %v1991, %v2151
      %v2153 = vpop.f32.mrb[0].mxu0
      %2154 = vmatprep.mubr.bf16.mxu0 0
      %2155 = vmatmul.mubr.bf16.gmra.mrb[0].mxu0 %v1108
      %v2156 = vpop.f32.mrb[0].mxu0
      %v2157 = vadd.f32 %v1996, %v2156
      %v2158 = vpop.f32.mrb[0].mxu0
      %v2159 = vpop.f32.mrb[0].mxu0
      %v2160 = vadd.f32 %v1999, %v2159
      %v2161 = vpop.f32.mrb[0].mxu0
      %2162 = vmatprep.mubr.bf16.mxu0 0
      %2163 = vmatmul.mubr.bf16.gmra.mrb[0].mxu0 %v1111
      %v2164 = vpop.f32.mrb[0].mxu0
      %v2165 = vadd.f32 %v2004, %v2164
      %v2166 = vpop.f32.mrb[0].mxu0
      %v2167 = vpop.f32.mrb[0].mxu0
      %v2168 = vadd.f32 %v2007, %v2167
      %v2169 = vpop.f32.mrb[0].mxu0
      %2170 = vmatprep.mubr.bf16.mxu0 0
      %2171 = vmatmul.mubr.bf16.gmra.mrb[0].mxu0 %v1114
      %v2172 = vpop.f32.mrb[0].mxu0
      %v2173 = vadd.f32 %v2012, %v2172
      %v2174 = vpop.f32.mrb[0].mxu0
      %v2175 = vpop.f32.mrb[0].mxu0
      %v2176 = vadd.f32 %v2015, %v2175
      %v2177 = vpop.f32.mrb[0].mxu0
      %2178 = vdwg.mxu0
      %v2180 = vshrl.u32 %v806, 16
      %v2182 = vshll.u32 %v806, 16
      %v2184 = vrot.slane %v2182, 1
      %v2185 = vor.u32 %v2180, %v2184
      %v2187 = vshll.u32 %v824, 16
      %v2189 = vrot.slane %v2187, 1
      %v2190 = vsel %vm825, %v2185, %v2189
      %v2194 = vrot.slane %v806, 1
      %v2195 = vrot.slane %v824, 1
      %v2196 = vsel %vm1066, %v2194, %v2195
      %s2198 = scalar_lea.vmem %s5, 384
      %v2199 = vld [vmem:[%s2198] sm:$0xf]
      %v2200 = vld [vmem:[%s2198 + $0x4] sm:$0xf]
      %v2201 = vld [vmem:[%s2198 + $0x8] sm:$0xf]
      %v2202 = vld [vmem:[%s2198 + $0xc] sm:$0xf]
      %v2203 = vld [vmem:[%s2198 + $0x10] sm:$0xf]
      %v2204 = vld [vmem:[%s2198 + $0x14] sm:$0xf]
      %v2205 = vld [vmem:[%s2198 + $0x18] sm:$0xf]
      %v2206 = vld [vmem:[%s2198 + $0x1c] sm:$0xf]
      %v2207 = vld [vmem:[%s2198 + $0x20] sm:$0xf]
      %v2208 = vld [vmem:[%s2198 + $0x24] sm:$0xf]
      %v2209 = vld [vmem:[%s2198 + $0x28] sm:$0xf]
      %v2210 = vld [vmem:[%s2198 + $0x2c] sm:$0xf]
      %v2211 = vld [vmem:[%s2198 + $0x30] sm:$0xf]
      %v2212 = vld [vmem:[%s2198 + $0x34] sm:$0xf]
      %v2213 = vld [vmem:[%s2198 + $0x38] sm:$0xf]
      %v2214 = vld [vmem:[%s2198 + $0x3c] sm:$0xf]
      %v2215 = vld [vmem:[%s2198 + $0x40] sm:$0xf]
      %v2216 = vld [vmem:[%s2198 + $0x44] sm:$0xf]
      %v2217 = vld [vmem:[%s2198 + $0x48] sm:$0xf]
      %v2218 = vld [vmem:[%s2198 + $0x4c] sm:$0xf]
      %v2219 = vld [vmem:[%s2198 + $0x50] sm:$0xf]
      %v2220 = vld [vmem:[%s2198 + $0x54] sm:$0xf]
      %v2221 = vld [vmem:[%s2198 + $0x58] sm:$0xf]
      %v2222 = vld [vmem:[%s2198 + $0x5c] sm:$0xf]
      %v2223 = vld [vmem:[%s2198 + $0x60] sm:$0xf]
      %v2224 = vld [vmem:[%s2198 + $0x64] sm:$0xf]
      %v2225 = vld [vmem:[%s2198 + $0x68] sm:$0xf]
      %v2226 = vld [vmem:[%s2198 + $0x6c] sm:$0xf]
      %v2227 = vld [vmem:[%s2198 + $0x70] sm:$0xf]
      %v2228 = vld [vmem:[%s2198 + $0x74] sm:$0xf]
      %v2229 = vld [vmem:[%s2198 + $0x78] sm:$0xf]
      %v2230 = vld [vmem:[%s2198 + $0x7c] sm:$0xf]
      %v2231 = vld [vmem:[%s2198 + $0x80] sm:$0xf]
      %v2232 = vld [vmem:[%s2198 + $0x84] sm:$0xf]
      %v2233 = vld [vmem:[%s2198 + $0x88] sm:$0xf]
      %v2234 = vld [vmem:[%s2198 + $0x8c] sm:$0xf]
      %v2235 = vld [vmem:[%s2198 + $0x90] sm:$0xf]
      %v2236 = vld [vmem:[%s2198 + $0x94] sm:$0xf]
      %v2237 = vld [vmem:[%s2198 + $0x98] sm:$0xf]
      %v2238 = vld [vmem:[%s2198 + $0x9c] sm:$0xf]
      %v2239 = vld [vmem:[%s2198 + $0xa0] sm:$0xf]
      %v2240 = vld [vmem:[%s2198 + $0xa4] sm:$0xf]
      %v2241 = vld [vmem:[%s2198 + $0xa8] sm:$0xf]
      %v2242 = vld [vmem:[%s2198 + $0xac] sm:$0xf]
      %v2243 = vld [vmem:[%s2198 + $0xb0] sm:$0xf]
      %v2244 = vld [vmem:[%s2198 + $0xb4] sm:$0xf]
      %v2245 = vld [vmem:[%s2198 + $0xb8] sm:$0xf]
      %v2246 = vld [vmem:[%s2198 + $0xbc] sm:$0xf]
      %v2295 = vunpack.c.l.b16 %v2199
      %v2296 = vunpack.c.l.b16 %v2200
      %v2297 = vunpack.c.l.b16 %v2201
      %v2298 = vunpack.c.l.b16 %v2202
      %v2299 = vunpack.c.l.b16 %v2203
      %v2300 = vunpack.c.l.b16 %v2204
      %v2301 = vunpack.c.l.b16 %v2205
      %v2302 = vunpack.c.l.b16 %v2206
      %v2303 = vunpack.c.l.b16 %v2207
      %v2304 = vunpack.c.l.b16 %v2208
      %v2305 = vunpack.c.l.b16 %v2209
      %v2306 = vunpack.c.l.b16 %v2210
      %v2307 = vunpack.c.l.b16 %v2211
      %v2308 = vunpack.c.l.b16 %v2212
      %v2309 = vunpack.c.l.b16 %v2213
      %v2310 = vunpack.c.l.b16 %v2214
      %v2311 = vunpack.c.l.b16 %v2215
      %v2312 = vunpack.c.l.b16 %v2216
      %v2313 = vunpack.c.l.b16 %v2217
      %v2314 = vunpack.c.l.b16 %v2218
      %v2315 = vunpack.c.l.b16 %v2219
      %v2316 = vunpack.c.l.b16 %v2220
      %v2317 = vunpack.c.l.b16 %v2221
      %v2318 = vunpack.c.l.b16 %v2222
      %v2319 = vunpack.c.l.b16 %v2223
      %v2320 = vunpack.c.l.b16 %v2224
      %v2321 = vunpack.c.l.b16 %v2225
      %v2322 = vunpack.c.l.b16 %v2226
      %v2323 = vunpack.c.l.b16 %v2227
      %v2324 = vunpack.c.l.b16 %v2228
      %v2325 = vunpack.c.l.b16 %v2229
      %v2326 = vunpack.c.l.b16 %v2230
      %v2327 = vunpack.c.l.b16 %v2231
      %v2328 = vunpack.c.l.b16 %v2232
      %v2329 = vunpack.c.l.b16 %v2233
      %v2330 = vunpack.c.l.b16 %v2234
      %v2331 = vunpack.c.l.b16 %v2235
      %v2332 = vunpack.c.l.b16 %v2236
      %v2333 = vunpack.c.l.b16 %v2237
      %v2334 = vunpack.c.l.b16 %v2238
      %v2335 = vunpack.c.l.b16 %v2239
      %v2336 = vunpack.c.l.b16 %v2240
      %v2337 = vunpack.c.l.b16 %v2241
      %v2338 = vunpack.c.l.b16 %v2242
      %v2339 = vunpack.c.l.b16 %v2243
      %v2340 = vunpack.c.l.b16 %v2244
      %v2341 = vunpack.c.l.b16 %v2245
      %v2342 = vunpack.c.l.b16 %v2246
      %v2343 = vpack.c.b16 %v2296, %v2295
      %v2344 = vpack.c.b16 %v2298, %v2297
      %v2345 = vpack.c.b16 %v2300, %v2299
      %v2346 = vpack.c.b16 %v2302, %v2301
      %v2347 = vpack.c.b16 %v2304, %v2303
      %v2348 = vpack.c.b16 %v2306, %v2305
      %v2349 = vpack.c.b16 %v2308, %v2307
      %v2350 = vpack.c.b16 %v2310, %v2309
      %v2351 = vpack.c.b16 %v2312, %v2311
      %v2352 = vpack.c.b16 %v2314, %v2313
      %v2353 = vpack.c.b16 %v2316, %v2315
      %v2354 = vpack.c.b16 %v2318, %v2317
      %v2355 = vpack.c.b16 %v2320, %v2319
      %v2356 = vpack.c.b16 %v2322, %v2321
      %v2357 = vpack.c.b16 %v2324, %v2323
      %v2358 = vpack.c.b16 %v2326, %v2325
      %v2359 = vpack.c.b16 %v2328, %v2327
      %v2360 = vpack.c.b16 %v2330, %v2329
      %v2361 = vpack.c.b16 %v2332, %v2331
      %v2362 = vpack.c.b16 %v2334, %v2333
      %v2363 = vpack.c.b16 %v2336, %v2335
      %v2364 = vpack.c.b16 %v2338, %v2337
      %v2365 = vpack.c.b16 %v2340, %v2339
      %v2366 = vpack.c.b16 %v2342, %v2341
      %2391 = vmatprep.subr.bf16.mxu0 0
      %2392 = vmatpush1.bf16.msra.mxu0 %v2343
      %2393 = vmatprep.subr.bf16.mxu0 0
      %2394 = vmatpush1.bf16.msra.mxu0 %v2344
      %2395 = vmatprep.subr.bf16.mxu0 0
      %2396 = vmatpush1.bf16.msra.mxu0 %v2345
      %2397 = vmatprep.subr.bf16.mxu0 0
      %2398 = vmatpush1.bf16.msra.mxu0 %v2346
      %2399 = vmatprep.subr.bf16.mxu0 0
      %2400 = vmatpush1.bf16.msra.mxu0 %v2347
      %2401 = vmatprep.subr.bf16.mxu0 0
      %2402 = vmatpush1.bf16.msra.mxu0 %v2348
      %2403 = vmatprep.subr.bf16.mxu0 0
      %2404 = vmatpush1.bf16.msra.mxu0 %v2349
      %2405 = vmatprep.subr.bf16.mxu0 0
      %2406 = vmatpush1.bf16.msra.mxu0 %v2350
      %2407 = vmatprep.subr.bf16.mxu0 0
      %2408 = vmatpush1.bf16.msra.mxu0 %v2351
      %2409 = vmatprep.subr.bf16.mxu0 0
      %2410 = vmatpush1.bf16.msra.mxu0 %v2352
      %2411 = vmatprep.subr.bf16.mxu0 0
      %2412 = vmatpush1.bf16.msra.mxu0 %v2353
      %2413 = vmatprep.subr.bf16.mxu0 0
      %2414 = vmatpush1.bf16.msra.mxu0 %v2354
      %2415 = vmatprep.subr.bf16.mxu0 0
      %2416 = vmatpush1.bf16.msra.mxu0 %v2355
      %2417 = vmatprep.subr.bf16.mxu0 0
      %2418 = vmatpush1.bf16.msra.mxu0 %v2356
      %2419 = vmatprep.subr.bf16.mxu0 0
      %2420 = vmatpush1.bf16.msra.mxu0 %v2357
      %2421 = vmatprep.subr.bf16.mxu0 0
      %2422 = vmatpush1.bf16.msra.mxu0 %v2358
      %2423 = vmatprep.mubr.bf16.mxu0 %v861
      %2424 = vmatmul.mubr.bf16.gmra.mrb[0].mxu0 %v791
      %v2425 = vpop.f32.mrb[0].mxu0
      %v2426 = vadd.f32 0.0, %v2425
      %v2427 = vpop.f32.mrb[0].mxu0
      %v2428 = vpop.f32.mrb[0].mxu0
      %v2429 = vadd.f32 0.0, %v2428
      %v2430 = vpop.f32.mrb[0].mxu0
      %2431 = vmatprep.mubr.bf16.mxu0 %v873
      %2432 = vmatmul.mubr.bf16.gmra.mrb[0].mxu0 %v792
      %v2433 = vpop.f32.mrb[0].mxu0
      %v2434 = vadd.f32 0.0, %v2433
      %v2435 = vpop.f32.mrb[0].mxu0
      %v2436 = vpop.f32.mrb[0].mxu0
      %v2437 = vadd.f32 0.0, %v2436
      %v2438 = vpop.f32.mrb[0].mxu0
      %2439 = vmatprep.mubr.bf16.mxu0 %v885
      %2440 = vmatmul.mubr.bf16.gmra.mrb[0].mxu0 %v793
      %v2441 = vpop.f32.mrb[0].mxu0
      %v2442 = vadd.f32 0.0, %v2441
      %v2443 = vpop.f32.mrb[0].mxu0
      %v2444 = vpop.f32.mrb[0].mxu0
      %v2445 = vadd.f32 0.0, %v2444
      %v2446 = vpop.f32.mrb[0].mxu0
      %2447 = vmatprep.mubr.bf16.mxu0 %v897
      %2448 = vmatmul.mubr.bf16.gmra.mrb[0].mxu0 %v794
      %v2449 = vpop.f32.mrb[0].mxu0
      %v2450 = vadd.f32 0.0, %v2449
      %v2451 = vpop.f32.mrb[0].mxu0
      %v2452 = vpop.f32.mrb[0].mxu0
      %v2453 = vadd.f32 0.0, %v2452
      %v2454 = vpop.f32.mrb[0].mxu0
      %2455 = vmatprep.mubr.bf16.mxu0 %v909
      %2456 = vmatmul.mubr.bf16.gmra.mrb[0].mxu0 %v795
      %v2457 = vpop.f32.mrb[0].mxu0
      %v2458 = vadd.f32 0.0, %v2457
      %v2459 = vpop.f32.mrb[0].mxu0
      %v2460 = vpop.f32.mrb[0].mxu0
      %v2461 = vadd.f32 0.0, %v2460
      %v2462 = vpop.f32.mrb[0].mxu0
      %2463 = vmatprep.mubr.bf16.mxu0 %v921
      %2464 = vmatmul.mubr.bf16.gmra.mrb[0].mxu0 %v796
      %v2465 = vpop.f32.mrb[0].mxu0
      %v2466 = vadd.f32 0.0, %v2465
      %v2467 = vpop.f32.mrb[0].mxu0
      %v2468 = vpop.f32.mrb[0].mxu0
      %v2469 = vadd.f32 0.0, %v2468
      %v2470 = vpop.f32.mrb[0].mxu0
      %2471 = vmatprep.mubr.bf16.mxu0 %v933
      %2472 = vmatmul.mubr.bf16.gmra.mrb[0].mxu0 %v797
      %v2473 = vpop.f32.mrb[0].mxu0
      %v2474 = vadd.f32 0.0, %v2473
      %v2475 = vpop.f32.mrb[0].mxu0
      %v2476 = vpop.f32.mrb[0].mxu0
      %v2477 = vadd.f32 0.0, %v2476
      %v2478 = vpop.f32.mrb[0].mxu0
      %2479 = vmatprep.mubr.bf16.mxu0 %v945
      %2480 = vmatmul.mubr.bf16.gmra.mrb[0].mxu0 %v798
      %v2481 = vpop.f32.mrb[0].mxu0
      %v2482 = vadd.f32 0.0, %v2481
      %v2483 = vpop.f32.mrb[0].mxu0
      %v2484 = vpop.f32.mrb[0].mxu0
      %v2485 = vadd.f32 0.0, %v2484
      %v2486 = vpop.f32.mrb[0].mxu0
      %2487 = vmatprep.mubr.bf16.mxu0 %v957
      %2488 = vmatmul.mubr.bf16.gmra.mrb[0].mxu0 %v799
      %v2489 = vpop.f32.mrb[0].mxu0
      %v2490 = vadd.f32 0.0, %v2489
      %v2491 = vpop.f32.mrb[0].mxu0
      %v2492 = vpop.f32.mrb[0].mxu0
      %v2493 = vadd.f32 0.0, %v2492
      %v2494 = vpop.f32.mrb[0].mxu0
      %2495 = vmatprep.mubr.bf16.mxu0 %v969
      %2496 = vmatmul.mubr.bf16.gmra.mrb[0].mxu0 %v800
      %v2497 = vpop.f32.mrb[0].mxu0
      %v2498 = vadd.f32 0.0, %v2497
      %v2499 = vpop.f32.mrb[0].mxu0
      %v2500 = vpop.f32.mrb[0].mxu0
      %v2501 = vadd.f32 0.0, %v2500
      %v2502 = vpop.f32.mrb[0].mxu0
      %2503 = vmatprep.mubr.bf16.mxu0 %v981
      %2504 = vmatmul.mubr.bf16.gmra.mrb[0].mxu0 %v801
      %v2505 = vpop.f32.mrb[0].mxu0
      %v2506 = vadd.f32 0.0, %v2505
      %v2507 = vpop.f32.mrb[0].mxu0
      %v2508 = vpop.f32.mrb[0].mxu0
      %v2509 = vadd.f32 0.0, %v2508
      %v2510 = vpop.f32.mrb[0].mxu0
      %2511 = vmatprep.mubr.bf16.mxu0 %v993
      %2512 = vmatmul.mubr.bf16.gmra.mrb[0].mxu0 %v802
      %v2513 = vpop.f32.mrb[0].mxu0
      %v2514 = vadd.f32 0.0, %v2513
      %v2515 = vpop.f32.mrb[0].mxu0
      %v2516 = vpop.f32.mrb[0].mxu0
      %v2517 = vadd.f32 0.0, %v2516
      %v2518 = vpop.f32.mrb[0].mxu0
      %2519 = vmatprep.mubr.bf16.mxu0 %v1005
      %2520 = vmatmul.mubr.bf16.gmra.mrb[0].mxu0 %v803
      %v2521 = vpop.f32.mrb[0].mxu0
      %v2522 = vadd.f32 0.0, %v2521
      %v2523 = vpop.f32.mrb[0].mxu0
      %v2524 = vpop.f32.mrb[0].mxu0
      %v2525 = vadd.f32 0.0, %v2524
      %v2526 = vpop.f32.mrb[0].mxu0
      %2527 = vmatprep.mubr.bf16.mxu0 %v1017
      %2528 = vmatmul.mubr.bf16.gmra.mrb[0].mxu0 %v804
      %v2529 = vpop.f32.mrb[0].mxu0
      %v2530 = vadd.f32 0.0, %v2529
      %v2531 = vpop.f32.mrb[0].mxu0
      %v2532 = vpop.f32.mrb[0].mxu0
      %v2533 = vadd.f32 0.0, %v2532
      %v2534 = vpop.f32.mrb[0].mxu0
      %2535 = vmatprep.mubr.bf16.mxu0 %v1190
      %2536 = vmatmul.mubr.bf16.gmra.mrb[0].mxu0 %v805
      %v2537 = vpop.f32.mrb[0].mxu0
      %v2538 = vadd.f32 0.0, %v2537
      %v2539 = vpop.f32.mrb[0].mxu0
      %v2540 = vpop.f32.mrb[0].mxu0
      %v2541 = vadd.f32 0.0, %v2540
      %v2542 = vpop.f32.mrb[0].mxu0
      %2543 = vmatprep.mubr.bf16.mxu0 %v2190
      %2544 = vmatmul.mubr.bf16.gmra.mrb[0].mxu0 %v806
      %v2545 = vpop.f32.mrb[0].mxu0
      %v2546 = vadd.f32 0.0, %v2545
      %v2547 = vpop.f32.mrb[0].mxu0
      %v2548 = vpop.f32.mrb[0].mxu0
      %v2549 = vadd.f32 0.0, %v2548
      %v2550 = vpop.f32.mrb[0].mxu0
      %2551 = vdwg.mxu0
      %2552 = vmatprep.subr.bf16.mxu0 0
      %2553 = vmatpush1.bf16.msra.mxu0 %v2359
      %2554 = vmatprep.subr.bf16.mxu0 0
      %2555 = vmatpush1.bf16.msra.mxu0 %v2360
      %2556 = vmatprep.subr.bf16.mxu0 0
      %2557 = vmatpush1.bf16.msra.mxu0 %v2361
      %2558 = vmatprep.subr.bf16.mxu0 0
      %2559 = vmatpush1.bf16.msra.mxu0 %v2362
      %2560 = vmatprep.subr.bf16.mxu0 0
      %2561 = vmatpush1.bf16.msra.mxu0 %v2363
      %2562 = vmatprep.subr.bf16.mxu0 0
      %2563 = vmatpush1.bf16.msra.mxu0 %v2364
      %2564 = vmatprep.subr.bf16.mxu0 0
      %2565 = vmatpush1.bf16.msra.mxu0 %v2365
      %2566 = vmatprep.subr.bf16.mxu0 0
      %2567 = vmatpush1.bf16.msra.mxu0 %v2366
      %2568 = vmatprep.subr.bf16.mxu0 0
      %2569 = vmatpush1.bf16.msra.mxu0 0
      %2570 = vmatprep.subr.bf16.mxu0 0
      %2571 = vmatpush1.bf16.msra.mxu0 0
      %2572 = vmatprep.subr.bf16.mxu0 0
      %2573 = vmatpush1.bf16.msra.mxu0 0
      %2574 = vmatprep.subr.bf16.mxu0 0
      %2575 = vmatpush1.bf16.msra.mxu0 0
      %2576 = vmatprep.subr.bf16.mxu0 0
      %2577 = vmatpush1.bf16.msra.mxu0 0
      %2578 = vmatprep.subr.bf16.mxu0 0
      %2579 = vmatpush1.bf16.msra.mxu0 0
      %2580 = vmatprep.subr.bf16.mxu0 0
      %2581 = vmatpush1.bf16.msra.mxu0 0
      %2582 = vmatprep.subr.bf16.mxu0 0
      %2583 = vmatpush1.bf16.msra.mxu0 0
      %2584 = vmatprep.mubr.bf16.mxu0 0
      %2585 = vmatmul.mubr.bf16.gmra.mrb[0].mxu0 %v1075
      %v2586 = vpop.f32.mrb[0].mxu0
      %v2587 = vadd.f32 %v2426, %v2586
      %v2588 = vpop.f32.mrb[0].mxu0
      %v2589 = vpop.f32.mrb[0].mxu0
      %v2590 = vadd.f32 %v2429, %v2589
      %v2591 = vpop.f32.mrb[0].mxu0
      %2592 = vmatprep.mubr.bf16.mxu0 0
      %2593 = vmatmul.mubr.bf16.gmra.mrb[0].mxu0 %v1078
      %v2594 = vpop.f32.mrb[0].mxu0
      %v2595 = vadd.f32 %v2434, %v2594
      %v2596 = vpop.f32.mrb[0].mxu0
      %v2597 = vpop.f32.mrb[0].mxu0
      %v2598 = vadd.f32 %v2437, %v2597
      %v2599 = vpop.f32.mrb[0].mxu0
      %2600 = vmatprep.mubr.bf16.mxu0 0
      %2601 = vmatmul.mubr.bf16.gmra.mrb[0].mxu0 %v1081
      %v2602 = vpop.f32.mrb[0].mxu0
      %v2603 = vadd.f32 %v2442, %v2602
      %v2604 = vpop.f32.mrb[0].mxu0
      %v2605 = vpop.f32.mrb[0].mxu0
      %v2606 = vadd.f32 %v2445, %v2605
      %v2607 = vpop.f32.mrb[0].mxu0
      %2608 = vmatprep.mubr.bf16.mxu0 0
      %2609 = vmatmul.mubr.bf16.gmra.mrb[0].mxu0 %v1084
      %v2610 = vpop.f32.mrb[0].mxu0
      %v2611 = vadd.f32 %v2450, %v2610
      %v2612 = vpop.f32.mrb[0].mxu0
      %v2613 = vpop.f32.mrb[0].mxu0
      %v2614 = vadd.f32 %v2453, %v2613
      %v2615 = vpop.f32.mrb[0].mxu0
      %2616 = vmatprep.mubr.bf16.mxu0 0
      %2617 = vmatmul.mubr.bf16.gmra.mrb[0].mxu0 %v1087
      %v2618 = vpop.f32.mrb[0].mxu0
      %v2619 = vadd.f32 %v2458, %v2618
      %v2620 = vpop.f32.mrb[0].mxu0
      %v2621 = vpop.f32.mrb[0].mxu0
      %v2622 = vadd.f32 %v2461, %v2621
      %v2623 = vpop.f32.mrb[0].mxu0
      %2624 = vmatprep.mubr.bf16.mxu0 0
      %2625 = vmatmul.mubr.bf16.gmra.mrb[0].mxu0 %v1090
      %v2626 = vpop.f32.mrb[0].mxu0
      %v2627 = vadd.f32 %v2466, %v2626
      %v2628 = vpop.f32.mrb[0].mxu0
      %v2629 = vpop.f32.mrb[0].mxu0
      %v2630 = vadd.f32 %v2469, %v2629
      %v2631 = vpop.f32.mrb[0].mxu0
      %2632 = vmatprep.mubr.bf16.mxu0 0
      %2633 = vmatmul.mubr.bf16.gmra.mrb[0].mxu0 %v1093
      %v2634 = vpop.f32.mrb[0].mxu0
      %v2635 = vadd.f32 %v2474, %v2634
      %v2636 = vpop.f32.mrb[0].mxu0
      %v2637 = vpop.f32.mrb[0].mxu0
      %v2638 = vadd.f32 %v2477, %v2637
      %v2639 = vpop.f32.mrb[0].mxu0
      %2640 = vmatprep.mubr.bf16.mxu0 0
      %2641 = vmatmul.mubr.bf16.gmra.mrb[0].mxu0 %v1096
      %v2642 = vpop.f32.mrb[0].mxu0
      %v2643 = vadd.f32 %v2482, %v2642
      %v2644 = vpop.f32.mrb[0].mxu0
      %v2645 = vpop.f32.mrb[0].mxu0
      %v2646 = vadd.f32 %v2485, %v2645
      %v2647 = vpop.f32.mrb[0].mxu0
      %2648 = vmatprep.mubr.bf16.mxu0 0
      %2649 = vmatmul.mubr.bf16.gmra.mrb[0].mxu0 %v1099
      %v2650 = vpop.f32.mrb[0].mxu0
      %v2651 = vadd.f32 %v2490, %v2650
      %v2652 = vpop.f32.mrb[0].mxu0
      %v2653 = vpop.f32.mrb[0].mxu0
      %v2654 = vadd.f32 %v2493, %v2653
      %v2655 = vpop.f32.mrb[0].mxu0
      %2656 = vmatprep.mubr.bf16.mxu0 0
      %2657 = vmatmul.mubr.bf16.gmra.mrb[0].mxu0 %v1102
      %v2658 = vpop.f32.mrb[0].mxu0
      %v2659 = vadd.f32 %v2498, %v2658
      %v2660 = vpop.f32.mrb[0].mxu0
      %v2661 = vpop.f32.mrb[0].mxu0
      %v2662 = vadd.f32 %v2501, %v2661
      %v2663 = vpop.f32.mrb[0].mxu0
      %2664 = vmatprep.mubr.bf16.mxu0 0
      %2665 = vmatmul.mubr.bf16.gmra.mrb[0].mxu0 %v1105
      %v2666 = vpop.f32.mrb[0].mxu0
      %v2667 = vadd.f32 %v2506, %v2666
      %v2668 = vpop.f32.mrb[0].mxu0
      %v2669 = vpop.f32.mrb[0].mxu0
      %v2670 = vadd.f32 %v2509, %v2669
      %v2671 = vpop.f32.mrb[0].mxu0
      %2672 = vmatprep.mubr.bf16.mxu0 0
      %2673 = vmatmul.mubr.bf16.gmra.mrb[0].mxu0 %v1108
      %v2674 = vpop.f32.mrb[0].mxu0
      %v2675 = vadd.f32 %v2514, %v2674
      %v2676 = vpop.f32.mrb[0].mxu0
      %v2677 = vpop.f32.mrb[0].mxu0
      %v2678 = vadd.f32 %v2517, %v2677
      %v2679 = vpop.f32.mrb[0].mxu0
      %2680 = vmatprep.mubr.bf16.mxu0 0
      %2681 = vmatmul.mubr.bf16.gmra.mrb[0].mxu0 %v1111
      %v2682 = vpop.f32.mrb[0].mxu0
      %v2683 = vadd.f32 %v2522, %v2682
      %v2684 = vpop.f32.mrb[0].mxu0
      %v2685 = vpop.f32.mrb[0].mxu0
      %v2686 = vadd.f32 %v2525, %v2685
      %v2687 = vpop.f32.mrb[0].mxu0
      %2688 = vmatprep.mubr.bf16.mxu0 0
      %2689 = vmatmul.mubr.bf16.gmra.mrb[0].mxu0 %v1114
      %v2690 = vpop.f32.mrb[0].mxu0
      %v2691 = vadd.f32 %v2530, %v2690
      %v2692 = vpop.f32.mrb[0].mxu0
      %v2693 = vpop.f32.mrb[0].mxu0
      %v2694 = vadd.f32 %v2533, %v2693
      %v2695 = vpop.f32.mrb[0].mxu0
      %2696 = vmatprep.mubr.bf16.mxu0 0
      %2697 = vmatmul.mubr.bf16.gmra.mrb[0].mxu0 %v1196
      %v2698 = vpop.f32.mrb[0].mxu0
      %v2699 = vadd.f32 %v2538, %v2698
      %v2700 = vpop.f32.mrb[0].mxu0
      %v2701 = vpop.f32.mrb[0].mxu0
      %v2702 = vadd.f32 %v2541, %v2701
      %v2703 = vpop.f32.mrb[0].mxu0
      %2704 = vmatprep.mubr.bf16.mxu0 0
      %2705 = vmatmul.mubr.bf16.gmra.mrb[0].mxu0 %v2196
      %v2706 = vpop.f32.mrb[0].mxu0
      %v2707 = vadd.f32 %v2546, %v2706
      %v2708 = vpop.f32.mrb[0].mxu0
      %v2709 = vpop.f32.mrb[0].mxu0
      %v2710 = vadd.f32 %v2549, %v2709
      %v2711 = vpop.f32.mrb[0].mxu0
      %2712 = vdwg.mxu0
      %v2713 = vadd.f32 %v2053, %v2587
      %v2714 = vadd.f32 %v2056, %v2590
      %v2715 = vadd.f32 %v2061, %v2595
      %v2716 = vadd.f32 %v2064, %v2598
      %v2717 = vadd.f32 %v2069, %v2603
      %v2718 = vadd.f32 %v2072, %v2606
      %v2719 = vadd.f32 %v2077, %v2611
      %v2720 = vadd.f32 %v2080, %v2614
      %v2721 = vadd.f32 %v2085, %v2619
      %v2722 = vadd.f32 %v2088, %v2622
      %v2723 = vadd.f32 %v2093, %v2627
      %v2724 = vadd.f32 %v2096, %v2630
      %v2725 = vadd.f32 %v2101, %v2635
      %v2726 = vadd.f32 %v2104, %v2638
      %v2727 = vadd.f32 %v2109, %v2643
      %v2728 = vadd.f32 %v2112, %v2646
      %v2729 = vadd.f32 %v2117, %v2651
      %v2730 = vadd.f32 %v2120, %v2654
      %v2731 = vadd.f32 %v2125, %v2659
      %v2732 = vadd.f32 %v2128, %v2662
      %v2733 = vadd.f32 %v2133, %v2667
      %v2734 = vadd.f32 %v2136, %v2670
      %v2735 = vadd.f32 %v2141, %v2675
      %v2736 = vadd.f32 %v2144, %v2678
      %v2737 = vadd.f32 %v2149, %v2683
      %v2738 = vadd.f32 %v2152, %v2686
      %v2739 = vadd.f32 %v2157, %v2691
      %v2740 = vadd.f32 %v2160, %v2694
      %v2741 = vadd.f32 %v2165, %v2699
      %v2742 = vadd.f32 %v2168, %v2702
      %v2743 = vadd.f32 %v2173, %v2707
      %v2744 = vadd.f32 %v2176, %v2710
      %v2745 = vpack.c.bf16 %v2714, %v2713
      %v2746 = vpack.c.bf16 %v2716, %v2715
      %v2747 = vpack.c.bf16 %v2718, %v2717
      %v2748 = vpack.c.bf16 %v2720, %v2719
      %v2749 = vpack.c.bf16 %v2722, %v2721
      %v2750 = vpack.c.bf16 %v2724, %v2723
      %v2751 = vpack.c.bf16 %v2726, %v2725
      %v2752 = vpack.c.bf16 %v2728, %v2727
      %v2753 = vpack.c.bf16 %v2730, %v2729
      %v2754 = vpack.c.bf16 %v2732, %v2731
      %v2755 = vpack.c.bf16 %v2734, %v2733
      %v2756 = vpack.c.bf16 %v2736, %v2735
      %v2757 = vpack.c.bf16 %v2738, %v2737
      %v2758 = vpack.c.bf16 %v2740, %v2739
      %v2759 = vpack.c.bf16 %v2742, %v2741
      %v2760 = vpack.c.bf16 %v2744, %v2743
      %v2777 = vunpack.c.l.b16 %v2745
      %v2778 = vunpack.c.h.b16 %v2745
      %v2779 = vunpack.c.l.b16 %v2746
      %v2780 = vunpack.c.h.b16 %v2746
      %v2781 = vunpack.c.l.b16 %v2747
      %v2782 = vunpack.c.h.b16 %v2747
      %v2783 = vunpack.c.l.b16 %v2748
      %v2784 = vunpack.c.h.b16 %v2748
      %v2785 = vunpack.c.l.b16 %v2749
      %v2786 = vunpack.c.h.b16 %v2749
      %v2787 = vunpack.c.l.b16 %v2750
      %v2788 = vunpack.c.h.b16 %v2750
      %v2789 = vunpack.c.l.b16 %v2751
      %v2790 = vunpack.c.h.b16 %v2751
      %v2791 = vunpack.c.l.b16 %v2752
      %v2792 = vunpack.c.h.b16 %v2752
      %v2793 = vunpack.c.l.b16 %v2753
      %v2794 = vunpack.c.h.b16 %v2753
      %v2795 = vunpack.c.l.b16 %v2754
      %v2796 = vunpack.c.h.b16 %v2754
      %v2797 = vunpack.c.l.b16 %v2755
      %v2798 = vunpack.c.h.b16 %v2755
      %v2799 = vunpack.c.l.b16 %v2756
      %v2800 = vunpack.c.h.b16 %v2756
      %v2801 = vunpack.c.l.b16 %v2757
      %v2802 = vunpack.c.h.b16 %v2757
      %v2803 = vunpack.c.l.b16 %v2758
      %v2804 = vunpack.c.h.b16 %v2758
      %v2805 = vunpack.c.l.b16 %v2759
      %v2806 = vunpack.c.h.b16 %v2759
      %v2807 = vunpack.c.l.b16 %v2760
      %v2808 = vunpack.c.h.b16 %v2760
      %v2809 = vpack.c.b16 %v2777, %v2777
      %v2810 = vpack.c.b16 %v2778, %v2778
      %v2811 = vpack.c.b16 %v2779, %v2779
      %v2812 = vpack.c.b16 %v2780, %v2780
      %v2813 = vpack.c.b16 %v2781, %v2781
      %v2814 = vpack.c.b16 %v2782, %v2782
      %v2815 = vpack.c.b16 %v2783, %v2783
      %v2816 = vpack.c.b16 %v2784, %v2784
      %v2817 = vpack.c.b16 %v2785, %v2785
      %v2818 = vpack.c.b16 %v2786, %v2786
      %v2819 = vpack.c.b16 %v2787, %v2787
      %v2820 = vpack.c.b16 %v2788, %v2788
      %v2821 = vpack.c.b16 %v2789, %v2789
      %v2822 = vpack.c.b16 %v2790, %v2790
      %v2823 = vpack.c.b16 %v2791, %v2791
      %v2824 = vpack.c.b16 %v2792, %v2792
      %v2825 = vpack.c.b16 %v2793, %v2793
      %v2826 = vpack.c.b16 %v2794, %v2794
      %v2827 = vpack.c.b16 %v2795, %v2795
      %v2828 = vpack.c.b16 %v2796, %v2796
      %v2829 = vpack.c.b16 %v2797, %v2797
      %v2830 = vpack.c.b16 %v2798, %v2798
      %v2831 = vpack.c.b16 %v2799, %v2799
      %v2832 = vpack.c.b16 %v2800, %v2800
      %v2833 = vpack.c.b16 %v2801, %v2801
      %v2834 = vpack.c.b16 %v2802, %v2802
      %v2835 = vpack.c.b16 %v2803, %v2803
      %v2836 = vpack.c.b16 %v2804, %v2804
      %v2837 = vpack.c.b16 %v2805, %v2805
      %v2838 = vpack.c.b16 %v2806, %v2806
      %v2839 = vpack.c.b16 %v2807, %v2807
      %v2840 = vpack.c.b16 %v2808, %v2808
      %2873 = vst [vmem:[%s482] sm:$0xf] %v2809
      %2874 = vst [vmem:[%s482 + $0x4] sm:$0xf] %v2810
      %2875 = vst [vmem:[%s482 + $0x8] sm:$0xf] %v2811
      %2876 = vst [vmem:[%s482 + $0xc] sm:$0xf] %v2812
      %2877 = vst [vmem:[%s482 + $0x10] sm:$0xf] %v2813
      %2878 = vst [vmem:[%s482 + $0x14] sm:$0xf] %v2814
      %2879 = vst [vmem:[%s482 + $0x18] sm:$0xf] %v2815
      %2880 = vst [vmem:[%s482 + $0x1c] sm:$0xf] %v2816
      %2881 = vst [vmem:[%s482 + $0x20] sm:$0xf] %v2817
      %2882 = vst [vmem:[%s482 + $0x24] sm:$0xf] %v2818
      %2883 = vst [vmem:[%s482 + $0x28] sm:$0xf] %v2819
      %2884 = vst [vmem:[%s482 + $0x2c] sm:$0xf] %v2820
      %2885 = vst [vmem:[%s482 + $0x30] sm:$0xf] %v2821
      %2886 = vst [vmem:[%s482 + $0x34] sm:$0xf] %v2822
      %2887 = vst [vmem:[%s482 + $0x38] sm:$0xf] %v2823
      %2888 = vst [vmem:[%s482 + $0x3c] sm:$0xf] %v2824
      %2889 = vst [vmem:[%s482 + $0x40] sm:$0xf] %v2825
      %2890 = vst [vmem:[%s482 + $0x44] sm:$0xf] %v2826
      %2891 = vst [vmem:[%s482 + $0x48] sm:$0xf] %v2827
      %2892 = vst [vmem:[%s482 + $0x4c] sm:$0xf] %v2828
      %2893 = vst [vmem:[%s482 + $0x50] sm:$0xf] %v2829
      %2894 = vst [vmem:[%s482 + $0x54] sm:$0xf] %v2830
      %2895 = vst [vmem:[%s482 + $0x58] sm:$0xf] %v2831
      %2896 = vst [vmem:[%s482 + $0x5c] sm:$0xf] %v2832
      %2897 = vst [vmem:[%s482 + $0x60] sm:$0xf] %v2833
      %2898 = vst [vmem:[%s482 + $0x64] sm:$0xf] %v2834
      %2899 = vst [vmem:[%s482 + $0x68] sm:$0xf] %v2835
      %2900 = vst [vmem:[%s482 + $0x6c] sm:$0xf] %v2836
      %2901 = vst [vmem:[%s482 + $0x70] sm:$0xf] %v2837
      %2902 = vst [vmem:[%s482 + $0x74] sm:$0xf] %v2838
      %2903 = vst [vmem:[%s482 + $0x78] sm:$0xf] %v2839
      %2904 = vst [vmem:[%s482 + $0x7c] sm:$0xf] %v2840
      %2905 = vmatprep.subr.mxu0 0.0
      %2906 = vmatpush1.msra.mxu0 %v2713
      %2907 = vmatprep.subr.mxu0 0.0
      %2908 = vmatpush1.msra.mxu0 %v2714
      %2909 = vmatprep.subr.mxu0 0.0
      %2910 = vmatpush1.msra.mxu0 %v2715
      %2911 = vmatprep.subr.mxu0 0.0
      %2912 = vmatpush1.msra.mxu0 %v2716
      %2913 = vmatprep.subr.mxu0 0.0
      %2914 = vmatpush1.msra.mxu0 %v2717
      %2915 = vmatprep.subr.mxu0 0.0
      %2916 = vmatpush1.msra.mxu0 %v2718
      %2917 = vmatprep.subr.mxu0 0.0
      %2918 = vmatpush1.msra.mxu0 %v2719
      %2919 = vmatprep.subr.mxu0 0.0
      %2920 = vmatpush1.msra.mxu0 %v2720
      %2921 = vmatprep.subr.mxu0 0.0
      %2922 = vmatpush1.msra.mxu0 %v2721
      %2923 = vmatprep.subr.mxu0 0.0
      %2924 = vmatpush1.msra.mxu0 %v2722
      %2925 = vmatprep.subr.mxu0 0.0
      %2926 = vmatpush1.msra.mxu0 %v2723
      %2927 = vmatprep.subr.mxu0 0.0
      %2928 = vmatpush1.msra.mxu0 %v2724
      %2929 = vmatprep.subr.mxu0 0.0
      %2930 = vmatpush1.msra.mxu0 %v2725
      %2931 = vmatprep.subr.mxu0 0.0
      %2932 = vmatpush1.msra.mxu0 %v2726
      %2933 = vmatprep.subr.mxu0 0.0
      %2934 = vmatpush1.msra.mxu0 %v2727
      %2935 = vmatprep.subr.mxu0 0.0
      %2936 = vmatpush1.msra.mxu0 %v2728
      %2937 = vmatprep.subr.mxu0 0.0
      %2938 = vmatpush1.msra.mxu0 %v2729
      %2939 = vmatprep.subr.mxu0 0.0
      %2940 = vmatpush1.msra.mxu0 %v2730
      %2941 = vmatprep.subr.mxu0 0.0
      %2942 = vmatpush1.msra.mxu0 %v2731
      %2943 = vmatprep.subr.mxu0 0.0
      %2944 = vmatpush1.msra.mxu0 %v2732
      %2945 = vmatprep.subr.mxu0 0.0
      %2946 = vmatpush1.msra.mxu0 %v2733
      %2947 = vmatprep.subr.mxu0 0.0
      %2948 = vmatpush1.msra.mxu0 %v2734
      %2949 = vmatprep.subr.mxu0 0.0
      %2950 = vmatpush1.msra.mxu0 %v2735
      %2951 = vmatprep.subr.mxu0 0.0
      %2952 = vmatpush1.msra.mxu0 %v2736
      %2953 = vmatprep.subr.mxu0 0.0
      %2954 = vmatpush1.msra.mxu0 %v2737
      %2955 = vmatprep.subr.mxu0 0.0
      %2956 = vmatpush1.msra.mxu0 %v2738
      %2957 = vmatprep.subr.mxu0 0.0
      %2958 = vmatpush1.msra.mxu0 %v2739
      %2959 = vmatprep.subr.mxu0 0.0
      %2960 = vmatpush1.msra.mxu0 %v2740
      %2961 = vmatprep.subr.mxu0 0.0
      %2962 = vmatpush1.msra.mxu0 %v2741
      %2963 = vmatprep.subr.mxu0 0.0
      %2964 = vmatpush1.msra.mxu0 %v2742
      %2965 = vmatprep.subr.mxu0 0.0
      %2966 = vmatpush1.msra.mxu0 %v2743
      %2967 = vmatprep.subr.mxu0 0.0
      %2968 = vmatpush1.msra.mxu0 %v2744
      %2969 = vmatprep.mubr.f32.mxu0 1.0
      %2970 = vmatmul.mubr.f32.gmra.mrb[0].mxu0 1.0
      %v2971 = vpop.f32.mrb[0].mxu0
      %v2972 = vadd.f32 0.0, %v2971
      %v2973 = vpop.f32.mrb[0].mxu0
      %2974 = vdwg.mxu0
      %v2975 = vmul.f32 %v2713, %v2713
      %v2976 = vmul.f32 %v2714, %v2714
      %v2977 = vmul.f32 %v2715, %v2715
      %v2978 = vmul.f32 %v2716, %v2716
      %v2979 = vmul.f32 %v2717, %v2717
      %v2980 = vmul.f32 %v2718, %v2718
      %v2981 = vmul.f32 %v2719, %v2719
      %v2982 = vmul.f32 %v2720, %v2720
      %v2983 = vmul.f32 %v2721, %v2721
      %v2984 = vmul.f32 %v2722, %v2722
      %v2985 = vmul.f32 %v2723, %v2723
      %v2986 = vmul.f32 %v2724, %v2724
      %v2987 = vmul.f32 %v2725, %v2725
      %v2988 = vmul.f32 %v2726, %v2726
      %v2989 = vmul.f32 %v2727, %v2727
      %v2990 = vmul.f32 %v2728, %v2728
      %v2991 = vmul.f32 %v2729, %v2729
      %v2992 = vmul.f32 %v2730, %v2730
      %v2993 = vmul.f32 %v2731, %v2731
      %v2994 = vmul.f32 %v2732, %v2732
      %v2995 = vmul.f32 %v2733, %v2733
      %v2996 = vmul.f32 %v2734, %v2734
      %v2997 = vmul.f32 %v2735, %v2735
      %v2998 = vmul.f32 %v2736, %v2736
      %v2999 = vmul.f32 %v2737, %v2737
      %v3000 = vmul.f32 %v2738, %v2738
      %v3001 = vmul.f32 %v2739, %v2739
      %v3002 = vmul.f32 %v2740, %v2740
      %v3003 = vmul.f32 %v2741, %v2741
      %v3004 = vmul.f32 %v2742, %v2742
      %v3005 = vmul.f32 %v2743, %v2743
      %v3006 = vmul.f32 %v2744, %v2744
      %3007 = vmatprep.subr.mxu0 0.0
      %3008 = vmatpush1.msra.mxu0 %v2975
      %3009 = vmatprep.subr.mxu0 0.0
      %3010 = vmatpush1.msra.mxu0 %v2976
      %3011 = vmatprep.subr.mxu0 0.0
      %3012 = vmatpush1.msra.mxu0 %v2977
      %3013 = vmatprep.subr.mxu0 0.0
      %3014 = vmatpush1.msra.mxu0 %v2978
      %3015 = vmatprep.subr.mxu0 0.0
      %3016 = vmatpush1.msra.mxu0 %v2979
      %3017 = vmatprep.subr.mxu0 0.0
      %3018 = vmatpush1.msra.mxu0 %v2980
      %3019 = vmatprep.subr.mxu0 0.0
      %3020 = vmatpush1.msra.mxu0 %v2981
      %3021 = vmatprep.subr.mxu0 0.0
      %3022 = vmatpush1.msra.mxu0 %v2982
      %3023 = vmatprep.subr.mxu0 0.0
      %3024 = vmatpush1.msra.mxu0 %v2983
      %3025 = vmatprep.subr.mxu0 0.0
      %3026 = vmatpush1.msra.mxu0 %v2984
      %3027 = vmatprep.subr.mxu0 0.0
      %3028 = vmatpush1.msra.mxu0 %v2985
      %3029 = vmatprep.subr.mxu0 0.0
      %3030 = vmatpush1.msra.mxu0 %v2986
      %3031 = vmatprep.subr.mxu0 0.0
      %3032 = vmatpush1.msra.mxu0 %v2987
      %3033 = vmatprep.subr.mxu0 0.0
      %3034 = vmatpush1.msra.mxu0 %v2988
      %3035 = vmatprep.subr.mxu0 0.0
      %3036 = vmatpush1.msra.mxu0 %v2989
      %3037 = vmatprep.subr.mxu0 0.0
      %3038 = vmatpush1.msra.mxu0 %v2990
      %3039 = vmatprep.subr.mxu0 0.0
      %3040 = vmatpush1.msra.mxu0 %v2991
      %3041 = vmatprep.subr.mxu0 0.0
      %3042 = vmatpush1.msra.mxu0 %v2992
      %3043 = vmatprep.subr.mxu0 0.0
      %3044 = vmatpush1.msra.mxu0 %v2993
      %3045 = vmatprep.subr.mxu0 0.0
      %3046 = vmatpush1.msra.mxu0 %v2994
      %3047 = vmatprep.subr.mxu0 0.0
      %3048 = vmatpush1.msra.mxu0 %v2995
      %3049 = vmatprep.subr.mxu0 0.0
      %3050 = vmatpush1.msra.mxu0 %v2996
      %3051 = vmatprep.subr.mxu0 0.0
      %3052 = vmatpush1.msra.mxu0 %v2997
      %3053 = vmatprep.subr.mxu0 0.0
      %3054 = vmatpush1.msra.mxu0 %v2998
      %3055 = vmatprep.subr.mxu0 0.0
      %3056 = vmatpush1.msra.mxu0 %v2999
      %3057 = vmatprep.subr.mxu0 0.0
      %3058 = vmatpush1.msra.mxu0 %v3000
      %3059 = vmatprep.subr.mxu0 0.0
      %3060 = vmatpush1.msra.mxu0 %v3001
      %3061 = vmatprep.subr.mxu0 0.0
      %3062 = vmatpush1.msra.mxu0 %v3002
      %3063 = vmatprep.subr.mxu0 0.0
      %3064 = vmatpush1.msra.mxu0 %v3003
      %3065 = vmatprep.subr.mxu0 0.0
      %3066 = vmatpush1.msra.mxu0 %v3004
      %3067 = vmatprep.subr.mxu0 0.0
      %3068 = vmatpush1.msra.mxu0 %v3005
      %3069 = vmatprep.subr.mxu0 0.0
      %3070 = vmatpush1.msra.mxu0 %v3006
      %3071 = vmatprep.mubr.f32.mxu0 1.0
      %3072 = vmatmul.mubr.f32.gmra.mrb[0].mxu0 1.0
      %v3073 = vpop.f32.mrb[0].mxu0
      %v3074 = vadd.f32 0.0, %v3073
      %v3075 = vpop.f32.mrb[0].mxu0
      %3076 = vdwg.mxu0
      %v3078 = vrot.slane %v3074, 7
      %vm3080 = vcmask 1040384
      %v3081 = vsel %vm3080, %v2972, %v3078
      %3082 = vst [vmem:[%s490] sm:$0x3] %v3081
      %s3083 = smul.u32 16, %s24
      %p3084 = scmp.lt.s32.totalorder %s23, 1
      %s3085 = scalar_select %p3084, %s23, 1
      %p3086 = scmp.lt.s32.totalorder %s3083, 15
      %s3087 = scalar_select %p3086, %s3083, 15
      %s3088 = smul.addr %s3087, 2
      %s3089 = smul.addr %s3085, 32
      %s3090 = sadd.s32 %s3088, %s3089
      %s3091 = smul.addr %s3090, 4
      %s3092 = scalar_lea.vmem %s6, %s3091
      %p3093 = scmp.lt.s32.totalorder %s23, 1
      %s3094 = scalar_select %p3093, %s23, 1
      %p3095 = scmp.lt.s32.totalorder %s24, 0
      %s3096 = scalar_select %p3095, %s24, 0
      %s3097 = sadd.s32 %s3096, %s3094
      %s3098 = smul.addr %s3097, 2
      %s3099 = scalar_lea.vmem %s7, %s3098
      // Predicated region
      $region45: #{double_conv.3} parent=43 // pred_check
        %p3100 = pneg %p214
      $region46: #{double_conv.3} parent=43 // pred_check_branch
        %3102 = sbr.rel (%p3100) target = $region48
      $region47: #{double_conv.3} parent=43 // pred_region
        %s3103 = smul.u32 16, %s24
      $region48: #{double_conv.3} parent=43 // pred_fallthru
        _
      // Predicated region
      $region49: #{double_conv.3} parent=43 // pred_check
        %p3104 = pneg %p242
      $region50: #{double_conv.3} parent=43 // pred_check_branch
        %3106 = sbr.rel (%p3104) target = $region52
      $region51: #{double_conv.3} parent=43 // pred_region
        _
      $region52: #{double_conv.3} parent=43 // pred_fallthru
        _
    $region44: #{double_conv.3} parent=5 // pred_fallthru
      _
    %p3107 = scmp.le.s32.totalorder 2, %s14
    // Predicated region
    $region53: #{double_conv.3} parent=5 // pred_check
      %p3108 = pneg %p3107
    $region54: #{double_conv.3} parent=5 // pred_check_branch
      %3110 = sbr.rel (%p3108) target = $region56
    $region55: #{double_conv.3} parent=5 // pred_region
      %s3111 = ssub.s32 %s14, 2
      // Predicated region
      $region57: #{double_conv.3} parent=55 // pred_check
        %p3112 = pneg %p220
      $region58: #{double_conv.3} parent=55 // pred_check_branch
        %3114 = sbr.rel (%p3112) target = $region60
      $region59: #{double_conv.3} parent=55 // pred_region
        %s3115 = smul.u32 16, %s26
        %p3116 = scmp.lt.s32.totalorder %s25, 1
        %s3117 = scalar_select %p3116, %s25, 1
        %p3118 = scmp.lt.s32.totalorder %s3115, 15
        %s3119 = scalar_select %p3118, %s3115, 15
        %s3120 = smul.addr %s3119, 2
        %s3121 = smul.addr %s3117, 32
        %s3122 = sadd.s32 %s3120, %s3121
        %s3123 = smul.addr %s3122, 4
        %s3124 = scalar_lea.vmem %s6, %s3123
      $region60: #{double_conv.3} parent=55 // pred_fallthru
        _
      // Predicated region
      $region61: #{double_conv.3} parent=55 // pred_check
        %p3125 = pneg %p248
      $region62: #{double_conv.3} parent=55 // pred_check_branch
        %3127 = sbr.rel (%p3125) target = $region64
      $region63: #{double_conv.3} parent=55 // pred_region
        %p3128 = scmp.lt.s32.totalorder %s25, 1
        %s3129 = scalar_select %p3128, %s25, 1
        %p3130 = scmp.lt.s32.totalorder %s26, 0
        %s3131 = scalar_select %p3130, %s26, 0
        %s3132 = sadd.s32 %s3131, %s3129
        %s3133 = smul.addr %s3132, 2
        %s3134 = scalar_lea.vmem %s7, %s3133
      $region64: #{double_conv.3} parent=55 // pred_fallthru
        _
    $region56: #{double_conv.3} parent=5 // pred_fallthru
      _
  $region6: #{double_conv.3} parent=0 // loop_footer
    %s18 = sadd.s32 1, %s14
  $region7: #{double_conv.3} parent=0 // loop_footer_branch
    %13 = sbr.rel target = $region3
  $region8: #{double_conv.3} parent=0 // loop_exit
    _

// kernel: double_conv.4
$region0: #{double_conv.4}
  #allocation0 [shape = 'u32[]', space=smem, size = 0x4, offset = 0x4, fixed_abs, tag = 'smem constant byte address 0x4 - core index']
  #allocation1 [shape = 'u32[144,128]{1,0:T(1,128)}', space=vmem, size = 0x12000, scoped, tag = 'internal scratch']
  %s0 = inlined_call_operand.vmem [shape: bf16[2,16,16,128], index: 0, kind: input, shape index: {}, may-alias: {0,1,2}]
  %s1 = inlined_call_operand.vmem [shape: bf16[2,16,16,128], index: 1, kind: input, shape index: {}, may-alias: {0,1,2}]
  %s2 = inlined_call_operand.vmem [shape: bf16[2,16,16,128], index: 2, kind: input, shape index: {}, may-alias: {0,1,2}]
  %s3 = inlined_call_operand.vmem [shape: f32[1,128], index: 3, kind: input, shape index: {}]
  %s4 = inlined_call_operand.vmem [shape: f32[1,128], index: 4, kind: input, shape index: {}]
  %s5 = inlined_call_operand.vmem [shape: bf16[3,384,128], index: 5, kind: input, shape index: {}]
  %s6 = inlined_call_operand.vmem [shape: bf16[2,16,16,128], index: 6, kind: output, shape index: {0}]
  %s7 = inlined_call_operand.vmem [shape: f32[2,1,2,128], index: 7, kind: output, shape index: {1}]
  %8 = xla_tuple %s6, %s7
  %s9 = sld [smem:[#allocation0]]
  $region65: #{double_conv.4} parent=0
    _
  %s11 = ssub.s32 1, %s9
  %s12 = scalar_select 0, %s11, %s9
  loop: start=0, step=1, limit=4
  $region2: #{double_conv.4} parent=0 // loop_pre_header
    _
  $region3: #{double_conv.4} parent=0 // loop_header
    %s14 = sphi 0, %s18
    %p15 = scmp.ge.s32.totalorder %s14, 4
    %s21 = sphi 0, %s33
    %s22 = sphi 0, %s29
    %s23 = sphi 0, %s21
    %s24 = sphi 0, %s22
    %s25 = sphi 0, %s23
    %s26 = sphi 0, %s24
    %s38 = sphi 0, %s40
    %s41 = sphi 0, %s38
    %s42 = sphi 0, %s41
    %s58 = sphi 0, %s42
    %s74 = sphi 0, %s76
    %s77 = sphi 0, %s74
    %s78 = sphi 0, %s77
    %s94 = sphi 0, %s78
    %s110 = sphi 0, %s112
    %s113 = sphi 0, %s110
    %s114 = sphi 0, %s113
    %s130 = sphi 0, %s114
    %s134 = sphi 0, %s134
    %s136 = sphi 0, %s134
    %s137 = sphi 0, %s136
    %s151 = sphi 0, %s137
    %s155 = sphi 0, %s155
    %s157 = sphi 0, %s155
    %s158 = sphi 0, %s157
    %s172 = sphi 0, %s158
    %s176 = sphi 0, %s176
    %s178 = sphi 0, %s176
    %s179 = sphi 0, %s178
    %s193 = sphi 0, %s179
    %s201 = sphi 0, %s203
    %s204 = sphi 0, %s201
    %s205 = sphi 0, %s204
    %s221 = sphi 0, %s205
    %s229 = sphi 0, %s231
    %s232 = sphi 0, %s229
    %s233 = sphi 0, %s232
    %s249 = sphi 0, %s233
  $region4: #{double_conv.4} parent=0 // loop_header_branch
    %17 = sbr.rel (%p15) target = $region8
  $region5: #{double_conv.4} parent=0 // loop_body
    %s19 = ssub.s32 %s14, 1
    %s20 = ssub.s32 %s14, 2
    %s27 = sadd.s32 1, %s22
    %p28 = scmp.ge.s32.totalorder %s27, 1
    %s29 = scalar_select %p28, 0, %s27
    %s30 = sadd.s32 1, %s21
    %s31 = scalar_select %p28, %s30, %s21
    %p32 = scmp.ge.s32.totalorder %s31, 2
    %s33 = scalar_select %p32, 0, %s31
    %s34 = ssub.s32 %s21, %s33
    %s35 = ssub.s32 %s22, %s29
    %s36 = sor.u32 %s34, %s35
    %p37 = scmp.eq.s32.totalorder %s36, 0
    %s39 = sadd.s32 %s38, 1
    %s40 = scalar_select %p37, %s38, %s39
    %p43 = pneg %p37
    %p44 = scmp.eq.s32.totalorder %s14, 1
    %p45 = por %p43, %p44
    %p46 = scmp.ne.s32.totalorder %s38, %s41
    %p47 = scmp.eq.s32.totalorder %s14, 0
    %p48 = por %p46, %p47
    %p49 = scmp.ne.s32.totalorder %s38, %s41
    %p50 = scmp.eq.s32.totalorder %s19, 1
    %p51 = por %p49, %p50
    %p52 = scmp.ne.s32.totalorder %s41, %s42
    %p53 = scmp.eq.s32.totalorder %s19, 0
    %p54 = por %p52, %p53
    %p55 = scmp.ne.s32.totalorder %s41, %s42
    %p56 = scmp.eq.s32.totalorder %s20, 1
    %p57 = por %p55, %p56
    %p59 = scmp.ne.s32.totalorder %s42, %s58
    %p60 = scmp.eq.s32.totalorder %s20, 0
    %p61 = por %p59, %p60
    %s62 = smul.u32 %s22, 16
    %s63 = ssub.s32 %s62, 1
    %p64 = scmp.gt.s32.totalorder %s63, 0
    %s65 = scalar_select %p64, %s63, 0
    %s66 = smul.u32 %s29, 16
    %s67 = ssub.s32 %s66, 1
    %p68 = scmp.gt.s32.totalorder %s67, 0
    %s69 = scalar_select %p68, %s67, 0
    %s70 = ssub.s32 %s21, %s33
    %s71 = ssub.s32 %s65, %s69
    %s72 = sor.u32 %s70, %s71
    %p73 = scmp.eq.s32.totalorder %s72, 0
    %s75 = sadd.s32 %s74, 1
    %s76 = scalar_select %p73, %s74, %s75
    %p79 = pneg %p73
    %p80 = scmp.eq.s32.totalorder %s14, 1
    %p81 = por %p79, %p80
    %p82 = scmp.ne.s32.totalorder %s74, %s77
    %p83 = scmp.eq.s32.totalorder %s14, 0
    %p84 = por %p82, %p83
    %p85 = scmp.ne.s32.totalorder %s74, %s77
    %p86 = scmp.eq.s32.totalorder %s19, 1
    %p87 = por %p85, %p86
    %p88 = scmp.ne.s32.totalorder %s77, %s78
    %p89 = scmp.eq.s32.totalorder %s19, 0
    %p90 = por %p88, %p89
    %p91 = scmp.ne.s32.totalorder %s77, %s78
    %p92 = scmp.eq.s32.totalorder %s20, 1
    %p93 = por %p91, %p92
    %p95 = scmp.ne.s32.totalorder %s78, %s94
    %p96 = scmp.eq.s32.totalorder %s20, 0
    %p97 = por %p95, %p96
    %s98 = smul.u32 %s22, 16
    %s99 = sadd.s32 %s98, 16
    %p100 = scmp.lt.s32.totalorder %s99, 15
    %s101 = scalar_select %p100, %s99, 15
    %s102 = smul.u32 %s29, 16
    %s103 = sadd.s32 %s102, 16
    %p104 = scmp.lt.s32.totalorder %s103, 15
    %s105 = scalar_select %p104, %s103, 15
    %s106 = ssub.s32 %s21, %s33
    %s107 = ssub.s32 %s101, %s105
    %s108 = sor.u32 %s106, %s107
    %p109 = scmp.eq.s32.totalorder %s108, 0
    %s111 = sadd.s32 %s110, 1
    %s112 = scalar_select %p109, %s110, %s111
    %p115 = pneg %p109
    %p116 = scmp.eq.s32.totalorder %s14, 1
    %p117 = por %p115, %p116
    %p118 = scmp.ne.s32.totalorder %s110, %s113
    %p119 = scmp.eq.s32.totalorder %s14, 0
    %p120 = por %p118, %p119
    %p121 = scmp.ne.s32.totalorder %s110, %s113
    %p122 = scmp.eq.s32.totalorder %s19, 1
    %p123 = por %p121, %p122
    %p124 = scmp.ne.s32.totalorder %s113, %s114
    %p125 = scmp.eq.s32.totalorder %s19, 0
    %p126 = por %p124, %p125
    %p127 = scmp.ne.s32.totalorder %s113, %s114
    %p128 = scmp.eq.s32.totalorder %s20, 1
    %p129 = por %p127, %p128
    %p131 = scmp.ne.s32.totalorder %s114, %s130
    %p132 = scmp.eq.s32.totalorder %s20, 0
    %p133 = por %p131, %p132
    %s135 = sadd.s32 %s134, 1
    %p138 = scmp.eq.s32.totalorder %s14, 1
    %p139 = scmp.ne.s32.totalorder %s134, %s136
    %p140 = scmp.eq.s32.totalorder %s14, 0
    %p141 = por %p139, %p140
    %p142 = scmp.ne.s32.totalorder %s134, %s136
    %p143 = scmp.eq.s32.totalorder %s19, 1
    %p144 = por %p142, %p143
    %p145 = scmp.ne.s32.totalorder %s136, %s137
    %p146 = scmp.eq.s32.totalorder %s19, 0
    %p147 = por %p145, %p146
    %p148 = scmp.ne.s32.totalorder %s136, %s137
    %p149 = scmp.eq.s32.totalorder %s20, 1
    %p150 = por %p148, %p149
    %p152 = scmp.ne.s32.totalorder %s137, %s151
    %p153 = scmp.eq.s32.totalorder %s20, 0
    %p154 = por %p152, %p153
    %s156 = sadd.s32 %s155, 1
    %p159 = scmp.eq.s32.totalorder %s14, 1
    %p160 = scmp.ne.s32.totalorder %s155, %s157
    %p161 = scmp.eq.s32.totalorder %s14, 0
    %p162 = por %p160, %p161
    %p163 = scmp.ne.s32.totalorder %s155, %s157
    %p164 = scmp.eq.s32.totalorder %s19, 1
    %p165 = por %p163, %p164
    %p166 = scmp.ne.s32.totalorder %s157, %s158
    %p167 = scmp.eq.s32.totalorder %s19, 0
    %p168 = por %p166, %p167
    %p169 = scmp.ne.s32.totalorder %s157, %s158
    %p170 = scmp.eq.s32.totalorder %s20, 1
    %p171 = por %p169, %p170
    %p173 = scmp.ne.s32.totalorder %s158, %s172
    %p174 = scmp.eq.s32.totalorder %s20, 0
    %p175 = por %p173, %p174
    %s177 = sadd.s32 %s176, 1
    %p180 = scmp.eq.s32.totalorder %s14, 1
    %p181 = scmp.ne.s32.totalorder %s176, %s178
    %p182 = scmp.eq.s32.totalorder %s14, 0
    %p183 = por %p181, %p182
    %p184 = scmp.ne.s32.totalorder %s176, %s178
    %p185 = scmp.eq.s32.totalorder %s19, 1
    %p186 = por %p184, %p185
    %p187 = scmp.ne.s32.totalorder %s178, %s179
    %p188 = scmp.eq.s32.totalorder %s19, 0
    %p189 = por %p187, %p188
    %p190 = scmp.ne.s32.totalorder %s178, %s179
    %p191 = scmp.eq.s32.totalorder %s20, 1
    %p192 = por %p190, %p191
    %p194 = scmp.ne.s32.totalorder %s179, %s193
    %p195 = scmp.eq.s32.totalorder %s20, 0
    %p196 = por %p194, %p195
    %s197 = ssub.s32 %s21, %s33
    %s198 = ssub.s32 %s22, %s29
    %s199 = sor.u32 %s197, %s198
    %p200 = scmp.eq.s32.totalorder %s199, 0
    %s202 = sadd.s32 %s201, 1
    %s203 = scalar_select %p200, %s201, %s202
    %p206 = pneg %p200
    %p207 = scmp.eq.s32.totalorder %s14, 1
    %p208 = por %p206, %p207
    %p209 = scmp.ne.s32.totalorder %s201, %s204
    %p210 = scmp.eq.s32.totalorder %s14, 0
    %p211 = por %p209, %p210
    %p212 = scmp.ne.s32.totalorder %s201, %s204
    %p213 = scmp.eq.s32.totalorder %s19, 1
    %p214 = por %p212, %p213
    %p215 = scmp.ne.s32.totalorder %s204, %s205
    %p216 = scmp.eq.s32.totalorder %s19, 0
    %p217 = por %p215, %p216
    %p218 = scmp.ne.s32.totalorder %s204, %s205
    %p219 = scmp.eq.s32.totalorder %s20, 1
    %p220 = por %p218, %p219
    %p222 = scmp.ne.s32.totalorder %s205, %s221
    %p223 = scmp.eq.s32.totalorder %s20, 0
    %p224 = por %p222, %p223
    %s225 = ssub.s32 %s21, %s33
    %s226 = ssub.s32 %s22, %s29
    %s227 = sor.u32 %s225, %s226
    %p228 = scmp.eq.s32.totalorder %s227, 0
    %s230 = sadd.s32 %s229, 1
    %s231 = scalar_select %p228, %s229, %s230
    %p234 = pneg %p228
    %p235 = scmp.eq.s32.totalorder %s14, 1
    %p236 = por %p234, %p235
    %p237 = scmp.ne.s32.totalorder %s229, %s232
    %p238 = scmp.eq.s32.totalorder %s14, 0
    %p239 = por %p237, %p238
    %p240 = scmp.ne.s32.totalorder %s229, %s232
    %p241 = scmp.eq.s32.totalorder %s19, 1
    %p242 = por %p240, %p241
    %p243 = scmp.ne.s32.totalorder %s232, %s233
    %p244 = scmp.eq.s32.totalorder %s19, 0
    %p245 = por %p243, %p244
    %p246 = scmp.ne.s32.totalorder %s232, %s233
    %p247 = scmp.eq.s32.totalorder %s20, 1
    %p248 = por %p246, %p247
    %p250 = scmp.ne.s32.totalorder %s233, %s249
    %p251 = scmp.eq.s32.totalorder %s20, 0
    %p252 = por %p250, %p251
    %p253 = scmp.le.s32.totalorder 1, %s14
    %p254 = scmp.lt.s32.totalorder %s14, 3
    %p255 = pnand %p253, %p254
    %p256 = pneg %p255
    // Predicated region
    $region9: #{double_conv.4} parent=5 // pred_check
      _
    $region10: #{double_conv.4} parent=5 // pred_check_branch
      %258 = sbr.rel (%p255) target = $region12
    $region11: #{double_conv.4} parent=5 // pred_region
      %s259 = ssub.s32 %s14, 1
      // Predicated region
      $region13: #{double_conv.4} parent=11 // pred_check
        %p260 = pneg %p147
      $region14: #{double_conv.4} parent=11 // pred_check_branch
        %262 = sbr.rel (%p260) target = $region16
      $region15: #{double_conv.4} parent=11 // pred_region
        _
      $region16: #{double_conv.4} parent=11 // pred_fallthru
        _
      // Predicated region
      $region17: #{double_conv.4} parent=11 // pred_check
        %p263 = pneg %p168
      $region18: #{double_conv.4} parent=11 // pred_check_branch
        %265 = sbr.rel (%p263) target = $region20
      $region19: #{double_conv.4} parent=11 // pred_region
        _
      $region20: #{double_conv.4} parent=11 // pred_fallthru
        _
      // Predicated region
      $region21: #{double_conv.4} parent=11 // pred_check
        %p266 = pneg %p189
      $region22: #{double_conv.4} parent=11 // pred_check_branch
        %268 = sbr.rel (%p266) target = $region24
      $region23: #{double_conv.4} parent=11 // pred_region
        _
      $region24: #{double_conv.4} parent=11 // pred_fallthru
        _
    $region12: #{double_conv.4} parent=5 // pred_fallthru
      _
    %p269 = scmp.lt.s32.totalorder %s14, 2
    // Predicated region
    $region25: #{double_conv.4} parent=5 // pred_check
      %p270 = pneg %p269
    $region26: #{double_conv.4} parent=5 // pred_check_branch
      %272 = sbr.rel (%p270) target = $region28
    $region27: #{double_conv.4} parent=5 // pred_region
      // Predicated region
      $region29: #{double_conv.4} parent=27 // pred_check
        %p273 = pneg %p48
      $region30: #{double_conv.4} parent=27 // pred_check_branch
        %275 = sbr.rel (%p273) target = $region32
      $region31: #{double_conv.4} parent=27 // pred_region
        %s276 = smul.u32 16, %s22
        %p277 = scmp.lt.s32.totalorder %s21, 1
        %s278 = scalar_select %p277, %s21, 1
        %p279 = scmp.lt.s32.totalorder %s276, 15
        %s280 = scalar_select %p279, %s276, 15
        %s281 = smul.addr %s280, 2
        %s282 = smul.addr %s278, 32
        %s283 = sadd.s32 %s281, %s282
        %s284 = smul.addr %s283, 4
        %s285 = scalar_lea.vmem %s0, %s284
        %s286 = smul.u32 16, %s22
      $region32: #{double_conv.4} parent=27 // pred_fallthru
        _
      // Predicated region
      $region33: #{double_conv.4} parent=27 // pred_check
        %p287 = pneg %p84
      $region34: #{double_conv.4} parent=27 // pred_check_branch
        %289 = sbr.rel (%p287) target = $region36
      $region35: #{double_conv.4} parent=27 // pred_region
        %s290 = smul.u32 %s22, 16
        %s291 = ssub.s32 %s290, 1
        %p292 = scmp.gt.s32.totalorder %s291, 0
        %s293 = scalar_select %p292, %s291, 0
        %p294 = scmp.lt.s32.totalorder %s21, 1
        %s295 = scalar_select %p294, %s21, 1
        %p296 = scmp.lt.s32.totalorder %s293, 15
        %s297 = scalar_select %p296, %s293, 15
        %s298 = smul.addr %s297, 2
        %s299 = smul.addr %s295, 32
        %s300 = sadd.s32 %s298, %s299
        %s301 = smul.addr %s300, 4
        %s302 = scalar_lea.vmem %s1, %s301
        %s303 = smul.u32 %s22, 16
        %s304 = ssub.s32 %s303, 1
        %p305 = scmp.gt.s32.totalorder %s304, 0
        %s306 = scalar_select %p305, %s304, 0
      $region36: #{double_conv.4} parent=27 // pred_fallthru
        _
      // Predicated region
      $region37: #{double_conv.4} parent=27 // pred_check
        %p307 = pneg %p120
      $region38: #{double_conv.4} parent=27 // pred_check_branch
        %309 = sbr.rel (%p307) target = $region40
      $region39: #{double_conv.4} parent=27 // pred_region
        %s310 = smul.u32 %s22, 16
        %s311 = sadd.s32 %s310, 16
        %p312 = scmp.lt.s32.totalorder %s311, 15
        %s313 = scalar_select %p312, %s311, 15
        %p314 = scmp.lt.s32.totalorder %s21, 1
        %s315 = scalar_select %p314, %s21, 1
        %p316 = scmp.lt.s32.totalorder %s313, 15
        %s317 = scalar_select %p316, %s313, 15
        %s318 = smul.addr %s317, 2
        %s319 = smul.addr %s315, 32
        %s320 = sadd.s32 %s318, %s319
        %s321 = smul.addr %s320, 4
        %s322 = scalar_lea.vmem %s2, %s321
        %s323 = smul.u32 %s22, 16
        %s324 = sadd.s32 %s323, 16
        %p325 = scmp.lt.s32.totalorder %s324, 15
        %s326 = scalar_select %p325, %s324, 15
      $region40: #{double_conv.4} parent=27 // pred_fallthru
        _
    $region28: #{double_conv.4} parent=5 // pred_fallthru
      _
    %p327 = scmp.le.s32.totalorder 1, %s14
    %p328 = scmp.lt.s32.totalorder %s14, 3
    %p329 = pnand %p327, %p328
    %p330 = pneg %p329
    // Predicated region
    $region41: #{double_conv.4} parent=5 // pred_check
      _
    $region42: #{double_conv.4} parent=5 // pred_check_branch
      %332 = sbr.rel (%p329) target = $region44
    $region43: #{double_conv.4} parent=5 // pred_region
      %s333 = ssub.s32 %s14, 1
      %s334 = smul.u32 16, %s24
      %p335 = scmp.lt.s32.totalorder %s23, 1
      %s336 = scalar_select %p335, %s23, 1
      %p337 = scmp.lt.s32.totalorder %s334, 15
      %s338 = scalar_select %p337, %s334, 15
      %s339 = smul.addr %s338, 2
      %s340 = smul.addr %s336, 32
      %s341 = sadd.s32 %s339, %s340
      %s342 = smul.addr %s341, 4
      %s343 = scalar_lea.vmem %s0, %s342
      %p344 = pneg %p54
      %p345 = pneg %p51
      %s346 = smul.u32 %s24, 16
      %s347 = ssub.s32 %s346, 1
      %p348 = scmp.gt.s32.totalorder %s347, 0
      %s349 = scalar_select %p348, %s347, 0
      %p350 = scmp.lt.s32.totalorder %s23, 1
      %s351 = scalar_select %p350, %s23, 1
      %p352 = scmp.lt.s32.totalorder %s349, 15
      %s353 = scalar_select %p352, %s349, 15
      %s354 = smul.addr %s353, 2
      %s355 = smul.addr %s351, 32
      %s356 = sadd.s32 %s354, %s355
      %s357 = smul.addr %s356, 4
      %s358 = scalar_lea.vmem %s1, %s357
      %p359 = pneg %p90
      %p360 = pneg %p87
      %s361 = smul.u32 %s24, 16
      %s362 = sadd.s32 %s361, 16
      %p363 = scmp.lt.s32.totalorder %s362, 15
      %s364 = scalar_select %p363, %s362, 15
      %p365 = scmp.lt.s32.totalorder %s23, 1
      %s366 = scalar_select %p365, %s23, 1
      %p367 = scmp.lt.s32.totalorder %s364, 15
      %s368 = scalar_select %p367, %s364, 15
      %s369 = smul.addr %s368, 2
      %s370 = smul.addr %s366, 32
      %s371 = sadd.s32 %s369, %s370
      %s372 = smul.addr %s371, 4
      %s373 = scalar_lea.vmem %s2, %s372
      %p374 = pneg %p126
      %p375 = pneg %p123
      %p376 = pneg %p147
      %p377 = pneg %p144
      %p378 = pneg %p168
      %p379 = pneg %p165
      %p380 = pneg %p189
      %p381 = pneg %p186
      %p382 = pneg %p217
      %p383 = pneg %p214
      %s384 = smul.u32 16, %s24
      %p385 = scmp.lt.s32.totalorder %s23, 1
      %s386 = scalar_select %p385, %s23, 1
      %p387 = scmp.lt.s32.totalorder %s384, 15
      %s388 = scalar_select %p387, %s384, 15
      %s389 = smul.addr %s388, 2
      %s390 = smul.addr %s386, 32
      %s391 = sadd.s32 %s389, %s390
      %s392 = smul.addr %s391, 4
      %s393 = scalar_lea.vmem %s6, %s392
      %p394 = pneg %p245
      %p395 = pneg %p242
      %p396 = scmp.lt.s32.totalorder %s23, 1
      %s397 = scalar_select %p396, %s23, 1
      %p398 = scmp.lt.s32.totalorder %s24, 0
      %s399 = scalar_select %p398, %s24, 0
      %s400 = sadd.s32 %s399, %s397
      %s401 = smul.addr %s400, 2
      %s402 = scalar_lea.vmem %s7, %s401
      %s403 = smul.u32 16, %s24
      %p404 = scmp.lt.s32.totalorder %s23, 1
      %s405 = scalar_select %p404, %s23, 1
      %p406 = scmp.lt.s32.totalorder %s403, 15
      %s407 = scalar_select %p406, %s403, 15
      %s408 = smul.addr %s407, 2
      %s409 = smul.addr %s405, 32
      %s410 = sadd.s32 %s408, %s409
      %s411 = smul.addr %s410, 4
      %s412 = scalar_lea.vmem %s0, %s411
      %s413 = smul.u32 16, %s24
      %s414 = smul.u32 %s24, 16
      %s415 = ssub.s32 %s414, 1
      %p416 = scmp.gt.s32.totalorder %s415, 0
      %s417 = scalar_select %p416, %s415, 0
      %p418 = scmp.lt.s32.totalorder %s23, 1
      %s419 = scalar_select %p418, %s23, 1
      %p420 = scmp.lt.s32.totalorder %s417, 15
      %s421 = scalar_select %p420, %s417, 15
      %s422 = smul.addr %s421, 2
      %s423 = smul.addr %s419, 32
      %s424 = sadd.s32 %s422, %s423
      %s425 = smul.addr %s424, 4
      %s426 = scalar_lea.vmem %s1, %s425
      %s427 = smul.u32 %s24, 16
      %s428 = ssub.s32 %s427, 1
      %p429 = scmp.gt.s32.totalorder %s428, 0
      %s430 = scalar_select %p429, %s428, 0
      %s431 = smul.u32 %s24, 16
      %s432 = sadd.s32 %s431, 16
      %p433 = scmp.lt.s32.totalorder %s432, 15
      %s434 = scalar_select %p433, %s432, 15
      %p435 = scmp.lt.s32.totalorder %s23, 1
      %s436 = scalar_select %p435, %s23, 1
      %p437 = scmp.lt.s32.totalorder %s434, 15
      %s438 = scalar_select %p437, %s434, 15
      %s439 = smul.addr %s438, 2
      %s440 = smul.addr %s436, 32
      %s441 = sadd.s32 %s439, %s440
      %s442 = smul.addr %s441, 4
      %s443 = scalar_lea.vmem %s2, %s442
      %s444 = smul.u32 %s24, 16
      %s445 = sadd.s32 %s444, 16
      %p446 = scmp.lt.s32.totalorder %s445, 15
      %s447 = scalar_select %p446, %s445, 15
      %s448 = smul.u32 16, %s24
      %p449 = scmp.lt.s32.totalorder %s23, 1
      %s450 = scalar_select %p449, %s23, 1
      %p451 = scmp.lt.s32.totalorder %s448, 15
      %s452 = scalar_select %p451, %s448, 15
      %s453 = smul.addr %s452, 2
      %s454 = smul.addr %s450, 32
      %s455 = sadd.s32 %s453, %s454
      %s456 = smul.addr %s455, 4
      %s457 = scalar_lea.vmem %s6, %s456
      %s458 = smul.u32 16, %s24
      %p459 = scmp.lt.s32.totalorder %s23, 1
      %s460 = scalar_select %p459, %s23, 1
      %p461 = scmp.lt.s32.totalorder %s24, 0
      %s462 = scalar_select %p461, %s24, 0
      %s463 = sadd.s32 %s462, %s460
      %s464 = smul.addr %s463, 2
      %s465 = scalar_lea.vmem %s7, %s464
      %v467 = vld [vmem:[%s412] sm:$0xf]
      %v468 = vld [vmem:[%s412 + $0x4] sm:$0xf]
      %v469 = vld [vmem:[%s412 + $0x8] sm:$0xf]
      %v470 = vld [vmem:[%s412 + $0xc] sm:$0xf]
      %v471 = vld [vmem:[%s412 + $0x10] sm:$0xf]
      %v472 = vld [vmem:[%s412 + $0x14] sm:$0xf]
      %v473 = vld [vmem:[%s412 + $0x18] sm:$0xf]
      %v474 = vld [vmem:[%s412 + $0x1c] sm:$0xf]
      %v475 = vld [vmem:[%s412 + $0x20] sm:$0xf]
      %v476 = vld [vmem:[%s412 + $0x24] sm:$0xf]
      %v477 = vld [vmem:[%s412 + $0x28] sm:$0xf]
      %v478 = vld [vmem:[%s412 + $0x2c] sm:$0xf]
      %v479 = vld [vmem:[%s412 + $0x30] sm:$0xf]
      %v480 = vld [vmem:[%s412 + $0x34] sm:$0xf]
      %v481 = vld [vmem:[%s412 + $0x38] sm:$0xf]
      %v482 = vld [vmem:[%s412 + $0x3c] sm:$0xf]
      %v483 = vld [vmem:[%s412 + $0x40] sm:$0xf]
      %v484 = vld [vmem:[%s412 + $0x44] sm:$0xf]
      %v485 = vld [vmem:[%s412 + $0x48] sm:$0xf]
      %v486 = vld [vmem:[%s412 + $0x4c] sm:$0xf]
      %v487 = vld [vmem:[%s412 + $0x50] sm:$0xf]
      %v488 = vld [vmem:[%s412 + $0x54] sm:$0xf]
      %v489 = vld [vmem:[%s412 + $0x58] sm:$0xf]
      %v490 = vld [vmem:[%s412 + $0x5c] sm:$0xf]
      %v491 = vld [vmem:[%s412 + $0x60] sm:$0xf]
      %v492 = vld [vmem:[%s412 + $0x64] sm:$0xf]
      %v493 = vld [vmem:[%s412 + $0x68] sm:$0xf]
      %v494 = vld [vmem:[%s412 + $0x6c] sm:$0xf]
      %v495 = vld [vmem:[%s412 + $0x70] sm:$0xf]
      %v496 = vld [vmem:[%s412 + $0x74] sm:$0xf]
      %v497 = vld [vmem:[%s412 + $0x78] sm:$0xf]
      %v498 = vld [vmem:[%s412 + $0x7c] sm:$0xf]
      %v499 = vld [vmem:[%s426] sm:$0xf]
      %v500 = vld [vmem:[%s426 + $0x4] sm:$0xf]
      %v501 = vld [vmem:[%s443] sm:$0xf]
      %v502 = vld [vmem:[%s443 + $0x4] sm:$0xf]
      %v503 = vld [vmem:[%s3] sm:$0x1]
      %v504 = vld [vmem:[%s4] sm:$0x1]
      %v505 = vunpack.c.l.bf16 %v467
      %v506 = vunpack.c.l.bf16 %v468
      %v507 = vunpack.c.l.bf16 %v469
      %v508 = vunpack.c.l.bf16 %v470
      %v509 = vunpack.c.l.bf16 %v471
      %v510 = vunpack.c.l.bf16 %v472
      %v511 = vunpack.c.l.bf16 %v473
      %v512 = vunpack.c.l.bf16 %v474
      %v513 = vunpack.c.l.bf16 %v475
      %v514 = vunpack.c.l.bf16 %v476
      %v515 = vunpack.c.l.bf16 %v477
      %v516 = vunpack.c.l.bf16 %v478
      %v517 = vunpack.c.l.bf16 %v479
      %v518 = vunpack.c.l.bf16 %v480
      %v519 = vunpack.c.l.bf16 %v481
      %v520 = vunpack.c.l.bf16 %v482
      %v521 = vunpack.c.l.bf16 %v483
      %v522 = vunpack.c.l.bf16 %v484
      %v523 = vunpack.c.l.bf16 %v485
      %v524 = vunpack.c.l.bf16 %v486
      %v525 = vunpack.c.l.bf16 %v487
      %v526 = vunpack.c.l.bf16 %v488
      %v527 = vunpack.c.l.bf16 %v489
      %v528 = vunpack.c.l.bf16 %v490
      %v529 = vunpack.c.l.bf16 %v491
      %v530 = vunpack.c.l.bf16 %v492
      %v531 = vunpack.c.l.bf16 %v493
      %v532 = vunpack.c.l.bf16 %v494
      %v533 = vunpack.c.l.bf16 %v495
      %v534 = vunpack.c.l.bf16 %v496
      %v535 = vunpack.c.l.bf16 %v497
      %v536 = vunpack.c.l.bf16 %v498
      %v538 = vlaneseq
      %v539 = vshrl.u32 %v538, 7
      %v540 = vsub.s32 0, %v539
      %v541 = vrot.slane %v503, %v540
      %v543 = vmul.f32 %v505, %v541
      %v544 = vmul.f32 %v506, %v541
      %v545 = vmul.f32 %v507, %v541
      %v546 = vmul.f32 %v508, %v541
      %v547 = vmul.f32 %v509, %v541
      %v548 = vmul.f32 %v510, %v541
      %v549 = vmul.f32 %v511, %v541
      %v550 = vmul.f32 %v512, %v541
      %v551 = vmul.f32 %v513, %v541
      %v552 = vmul.f32 %v514, %v541
      %v553 = vmul.f32 %v515, %v541
      %v554 = vmul.f32 %v516, %v541
      %v555 = vmul.f32 %v517, %v541
      %v556 = vmul.f32 %v518, %v541
      %v557 = vmul.f32 %v519, %v541
      %v558 = vmul.f32 %v520, %v541
      %v559 = vmul.f32 %v521, %v541
      %v560 = vmul.f32 %v522, %v541
      %v561 = vmul.f32 %v523, %v541
      %v562 = vmul.f32 %v524, %v541
      %v563 = vmul.f32 %v525, %v541
      %v564 = vmul.f32 %v526, %v541
      %v565 = vmul.f32 %v527, %v541
      %v566 = vmul.f32 %v528, %v541
      %v567 = vmul.f32 %v529, %v541
      %v568 = vmul.f32 %v530, %v541
      %v569 = vmul.f32 %v531, %v541
      %v570 = vmul.f32 %v532, %v541
      %v571 = vmul.f32 %v533, %v541
      %v572 = vmul.f32 %v534, %v541
      %v573 = vmul.f32 %v535, %v541
      %v574 = vmul.f32 %v536, %v541
      %v576 = vlaneseq
      %v577 = vshrl.u32 %v576, 7
      %v578 = vsub.s32 0, %v577
      %v579 = vrot.slane %v504, %v578
      %v581 = vadd.f32 %v543, %v579
      %v582 = vadd.f32 %v544, %v579
      %v583 = vadd.f32 %v545, %v579
      %v584 = vadd.f32 %v546, %v579
      %v585 = vadd.f32 %v547, %v579
      %v586 = vadd.f32 %v548, %v579
      %v587 = vadd.f32 %v549, %v579
      %v588 = vadd.f32 %v550, %v579
      %v589 = vadd.f32 %v551, %v579
      %v590 = vadd.f32 %v552, %v579
      %v591 = vadd.f32 %v553, %v579
      %v592 = vadd.f32 %v554, %v579
      %v593 = vadd.f32 %v555, %v579
      %v594 = vadd.f32 %v556, %v579
      %v595 = vadd.f32 %v557, %v579
      %v596 = vadd.f32 %v558, %v579
      %v597 = vadd.f32 %v559, %v579
      %v598 = vadd.f32 %v560, %v579
      %v599 = vadd.f32 %v561, %v579
      %v600 = vadd.f32 %v562, %v579
      %v601 = vadd.f32 %v563, %v579
      %v602 = vadd.f32 %v564, %v579
      %v603 = vadd.f32 %v565, %v579
      %v604 = vadd.f32 %v566, %v579
      %v605 = vadd.f32 %v567, %v579
      %v606 = vadd.f32 %v568, %v579
      %v607 = vadd.f32 %v569, %v579
      %v608 = vadd.f32 %v570, %v579
      %v609 = vadd.f32 %v571, %v579
      %v610 = vadd.f32 %v572, %v579
      %v611 = vadd.f32 %v573, %v579
      %v612 = vadd.f32 %v574, %v579
      %v613 = vmax.f32 %v581, 0.0
      %v614 = vmax.f32 %v582, 0.0
      %v615 = vmax.f32 %v583, 0.0
      %v616 = vmax.f32 %v584, 0.0
      %v617 = vmax.f32 %v585, 0.0
      %v618 = vmax.f32 %v586, 0.0
      %v619 = vmax.f32 %v587, 0.0
      %v620 = vmax.f32 %v588, 0.0
      %v621 = vmax.f32 %v589, 0.0
      %v622 = vmax.f32 %v590, 0.0
      %v623 = vmax.f32 %v591, 0.0
      %v624 = vmax.f32 %v592, 0.0
      %v625 = vmax.f32 %v593, 0.0
      %v626 = vmax.f32 %v594, 0.0
      %v627 = vmax.f32 %v595, 0.0
      %v628 = vmax.f32 %v596, 0.0
      %v629 = vmax.f32 %v597, 0.0
      %v630 = vmax.f32 %v598, 0.0
      %v631 = vmax.f32 %v599, 0.0
      %v632 = vmax.f32 %v600, 0.0
      %v633 = vmax.f32 %v601, 0.0
      %v634 = vmax.f32 %v602, 0.0
      %v635 = vmax.f32 %v603, 0.0
      %v636 = vmax.f32 %v604, 0.0
      %v637 = vmax.f32 %v605, 0.0
      %v638 = vmax.f32 %v606, 0.0
      %v639 = vmax.f32 %v607, 0.0
      %v640 = vmax.f32 %v608, 0.0
      %v641 = vmax.f32 %v609, 0.0
      %v642 = vmax.f32 %v610, 0.0
      %v643 = vmax.f32 %v611, 0.0
      %v644 = vmax.f32 %v612, 0.0
      %v645 = vunpack.c.l.bf16 %v499
      %v646 = vunpack.c.l.bf16 %v500
      %v647 = vmul.f32 %v645, %v541
      %v648 = vmul.f32 %v646, %v541
      %v649 = vadd.f32 %v647, %v579
      %v650 = vadd.f32 %v648, %v579
      %v651 = vmax.f32 %v649, 0.0
      %v652 = vmax.f32 %v650, 0.0
      %v653 = vunpack.c.l.bf16 %v501
      %v654 = vunpack.c.l.bf16 %v502
      %v655 = vmul.f32 %v653, %v541
      %v656 = vmul.f32 %v654, %v541
      %v657 = vadd.f32 %v655, %v579
      %v658 = vadd.f32 %v656, %v579
      %v659 = vmax.f32 %v657, 0.0
      %v660 = vmax.f32 %v658, 0.0
      %s661 = smul.u32 %s24, 16
      %s662 = sadd.s32 %s661, 16
      %p663 = scmp.lt.s32.totalorder %s662, 16
      %s664 = scalar_select %p663, 1, 0
      %v665 = vstv %s664
      %vm666 = vcmp.eq.s32.totalorder %v665, 1
      %v667 = vsel %vm666, %v659, 0.0
      %v668 = vsel %vm666, %v660, 0.0
      %p669 = scmp.gt.s32.totalorder %s24, 0
      %s670 = scalar_select %p669, 1, 0
      %v671 = vstv %s670
      %vm672 = vcmp.eq.s32.totalorder %v671, 1
      %v673 = vsel %vm672, %v651, 0.0
      %v674 = vsel %vm672, %v652, 0.0
      %v675 = vpack.c.bf16 %v674, %v673
      %v676 = vpack.c.bf16 %v614, %v613
      %v677 = vpack.c.bf16 %v616, %v615
      %v678 = vpack.c.bf16 %v618, %v617
      %v679 = vpack.c.bf16 %v620, %v619
      %v680 = vpack.c.bf16 %v622, %v621
      %v681 = vpack.c.bf16 %v624, %v623
      %v682 = vpack.c.bf16 %v626, %v625
      %v683 = vpack.c.bf16 %v628, %v627
      %v684 = vpack.c.bf16 %v630, %v629
      %v685 = vpack.c.bf16 %v632, %v631
      %v686 = vpack.c.bf16 %v634, %v633
      %v687 = vpack.c.bf16 %v636, %v635
      %v688 = vpack.c.bf16 %v638, %v637
      %v689 = vpack.c.bf16 %v640, %v639
      %v690 = vpack.c.bf16 %v642, %v641
      %v691 = vpack.c.bf16 %v644, %v643
      %v692 = vpack.c.bf16 %v668, %v667
      %v694 = vshrl.u32 %v675, 16
      %v696 = vrot.slane %v694, 7
      %v697 = vshll.u32 %v675, 16
      %v699 = vor.u32 %v696, %v697
      %v701 = vshrl.u32 %v676, 16
      %v703 = vrot.slane %v701, 7
      %v704 = vshll.u32 %v676, 16
      %v706 = vor.u32 %v703, %v704
      %v708 = vshrl.u32 %v677, 16
      %v710 = vrot.slane %v708, 7
      %v711 = vshll.u32 %v677, 16
      %v713 = vor.u32 %v710, %v711
      %v715 = vshrl.u32 %v678, 16
      %v717 = vrot.slane %v715, 7
      %v718 = vshll.u32 %v678, 16
      %v720 = vor.u32 %v717, %v718
      %v722 = vshrl.u32 %v679, 16
      %v724 = vrot.slane %v722, 7
      %v725 = vshll.u32 %v679, 16
      %v727 = vor.u32 %v724, %v725
      %v729 = vshrl.u32 %v680, 16
      %v731 = vrot.slane %v729, 7
      %v732 = vshll.u32 %v680, 16
      %v734 = vor.u32 %v731, %v732
      %v736 = vshrl.u32 %v681, 16
      %v738 = vrot.slane %v736, 7
      %v739 = vshll.u32 %v681, 16
      %v741 = vor.u32 %v738, %v739
      %v743 = vshrl.u32 %v682, 16
      %v745 = vrot.slane %v743, 7
      %v746 = vshll.u32 %v682, 16
      %v748 = vor.u32 %v745, %v746
      %v750 = vshrl.u32 %v683, 16
      %v752 = vrot.slane %v750, 7
      %v753 = vshll.u32 %v683, 16
      %v755 = vor.u32 %v752, %v753
      %v757 = vshrl.u32 %v684, 16
      %v759 = vrot.slane %v757, 7
      %v760 = vshll.u32 %v684, 16
      %v762 = vor.u32 %v759, %v760
      %v764 = vshrl.u32 %v685, 16
      %v766 = vrot.slane %v764, 7
      %v767 = vshll.u32 %v685, 16
      %v769 = vor.u32 %v766, %v767
      %v771 = vshrl.u32 %v686, 16
      %v773 = vrot.slane %v771, 7
      %v774 = vshll.u32 %v686, 16
      %v776 = vor.u32 %v773, %v774
      %v778 = vshrl.u32 %v687, 16
      %v780 = vrot.slane %v778, 7
      %v781 = vshll.u32 %v687, 16
      %v783 = vor.u32 %v780, %v781
      %v785 = vshrl.u32 %v688, 16
      %v787 = vrot.slane %v785, 7
      %v788 = vshll.u32 %v688, 16
      %v790 = vor.u32 %v787, %v788
      %v792 = vshrl.u32 %v689, 16
      %v794 = vrot.slane %v792, 7
      %v795 = vshll.u32 %v689, 16
      %v797 = vor.u32 %v794, %v795
      %v799 = vshrl.u32 %v690, 16
      %v801 = vrot.slane %v799, 7
      %v802 = vshll.u32 %v690, 16
      %v804 = vor.u32 %v801, %v802
      %v806 = vshrl.u32 %v691, 16
      %v808 = vrot.slane %v806, 7
      %v809 = vshll.u32 %v691, 16
      %v811 = vor.u32 %v808, %v809
      %v813 = vshrl.u32 %v692, 16
      %v815 = vrot.slane %v813, 7
      %v816 = vshll.u32 %v692, 16
      %v818 = vor.u32 %v815, %v816
      %vm855 = vcmask 1040384
      %vm856 = vsmask.f32 256
      %vm857 = vmand %vm855, %vm856
      %v858 = vsel %vm857, 0, %v699
      %v859 = vsel %vm857, 0, %v706
      %v860 = vsel %vm857, 0, %v713
      %v861 = vsel %vm857, 0, %v720
      %v862 = vsel %vm857, 0, %v727
      %v863 = vsel %vm857, 0, %v734
      %v864 = vsel %vm857, 0, %v741
      %v865 = vsel %vm857, 0, %v748
      %v866 = vsel %vm857, 0, %v755
      %v867 = vsel %vm857, 0, %v762
      %v868 = vsel %vm857, 0, %v769
      %v869 = vsel %vm857, 0, %v776
      %v870 = vsel %vm857, 0, %v783
      %v871 = vsel %vm857, 0, %v790
      %v872 = vsel %vm857, 0, %v797
      %v873 = vsel %vm857, 0, %v804
      %v874 = vsel %vm857, 0, %v811
      %v875 = vsel %vm857, 0, %v818
      %v876 = vsel %vm857, %v696, 0
      %v877 = vsel %vm857, %v703, 0
      %v878 = vsel %vm857, %v710, 0
      %v879 = vsel %vm857, %v717, 0
      %v880 = vsel %vm857, %v724, 0
      %v881 = vsel %vm857, %v731, 0
      %v882 = vsel %vm857, %v738, 0
      %v883 = vsel %vm857, %v745, 0
      %v884 = vsel %vm857, %v752, 0
      %v885 = vsel %vm857, %v759, 0
      %v886 = vsel %vm857, %v766, 0
      %v887 = vsel %vm857, %v773, 0
      %v888 = vsel %vm857, %v780, 0
      %v889 = vsel %vm857, %v787, 0
      %v890 = vsel %vm857, %v794, 0
      %v891 = vsel %vm857, %v801, 0
      %v892 = vsel %vm857, %v808, 0
      %v893 = vsel %vm857, %v815, 0
      %vm894 = vsmask.f32 7424
      %v896 = vshrl.u32 %v858, 16
      %v898 = vshll.u32 %v858, 16
      %v900 = vrot.slane %v898, 1
      %v901 = vor.u32 %v896, %v900
      %v903 = vshll.u32 %v876, 16
      %v905 = vrot.slane %v903, 1
      %v906 = vsel %vm894, %v901, %v905
      %v908 = vshrl.u32 %v859, 16
      %v910 = vshll.u32 %v859, 16
      %v912 = vrot.slane %v910, 1
      %v913 = vor.u32 %v908, %v912
      %v915 = vshll.u32 %v877, 16
      %v917 = vrot.slane %v915, 1
      %v918 = vsel %vm894, %v913, %v917
      %v920 = vshrl.u32 %v860, 16
      %v922 = vshll.u32 %v860, 16
      %v924 = vrot.slane %v922, 1
      %v925 = vor.u32 %v920, %v924
      %v927 = vshll.u32 %v878, 16
      %v929 = vrot.slane %v927, 1
      %v930 = vsel %vm894, %v925, %v929
      %v932 = vshrl.u32 %v861, 16
      %v934 = vshll.u32 %v861, 16
      %v936 = vrot.slane %v934, 1
      %v937 = vor.u32 %v932, %v936
      %v939 = vshll.u32 %v879, 16
      %v941 = vrot.slane %v939, 1
      %v942 = vsel %vm894, %v937, %v941
      %v944 = vshrl.u32 %v862, 16
      %v946 = vshll.u32 %v862, 16
      %v948 = vrot.slane %v946, 1
      %v949 = vor.u32 %v944, %v948
      %v951 = vshll.u32 %v880, 16
      %v953 = vrot.slane %v951, 1
      %v954 = vsel %vm894, %v949, %v953
      %v956 = vshrl.u32 %v863, 16
      %v958 = vshll.u32 %v863, 16
      %v960 = vrot.slane %v958, 1
      %v961 = vor.u32 %v956, %v960
      %v963 = vshll.u32 %v881, 16
      %v965 = vrot.slane %v963, 1
      %v966 = vsel %vm894, %v961, %v965
      %v968 = vshrl.u32 %v864, 16
      %v970 = vshll.u32 %v864, 16
      %v972 = vrot.slane %v970, 1
      %v973 = vor.u32 %v968, %v972
      %v975 = vshll.u32 %v882, 16
      %v977 = vrot.slane %v975, 1
      %v978 = vsel %vm894, %v973, %v977
      %v980 = vshrl.u32 %v865, 16
      %v982 = vshll.u32 %v865, 16
      %v984 = vrot.slane %v982, 1
      %v985 = vor.u32 %v980, %v984
      %v987 = vshll.u32 %v883, 16
      %v989 = vrot.slane %v987, 1
      %v990 = vsel %vm894, %v985, %v989
      %v992 = vshrl.u32 %v866, 16
      %v994 = vshll.u32 %v866, 16
      %v996 = vrot.slane %v994, 1
      %v997 = vor.u32 %v992, %v996
      %v999 = vshll.u32 %v884, 16
      %v1001 = vrot.slane %v999, 1
      %v1002 = vsel %vm894, %v997, %v1001
      %v1004 = vshrl.u32 %v867, 16
      %v1006 = vshll.u32 %v867, 16
      %v1008 = vrot.slane %v1006, 1
      %v1009 = vor.u32 %v1004, %v1008
      %v1011 = vshll.u32 %v885, 16
      %v1013 = vrot.slane %v1011, 1
      %v1014 = vsel %vm894, %v1009, %v1013
      %v1016 = vshrl.u32 %v868, 16
      %v1018 = vshll.u32 %v868, 16
      %v1020 = vrot.slane %v1018, 1
      %v1021 = vor.u32 %v1016, %v1020
      %v1023 = vshll.u32 %v886, 16
      %v1025 = vrot.slane %v1023, 1
      %v1026 = vsel %vm894, %v1021, %v1025
      %v1028 = vshrl.u32 %v869, 16
      %v1030 = vshll.u32 %v869, 16
      %v1032 = vrot.slane %v1030, 1
      %v1033 = vor.u32 %v1028, %v1032
      %v1035 = vshll.u32 %v887, 16
      %v1037 = vrot.slane %v1035, 1
      %v1038 = vsel %vm894, %v1033, %v1037
      %v1040 = vshrl.u32 %v870, 16
      %v1042 = vshll.u32 %v870, 16
      %v1044 = vrot.slane %v1042, 1
      %v1045 = vor.u32 %v1040, %v1044
      %v1047 = vshll.u32 %v888, 16
      %v1049 = vrot.slane %v1047, 1
      %v1050 = vsel %vm894, %v1045, %v1049
      %v1052 = vshrl.u32 %v871, 16
      %v1054 = vshll.u32 %v871, 16
      %v1056 = vrot.slane %v1054, 1
      %v1057 = vor.u32 %v1052, %v1056
      %v1059 = vshll.u32 %v889, 16
      %v1061 = vrot.slane %v1059, 1
      %v1062 = vsel %vm894, %v1057, %v1061
      %v1064 = vshrl.u32 %v872, 16
      %v1066 = vshll.u32 %v872, 16
      %v1068 = vrot.slane %v1066, 1
      %v1069 = vor.u32 %v1064, %v1068
      %v1071 = vshll.u32 %v890, 16
      %v1073 = vrot.slane %v1071, 1
      %v1074 = vsel %vm894, %v1069, %v1073
      %v1076 = vshrl.u32 %v873, 16
      %v1078 = vshll.u32 %v873, 16
      %v1080 = vrot.slane %v1078, 1
      %v1081 = vor.u32 %v1076, %v1080
      %v1083 = vshll.u32 %v891, 16
      %v1085 = vrot.slane %v1083, 1
      %v1086 = vsel %vm894, %v1081, %v1085
      %vm1135 = vcmask 1046528
      %v1136 = vrot.slane %v858, 1
      %v1137 = vrot.slane %v876, 1
      %v1138 = vsel %vm1135, %v1136, %v1137
      %v1139 = vrot.slane %v859, 1
      %v1140 = vrot.slane %v877, 1
      %v1141 = vsel %vm1135, %v1139, %v1140
      %v1142 = vrot.slane %v860, 1
      %v1143 = vrot.slane %v878, 1
      %v1144 = vsel %vm1135, %v1142, %v1143
      %v1145 = vrot.slane %v861, 1
      %v1146 = vrot.slane %v879, 1
      %v1147 = vsel %vm1135, %v1145, %v1146
      %v1148 = vrot.slane %v862, 1
      %v1149 = vrot.slane %v880, 1
      %v1150 = vsel %vm1135, %v1148, %v1149
      %v1151 = vrot.slane %v863, 1
      %v1152 = vrot.slane %v881, 1
      %v1153 = vsel %vm1135, %v1151, %v1152
      %v1154 = vrot.slane %v864, 1
      %v1155 = vrot.slane %v882, 1
      %v1156 = vsel %vm1135, %v1154, %v1155
      %v1157 = vrot.slane %v865, 1
      %v1158 = vrot.slane %v883, 1
      %v1159 = vsel %vm1135, %v1157, %v1158
      %v1160 = vrot.slane %v866, 1
      %v1161 = vrot.slane %v884, 1
      %v1162 = vsel %vm1135, %v1160, %v1161
      %v1163 = vrot.slane %v867, 1
      %v1164 = vrot.slane %v885, 1
      %v1165 = vsel %vm1135, %v1163, %v1164
      %v1166 = vrot.slane %v868, 1
      %v1167 = vrot.slane %v886, 1
      %v1168 = vsel %vm1135, %v1166, %v1167
      %v1169 = vrot.slane %v869, 1
      %v1170 = vrot.slane %v887, 1
      %v1171 = vsel %vm1135, %v1169, %v1170
      %v1172 = vrot.slane %v870, 1
      %v1173 = vrot.slane %v888, 1
      %v1174 = vsel %vm1135, %v1172, %v1173
      %v1175 = vrot.slane %v871, 1
      %v1176 = vrot.slane %v889, 1
      %v1177 = vsel %vm1135, %v1175, %v1176
      %v1178 = vrot.slane %v872, 1
      %v1179 = vrot.slane %v890, 1
      %v1180 = vsel %vm1135, %v1178, %v1179
      %v1181 = vrot.slane %v873, 1
      %v1182 = vrot.slane %v891, 1
      %v1183 = vsel %vm1135, %v1181, %v1182
      %v1200 = vld [vmem:[%s5] sm:$0xf]
      %v1201 = vld [vmem:[%s5 + $0x4] sm:$0xf]
      %v1202 = vld [vmem:[%s5 + $0x8] sm:$0xf]
      %v1203 = vld [vmem:[%s5 + $0xc] sm:$0xf]
      %v1204 = vld [vmem:[%s5 + $0x10] sm:$0xf]
      %v1205 = vld [vmem:[%s5 + $0x14] sm:$0xf]
      %v1206 = vld [vmem:[%s5 + $0x18] sm:$0xf]
      %v1207 = vld [vmem:[%s5 + $0x1c] sm:$0xf]
      %v1208 = vld [vmem:[%s5 + $0x20] sm:$0xf]
      %v1209 = vld [vmem:[%s5 + $0x24] sm:$0xf]
      %v1210 = vld [vmem:[%s5 + $0x28] sm:$0xf]
      %v1211 = vld [vmem:[%s5 + $0x2c] sm:$0xf]
      %v1212 = vld [vmem:[%s5 + $0x30] sm:$0xf]
      %v1213 = vld [vmem:[%s5 + $0x34] sm:$0xf]
      %v1214 = vld [vmem:[%s5 + $0x38] sm:$0xf]
      %v1215 = vld [vmem:[%s5 + $0x3c] sm:$0xf]
      %v1216 = vld [vmem:[%s5 + $0x40] sm:$0xf]
      %v1217 = vld [vmem:[%s5 + $0x44] sm:$0xf]
      %v1218 = vld [vmem:[%s5 + $0x48] sm:$0xf]
      %v1219 = vld [vmem:[%s5 + $0x4c] sm:$0xf]
      %v1220 = vld [vmem:[%s5 + $0x50] sm:$0xf]
      %v1221 = vld [vmem:[%s5 + $0x54] sm:$0xf]
      %v1222 = vld [vmem:[%s5 + $0x58] sm:$0xf]
      %v1223 = vld [vmem:[%s5 + $0x5c] sm:$0xf]
      %v1224 = vld [vmem:[%s5 + $0x60] sm:$0xf]
      %v1225 = vld [vmem:[%s5 + $0x64] sm:$0xf]
      %v1226 = vld [vmem:[%s5 + $0x68] sm:$0xf]
      %v1227 = vld [vmem:[%s5 + $0x6c] sm:$0xf]
      %v1228 = vld [vmem:[%s5 + $0x70] sm:$0xf]
      %v1229 = vld [vmem:[%s5 + $0x74] sm:$0xf]
      %v1230 = vld [vmem:[%s5 + $0x78] sm:$0xf]
      %v1231 = vld [vmem:[%s5 + $0x7c] sm:$0xf]
      %v1232 = vld [vmem:[%s5 + $0x80] sm:$0xf]
      %v1233 = vld [vmem:[%s5 + $0x84] sm:$0xf]
      %v1234 = vld [vmem:[%s5 + $0x88] sm:$0xf]
      %v1235 = vld [vmem:[%s5 + $0x8c] sm:$0xf]
      %v1236 = vld [vmem:[%s5 + $0x90] sm:$0xf]
      %v1237 = vld [vmem:[%s5 + $0x94] sm:$0xf]
      %v1238 = vld [vmem:[%s5 + $0x98] sm:$0xf]
      %v1239 = vld [vmem:[%s5 + $0x9c] sm:$0xf]
      %v1240 = vld [vmem:[%s5 + $0xa0] sm:$0xf]
      %v1241 = vld [vmem:[%s5 + $0xa4] sm:$0xf]
      %v1242 = vld [vmem:[%s5 + $0xa8] sm:$0xf]
      %v1243 = vld [vmem:[%s5 + $0xac] sm:$0xf]
      %v1244 = vld [vmem:[%s5 + $0xb0] sm:$0xf]
      %v1245 = vld [vmem:[%s5 + $0xb4] sm:$0xf]
      %v1246 = vld [vmem:[%s5 + $0xb8] sm:$0xf]
      %v1247 = vld [vmem:[%s5 + $0xbc] sm:$0xf]
      %v1249 = vshrl.u32 %v874, 16
      %v1251 = vshll.u32 %v874, 16
      %v1253 = vrot.slane %v1251, 1
      %v1254 = vor.u32 %v1249, %v1253
      %v1256 = vshll.u32 %v892, 16
      %v1258 = vrot.slane %v1256, 1
      %v1259 = vsel %vm894, %v1254, %v1258
      %v1263 = vrot.slane %v874, 1
      %v1264 = vrot.slane %v892, 1
      %v1265 = vsel %vm1135, %v1263, %v1264
      %s1267 = scalar_lea.vmem %s5, 192
      %v1268 = vld [vmem:[%s1267] sm:$0xf]
      %v1269 = vld [vmem:[%s1267 + $0x4] sm:$0xf]
      %v1270 = vld [vmem:[%s1267 + $0x8] sm:$0xf]
      %v1271 = vld [vmem:[%s1267 + $0xc] sm:$0xf]
      %v1272 = vld [vmem:[%s1267 + $0x10] sm:$0xf]
      %v1273 = vld [vmem:[%s1267 + $0x14] sm:$0xf]
      %v1274 = vld [vmem:[%s1267 + $0x18] sm:$0xf]
      %v1275 = vld [vmem:[%s1267 + $0x1c] sm:$0xf]
      %v1276 = vld [vmem:[%s1267 + $0x20] sm:$0xf]
      %v1277 = vld [vmem:[%s1267 + $0x24] sm:$0xf]
      %v1278 = vld [vmem:[%s1267 + $0x28] sm:$0xf]
      %v1279 = vld [vmem:[%s1267 + $0x2c] sm:$0xf]
      %v1280 = vld [vmem:[%s1267 + $0x30] sm:$0xf]
      %v1281 = vld [vmem:[%s1267 + $0x34] sm:$0xf]
      %v1282 = vld [vmem:[%s1267 + $0x38] sm:$0xf]
      %v1283 = vld [vmem:[%s1267 + $0x3c] sm:$0xf]
      %v1284 = vld [vmem:[%s1267 + $0x40] sm:$0xf]
      %v1285 = vld [vmem:[%s1267 + $0x44] sm:$0xf]
      %v1286 = vld [vmem:[%s1267 + $0x48] sm:$0xf]
      %v1287 = vld [vmem:[%s1267 + $0x4c] sm:$0xf]
      %v1288 = vld [vmem:[%s1267 + $0x50] sm:$0xf]
      %v1289 = vld [vmem:[%s1267 + $0x54] sm:$0xf]
      %v1290 = vld [vmem:[%s1267 + $0x58] sm:$0xf]
      %v1291 = vld [vmem:[%s1267 + $0x5c] sm:$0xf]
      %v1292 = vld [vmem:[%s1267 + $0x60] sm:$0xf]
      %v1293 = vld [vmem:[%s1267 + $0x64] sm:$0xf]
      %v1294 = vld [vmem:[%s1267 + $0x68] sm:$0xf]
      %v1295 = vld [vmem:[%s1267 + $0x6c] sm:$0xf]
      %v1296 = vld [vmem:[%s1267 + $0x70] sm:$0xf]
      %v1297 = vld [vmem:[%s1267 + $0x74] sm:$0xf]
      %v1298 = vld [vmem:[%s1267 + $0x78] sm:$0xf]
      %v1299 = vld [vmem:[%s1267 + $0x7c] sm:$0xf]
      %v1300 = vld [vmem:[%s1267 + $0x80] sm:$0xf]
      %v1301 = vld [vmem:[%s1267 + $0x84] sm:$0xf]
      %v1302 = vld [vmem:[%s1267 + $0x88] sm:$0xf]
      %v1303 = vld [vmem:[%s1267 + $0x8c] sm:$0xf]
      %v1304 = vld [vmem:[%s1267 + $0x90] sm:$0xf]
      %v1305 = vld [vmem:[%s1267 + $0x94] sm:$0xf]
      %v1306 = vld [vmem:[%s1267 + $0x98] sm:$0xf]
      %v1307 = vld [vmem:[%s1267 + $0x9c] sm:$0xf]
      %v1308 = vld [vmem:[%s1267 + $0xa0] sm:$0xf]
      %v1309 = vld [vmem:[%s1267 + $0xa4] sm:$0xf]
      %v1310 = vld [vmem:[%s1267 + $0xa8] sm:$0xf]
      %v1311 = vld [vmem:[%s1267 + $0xac] sm:$0xf]
      %v1312 = vld [vmem:[%s1267 + $0xb0] sm:$0xf]
      %v1313 = vld [vmem:[%s1267 + $0xb4] sm:$0xf]
      %v1314 = vld [vmem:[%s1267 + $0xb8] sm:$0xf]
      %v1315 = vld [vmem:[%s1267 + $0xbc] sm:$0xf]
      %v1364 = vunpack.c.l.b16 %v1268
      %v1365 = vunpack.c.l.b16 %v1269
      %v1366 = vunpack.c.l.b16 %v1270
      %v1367 = vunpack.c.l.b16 %v1271
      %v1368 = vunpack.c.l.b16 %v1272
      %v1369 = vunpack.c.l.b16 %v1273
      %v1370 = vunpack.c.l.b16 %v1274
      %v1371 = vunpack.c.l.b16 %v1275
      %v1372 = vunpack.c.l.b16 %v1276
      %v1373 = vunpack.c.l.b16 %v1277
      %v1374 = vunpack.c.l.b16 %v1278
      %v1375 = vunpack.c.l.b16 %v1279
      %v1376 = vunpack.c.l.b16 %v1280
      %v1377 = vunpack.c.l.b16 %v1281
      %v1378 = vunpack.c.l.b16 %v1282
      %v1379 = vunpack.c.l.b16 %v1283
      %v1380 = vunpack.c.l.b16 %v1284
      %v1381 = vunpack.c.l.b16 %v1285
      %v1382 = vunpack.c.l.b16 %v1286
      %v1383 = vunpack.c.l.b16 %v1287
      %v1384 = vunpack.c.l.b16 %v1288
      %v1385 = vunpack.c.l.b16 %v1289
      %v1386 = vunpack.c.l.b16 %v1290
      %v1387 = vunpack.c.l.b16 %v1291
      %v1388 = vunpack.c.l.b16 %v1292
      %v1389 = vunpack.c.l.b16 %v1293
      %v1390 = vunpack.c.l.b16 %v1294
      %v1391 = vunpack.c.l.b16 %v1295
      %v1392 = vunpack.c.l.b16 %v1296
      %v1393 = vunpack.c.l.b16 %v1297
      %v1394 = vunpack.c.l.b16 %v1298
      %v1395 = vunpack.c.l.b16 %v1299
      %v1396 = vunpack.c.l.b16 %v1300
      %v1397 = vunpack.c.l.b16 %v1301
      %v1398 = vunpack.c.l.b16 %v1302
      %v1399 = vunpack.c.l.b16 %v1303
      %v1400 = vunpack.c.l.b16 %v1304
      %v1401 = vunpack.c.l.b16 %v1305
      %v1402 = vunpack.c.l.b16 %v1306
      %v1403 = vunpack.c.l.b16 %v1307
      %v1404 = vunpack.c.l.b16 %v1308
      %v1405 = vunpack.c.l.b16 %v1309
      %v1406 = vunpack.c.l.b16 %v1310
      %v1407 = vunpack.c.l.b16 %v1311
      %v1408 = vunpack.c.l.b16 %v1312
      %v1409 = vunpack.c.l.b16 %v1313
      %v1410 = vunpack.c.l.b16 %v1314
      %v1411 = vunpack.c.l.b16 %v1315
      %v1412 = vpack.c.b16 %v1365, %v1364
      %v1413 = vpack.c.b16 %v1367, %v1366
      %v1414 = vpack.c.b16 %v1369, %v1368
      %v1415 = vpack.c.b16 %v1371, %v1370
      %v1416 = vpack.c.b16 %v1373, %v1372
      %v1417 = vpack.c.b16 %v1375, %v1374
      %v1418 = vpack.c.b16 %v1377, %v1376
      %v1419 = vpack.c.b16 %v1379, %v1378
      %v1420 = vpack.c.b16 %v1381, %v1380
      %v1421 = vpack.c.b16 %v1383, %v1382
      %v1422 = vpack.c.b16 %v1385, %v1384
      %v1423 = vpack.c.b16 %v1387, %v1386
      %v1424 = vpack.c.b16 %v1389, %v1388
      %v1425 = vpack.c.b16 %v1391, %v1390
      %v1426 = vpack.c.b16 %v1393, %v1392
      %v1427 = vpack.c.b16 %v1395, %v1394
      %v1428 = vpack.c.b16 %v1397, %v1396
      %v1429 = vpack.c.b16 %v1399, %v1398
      %v1430 = vpack.c.b16 %v1401, %v1400
      %v1431 = vpack.c.b16 %v1403, %v1402
      %v1432 = vpack.c.b16 %v1405, %v1404
      %v1433 = vpack.c.b16 %v1407, %v1406
      %v1434 = vpack.c.b16 %v1409, %v1408
      %v1435 = vpack.c.b16 %v1411, %v1410
      %1460 = vmatprep.subr.bf16.mxu0 0
      %1461 = vmatpush1.bf16.msra.mxu0 %v1412
      %1462 = vmatprep.subr.bf16.mxu0 0
      %1463 = vmatpush1.bf16.msra.mxu0 %v1413
      %1464 = vmatprep.subr.bf16.mxu0 0
      %1465 = vmatpush1.bf16.msra.mxu0 %v1414
      %1466 = vmatprep.subr.bf16.mxu0 0
      %1467 = vmatpush1.bf16.msra.mxu0 %v1415
      %1468 = vmatprep.subr.bf16.mxu0 0
      %1469 = vmatpush1.bf16.msra.mxu0 %v1416
      %1470 = vmatprep.subr.bf16.mxu0 0
      %1471 = vmatpush1.bf16.msra.mxu0 %v1417
      %1472 = vmatprep.subr.bf16.mxu0 0
      %1473 = vmatpush1.bf16.msra.mxu0 %v1418
      %1474 = vmatprep.subr.bf16.mxu0 0
      %1475 = vmatpush1.bf16.msra.mxu0 %v1419
      %1476 = vmatprep.subr.bf16.mxu0 0
      %1477 = vmatpush1.bf16.msra.mxu0 %v1420
      %1478 = vmatprep.subr.bf16.mxu0 0
      %1479 = vmatpush1.bf16.msra.mxu0 %v1421
      %1480 = vmatprep.subr.bf16.mxu0 0
      %1481 = vmatpush1.bf16.msra.mxu0 %v1422
      %1482 = vmatprep.subr.bf16.mxu0 0
      %1483 = vmatpush1.bf16.msra.mxu0 %v1423
      %1484 = vmatprep.subr.bf16.mxu0 0
      %1485 = vmatpush1.bf16.msra.mxu0 %v1424
      %1486 = vmatprep.subr.bf16.mxu0 0
      %1487 = vmatpush1.bf16.msra.mxu0 %v1425
      %1488 = vmatprep.subr.bf16.mxu0 0
      %1489 = vmatpush1.bf16.msra.mxu0 %v1426
      %1490 = vmatprep.subr.bf16.mxu0 0
      %1491 = vmatpush1.bf16.msra.mxu0 %v1427
      %1492 = vmatprep.mubr.bf16.mxu0 %v918
      %1493 = vmatmul.mubr.bf16.gmra.mrb[0].mxu0 %v859
      %v1494 = vpop.f32.mrb[0].mxu0
      %v1495 = vadd.f32 0.0, %v1494
      %v1496 = vpop.f32.mrb[0].mxu0
      %v1497 = vpop.f32.mrb[0].mxu0
      %v1498 = vadd.f32 0.0, %v1497
      %v1499 = vpop.f32.mrb[0].mxu0
      %1500 = vmatprep.mubr.bf16.mxu0 %v930
      %1501 = vmatmul.mubr.bf16.gmra.mrb[0].mxu0 %v860
      %v1502 = vpop.f32.mrb[0].mxu0
      %v1503 = vadd.f32 0.0, %v1502
      %v1504 = vpop.f32.mrb[0].mxu0
      %v1505 = vpop.f32.mrb[0].mxu0
      %v1506 = vadd.f32 0.0, %v1505
      %v1507 = vpop.f32.mrb[0].mxu0
      %1508 = vmatprep.mubr.bf16.mxu0 %v942
      %1509 = vmatmul.mubr.bf16.gmra.mrb[0].mxu0 %v861
      %v1510 = vpop.f32.mrb[0].mxu0
      %v1511 = vadd.f32 0.0, %v1510
      %v1512 = vpop.f32.mrb[0].mxu0
      %v1513 = vpop.f32.mrb[0].mxu0
      %v1514 = vadd.f32 0.0, %v1513
      %v1515 = vpop.f32.mrb[0].mxu0
      %1516 = vmatprep.mubr.bf16.mxu0 %v954
      %1517 = vmatmul.mubr.bf16.gmra.mrb[0].mxu0 %v862
      %v1518 = vpop.f32.mrb[0].mxu0
      %v1519 = vadd.f32 0.0, %v1518
      %v1520 = vpop.f32.mrb[0].mxu0
      %v1521 = vpop.f32.mrb[0].mxu0
      %v1522 = vadd.f32 0.0, %v1521
      %v1523 = vpop.f32.mrb[0].mxu0
      %1524 = vmatprep.mubr.bf16.mxu0 %v966
      %1525 = vmatmul.mubr.bf16.gmra.mrb[0].mxu0 %v863
      %v1526 = vpop.f32.mrb[0].mxu0
      %v1527 = vadd.f32 0.0, %v1526
      %v1528 = vpop.f32.mrb[0].mxu0
      %v1529 = vpop.f32.mrb[0].mxu0
      %v1530 = vadd.f32 0.0, %v1529
      %v1531 = vpop.f32.mrb[0].mxu0
      %1532 = vmatprep.mubr.bf16.mxu0 %v978
      %1533 = vmatmul.mubr.bf16.gmra.mrb[0].mxu0 %v864
      %v1534 = vpop.f32.mrb[0].mxu0
      %v1535 = vadd.f32 0.0, %v1534
      %v1536 = vpop.f32.mrb[0].mxu0
      %v1537 = vpop.f32.mrb[0].mxu0
      %v1538 = vadd.f32 0.0, %v1537
      %v1539 = vpop.f32.mrb[0].mxu0
      %1540 = vmatprep.mubr.bf16.mxu0 %v990
      %1541 = vmatmul.mubr.bf16.gmra.mrb[0].mxu0 %v865
      %v1542 = vpop.f32.mrb[0].mxu0
      %v1543 = vadd.f32 0.0, %v1542
      %v1544 = vpop.f32.mrb[0].mxu0
      %v1545 = vpop.f32.mrb[0].mxu0
      %v1546 = vadd.f32 0.0, %v1545
      %v1547 = vpop.f32.mrb[0].mxu0
      %1548 = vmatprep.mubr.bf16.mxu0 %v1002
      %1549 = vmatmul.mubr.bf16.gmra.mrb[0].mxu0 %v866
      %v1550 = vpop.f32.mrb[0].mxu0
      %v1551 = vadd.f32 0.0, %v1550
      %v1552 = vpop.f32.mrb[0].mxu0
      %v1553 = vpop.f32.mrb[0].mxu0
      %v1554 = vadd.f32 0.0, %v1553
      %v1555 = vpop.f32.mrb[0].mxu0
      %1556 = vmatprep.mubr.bf16.mxu0 %v1014
      %1557 = vmatmul.mubr.bf16.gmra.mrb[0].mxu0 %v867
      %v1558 = vpop.f32.mrb[0].mxu0
      %v1559 = vadd.f32 0.0, %v1558
      %v1560 = vpop.f32.mrb[0].mxu0
      %v1561 = vpop.f32.mrb[0].mxu0
      %v1562 = vadd.f32 0.0, %v1561
      %v1563 = vpop.f32.mrb[0].mxu0
      %1564 = vmatprep.mubr.bf16.mxu0 %v1026
      %1565 = vmatmul.mubr.bf16.gmra.mrb[0].mxu0 %v868
      %v1566 = vpop.f32.mrb[0].mxu0
      %v1567 = vadd.f32 0.0, %v1566
      %v1568 = vpop.f32.mrb[0].mxu0
      %v1569 = vpop.f32.mrb[0].mxu0
      %v1570 = vadd.f32 0.0, %v1569
      %v1571 = vpop.f32.mrb[0].mxu0
      %1572 = vmatprep.mubr.bf16.mxu0 %v1038
      %1573 = vmatmul.mubr.bf16.gmra.mrb[0].mxu0 %v869
      %v1574 = vpop.f32.mrb[0].mxu0
      %v1575 = vadd.f32 0.0, %v1574
      %v1576 = vpop.f32.mrb[0].mxu0
      %v1577 = vpop.f32.mrb[0].mxu0
      %v1578 = vadd.f32 0.0, %v1577
      %v1579 = vpop.f32.mrb[0].mxu0
      %1580 = vmatprep.mubr.bf16.mxu0 %v1050
      %1581 = vmatmul.mubr.bf16.gmra.mrb[0].mxu0 %v870
      %v1582 = vpop.f32.mrb[0].mxu0
      %v1583 = vadd.f32 0.0, %v1582
      %v1584 = vpop.f32.mrb[0].mxu0
      %v1585 = vpop.f32.mrb[0].mxu0
      %v1586 = vadd.f32 0.0, %v1585
      %v1587 = vpop.f32.mrb[0].mxu0
      %1588 = vmatprep.mubr.bf16.mxu0 %v1062
      %1589 = vmatmul.mubr.bf16.gmra.mrb[0].mxu0 %v871
      %v1590 = vpop.f32.mrb[0].mxu0
      %v1591 = vadd.f32 0.0, %v1590
      %v1592 = vpop.f32.mrb[0].mxu0
      %v1593 = vpop.f32.mrb[0].mxu0
      %v1594 = vadd.f32 0.0, %v1593
      %v1595 = vpop.f32.mrb[0].mxu0
      %1596 = vmatprep.mubr.bf16.mxu0 %v1074
      %1597 = vmatmul.mubr.bf16.gmra.mrb[0].mxu0 %v872
      %v1598 = vpop.f32.mrb[0].mxu0
      %v1599 = vadd.f32 0.0, %v1598
      %v1600 = vpop.f32.mrb[0].mxu0
      %v1601 = vpop.f32.mrb[0].mxu0
      %v1602 = vadd.f32 0.0, %v1601
      %v1603 = vpop.f32.mrb[0].mxu0
      %1604 = vmatprep.mubr.bf16.mxu0 %v1086
      %1605 = vmatmul.mubr.bf16.gmra.mrb[0].mxu0 %v873
      %v1606 = vpop.f32.mrb[0].mxu0
      %v1607 = vadd.f32 0.0, %v1606
      %v1608 = vpop.f32.mrb[0].mxu0
      %v1609 = vpop.f32.mrb[0].mxu0
      %v1610 = vadd.f32 0.0, %v1609
      %v1611 = vpop.f32.mrb[0].mxu0
      %1612 = vmatprep.mubr.bf16.mxu0 %v1259
      %1613 = vmatmul.mubr.bf16.gmra.mrb[0].mxu0 %v874
      %v1614 = vpop.f32.mrb[0].mxu0
      %v1615 = vadd.f32 0.0, %v1614
      %v1616 = vpop.f32.mrb[0].mxu0
      %v1617 = vpop.f32.mrb[0].mxu0
      %v1618 = vadd.f32 0.0, %v1617
      %v1619 = vpop.f32.mrb[0].mxu0
      %1620 = vdwg.mxu0
      %1621 = vmatprep.subr.bf16.mxu0 0
      %1622 = vmatpush1.bf16.msra.mxu0 %v1428
      %1623 = vmatprep.subr.bf16.mxu0 0
      %1624 = vmatpush1.bf16.msra.mxu0 %v1429
      %1625 = vmatprep.subr.bf16.mxu0 0
      %1626 = vmatpush1.bf16.msra.mxu0 %v1430
      %1627 = vmatprep.subr.bf16.mxu0 0
      %1628 = vmatpush1.bf16.msra.mxu0 %v1431
      %1629 = vmatprep.subr.bf16.mxu0 0
      %1630 = vmatpush1.bf16.msra.mxu0 %v1432
      %1631 = vmatprep.subr.bf16.mxu0 0
      %1632 = vmatpush1.bf16.msra.mxu0 %v1433
      %1633 = vmatprep.subr.bf16.mxu0 0
      %1634 = vmatpush1.bf16.msra.mxu0 %v1434
      %1635 = vmatprep.subr.bf16.mxu0 0
      %1636 = vmatpush1.bf16.msra.mxu0 %v1435
      %1637 = vmatprep.subr.bf16.mxu0 0
      %1638 = vmatpush1.bf16.msra.mxu0 0
      %1639 = vmatprep.subr.bf16.mxu0 0
      %1640 = vmatpush1.bf16.msra.mxu0 0
      %1641 = vmatprep.subr.bf16.mxu0 0
      %1642 = vmatpush1.bf16.msra.mxu0 0
      %1643 = vmatprep.subr.bf16.mxu0 0
      %1644 = vmatpush1.bf16.msra.mxu0 0
      %1645 = vmatprep.subr.bf16.mxu0 0
      %1646 = vmatpush1.bf16.msra.mxu0 0
      %1647 = vmatprep.subr.bf16.mxu0 0
      %1648 = vmatpush1.bf16.msra.mxu0 0
      %1649 = vmatprep.subr.bf16.mxu0 0
      %1650 = vmatpush1.bf16.msra.mxu0 0
      %1651 = vmatprep.subr.bf16.mxu0 0
      %1652 = vmatpush1.bf16.msra.mxu0 0
      %1653 = vmatprep.mubr.bf16.mxu0 0
      %1654 = vmatmul.mubr.bf16.gmra.mrb[0].mxu0 %v1141
      %v1655 = vpop.f32.mrb[0].mxu0
      %v1656 = vadd.f32 %v1495, %v1655
      %v1657 = vpop.f32.mrb[0].mxu0
      %v1658 = vpop.f32.mrb[0].mxu0
      %v1659 = vadd.f32 %v1498, %v1658
      %v1660 = vpop.f32.mrb[0].mxu0
      %1661 = vmatprep.mubr.bf16.mxu0 0
      %1662 = vmatmul.mubr.bf16.gmra.mrb[0].mxu0 %v1144
      %v1663 = vpop.f32.mrb[0].mxu0
      %v1664 = vadd.f32 %v1503, %v1663
      %v1665 = vpop.f32.mrb[0].mxu0
      %v1666 = vpop.f32.mrb[0].mxu0
      %v1667 = vadd.f32 %v1506, %v1666
      %v1668 = vpop.f32.mrb[0].mxu0
      %1669 = vmatprep.mubr.bf16.mxu0 0
      %1670 = vmatmul.mubr.bf16.gmra.mrb[0].mxu0 %v1147
      %v1671 = vpop.f32.mrb[0].mxu0
      %v1672 = vadd.f32 %v1511, %v1671
      %v1673 = vpop.f32.mrb[0].mxu0
      %v1674 = vpop.f32.mrb[0].mxu0
      %v1675 = vadd.f32 %v1514, %v1674
      %v1676 = vpop.f32.mrb[0].mxu0
      %1677 = vmatprep.mubr.bf16.mxu0 0
      %1678 = vmatmul.mubr.bf16.gmra.mrb[0].mxu0 %v1150
      %v1679 = vpop.f32.mrb[0].mxu0
      %v1680 = vadd.f32 %v1519, %v1679
      %v1681 = vpop.f32.mrb[0].mxu0
      %v1682 = vpop.f32.mrb[0].mxu0
      %v1683 = vadd.f32 %v1522, %v1682
      %v1684 = vpop.f32.mrb[0].mxu0
      %1685 = vmatprep.mubr.bf16.mxu0 0
      %1686 = vmatmul.mubr.bf16.gmra.mrb[0].mxu0 %v1153
      %v1687 = vpop.f32.mrb[0].mxu0
      %v1688 = vadd.f32 %v1527, %v1687
      %v1689 = vpop.f32.mrb[0].mxu0
      %v1690 = vpop.f32.mrb[0].mxu0
      %v1691 = vadd.f32 %v1530, %v1690
      %v1692 = vpop.f32.mrb[0].mxu0
      %1693 = vmatprep.mubr.bf16.mxu0 0
      %1694 = vmatmul.mubr.bf16.gmra.mrb[0].mxu0 %v1156
      %v1695 = vpop.f32.mrb[0].mxu0
      %v1696 = vadd.f32 %v1535, %v1695
      %v1697 = vpop.f32.mrb[0].mxu0
      %v1698 = vpop.f32.mrb[0].mxu0
      %v1699 = vadd.f32 %v1538, %v1698
      %v1700 = vpop.f32.mrb[0].mxu0
      %1701 = vmatprep.mubr.bf16.mxu0 0
      %1702 = vmatmul.mubr.bf16.gmra.mrb[0].mxu0 %v1159
      %v1703 = vpop.f32.mrb[0].mxu0
      %v1704 = vadd.f32 %v1543, %v1703
      %v1705 = vpop.f32.mrb[0].mxu0
      %v1706 = vpop.f32.mrb[0].mxu0
      %v1707 = vadd.f32 %v1546, %v1706
      %v1708 = vpop.f32.mrb[0].mxu0
      %1709 = vmatprep.mubr.bf16.mxu0 0
      %1710 = vmatmul.mubr.bf16.gmra.mrb[0].mxu0 %v1162
      %v1711 = vpop.f32.mrb[0].mxu0
      %v1712 = vadd.f32 %v1551, %v1711
      %v1713 = vpop.f32.mrb[0].mxu0
      %v1714 = vpop.f32.mrb[0].mxu0
      %v1715 = vadd.f32 %v1554, %v1714
      %v1716 = vpop.f32.mrb[0].mxu0
      %1717 = vmatprep.mubr.bf16.mxu0 0
      %1718 = vmatmul.mubr.bf16.gmra.mrb[0].mxu0 %v1165
      %v1719 = vpop.f32.mrb[0].mxu0
      %v1720 = vadd.f32 %v1559, %v1719
      %v1721 = vpop.f32.mrb[0].mxu0
      %v1722 = vpop.f32.mrb[0].mxu0
      %v1723 = vadd.f32 %v1562, %v1722
      %v1724 = vpop.f32.mrb[0].mxu0
      %1725 = vmatprep.mubr.bf16.mxu0 0
      %1726 = vmatmul.mubr.bf16.gmra.mrb[0].mxu0 %v1168
      %v1727 = vpop.f32.mrb[0].mxu0
      %v1728 = vadd.f32 %v1567, %v1727
      %v1729 = vpop.f32.mrb[0].mxu0
      %v1730 = vpop.f32.mrb[0].mxu0
      %v1731 = vadd.f32 %v1570, %v1730
      %v1732 = vpop.f32.mrb[0].mxu0
      %1733 = vmatprep.mubr.bf16.mxu0 0
      %1734 = vmatmul.mubr.bf16.gmra.mrb[0].mxu0 %v1171
      %v1735 = vpop.f32.mrb[0].mxu0
      %v1736 = vadd.f32 %v1575, %v1735
      %v1737 = vpop.f32.mrb[0].mxu0
      %v1738 = vpop.f32.mrb[0].mxu0
      %v1739 = vadd.f32 %v1578, %v1738
      %v1740 = vpop.f32.mrb[0].mxu0
      %1741 = vmatprep.mubr.bf16.mxu0 0
      %1742 = vmatmul.mubr.bf16.gmra.mrb[0].mxu0 %v1174
      %v1743 = vpop.f32.mrb[0].mxu0
      %v1744 = vadd.f32 %v1583, %v1743
      %v1745 = vpop.f32.mrb[0].mxu0
      %v1746 = vpop.f32.mrb[0].mxu0
      %v1747 = vadd.f32 %v1586, %v1746
      %v1748 = vpop.f32.mrb[0].mxu0
      %1749 = vmatprep.mubr.bf16.mxu0 0
      %1750 = vmatmul.mubr.bf16.gmra.mrb[0].mxu0 %v1177
      %v1751 = vpop.f32.mrb[0].mxu0
      %v1752 = vadd.f32 %v1591, %v1751
      %v1753 = vpop.f32.mrb[0].mxu0
      %v1754 = vpop.f32.mrb[0].mxu0
      %v1755 = vadd.f32 %v1594, %v1754
      %v1756 = vpop.f32.mrb[0].mxu0
      %1757 = vmatprep.mubr.bf16.mxu0 0
      %1758 = vmatmul.mubr.bf16.gmra.mrb[0].mxu0 %v1180
      %v1759 = vpop.f32.mrb[0].mxu0
      %v1760 = vadd.f32 %v1599, %v1759
      %v1761 = vpop.f32.mrb[0].mxu0
      %v1762 = vpop.f32.mrb[0].mxu0
      %v1763 = vadd.f32 %v1602, %v1762
      %v1764 = vpop.f32.mrb[0].mxu0
      %1765 = vmatprep.mubr.bf16.mxu0 0
      %1766 = vmatmul.mubr.bf16.gmra.mrb[0].mxu0 %v1183
      %v1767 = vpop.f32.mrb[0].mxu0
      %v1768 = vadd.f32 %v1607, %v1767
      %v1769 = vpop.f32.mrb[0].mxu0
      %v1770 = vpop.f32.mrb[0].mxu0
      %v1771 = vadd.f32 %v1610, %v1770
      %v1772 = vpop.f32.mrb[0].mxu0
      %1773 = vmatprep.mubr.bf16.mxu0 0
      %1774 = vmatmul.mubr.bf16.gmra.mrb[0].mxu0 %v1265
      %v1775 = vpop.f32.mrb[0].mxu0
      %v1776 = vadd.f32 %v1615, %v1775
      %v1777 = vpop.f32.mrb[0].mxu0
      %v1778 = vpop.f32.mrb[0].mxu0
      %v1779 = vadd.f32 %v1618, %v1778
      %v1780 = vpop.f32.mrb[0].mxu0
      %1781 = vdwg.mxu0
      %v1830 = vunpack.c.l.b16 %v1200
      %v1831 = vunpack.c.l.b16 %v1201
      %v1832 = vunpack.c.l.b16 %v1202
      %v1833 = vunpack.c.l.b16 %v1203
      %v1834 = vunpack.c.l.b16 %v1204
      %v1835 = vunpack.c.l.b16 %v1205
      %v1836 = vunpack.c.l.b16 %v1206
      %v1837 = vunpack.c.l.b16 %v1207
      %v1838 = vunpack.c.l.b16 %v1208
      %v1839 = vunpack.c.l.b16 %v1209
      %v1840 = vunpack.c.l.b16 %v1210
      %v1841 = vunpack.c.l.b16 %v1211
      %v1842 = vunpack.c.l.b16 %v1212
      %v1843 = vunpack.c.l.b16 %v1213
      %v1844 = vunpack.c.l.b16 %v1214
      %v1845 = vunpack.c.l.b16 %v1215
      %v1846 = vunpack.c.l.b16 %v1216
      %v1847 = vunpack.c.l.b16 %v1217
      %v1848 = vunpack.c.l.b16 %v1218
      %v1849 = vunpack.c.l.b16 %v1219
      %v1850 = vunpack.c.l.b16 %v1220
      %v1851 = vunpack.c.l.b16 %v1221
      %v1852 = vunpack.c.l.b16 %v1222
      %v1853 = vunpack.c.l.b16 %v1223
      %v1854 = vunpack.c.l.b16 %v1224
      %v1855 = vunpack.c.l.b16 %v1225
      %v1856 = vunpack.c.l.b16 %v1226
      %v1857 = vunpack.c.l.b16 %v1227
      %v1858 = vunpack.c.l.b16 %v1228
      %v1859 = vunpack.c.l.b16 %v1229
      %v1860 = vunpack.c.l.b16 %v1230
      %v1861 = vunpack.c.l.b16 %v1231
      %v1862 = vunpack.c.l.b16 %v1232
      %v1863 = vunpack.c.l.b16 %v1233
      %v1864 = vunpack.c.l.b16 %v1234
      %v1865 = vunpack.c.l.b16 %v1235
      %v1866 = vunpack.c.l.b16 %v1236
      %v1867 = vunpack.c.l.b16 %v1237
      %v1868 = vunpack.c.l.b16 %v1238
      %v1869 = vunpack.c.l.b16 %v1239
      %v1870 = vunpack.c.l.b16 %v1240
      %v1871 = vunpack.c.l.b16 %v1241
      %v1872 = vunpack.c.l.b16 %v1242
      %v1873 = vunpack.c.l.b16 %v1243
      %v1874 = vunpack.c.l.b16 %v1244
      %v1875 = vunpack.c.l.b16 %v1245
      %v1876 = vunpack.c.l.b16 %v1246
      %v1877 = vunpack.c.l.b16 %v1247
      %v1878 = vpack.c.b16 %v1831, %v1830
      %v1879 = vpack.c.b16 %v1833, %v1832
      %v1880 = vpack.c.b16 %v1835, %v1834
      %v1881 = vpack.c.b16 %v1837, %v1836
      %v1882 = vpack.c.b16 %v1839, %v1838
      %v1883 = vpack.c.b16 %v1841, %v1840
      %v1884 = vpack.c.b16 %v1843, %v1842
      %v1885 = vpack.c.b16 %v1845, %v1844
      %v1886 = vpack.c.b16 %v1847, %v1846
      %v1887 = vpack.c.b16 %v1849, %v1848
      %v1888 = vpack.c.b16 %v1851, %v1850
      %v1889 = vpack.c.b16 %v1853, %v1852
      %v1890 = vpack.c.b16 %v1855, %v1854
      %v1891 = vpack.c.b16 %v1857, %v1856
      %v1892 = vpack.c.b16 %v1859, %v1858
      %v1893 = vpack.c.b16 %v1861, %v1860
      %v1894 = vpack.c.b16 %v1863, %v1862
      %v1895 = vpack.c.b16 %v1865, %v1864
      %v1896 = vpack.c.b16 %v1867, %v1866
      %v1897 = vpack.c.b16 %v1869, %v1868
      %v1898 = vpack.c.b16 %v1871, %v1870
      %v1899 = vpack.c.b16 %v1873, %v1872
      %v1900 = vpack.c.b16 %v1875, %v1874
      %v1901 = vpack.c.b16 %v1877, %v1876
      %1926 = vmatprep.subr.bf16.mxu0 0
      %1927 = vmatpush1.bf16.msra.mxu0 %v1878
      %1928 = vmatprep.subr.bf16.mxu0 0
      %1929 = vmatpush1.bf16.msra.mxu0 %v1879
      %1930 = vmatprep.subr.bf16.mxu0 0
      %1931 = vmatpush1.bf16.msra.mxu0 %v1880
      %1932 = vmatprep.subr.bf16.mxu0 0
      %1933 = vmatpush1.bf16.msra.mxu0 %v1881
      %1934 = vmatprep.subr.bf16.mxu0 0
      %1935 = vmatpush1.bf16.msra.mxu0 %v1882
      %1936 = vmatprep.subr.bf16.mxu0 0
      %1937 = vmatpush1.bf16.msra.mxu0 %v1883
      %1938 = vmatprep.subr.bf16.mxu0 0
      %1939 = vmatpush1.bf16.msra.mxu0 %v1884
      %1940 = vmatprep.subr.bf16.mxu0 0
      %1941 = vmatpush1.bf16.msra.mxu0 %v1885
      %1942 = vmatprep.subr.bf16.mxu0 0
      %1943 = vmatpush1.bf16.msra.mxu0 %v1886
      %1944 = vmatprep.subr.bf16.mxu0 0
      %1945 = vmatpush1.bf16.msra.mxu0 %v1887
      %1946 = vmatprep.subr.bf16.mxu0 0
      %1947 = vmatpush1.bf16.msra.mxu0 %v1888
      %1948 = vmatprep.subr.bf16.mxu0 0
      %1949 = vmatpush1.bf16.msra.mxu0 %v1889
      %1950 = vmatprep.subr.bf16.mxu0 0
      %1951 = vmatpush1.bf16.msra.mxu0 %v1890
      %1952 = vmatprep.subr.bf16.mxu0 0
      %1953 = vmatpush1.bf16.msra.mxu0 %v1891
      %1954 = vmatprep.subr.bf16.mxu0 0
      %1955 = vmatpush1.bf16.msra.mxu0 %v1892
      %1956 = vmatprep.subr.bf16.mxu0 0
      %1957 = vmatpush1.bf16.msra.mxu0 %v1893
      %1958 = vmatprep.mubr.bf16.mxu0 %v906
      %1959 = vmatmul.mubr.bf16.gmra.mrb[0].mxu0 %v858
      %v1960 = vpop.f32.mrb[0].mxu0
      %v1961 = vadd.f32 %v1656, %v1960
      %v1962 = vpop.f32.mrb[0].mxu0
      %v1963 = vpop.f32.mrb[0].mxu0
      %v1964 = vadd.f32 %v1659, %v1963
      %v1965 = vpop.f32.mrb[0].mxu0
      %1966 = vmatprep.mubr.bf16.mxu0 %v918
      %1967 = vmatmul.mubr.bf16.gmra.mrb[0].mxu0 %v859
      %v1968 = vpop.f32.mrb[0].mxu0
      %v1969 = vadd.f32 %v1664, %v1968
      %v1970 = vpop.f32.mrb[0].mxu0
      %v1971 = vpop.f32.mrb[0].mxu0
      %v1972 = vadd.f32 %v1667, %v1971
      %v1973 = vpop.f32.mrb[0].mxu0
      %1974 = vmatprep.mubr.bf16.mxu0 %v930
      %1975 = vmatmul.mubr.bf16.gmra.mrb[0].mxu0 %v860
      %v1976 = vpop.f32.mrb[0].mxu0
      %v1977 = vadd.f32 %v1672, %v1976
      %v1978 = vpop.f32.mrb[0].mxu0
      %v1979 = vpop.f32.mrb[0].mxu0
      %v1980 = vadd.f32 %v1675, %v1979
      %v1981 = vpop.f32.mrb[0].mxu0
      %1982 = vmatprep.mubr.bf16.mxu0 %v942
      %1983 = vmatmul.mubr.bf16.gmra.mrb[0].mxu0 %v861
      %v1984 = vpop.f32.mrb[0].mxu0
      %v1985 = vadd.f32 %v1680, %v1984
      %v1986 = vpop.f32.mrb[0].mxu0
      %v1987 = vpop.f32.mrb[0].mxu0
      %v1988 = vadd.f32 %v1683, %v1987
      %v1989 = vpop.f32.mrb[0].mxu0
      %1990 = vmatprep.mubr.bf16.mxu0 %v954
      %1991 = vmatmul.mubr.bf16.gmra.mrb[0].mxu0 %v862
      %v1992 = vpop.f32.mrb[0].mxu0
      %v1993 = vadd.f32 %v1688, %v1992
      %v1994 = vpop.f32.mrb[0].mxu0
      %v1995 = vpop.f32.mrb[0].mxu0
      %v1996 = vadd.f32 %v1691, %v1995
      %v1997 = vpop.f32.mrb[0].mxu0
      %1998 = vmatprep.mubr.bf16.mxu0 %v966
      %1999 = vmatmul.mubr.bf16.gmra.mrb[0].mxu0 %v863
      %v2000 = vpop.f32.mrb[0].mxu0
      %v2001 = vadd.f32 %v1696, %v2000
      %v2002 = vpop.f32.mrb[0].mxu0
      %v2003 = vpop.f32.mrb[0].mxu0
      %v2004 = vadd.f32 %v1699, %v2003
      %v2005 = vpop.f32.mrb[0].mxu0
      %2006 = vmatprep.mubr.bf16.mxu0 %v978
      %2007 = vmatmul.mubr.bf16.gmra.mrb[0].mxu0 %v864
      %v2008 = vpop.f32.mrb[0].mxu0
      %v2009 = vadd.f32 %v1704, %v2008
      %v2010 = vpop.f32.mrb[0].mxu0
      %v2011 = vpop.f32.mrb[0].mxu0
      %v2012 = vadd.f32 %v1707, %v2011
      %v2013 = vpop.f32.mrb[0].mxu0
      %2014 = vmatprep.mubr.bf16.mxu0 %v990
      %2015 = vmatmul.mubr.bf16.gmra.mrb[0].mxu0 %v865
      %v2016 = vpop.f32.mrb[0].mxu0
      %v2017 = vadd.f32 %v1712, %v2016
      %v2018 = vpop.f32.mrb[0].mxu0
      %v2019 = vpop.f32.mrb[0].mxu0
      %v2020 = vadd.f32 %v1715, %v2019
      %v2021 = vpop.f32.mrb[0].mxu0
      %2022 = vmatprep.mubr.bf16.mxu0 %v1002
      %2023 = vmatmul.mubr.bf16.gmra.mrb[0].mxu0 %v866
      %v2024 = vpop.f32.mrb[0].mxu0
      %v2025 = vadd.f32 %v1720, %v2024
      %v2026 = vpop.f32.mrb[0].mxu0
      %v2027 = vpop.f32.mrb[0].mxu0
      %v2028 = vadd.f32 %v1723, %v2027
      %v2029 = vpop.f32.mrb[0].mxu0
      %2030 = vmatprep.mubr.bf16.mxu0 %v1014
      %2031 = vmatmul.mubr.bf16.gmra.mrb[0].mxu0 %v867
      %v2032 = vpop.f32.mrb[0].mxu0
      %v2033 = vadd.f32 %v1728, %v2032
      %v2034 = vpop.f32.mrb[0].mxu0
      %v2035 = vpop.f32.mrb[0].mxu0
      %v2036 = vadd.f32 %v1731, %v2035
      %v2037 = vpop.f32.mrb[0].mxu0
      %2038 = vmatprep.mubr.bf16.mxu0 %v1026
      %2039 = vmatmul.mubr.bf16.gmra.mrb[0].mxu0 %v868
      %v2040 = vpop.f32.mrb[0].mxu0
      %v2041 = vadd.f32 %v1736, %v2040
      %v2042 = vpop.f32.mrb[0].mxu0
      %v2043 = vpop.f32.mrb[0].mxu0
      %v2044 = vadd.f32 %v1739, %v2043
      %v2045 = vpop.f32.mrb[0].mxu0
      %2046 = vmatprep.mubr.bf16.mxu0 %v1038
      %2047 = vmatmul.mubr.bf16.gmra.mrb[0].mxu0 %v869
      %v2048 = vpop.f32.mrb[0].mxu0
      %v2049 = vadd.f32 %v1744, %v2048
      %v2050 = vpop.f32.mrb[0].mxu0
      %v2051 = vpop.f32.mrb[0].mxu0
      %v2052 = vadd.f32 %v1747, %v2051
      %v2053 = vpop.f32.mrb[0].mxu0
      %2054 = vmatprep.mubr.bf16.mxu0 %v1050
      %2055 = vmatmul.mubr.bf16.gmra.mrb[0].mxu0 %v870
      %v2056 = vpop.f32.mrb[0].mxu0
      %v2057 = vadd.f32 %v1752, %v2056
      %v2058 = vpop.f32.mrb[0].mxu0
      %v2059 = vpop.f32.mrb[0].mxu0
      %v2060 = vadd.f32 %v1755, %v2059
      %v2061 = vpop.f32.mrb[0].mxu0
      %2062 = vmatprep.mubr.bf16.mxu0 %v1062
      %2063 = vmatmul.mubr.bf16.gmra.mrb[0].mxu0 %v871
      %v2064 = vpop.f32.mrb[0].mxu0
      %v2065 = vadd.f32 %v1760, %v2064
      %v2066 = vpop.f32.mrb[0].mxu0
      %v2067 = vpop.f32.mrb[0].mxu0
      %v2068 = vadd.f32 %v1763, %v2067
      %v2069 = vpop.f32.mrb[0].mxu0
      %2070 = vmatprep.mubr.bf16.mxu0 %v1074
      %2071 = vmatmul.mubr.bf16.gmra.mrb[0].mxu0 %v872
      %v2072 = vpop.f32.mrb[0].mxu0
      %v2073 = vadd.f32 %v1768, %v2072
      %v2074 = vpop.f32.mrb[0].mxu0
      %v2075 = vpop.f32.mrb[0].mxu0
      %v2076 = vadd.f32 %v1771, %v2075
      %v2077 = vpop.f32.mrb[0].mxu0
      %2078 = vmatprep.mubr.bf16.mxu0 %v1086
      %2079 = vmatmul.mubr.bf16.gmra.mrb[0].mxu0 %v873
      %v2080 = vpop.f32.mrb[0].mxu0
      %v2081 = vadd.f32 %v1776, %v2080
      %v2082 = vpop.f32.mrb[0].mxu0
      %v2083 = vpop.f32.mrb[0].mxu0
      %v2084 = vadd.f32 %v1779, %v2083
      %v2085 = vpop.f32.mrb[0].mxu0
      %2086 = vdwg.mxu0
      %2087 = vmatprep.subr.bf16.mxu0 0
      %2088 = vmatpush1.bf16.msra.mxu0 %v1894
      %2089 = vmatprep.subr.bf16.mxu0 0
      %2090 = vmatpush1.bf16.msra.mxu0 %v1895
      %2091 = vmatprep.subr.bf16.mxu0 0
      %2092 = vmatpush1.bf16.msra.mxu0 %v1896
      %2093 = vmatprep.subr.bf16.mxu0 0
      %2094 = vmatpush1.bf16.msra.mxu0 %v1897
      %2095 = vmatprep.subr.bf16.mxu0 0
      %2096 = vmatpush1.bf16.msra.mxu0 %v1898
      %2097 = vmatprep.subr.bf16.mxu0 0
      %2098 = vmatpush1.bf16.msra.mxu0 %v1899
      %2099 = vmatprep.subr.bf16.mxu0 0
      %2100 = vmatpush1.bf16.msra.mxu0 %v1900
      %2101 = vmatprep.subr.bf16.mxu0 0
      %2102 = vmatpush1.bf16.msra.mxu0 %v1901
      %2103 = vmatprep.subr.bf16.mxu0 0
      %2104 = vmatpush1.bf16.msra.mxu0 0
      %2105 = vmatprep.subr.bf16.mxu0 0
      %2106 = vmatpush1.bf16.msra.mxu0 0
      %2107 = vmatprep.subr.bf16.mxu0 0
      %2108 = vmatpush1.bf16.msra.mxu0 0
      %2109 = vmatprep.subr.bf16.mxu0 0
      %2110 = vmatpush1.bf16.msra.mxu0 0
      %2111 = vmatprep.subr.bf16.mxu0 0
      %2112 = vmatpush1.bf16.msra.mxu0 0
      %2113 = vmatprep.subr.bf16.mxu0 0
      %2114 = vmatpush1.bf16.msra.mxu0 0
      %2115 = vmatprep.subr.bf16.mxu0 0
      %2116 = vmatpush1.bf16.msra.mxu0 0
      %2117 = vmatprep.subr.bf16.mxu0 0
      %2118 = vmatpush1.bf16.msra.mxu0 0
      %2119 = vmatprep.mubr.bf16.mxu0 0
      %2120 = vmatmul.mubr.bf16.gmra.mrb[0].mxu0 %v1138
      %v2121 = vpop.f32.mrb[0].mxu0
      %v2122 = vadd.f32 %v1961, %v2121
      %v2123 = vpop.f32.mrb[0].mxu0
      %v2124 = vpop.f32.mrb[0].mxu0
      %v2125 = vadd.f32 %v1964, %v2124
      %v2126 = vpop.f32.mrb[0].mxu0
      %2127 = vmatprep.mubr.bf16.mxu0 0
      %2128 = vmatmul.mubr.bf16.gmra.mrb[0].mxu0 %v1141
      %v2129 = vpop.f32.mrb[0].mxu0
      %v2130 = vadd.f32 %v1969, %v2129
      %v2131 = vpop.f32.mrb[0].mxu0
      %v2132 = vpop.f32.mrb[0].mxu0
      %v2133 = vadd.f32 %v1972, %v2132
      %v2134 = vpop.f32.mrb[0].mxu0
      %2135 = vmatprep.mubr.bf16.mxu0 0
      %2136 = vmatmul.mubr.bf16.gmra.mrb[0].mxu0 %v1144
      %v2137 = vpop.f32.mrb[0].mxu0
      %v2138 = vadd.f32 %v1977, %v2137
      %v2139 = vpop.f32.mrb[0].mxu0
      %v2140 = vpop.f32.mrb[0].mxu0
      %v2141 = vadd.f32 %v1980, %v2140
      %v2142 = vpop.f32.mrb[0].mxu0
      %2143 = vmatprep.mubr.bf16.mxu0 0
      %2144 = vmatmul.mubr.bf16.gmra.mrb[0].mxu0 %v1147
      %v2145 = vpop.f32.mrb[0].mxu0
      %v2146 = vadd.f32 %v1985, %v2145
      %v2147 = vpop.f32.mrb[0].mxu0
      %v2148 = vpop.f32.mrb[0].mxu0
      %v2149 = vadd.f32 %v1988, %v2148
      %v2150 = vpop.f32.mrb[0].mxu0
      %2151 = vmatprep.mubr.bf16.mxu0 0
      %2152 = vmatmul.mubr.bf16.gmra.mrb[0].mxu0 %v1150
      %v2153 = vpop.f32.mrb[0].mxu0
      %v2154 = vadd.f32 %v1993, %v2153
      %v2155 = vpop.f32.mrb[0].mxu0
      %v2156 = vpop.f32.mrb[0].mxu0
      %v2157 = vadd.f32 %v1996, %v2156
      %v2158 = vpop.f32.mrb[0].mxu0
      %2159 = vmatprep.mubr.bf16.mxu0 0
      %2160 = vmatmul.mubr.bf16.gmra.mrb[0].mxu0 %v1153
      %v2161 = vpop.f32.mrb[0].mxu0
      %v2162 = vadd.f32 %v2001, %v2161
      %v2163 = vpop.f32.mrb[0].mxu0
      %v2164 = vpop.f32.mrb[0].mxu0
      %v2165 = vadd.f32 %v2004, %v2164
      %v2166 = vpop.f32.mrb[0].mxu0
      %2167 = vmatprep.mubr.bf16.mxu0 0
      %2168 = vmatmul.mubr.bf16.gmra.mrb[0].mxu0 %v1156
      %v2169 = vpop.f32.mrb[0].mxu0
      %v2170 = vadd.f32 %v2009, %v2169
      %v2171 = vpop.f32.mrb[0].mxu0
      %v2172 = vpop.f32.mrb[0].mxu0
      %v2173 = vadd.f32 %v2012, %v2172
      %v2174 = vpop.f32.mrb[0].mxu0
      %2175 = vmatprep.mubr.bf16.mxu0 0
      %2176 = vmatmul.mubr.bf16.gmra.mrb[0].mxu0 %v1159
      %v2177 = vpop.f32.mrb[0].mxu0
      %v2178 = vadd.f32 %v2017, %v2177
      %v2179 = vpop.f32.mrb[0].mxu0
      %v2180 = vpop.f32.mrb[0].mxu0
      %v2181 = vadd.f32 %v2020, %v2180
      %v2182 = vpop.f32.mrb[0].mxu0
      %2183 = vmatprep.mubr.bf16.mxu0 0
      %2184 = vmatmul.mubr.bf16.gmra.mrb[0].mxu0 %v1162
      %v2185 = vpop.f32.mrb[0].mxu0
      %v2186 = vadd.f32 %v2025, %v2185
      %v2187 = vpop.f32.mrb[0].mxu0
      %v2188 = vpop.f32.mrb[0].mxu0
      %v2189 = vadd.f32 %v2028, %v2188
      %v2190 = vpop.f32.mrb[0].mxu0
      %2191 = vmatprep.mubr.bf16.mxu0 0
      %2192 = vmatmul.mubr.bf16.gmra.mrb[0].mxu0 %v1165
      %v2193 = vpop.f32.mrb[0].mxu0
      %v2194 = vadd.f32 %v2033, %v2193
      %v2195 = vpop.f32.mrb[0].mxu0
      %v2196 = vpop.f32.mrb[0].mxu0
      %v2197 = vadd.f32 %v2036, %v2196
      %v2198 = vpop.f32.mrb[0].mxu0
      %2199 = vmatprep.mubr.bf16.mxu0 0
      %2200 = vmatmul.mubr.bf16.gmra.mrb[0].mxu0 %v1168
      %v2201 = vpop.f32.mrb[0].mxu0
      %v2202 = vadd.f32 %v2041, %v2201
      %v2203 = vpop.f32.mrb[0].mxu0
      %v2204 = vpop.f32.mrb[0].mxu0
      %v2205 = vadd.f32 %v2044, %v2204
      %v2206 = vpop.f32.mrb[0].mxu0
      %2207 = vmatprep.mubr.bf16.mxu0 0
      %2208 = vmatmul.mubr.bf16.gmra.mrb[0].mxu0 %v1171
      %v2209 = vpop.f32.mrb[0].mxu0
      %v2210 = vadd.f32 %v2049, %v2209
      %v2211 = vpop.f32.mrb[0].mxu0
      %v2212 = vpop.f32.mrb[0].mxu0
      %v2213 = vadd.f32 %v2052, %v2212
      %v2214 = vpop.f32.mrb[0].mxu0
      %2215 = vmatprep.mubr.bf16.mxu0 0
      %2216 = vmatmul.mubr.bf16.gmra.mrb[0].mxu0 %v1174
      %v2217 = vpop.f32.mrb[0].mxu0
      %v2218 = vadd.f32 %v2057, %v2217
      %v2219 = vpop.f32.mrb[0].mxu0
      %v2220 = vpop.f32.mrb[0].mxu0
      %v2221 = vadd.f32 %v2060, %v2220
      %v2222 = vpop.f32.mrb[0].mxu0
      %2223 = vmatprep.mubr.bf16.mxu0 0
      %2224 = vmatmul.mubr.bf16.gmra.mrb[0].mxu0 %v1177
      %v2225 = vpop.f32.mrb[0].mxu0
      %v2226 = vadd.f32 %v2065, %v2225
      %v2227 = vpop.f32.mrb[0].mxu0
      %v2228 = vpop.f32.mrb[0].mxu0
      %v2229 = vadd.f32 %v2068, %v2228
      %v2230 = vpop.f32.mrb[0].mxu0
      %2231 = vmatprep.mubr.bf16.mxu0 0
      %2232 = vmatmul.mubr.bf16.gmra.mrb[0].mxu0 %v1180
      %v2233 = vpop.f32.mrb[0].mxu0
      %v2234 = vadd.f32 %v2073, %v2233
      %v2235 = vpop.f32.mrb[0].mxu0
      %v2236 = vpop.f32.mrb[0].mxu0
      %v2237 = vadd.f32 %v2076, %v2236
      %v2238 = vpop.f32.mrb[0].mxu0
      %2239 = vmatprep.mubr.bf16.mxu0 0
      %2240 = vmatmul.mubr.bf16.gmra.mrb[0].mxu0 %v1183
      %v2241 = vpop.f32.mrb[0].mxu0
      %v2242 = vadd.f32 %v2081, %v2241
      %v2243 = vpop.f32.mrb[0].mxu0
      %v2244 = vpop.f32.mrb[0].mxu0
      %v2245 = vadd.f32 %v2084, %v2244
      %v2246 = vpop.f32.mrb[0].mxu0
      %2247 = vdwg.mxu0
      %v2249 = vshrl.u32 %v875, 16
      %v2251 = vshll.u32 %v875, 16
      %v2253 = vrot.slane %v2251, 1
      %v2254 = vor.u32 %v2249, %v2253
      %v2256 = vshll.u32 %v893, 16
      %v2258 = vrot.slane %v2256, 1
      %v2259 = vsel %vm894, %v2254, %v2258
      %v2263 = vrot.slane %v875, 1
      %v2264 = vrot.slane %v893, 1
      %v2265 = vsel %vm1135, %v2263, %v2264
      %s2267 = scalar_lea.vmem %s5, 384
      %v2268 = vld [vmem:[%s2267] sm:$0xf]
      %v2269 = vld [vmem:[%s2267 + $0x4] sm:$0xf]
      %v2270 = vld [vmem:[%s2267 + $0x8] sm:$0xf]
      %v2271 = vld [vmem:[%s2267 + $0xc] sm:$0xf]
      %v2272 = vld [vmem:[%s2267 + $0x10] sm:$0xf]
      %v2273 = vld [vmem:[%s2267 + $0x14] sm:$0xf]
      %v2274 = vld [vmem:[%s2267 + $0x18] sm:$0xf]
      %v2275 = vld [vmem:[%s2267 + $0x1c] sm:$0xf]
      %v2276 = vld [vmem:[%s2267 + $0x20] sm:$0xf]
      %v2277 = vld [vmem:[%s2267 + $0x24] sm:$0xf]
      %v2278 = vld [vmem:[%s2267 + $0x28] sm:$0xf]
      %v2279 = vld [vmem:[%s2267 + $0x2c] sm:$0xf]
      %v2280 = vld [vmem:[%s2267 + $0x30] sm:$0xf]
      %v2281 = vld [vmem:[%s2267 + $0x34] sm:$0xf]
      %v2282 = vld [vmem:[%s2267 + $0x38] sm:$0xf]
      %v2283 = vld [vmem:[%s2267 + $0x3c] sm:$0xf]
      %v2284 = vld [vmem:[%s2267 + $0x40] sm:$0xf]
      %v2285 = vld [vmem:[%s2267 + $0x44] sm:$0xf]
      %v2286 = vld [vmem:[%s2267 + $0x48] sm:$0xf]
      %v2287 = vld [vmem:[%s2267 + $0x4c] sm:$0xf]
      %v2288 = vld [vmem:[%s2267 + $0x50] sm:$0xf]
      %v2289 = vld [vmem:[%s2267 + $0x54] sm:$0xf]
      %v2290 = vld [vmem:[%s2267 + $0x58] sm:$0xf]
      %v2291 = vld [vmem:[%s2267 + $0x5c] sm:$0xf]
      %v2292 = vld [vmem:[%s2267 + $0x60] sm:$0xf]
      %v2293 = vld [vmem:[%s2267 + $0x64] sm:$0xf]
      %v2294 = vld [vmem:[%s2267 + $0x68] sm:$0xf]
      %v2295 = vld [vmem:[%s2267 + $0x6c] sm:$0xf]
      %v2296 = vld [vmem:[%s2267 + $0x70] sm:$0xf]
      %v2297 = vld [vmem:[%s2267 + $0x74] sm:$0xf]
      %v2298 = vld [vmem:[%s2267 + $0x78] sm:$0xf]
      %v2299 = vld [vmem:[%s2267 + $0x7c] sm:$0xf]
      %v2300 = vld [vmem:[%s2267 + $0x80] sm:$0xf]
      %v2301 = vld [vmem:[%s2267 + $0x84] sm:$0xf]
      %v2302 = vld [vmem:[%s2267 + $0x88] sm:$0xf]
      %v2303 = vld [vmem:[%s2267 + $0x8c] sm:$0xf]
      %v2304 = vld [vmem:[%s2267 + $0x90] sm:$0xf]
      %v2305 = vld [vmem:[%s2267 + $0x94] sm:$0xf]
      %v2306 = vld [vmem:[%s2267 + $0x98] sm:$0xf]
      %v2307 = vld [vmem:[%s2267 + $0x9c] sm:$0xf]
      %v2308 = vld [vmem:[%s2267 + $0xa0] sm:$0xf]
      %v2309 = vld [vmem:[%s2267 + $0xa4] sm:$0xf]
      %v2310 = vld [vmem:[%s2267 + $0xa8] sm:$0xf]
      %v2311 = vld [vmem:[%s2267 + $0xac] sm:$0xf]
      %v2312 = vld [vmem:[%s2267 + $0xb0] sm:$0xf]
      %v2313 = vld [vmem:[%s2267 + $0xb4] sm:$0xf]
      %v2314 = vld [vmem:[%s2267 + $0xb8] sm:$0xf]
      %v2315 = vld [vmem:[%s2267 + $0xbc] sm:$0xf]
      %v2364 = vunpack.c.l.b16 %v2268
      %v2365 = vunpack.c.l.b16 %v2269
      %v2366 = vunpack.c.l.b16 %v2270
      %v2367 = vunpack.c.l.b16 %v2271
      %v2368 = vunpack.c.l.b16 %v2272
      %v2369 = vunpack.c.l.b16 %v2273
      %v2370 = vunpack.c.l.b16 %v2274
      %v2371 = vunpack.c.l.b16 %v2275
      %v2372 = vunpack.c.l.b16 %v2276
      %v2373 = vunpack.c.l.b16 %v2277
      %v2374 = vunpack.c.l.b16 %v2278
      %v2375 = vunpack.c.l.b16 %v2279
      %v2376 = vunpack.c.l.b16 %v2280
      %v2377 = vunpack.c.l.b16 %v2281
      %v2378 = vunpack.c.l.b16 %v2282
      %v2379 = vunpack.c.l.b16 %v2283
      %v2380 = vunpack.c.l.b16 %v2284
      %v2381 = vunpack.c.l.b16 %v2285
      %v2382 = vunpack.c.l.b16 %v2286
      %v2383 = vunpack.c.l.b16 %v2287
      %v2384 = vunpack.c.l.b16 %v2288
      %v2385 = vunpack.c.l.b16 %v2289
      %v2386 = vunpack.c.l.b16 %v2290
      %v2387 = vunpack.c.l.b16 %v2291
      %v2388 = vunpack.c.l.b16 %v2292
      %v2389 = vunpack.c.l.b16 %v2293
      %v2390 = vunpack.c.l.b16 %v2294
      %v2391 = vunpack.c.l.b16 %v2295
      %v2392 = vunpack.c.l.b16 %v2296
      %v2393 = vunpack.c.l.b16 %v2297
      %v2394 = vunpack.c.l.b16 %v2298
      %v2395 = vunpack.c.l.b16 %v2299
      %v2396 = vunpack.c.l.b16 %v2300
      %v2397 = vunpack.c.l.b16 %v2301
      %v2398 = vunpack.c.l.b16 %v2302
      %v2399 = vunpack.c.l.b16 %v2303
      %v2400 = vunpack.c.l.b16 %v2304
      %v2401 = vunpack.c.l.b16 %v2305
      %v2402 = vunpack.c.l.b16 %v2306
      %v2403 = vunpack.c.l.b16 %v2307
      %v2404 = vunpack.c.l.b16 %v2308
      %v2405 = vunpack.c.l.b16 %v2309
      %v2406 = vunpack.c.l.b16 %v2310
      %v2407 = vunpack.c.l.b16 %v2311
      %v2408 = vunpack.c.l.b16 %v2312
      %v2409 = vunpack.c.l.b16 %v2313
      %v2410 = vunpack.c.l.b16 %v2314
      %v2411 = vunpack.c.l.b16 %v2315
      %v2412 = vpack.c.b16 %v2365, %v2364
      %v2413 = vpack.c.b16 %v2367, %v2366
      %v2414 = vpack.c.b16 %v2369, %v2368
      %v2415 = vpack.c.b16 %v2371, %v2370
      %v2416 = vpack.c.b16 %v2373, %v2372
      %v2417 = vpack.c.b16 %v2375, %v2374
      %v2418 = vpack.c.b16 %v2377, %v2376
      %v2419 = vpack.c.b16 %v2379, %v2378
      %v2420 = vpack.c.b16 %v2381, %v2380
      %v2421 = vpack.c.b16 %v2383, %v2382
      %v2422 = vpack.c.b16 %v2385, %v2384
      %v2423 = vpack.c.b16 %v2387, %v2386
      %v2424 = vpack.c.b16 %v2389, %v2388
      %v2425 = vpack.c.b16 %v2391, %v2390
      %v2426 = vpack.c.b16 %v2393, %v2392
      %v2427 = vpack.c.b16 %v2395, %v2394
      %v2428 = vpack.c.b16 %v2397, %v2396
      %v2429 = vpack.c.b16 %v2399, %v2398
      %v2430 = vpack.c.b16 %v2401, %v2400
      %v2431 = vpack.c.b16 %v2403, %v2402
      %v2432 = vpack.c.b16 %v2405, %v2404
      %v2433 = vpack.c.b16 %v2407, %v2406
      %v2434 = vpack.c.b16 %v2409, %v2408
      %v2435 = vpack.c.b16 %v2411, %v2410
      %2460 = vmatprep.subr.bf16.mxu0 0
      %2461 = vmatpush1.bf16.msra.mxu0 %v2412
      %2462 = vmatprep.subr.bf16.mxu0 0
      %2463 = vmatpush1.bf16.msra.mxu0 %v2413
      %2464 = vmatprep.subr.bf16.mxu0 0
      %2465 = vmatpush1.bf16.msra.mxu0 %v2414
      %2466 = vmatprep.subr.bf16.mxu0 0
      %2467 = vmatpush1.bf16.msra.mxu0 %v2415
      %2468 = vmatprep.subr.bf16.mxu0 0
      %2469 = vmatpush1.bf16.msra.mxu0 %v2416
      %2470 = vmatprep.subr.bf16.mxu0 0
      %2471 = vmatpush1.bf16.msra.mxu0 %v2417
      %2472 = vmatprep.subr.bf16.mxu0 0
      %2473 = vmatpush1.bf16.msra.mxu0 %v2418
      %2474 = vmatprep.subr.bf16.mxu0 0
      %2475 = vmatpush1.bf16.msra.mxu0 %v2419
      %2476 = vmatprep.subr.bf16.mxu0 0
      %2477 = vmatpush1.bf16.msra.mxu0 %v2420
      %2478 = vmatprep.subr.bf16.mxu0 0
      %2479 = vmatpush1.bf16.msra.mxu0 %v2421
      %2480 = vmatprep.subr.bf16.mxu0 0
      %2481 = vmatpush1.bf16.msra.mxu0 %v2422
      %2482 = vmatprep.subr.bf16.mxu0 0
      %2483 = vmatpush1.bf16.msra.mxu0 %v2423
      %2484 = vmatprep.subr.bf16.mxu0 0
      %2485 = vmatpush1.bf16.msra.mxu0 %v2424
      %2486 = vmatprep.subr.bf16.mxu0 0
      %2487 = vmatpush1.bf16.msra.mxu0 %v2425
      %2488 = vmatprep.subr.bf16.mxu0 0
      %2489 = vmatpush1.bf16.msra.mxu0 %v2426
      %2490 = vmatprep.subr.bf16.mxu0 0
      %2491 = vmatpush1.bf16.msra.mxu0 %v2427
      %2492 = vmatprep.mubr.bf16.mxu0 %v930
      %2493 = vmatmul.mubr.bf16.gmra.mrb[0].mxu0 %v860
      %v2494 = vpop.f32.mrb[0].mxu0
      %v2495 = vadd.f32 0.0, %v2494
      %v2496 = vpop.f32.mrb[0].mxu0
      %v2497 = vpop.f32.mrb[0].mxu0
      %v2498 = vadd.f32 0.0, %v2497
      %v2499 = vpop.f32.mrb[0].mxu0
      %2500 = vmatprep.mubr.bf16.mxu0 %v942
      %2501 = vmatmul.mubr.bf16.gmra.mrb[0].mxu0 %v861
      %v2502 = vpop.f32.mrb[0].mxu0
      %v2503 = vadd.f32 0.0, %v2502
      %v2504 = vpop.f32.mrb[0].mxu0
      %v2505 = vpop.f32.mrb[0].mxu0
      %v2506 = vadd.f32 0.0, %v2505
      %v2507 = vpop.f32.mrb[0].mxu0
      %2508 = vmatprep.mubr.bf16.mxu0 %v954
      %2509 = vmatmul.mubr.bf16.gmra.mrb[0].mxu0 %v862
      %v2510 = vpop.f32.mrb[0].mxu0
      %v2511 = vadd.f32 0.0, %v2510
      %v2512 = vpop.f32.mrb[0].mxu0
      %v2513 = vpop.f32.mrb[0].mxu0
      %v2514 = vadd.f32 0.0, %v2513
      %v2515 = vpop.f32.mrb[0].mxu0
      %2516 = vmatprep.mubr.bf16.mxu0 %v966
      %2517 = vmatmul.mubr.bf16.gmra.mrb[0].mxu0 %v863
      %v2518 = vpop.f32.mrb[0].mxu0
      %v2519 = vadd.f32 0.0, %v2518
      %v2520 = vpop.f32.mrb[0].mxu0
      %v2521 = vpop.f32.mrb[0].mxu0
      %v2522 = vadd.f32 0.0, %v2521
      %v2523 = vpop.f32.mrb[0].mxu0
      %2524 = vmatprep.mubr.bf16.mxu0 %v978
      %2525 = vmatmul.mubr.bf16.gmra.mrb[0].mxu0 %v864
      %v2526 = vpop.f32.mrb[0].mxu0
      %v2527 = vadd.f32 0.0, %v2526
      %v2528 = vpop.f32.mrb[0].mxu0
      %v2529 = vpop.f32.mrb[0].mxu0
      %v2530 = vadd.f32 0.0, %v2529
      %v2531 = vpop.f32.mrb[0].mxu0
      %2532 = vmatprep.mubr.bf16.mxu0 %v990
      %2533 = vmatmul.mubr.bf16.gmra.mrb[0].mxu0 %v865
      %v2534 = vpop.f32.mrb[0].mxu0
      %v2535 = vadd.f32 0.0, %v2534
      %v2536 = vpop.f32.mrb[0].mxu0
      %v2537 = vpop.f32.mrb[0].mxu0
      %v2538 = vadd.f32 0.0, %v2537
      %v2539 = vpop.f32.mrb[0].mxu0
      %2540 = vmatprep.mubr.bf16.mxu0 %v1002
      %2541 = vmatmul.mubr.bf16.gmra.mrb[0].mxu0 %v866
      %v2542 = vpop.f32.mrb[0].mxu0
      %v2543 = vadd.f32 0.0, %v2542
      %v2544 = vpop.f32.mrb[0].mxu0
      %v2545 = vpop.f32.mrb[0].mxu0
      %v2546 = vadd.f32 0.0, %v2545
      %v2547 = vpop.f32.mrb[0].mxu0
      %2548 = vmatprep.mubr.bf16.mxu0 %v1014
      %2549 = vmatmul.mubr.bf16.gmra.mrb[0].mxu0 %v867
      %v2550 = vpop.f32.mrb[0].mxu0
      %v2551 = vadd.f32 0.0, %v2550
      %v2552 = vpop.f32.mrb[0].mxu0
      %v2553 = vpop.f32.mrb[0].mxu0
      %v2554 = vadd.f32 0.0, %v2553
      %v2555 = vpop.f32.mrb[0].mxu0
      %2556 = vmatprep.mubr.bf16.mxu0 %v1026
      %2557 = vmatmul.mubr.bf16.gmra.mrb[0].mxu0 %v868
      %v2558 = vpop.f32.mrb[0].mxu0
      %v2559 = vadd.f32 0.0, %v2558
      %v2560 = vpop.f32.mrb[0].mxu0
      %v2561 = vpop.f32.mrb[0].mxu0
      %v2562 = vadd.f32 0.0, %v2561
      %v2563 = vpop.f32.mrb[0].mxu0
      %2564 = vmatprep.mubr.bf16.mxu0 %v1038
      %2565 = vmatmul.mubr.bf16.gmra.mrb[0].mxu0 %v869
      %v2566 = vpop.f32.mrb[0].mxu0
      %v2567 = vadd.f32 0.0, %v2566
      %v2568 = vpop.f32.mrb[0].mxu0
      %v2569 = vpop.f32.mrb[0].mxu0
      %v2570 = vadd.f32 0.0, %v2569
      %v2571 = vpop.f32.mrb[0].mxu0
      %2572 = vmatprep.mubr.bf16.mxu0 %v1050
      %2573 = vmatmul.mubr.bf16.gmra.mrb[0].mxu0 %v870
      %v2574 = vpop.f32.mrb[0].mxu0
      %v2575 = vadd.f32 0.0, %v2574
      %v2576 = vpop.f32.mrb[0].mxu0
      %v2577 = vpop.f32.mrb[0].mxu0
      %v2578 = vadd.f32 0.0, %v2577
      %v2579 = vpop.f32.mrb[0].mxu0
      %2580 = vmatprep.mubr.bf16.mxu0 %v1062
      %2581 = vmatmul.mubr.bf16.gmra.mrb[0].mxu0 %v871
      %v2582 = vpop.f32.mrb[0].mxu0
      %v2583 = vadd.f32 0.0, %v2582
      %v2584 = vpop.f32.mrb[0].mxu0
      %v2585 = vpop.f32.mrb[0].mxu0
      %v2586 = vadd.f32 0.0, %v2585
      %v2587 = vpop.f32.mrb[0].mxu0
      %2588 = vmatprep.mubr.bf16.mxu0 %v1074
      %2589 = vmatmul.mubr.bf16.gmra.mrb[0].mxu0 %v872
      %v2590 = vpop.f32.mrb[0].mxu0
      %v2591 = vadd.f32 0.0, %v2590
      %v2592 = vpop.f32.mrb[0].mxu0
      %v2593 = vpop.f32.mrb[0].mxu0
      %v2594 = vadd.f32 0.0, %v2593
      %v2595 = vpop.f32.mrb[0].mxu0
      %2596 = vmatprep.mubr.bf16.mxu0 %v1086
      %2597 = vmatmul.mubr.bf16.gmra.mrb[0].mxu0 %v873
      %v2598 = vpop.f32.mrb[0].mxu0
      %v2599 = vadd.f32 0.0, %v2598
      %v2600 = vpop.f32.mrb[0].mxu0
      %v2601 = vpop.f32.mrb[0].mxu0
      %v2602 = vadd.f32 0.0, %v2601
      %v2603 = vpop.f32.mrb[0].mxu0
      %2604 = vmatprep.mubr.bf16.mxu0 %v1259
      %2605 = vmatmul.mubr.bf16.gmra.mrb[0].mxu0 %v874
      %v2606 = vpop.f32.mrb[0].mxu0
      %v2607 = vadd.f32 0.0, %v2606
      %v2608 = vpop.f32.mrb[0].mxu0
      %v2609 = vpop.f32.mrb[0].mxu0
      %v2610 = vadd.f32 0.0, %v2609
      %v2611 = vpop.f32.mrb[0].mxu0
      %2612 = vmatprep.mubr.bf16.mxu0 %v2259
      %2613 = vmatmul.mubr.bf16.gmra.mrb[0].mxu0 %v875
      %v2614 = vpop.f32.mrb[0].mxu0
      %v2615 = vadd.f32 0.0, %v2614
      %v2616 = vpop.f32.mrb[0].mxu0
      %v2617 = vpop.f32.mrb[0].mxu0
      %v2618 = vadd.f32 0.0, %v2617
      %v2619 = vpop.f32.mrb[0].mxu0
      %2620 = vdwg.mxu0
      %2621 = vmatprep.subr.bf16.mxu0 0
      %2622 = vmatpush1.bf16.msra.mxu0 %v2428
      %2623 = vmatprep.subr.bf16.mxu0 0
      %2624 = vmatpush1.bf16.msra.mxu0 %v2429
      %2625 = vmatprep.subr.bf16.mxu0 0
      %2626 = vmatpush1.bf16.msra.mxu0 %v2430
      %2627 = vmatprep.subr.bf16.mxu0 0
      %2628 = vmatpush1.bf16.msra.mxu0 %v2431
      %2629 = vmatprep.subr.bf16.mxu0 0
      %2630 = vmatpush1.bf16.msra.mxu0 %v2432
      %2631 = vmatprep.subr.bf16.mxu0 0
      %2632 = vmatpush1.bf16.msra.mxu0 %v2433
      %2633 = vmatprep.subr.bf16.mxu0 0
      %2634 = vmatpush1.bf16.msra.mxu0 %v2434
      %2635 = vmatprep.subr.bf16.mxu0 0
      %2636 = vmatpush1.bf16.msra.mxu0 %v2435
      %2637 = vmatprep.subr.bf16.mxu0 0
      %2638 = vmatpush1.bf16.msra.mxu0 0
      %2639 = vmatprep.subr.bf16.mxu0 0
      %2640 = vmatpush1.bf16.msra.mxu0 0
      %2641 = vmatprep.subr.bf16.mxu0 0
      %2642 = vmatpush1.bf16.msra.mxu0 0
      %2643 = vmatprep.subr.bf16.mxu0 0
      %2644 = vmatpush1.bf16.msra.mxu0 0
      %2645 = vmatprep.subr.bf16.mxu0 0
      %2646 = vmatpush1.bf16.msra.mxu0 0
      %2647 = vmatprep.subr.bf16.mxu0 0
      %2648 = vmatpush1.bf16.msra.mxu0 0
      %2649 = vmatprep.subr.bf16.mxu0 0
      %2650 = vmatpush1.bf16.msra.mxu0 0
      %2651 = vmatprep.subr.bf16.mxu0 0
      %2652 = vmatpush1.bf16.msra.mxu0 0
      %2653 = vmatprep.mubr.bf16.mxu0 0
      %2654 = vmatmul.mubr.bf16.gmra.mrb[0].mxu0 %v1144
      %v2655 = vpop.f32.mrb[0].mxu0
      %v2656 = vadd.f32 %v2495, %v2655
      %v2657 = vpop.f32.mrb[0].mxu0
      %v2658 = vpop.f32.mrb[0].mxu0
      %v2659 = vadd.f32 %v2498, %v2658
      %v2660 = vpop.f32.mrb[0].mxu0
      %2661 = vmatprep.mubr.bf16.mxu0 0
      %2662 = vmatmul.mubr.bf16.gmra.mrb[0].mxu0 %v1147
      %v2663 = vpop.f32.mrb[0].mxu0
      %v2664 = vadd.f32 %v2503, %v2663
      %v2665 = vpop.f32.mrb[0].mxu0
      %v2666 = vpop.f32.mrb[0].mxu0
      %v2667 = vadd.f32 %v2506, %v2666
      %v2668 = vpop.f32.mrb[0].mxu0
      %2669 = vmatprep.mubr.bf16.mxu0 0
      %2670 = vmatmul.mubr.bf16.gmra.mrb[0].mxu0 %v1150
      %v2671 = vpop.f32.mrb[0].mxu0
      %v2672 = vadd.f32 %v2511, %v2671
      %v2673 = vpop.f32.mrb[0].mxu0
      %v2674 = vpop.f32.mrb[0].mxu0
      %v2675 = vadd.f32 %v2514, %v2674
      %v2676 = vpop.f32.mrb[0].mxu0
      %2677 = vmatprep.mubr.bf16.mxu0 0
      %2678 = vmatmul.mubr.bf16.gmra.mrb[0].mxu0 %v1153
      %v2679 = vpop.f32.mrb[0].mxu0
      %v2680 = vadd.f32 %v2519, %v2679
      %v2681 = vpop.f32.mrb[0].mxu0
      %v2682 = vpop.f32.mrb[0].mxu0
      %v2683 = vadd.f32 %v2522, %v2682
      %v2684 = vpop.f32.mrb[0].mxu0
      %2685 = vmatprep.mubr.bf16.mxu0 0
      %2686 = vmatmul.mubr.bf16.gmra.mrb[0].mxu0 %v1156
      %v2687 = vpop.f32.mrb[0].mxu0
      %v2688 = vadd.f32 %v2527, %v2687
      %v2689 = vpop.f32.mrb[0].mxu0
      %v2690 = vpop.f32.mrb[0].mxu0
      %v2691 = vadd.f32 %v2530, %v2690
      %v2692 = vpop.f32.mrb[0].mxu0
      %2693 = vmatprep.mubr.bf16.mxu0 0
      %2694 = vmatmul.mubr.bf16.gmra.mrb[0].mxu0 %v1159
      %v2695 = vpop.f32.mrb[0].mxu0
      %v2696 = vadd.f32 %v2535, %v2695
      %v2697 = vpop.f32.mrb[0].mxu0
      %v2698 = vpop.f32.mrb[0].mxu0
      %v2699 = vadd.f32 %v2538, %v2698
      %v2700 = vpop.f32.mrb[0].mxu0
      %2701 = vmatprep.mubr.bf16.mxu0 0
      %2702 = vmatmul.mubr.bf16.gmra.mrb[0].mxu0 %v1162
      %v2703 = vpop.f32.mrb[0].mxu0
      %v2704 = vadd.f32 %v2543, %v2703
      %v2705 = vpop.f32.mrb[0].mxu0
      %v2706 = vpop.f32.mrb[0].mxu0
      %v2707 = vadd.f32 %v2546, %v2706
      %v2708 = vpop.f32.mrb[0].mxu0
      %2709 = vmatprep.mubr.bf16.mxu0 0
      %2710 = vmatmul.mubr.bf16.gmra.mrb[0].mxu0 %v1165
      %v2711 = vpop.f32.mrb[0].mxu0
      %v2712 = vadd.f32 %v2551, %v2711
      %v2713 = vpop.f32.mrb[0].mxu0
      %v2714 = vpop.f32.mrb[0].mxu0
      %v2715 = vadd.f32 %v2554, %v2714
      %v2716 = vpop.f32.mrb[0].mxu0
      %2717 = vmatprep.mubr.bf16.mxu0 0
      %2718 = vmatmul.mubr.bf16.gmra.mrb[0].mxu0 %v1168
      %v2719 = vpop.f32.mrb[0].mxu0
      %v2720 = vadd.f32 %v2559, %v2719
      %v2721 = vpop.f32.mrb[0].mxu0
      %v2722 = vpop.f32.mrb[0].mxu0
      %v2723 = vadd.f32 %v2562, %v2722
      %v2724 = vpop.f32.mrb[0].mxu0
      %2725 = vmatprep.mubr.bf16.mxu0 0
      %2726 = vmatmul.mubr.bf16.gmra.mrb[0].mxu0 %v1171
      %v2727 = vpop.f32.mrb[0].mxu0
      %v2728 = vadd.f32 %v2567, %v2727
      %v2729 = vpop.f32.mrb[0].mxu0
      %v2730 = vpop.f32.mrb[0].mxu0
      %v2731 = vadd.f32 %v2570, %v2730
      %v2732 = vpop.f32.mrb[0].mxu0
      %2733 = vmatprep.mubr.bf16.mxu0 0
      %2734 = vmatmul.mubr.bf16.gmra.mrb[0].mxu0 %v1174
      %v2735 = vpop.f32.mrb[0].mxu0
      %v2736 = vadd.f32 %v2575, %v2735
      %v2737 = vpop.f32.mrb[0].mxu0
      %v2738 = vpop.f32.mrb[0].mxu0
      %v2739 = vadd.f32 %v2578, %v2738
      %v2740 = vpop.f32.mrb[0].mxu0
      %2741 = vmatprep.mubr.bf16.mxu0 0
      %2742 = vmatmul.mubr.bf16.gmra.mrb[0].mxu0 %v1177
      %v2743 = vpop.f32.mrb[0].mxu0
      %v2744 = vadd.f32 %v2583, %v2743
      %v2745 = vpop.f32.mrb[0].mxu0
      %v2746 = vpop.f32.mrb[0].mxu0
      %v2747 = vadd.f32 %v2586, %v2746
      %v2748 = vpop.f32.mrb[0].mxu0
      %2749 = vmatprep.mubr.bf16.mxu0 0
      %2750 = vmatmul.mubr.bf16.gmra.mrb[0].mxu0 %v1180
      %v2751 = vpop.f32.mrb[0].mxu0
      %v2752 = vadd.f32 %v2591, %v2751
      %v2753 = vpop.f32.mrb[0].mxu0
      %v2754 = vpop.f32.mrb[0].mxu0
      %v2755 = vadd.f32 %v2594, %v2754
      %v2756 = vpop.f32.mrb[0].mxu0
      %2757 = vmatprep.mubr.bf16.mxu0 0
      %2758 = vmatmul.mubr.bf16.gmra.mrb[0].mxu0 %v1183
      %v2759 = vpop.f32.mrb[0].mxu0
      %v2760 = vadd.f32 %v2599, %v2759
      %v2761 = vpop.f32.mrb[0].mxu0
      %v2762 = vpop.f32.mrb[0].mxu0
      %v2763 = vadd.f32 %v2602, %v2762
      %v2764 = vpop.f32.mrb[0].mxu0
      %2765 = vmatprep.mubr.bf16.mxu0 0
      %2766 = vmatmul.mubr.bf16.gmra.mrb[0].mxu0 %v1265
      %v2767 = vpop.f32.mrb[0].mxu0
      %v2768 = vadd.f32 %v2607, %v2767
      %v2769 = vpop.f32.mrb[0].mxu0
      %v2770 = vpop.f32.mrb[0].mxu0
      %v2771 = vadd.f32 %v2610, %v2770
      %v2772 = vpop.f32.mrb[0].mxu0
      %2773 = vmatprep.mubr.bf16.mxu0 0
      %2774 = vmatmul.mubr.bf16.gmra.mrb[0].mxu0 %v2265
      %v2775 = vpop.f32.mrb[0].mxu0
      %v2776 = vadd.f32 %v2615, %v2775
      %v2777 = vpop.f32.mrb[0].mxu0
      %v2778 = vpop.f32.mrb[0].mxu0
      %v2779 = vadd.f32 %v2618, %v2778
      %v2780 = vpop.f32.mrb[0].mxu0
      %2781 = vdwg.mxu0
      %v2782 = vadd.f32 %v2122, %v2656
      %v2783 = vadd.f32 %v2125, %v2659
      %v2784 = vadd.f32 %v2130, %v2664
      %v2785 = vadd.f32 %v2133, %v2667
      %v2786 = vadd.f32 %v2138, %v2672
      %v2787 = vadd.f32 %v2141, %v2675
      %v2788 = vadd.f32 %v2146, %v2680
      %v2789 = vadd.f32 %v2149, %v2683
      %v2790 = vadd.f32 %v2154, %v2688
      %v2791 = vadd.f32 %v2157, %v2691
      %v2792 = vadd.f32 %v2162, %v2696
      %v2793 = vadd.f32 %v2165, %v2699
      %v2794 = vadd.f32 %v2170, %v2704
      %v2795 = vadd.f32 %v2173, %v2707
      %v2796 = vadd.f32 %v2178, %v2712
      %v2797 = vadd.f32 %v2181, %v2715
      %v2798 = vadd.f32 %v2186, %v2720
      %v2799 = vadd.f32 %v2189, %v2723
      %v2800 = vadd.f32 %v2194, %v2728
      %v2801 = vadd.f32 %v2197, %v2731
      %v2802 = vadd.f32 %v2202, %v2736
      %v2803 = vadd.f32 %v2205, %v2739
      %v2804 = vadd.f32 %v2210, %v2744
      %v2805 = vadd.f32 %v2213, %v2747
      %v2806 = vadd.f32 %v2218, %v2752
      %v2807 = vadd.f32 %v2221, %v2755
      %v2808 = vadd.f32 %v2226, %v2760
      %v2809 = vadd.f32 %v2229, %v2763
      %v2810 = vadd.f32 %v2234, %v2768
      %v2811 = vadd.f32 %v2237, %v2771
      %v2812 = vadd.f32 %v2242, %v2776
      %v2813 = vadd.f32 %v2245, %v2779
      %v2814 = vpack.c.bf16 %v2783, %v2782
      %v2815 = vpack.c.bf16 %v2785, %v2784
      %v2816 = vpack.c.bf16 %v2787, %v2786
      %v2817 = vpack.c.bf16 %v2789, %v2788
      %v2818 = vpack.c.bf16 %v2791, %v2790
      %v2819 = vpack.c.bf16 %v2793, %v2792
      %v2820 = vpack.c.bf16 %v2795, %v2794
      %v2821 = vpack.c.bf16 %v2797, %v2796
      %v2822 = vpack.c.bf16 %v2799, %v2798
      %v2823 = vpack.c.bf16 %v2801, %v2800
      %v2824 = vpack.c.bf16 %v2803, %v2802
      %v2825 = vpack.c.bf16 %v2805, %v2804
      %v2826 = vpack.c.bf16 %v2807, %v2806
      %v2827 = vpack.c.bf16 %v2809, %v2808
      %v2828 = vpack.c.bf16 %v2811, %v2810
      %v2829 = vpack.c.bf16 %v2813, %v2812
      %v2846 = vunpack.c.l.b16 %v2814
      %v2847 = vunpack.c.h.b16 %v2814
      %v2848 = vunpack.c.l.b16 %v2815
      %v2849 = vunpack.c.h.b16 %v2815
      %v2850 = vunpack.c.l.b16 %v2816
      %v2851 = vunpack.c.h.b16 %v2816
      %v2852 = vunpack.c.l.b16 %v2817
      %v2853 = vunpack.c.h.b16 %v2817
      %v2854 = vunpack.c.l.b16 %v2818
      %v2855 = vunpack.c.h.b16 %v2818
      %v2856 = vunpack.c.l.b16 %v2819
      %v2857 = vunpack.c.h.b16 %v2819
      %v2858 = vunpack.c.l.b16 %v2820
      %v2859 = vunpack.c.h.b16 %v2820
      %v2860 = vunpack.c.l.b16 %v2821
      %v2861 = vunpack.c.h.b16 %v2821
      %v2862 = vunpack.c.l.b16 %v2822
      %v2863 = vunpack.c.h.b16 %v2822
      %v2864 = vunpack.c.l.b16 %v2823
      %v2865 = vunpack.c.h.b16 %v2823
      %v2866 = vunpack.c.l.b16 %v2824
      %v2867 = vunpack.c.h.b16 %v2824
      %v2868 = vunpack.c.l.b16 %v2825
      %v2869 = vunpack.c.h.b16 %v2825
      %v2870 = vunpack.c.l.b16 %v2826
      %v2871 = vunpack.c.h.b16 %v2826
      %v2872 = vunpack.c.l.b16 %v2827
      %v2873 = vunpack.c.h.b16 %v2827
      %v2874 = vunpack.c.l.b16 %v2828
      %v2875 = vunpack.c.h.b16 %v2828
      %v2876 = vunpack.c.l.b16 %v2829
      %v2877 = vunpack.c.h.b16 %v2829
      %v2878 = vpack.c.b16 %v2846, %v2846
      %v2879 = vpack.c.b16 %v2847, %v2847
      %v2880 = vpack.c.b16 %v2848, %v2848
      %v2881 = vpack.c.b16 %v2849, %v2849
      %v2882 = vpack.c.b16 %v2850, %v2850
      %v2883 = vpack.c.b16 %v2851, %v2851
      %v2884 = vpack.c.b16 %v2852, %v2852
      %v2885 = vpack.c.b16 %v2853, %v2853
      %v2886 = vpack.c.b16 %v2854, %v2854
      %v2887 = vpack.c.b16 %v2855, %v2855
      %v2888 = vpack.c.b16 %v2856, %v2856
      %v2889 = vpack.c.b16 %v2857, %v2857
      %v2890 = vpack.c.b16 %v2858, %v2858
      %v2891 = vpack.c.b16 %v2859, %v2859
      %v2892 = vpack.c.b16 %v2860, %v2860
      %v2893 = vpack.c.b16 %v2861, %v2861
      %v2894 = vpack.c.b16 %v2862, %v2862
      %v2895 = vpack.c.b16 %v2863, %v2863
      %v2896 = vpack.c.b16 %v2864, %v2864
      %v2897 = vpack.c.b16 %v2865, %v2865
      %v2898 = vpack.c.b16 %v2866, %v2866
      %v2899 = vpack.c.b16 %v2867, %v2867
      %v2900 = vpack.c.b16 %v2868, %v2868
      %v2901 = vpack.c.b16 %v2869, %v2869
      %v2902 = vpack.c.b16 %v2870, %v2870
      %v2903 = vpack.c.b16 %v2871, %v2871
      %v2904 = vpack.c.b16 %v2872, %v2872
      %v2905 = vpack.c.b16 %v2873, %v2873
      %v2906 = vpack.c.b16 %v2874, %v2874
      %v2907 = vpack.c.b16 %v2875, %v2875
      %v2908 = vpack.c.b16 %v2876, %v2876
      %v2909 = vpack.c.b16 %v2877, %v2877
      %2942 = vst [vmem:[%s457] sm:$0xf] %v2878
      %2943 = vst [vmem:[%s457 + $0x4] sm:$0xf] %v2879
      %2944 = vst [vmem:[%s457 + $0x8] sm:$0xf] %v2880
      %2945 = vst [vmem:[%s457 + $0xc] sm:$0xf] %v2881
      %2946 = vst [vmem:[%s457 + $0x10] sm:$0xf] %v2882
      %2947 = vst [vmem:[%s457 + $0x14] sm:$0xf] %v2883
      %2948 = vst [vmem:[%s457 + $0x18] sm:$0xf] %v2884
      %2949 = vst [vmem:[%s457 + $0x1c] sm:$0xf] %v2885
      %2950 = vst [vmem:[%s457 + $0x20] sm:$0xf] %v2886
      %2951 = vst [vmem:[%s457 + $0x24] sm:$0xf] %v2887
      %2952 = vst [vmem:[%s457 + $0x28] sm:$0xf] %v2888
      %2953 = vst [vmem:[%s457 + $0x2c] sm:$0xf] %v2889
      %2954 = vst [vmem:[%s457 + $0x30] sm:$0xf] %v2890
      %2955 = vst [vmem:[%s457 + $0x34] sm:$0xf] %v2891
      %2956 = vst [vmem:[%s457 + $0x38] sm:$0xf] %v2892
      %2957 = vst [vmem:[%s457 + $0x3c] sm:$0xf] %v2893
      %2958 = vst [vmem:[%s457 + $0x40] sm:$0xf] %v2894
      %2959 = vst [vmem:[%s457 + $0x44] sm:$0xf] %v2895
      %2960 = vst [vmem:[%s457 + $0x48] sm:$0xf] %v2896
      %2961 = vst [vmem:[%s457 + $0x4c] sm:$0xf] %v2897
      %2962 = vst [vmem:[%s457 + $0x50] sm:$0xf] %v2898
      %2963 = vst [vmem:[%s457 + $0x54] sm:$0xf] %v2899
      %2964 = vst [vmem:[%s457 + $0x58] sm:$0xf] %v2900
      %2965 = vst [vmem:[%s457 + $0x5c] sm:$0xf] %v2901
      %2966 = vst [vmem:[%s457 + $0x60] sm:$0xf] %v2902
      %2967 = vst [vmem:[%s457 + $0x64] sm:$0xf] %v2903
      %2968 = vst [vmem:[%s457 + $0x68] sm:$0xf] %v2904
      %2969 = vst [vmem:[%s457 + $0x6c] sm:$0xf] %v2905
      %2970 = vst [vmem:[%s457 + $0x70] sm:$0xf] %v2906
      %2971 = vst [vmem:[%s457 + $0x74] sm:$0xf] %v2907
      %2972 = vst [vmem:[%s457 + $0x78] sm:$0xf] %v2908
      %2973 = vst [vmem:[%s457 + $0x7c] sm:$0xf] %v2909
      %2974 = vmatprep.subr.mxu0 0.0
      %2975 = vmatpush1.msra.mxu0 %v2782
      %2976 = vmatprep.subr.mxu0 0.0
      %2977 = vmatpush1.msra.mxu0 %v2783
      %2978 = vmatprep.subr.mxu0 0.0
      %2979 = vmatpush1.msra.mxu0 %v2784
      %2980 = vmatprep.subr.mxu0 0.0
      %2981 = vmatpush1.msra.mxu0 %v2785
      %2982 = vmatprep.subr.mxu0 0.0
      %2983 = vmatpush1.msra.mxu0 %v2786
      %2984 = vmatprep.subr.mxu0 0.0
      %2985 = vmatpush1.msra.mxu0 %v2787
      %2986 = vmatprep.subr.mxu0 0.0
      %2987 = vmatpush1.msra.mxu0 %v2788
      %2988 = vmatprep.subr.mxu0 0.0
      %2989 = vmatpush1.msra.mxu0 %v2789
      %2990 = vmatprep.subr.mxu0 0.0
      %2991 = vmatpush1.msra.mxu0 %v2790
      %2992 = vmatprep.subr.mxu0 0.0
      %2993 = vmatpush1.msra.mxu0 %v2791
      %2994 = vmatprep.subr.mxu0 0.0
      %2995 = vmatpush1.msra.mxu0 %v2792
      %2996 = vmatprep.subr.mxu0 0.0
      %2997 = vmatpush1.msra.mxu0 %v2793
      %2998 = vmatprep.subr.mxu0 0.0
      %2999 = vmatpush1.msra.mxu0 %v2794
      %3000 = vmatprep.subr.mxu0 0.0
      %3001 = vmatpush1.msra.mxu0 %v2795
      %3002 = vmatprep.subr.mxu0 0.0
      %3003 = vmatpush1.msra.mxu0 %v2796
      %3004 = vmatprep.subr.mxu0 0.0
      %3005 = vmatpush1.msra.mxu0 %v2797
      %3006 = vmatprep.subr.mxu0 0.0
      %3007 = vmatpush1.msra.mxu0 %v2798
      %3008 = vmatprep.subr.mxu0 0.0
      %3009 = vmatpush1.msra.mxu0 %v2799
      %3010 = vmatprep.subr.mxu0 0.0
      %3011 = vmatpush1.msra.mxu0 %v2800
      %3012 = vmatprep.subr.mxu0 0.0
      %3013 = vmatpush1.msra.mxu0 %v2801
      %3014 = vmatprep.subr.mxu0 0.0
      %3015 = vmatpush1.msra.mxu0 %v2802
      %3016 = vmatprep.subr.mxu0 0.0
      %3017 = vmatpush1.msra.mxu0 %v2803
      %3018 = vmatprep.subr.mxu0 0.0
      %3019 = vmatpush1.msra.mxu0 %v2804
      %3020 = vmatprep.subr.mxu0 0.0
      %3021 = vmatpush1.msra.mxu0 %v2805
      %3022 = vmatprep.subr.mxu0 0.0
      %3023 = vmatpush1.msra.mxu0 %v2806
      %3024 = vmatprep.subr.mxu0 0.0
      %3025 = vmatpush1.msra.mxu0 %v2807
      %3026 = vmatprep.subr.mxu0 0.0
      %3027 = vmatpush1.msra.mxu0 %v2808
      %3028 = vmatprep.subr.mxu0 0.0
      %3029 = vmatpush1.msra.mxu0 %v2809
      %3030 = vmatprep.subr.mxu0 0.0
      %3031 = vmatpush1.msra.mxu0 %v2810
      %3032 = vmatprep.subr.mxu0 0.0
      %3033 = vmatpush1.msra.mxu0 %v2811
      %3034 = vmatprep.subr.mxu0 0.0
      %3035 = vmatpush1.msra.mxu0 %v2812
      %3036 = vmatprep.subr.mxu0 0.0
      %3037 = vmatpush1.msra.mxu0 %v2813
      %3038 = vmatprep.mubr.f32.mxu0 1.0
      %3039 = vmatmul.mubr.f32.gmra.mrb[0].mxu0 1.0
      %v3040 = vpop.f32.mrb[0].mxu0
      %v3041 = vadd.f32 0.0, %v3040
      %v3042 = vpop.f32.mrb[0].mxu0
      %3043 = vdwg.mxu0
      %v3044 = vmul.f32 %v2782, %v2782
      %v3045 = vmul.f32 %v2783, %v2783
      %v3046 = vmul.f32 %v2784, %v2784
      %v3047 = vmul.f32 %v2785, %v2785
      %v3048 = vmul.f32 %v2786, %v2786
      %v3049 = vmul.f32 %v2787, %v2787
      %v3050 = vmul.f32 %v2788, %v2788
      %v3051 = vmul.f32 %v2789, %v2789
      %v3052 = vmul.f32 %v2790, %v2790
      %v3053 = vmul.f32 %v2791, %v2791
      %v3054 = vmul.f32 %v2792, %v2792
      %v3055 = vmul.f32 %v2793, %v2793
      %v3056 = vmul.f32 %v2794, %v2794
      %v3057 = vmul.f32 %v2795, %v2795
      %v3058 = vmul.f32 %v2796, %v2796
      %v3059 = vmul.f32 %v2797, %v2797
      %v3060 = vmul.f32 %v2798, %v2798
      %v3061 = vmul.f32 %v2799, %v2799
      %v3062 = vmul.f32 %v2800, %v2800
      %v3063 = vmul.f32 %v2801, %v2801
      %v3064 = vmul.f32 %v2802, %v2802
      %v3065 = vmul.f32 %v2803, %v2803
      %v3066 = vmul.f32 %v2804, %v2804
      %v3067 = vmul.f32 %v2805, %v2805
      %v3068 = vmul.f32 %v2806, %v2806
      %v3069 = vmul.f32 %v2807, %v2807
      %v3070 = vmul.f32 %v2808, %v2808
      %v3071 = vmul.f32 %v2809, %v2809
      %v3072 = vmul.f32 %v2810, %v2810
      %v3073 = vmul.f32 %v2811, %v2811
      %v3074 = vmul.f32 %v2812, %v2812
      %v3075 = vmul.f32 %v2813, %v2813
      %3076 = vmatprep.subr.mxu0 0.0
      %3077 = vmatpush1.msra.mxu0 %v3044
      %3078 = vmatprep.subr.mxu0 0.0
      %3079 = vmatpush1.msra.mxu0 %v3045
      %3080 = vmatprep.subr.mxu0 0.0
      %3081 = vmatpush1.msra.mxu0 %v3046
      %3082 = vmatprep.subr.mxu0 0.0
      %3083 = vmatpush1.msra.mxu0 %v3047
      %3084 = vmatprep.subr.mxu0 0.0
      %3085 = vmatpush1.msra.mxu0 %v3048
      %3086 = vmatprep.subr.mxu0 0.0
      %3087 = vmatpush1.msra.mxu0 %v3049
      %3088 = vmatprep.subr.mxu0 0.0
      %3089 = vmatpush1.msra.mxu0 %v3050
      %3090 = vmatprep.subr.mxu0 0.0
      %3091 = vmatpush1.msra.mxu0 %v3051
      %3092 = vmatprep.subr.mxu0 0.0
      %3093 = vmatpush1.msra.mxu0 %v3052
      %3094 = vmatprep.subr.mxu0 0.0
      %3095 = vmatpush1.msra.mxu0 %v3053
      %3096 = vmatprep.subr.mxu0 0.0
      %3097 = vmatpush1.msra.mxu0 %v3054
      %3098 = vmatprep.subr.mxu0 0.0
      %3099 = vmatpush1.msra.mxu0 %v3055
      %3100 = vmatprep.subr.mxu0 0.0
      %3101 = vmatpush1.msra.mxu0 %v3056
      %3102 = vmatprep.subr.mxu0 0.0
      %3103 = vmatpush1.msra.mxu0 %v3057
      %3104 = vmatprep.subr.mxu0 0.0
      %3105 = vmatpush1.msra.mxu0 %v3058
      %3106 = vmatprep.subr.mxu0 0.0
      %3107 = vmatpush1.msra.mxu0 %v3059
      %3108 = vmatprep.subr.mxu0 0.0
      %3109 = vmatpush1.msra.mxu0 %v3060
      %3110 = vmatprep.subr.mxu0 0.0
      %3111 = vmatpush1.msra.mxu0 %v3061
      %3112 = vmatprep.subr.mxu0 0.0
      %3113 = vmatpush1.msra.mxu0 %v3062
      %3114 = vmatprep.subr.mxu0 0.0
      %3115 = vmatpush1.msra.mxu0 %v3063
      %3116 = vmatprep.subr.mxu0 0.0
      %3117 = vmatpush1.msra.mxu0 %v3064
      %3118 = vmatprep.subr.mxu0 0.0
      %3119 = vmatpush1.msra.mxu0 %v3065
      %3120 = vmatprep.subr.mxu0 0.0
      %3121 = vmatpush1.msra.mxu0 %v3066
      %3122 = vmatprep.subr.mxu0 0.0
      %3123 = vmatpush1.msra.mxu0 %v3067
      %3124 = vmatprep.subr.mxu0 0.0
      %3125 = vmatpush1.msra.mxu0 %v3068
      %3126 = vmatprep.subr.mxu0 0.0
      %3127 = vmatpush1.msra.mxu0 %v3069
      %3128 = vmatprep.subr.mxu0 0.0
      %3129 = vmatpush1.msra.mxu0 %v3070
      %3130 = vmatprep.subr.mxu0 0.0
      %3131 = vmatpush1.msra.mxu0 %v3071
      %3132 = vmatprep.subr.mxu0 0.0
      %3133 = vmatpush1.msra.mxu0 %v3072
      %3134 = vmatprep.subr.mxu0 0.0
      %3135 = vmatpush1.msra.mxu0 %v3073
      %3136 = vmatprep.subr.mxu0 0.0
      %3137 = vmatpush1.msra.mxu0 %v3074
      %3138 = vmatprep.subr.mxu0 0.0
      %3139 = vmatpush1.msra.mxu0 %v3075
      %3140 = vmatprep.mubr.f32.mxu0 1.0
      %3141 = vmatmul.mubr.f32.gmra.mrb[0].mxu0 1.0
      %v3142 = vpop.f32.mrb[0].mxu0
      %v3143 = vadd.f32 0.0, %v3142
      %v3144 = vpop.f32.mrb[0].mxu0
      %3145 = vdwg.mxu0
      %v3147 = vrot.slane %v3143, 7
      %vm3149 = vcmask 1040384
      %v3150 = vsel %vm3149, %v3041, %v3147
      %3151 = vst [vmem:[%s465] sm:$0x3] %v3150
      %s3152 = smul.u32 16, %s24
      %p3153 = scmp.lt.s32.totalorder %s23, 1
      %s3154 = scalar_select %p3153, %s23, 1
      %p3155 = scmp.lt.s32.totalorder %s3152, 15
      %s3156 = scalar_select %p3155, %s3152, 15
      %s3157 = smul.addr %s3156, 2
      %s3158 = smul.addr %s3154, 32
      %s3159 = sadd.s32 %s3157, %s3158
      %s3160 = smul.addr %s3159, 4
      %s3161 = scalar_lea.vmem %s6, %s3160
      %p3162 = scmp.lt.s32.totalorder %s23, 1
      %s3163 = scalar_select %p3162, %s23, 1
      %p3164 = scmp.lt.s32.totalorder %s24, 0
      %s3165 = scalar_select %p3164, %s24, 0
      %s3166 = sadd.s32 %s3165, %s3163
      %s3167 = smul.addr %s3166, 2
      %s3168 = scalar_lea.vmem %s7, %s3167
      // Predicated region
      $region45: #{double_conv.4} parent=43 // pred_check
        %p3169 = pneg %p214
      $region46: #{double_conv.4} parent=43 // pred_check_branch
        %3171 = sbr.rel (%p3169) target = $region48
      $region47: #{double_conv.4} parent=43 // pred_region
        %s3172 = smul.u32 16, %s24
      $region48: #{double_conv.4} parent=43 // pred_fallthru
        _
      // Predicated region
      $region49: #{double_conv.4} parent=43 // pred_check
        %p3173 = pneg %p242
      $region50: #{double_conv.4} parent=43 // pred_check_branch
        %3175 = sbr.rel (%p3173) target = $region52
      $region51: #{double_conv.4} parent=43 // pred_region
        _
      $region52: #{double_conv.4} parent=43 // pred_fallthru
        _
    $region44: #{double_conv.4} parent=5 // pred_fallthru
      _
    %p3176 = scmp.le.s32.totalorder 2, %s14
    // Predicated region
    $region53: #{double_conv.4} parent=5 // pred_check
      %p3177 = pneg %p3176
    $region54: #{double_conv.4} parent=5 // pred_check_branch
      %3179 = sbr.rel (%p3177) target = $region56
    $region55: #{double_conv.4} parent=5 // pred_region
      %s3180 = ssub.s32 %s14, 2
      // Predicated region
      $region57: #{double_conv.4} parent=55 // pred_check
        %p3181 = pneg %p220
      $region58: #{double_conv.4} parent=55 // pred_check_branch
        %3183 = sbr.rel (%p3181) target = $region60
      $region59: #{double_conv.4} parent=55 // pred_region
        %s3184 = smul.u32 16, %s26
        %p3185 = scmp.lt.s32.totalorder %s25, 1
        %s3186 = scalar_select %p3185, %s25, 1
        %p3187 = scmp.lt.s32.totalorder %s3184, 15
        %s3188 = scalar_select %p3187, %s3184, 15
        %s3189 = smul.addr %s3188, 2
        %s3190 = smul.addr %s3186, 32
        %s3191 = sadd.s32 %s3189, %s3190
        %s3192 = smul.addr %s3191, 4
        %s3193 = scalar_lea.vmem %s6, %s3192
      $region60: #{double_conv.4} parent=55 // pred_fallthru
        _
      // Predicated region
      $region61: #{double_conv.4} parent=55 // pred_check
        %p3194 = pneg %p248
      $region62: #{double_conv.4} parent=55 // pred_check_branch
        %3196 = sbr.rel (%p3194) target = $region64
      $region63: #{double_conv.4} parent=55 // pred_region
        %p3197 = scmp.lt.s32.totalorder %s25, 1
        %s3198 = scalar_select %p3197, %s25, 1
        %p3199 = scmp.lt.s32.totalorder %s26, 0
        %s3200 = scalar_select %p3199, %s26, 0
        %s3201 = sadd.s32 %s3200, %s3198
        %s3202 = smul.addr %s3201, 2
        %s3203 = scalar_lea.vmem %s7, %s3202
      $region64: #{double_conv.4} parent=55 // pred_fallthru
        _
    $region56: #{double_conv.4} parent=5 // pred_fallthru
      _
  $region6: #{double_conv.4} parent=0 // loop_footer
    %s18 = sadd.s32 1, %s14
  $region7: #{double_conv.4} parent=0 // loop_footer_branch
    %13 = sbr.rel target = $region3
  $region8: #{double_conv.4} parent=0 // loop_exit
    _

</llo_original>
